<compile_context>
chip_gen: v7x
topology: tpu7x:2x2x1
jax: 0.10.0
libtpu: 0.0.40
codegen_flags: <defaults>
</compile_context>

<pallas_src>
import functools
import math

import jax
import jax.numpy as jnp
import numpy as np
from jax.experimental import pallas as pl
from jax.experimental.pallas import tpu as pltpu


# ----------------------------- in-kernel helpers ------------------------------------

def _layer_norm(x, g, b, eps=1e-5):
    mu = jnp.mean(x, axis=-1, keepdims=True)
    var = jnp.mean(jnp.square(x - mu), axis=-1, keepdims=True)
    return (x - mu) * jax.lax.rsqrt(var + eps) * g + b


def _mha(xq, xkv, wqkv, bqkv, wo, bo, num_heads, self_attn):
    """Multi-head attention on one [S, E] sequence (batch lives on the grid). fp32.

    wqkv: [E, 3E], bqkv: [1, 3E], wo: [E, E], bo: [1, E].
    """
    S, E = xq.shape
    dh = E // num_heads
    scale = 1.0 / math.sqrt(dh)

    if self_attn:
        qkv = jnp.dot(xq, wqkv, preferred_element_type=jnp.float32) + bqkv
        q = qkv[:, :E] * scale                     # fold 1/sqrt(dh) into Q once
        k = qkv[:, E:2 * E]
        v = qkv[:, 2 * E:]
    else:
        q = (jnp.dot(xq, wqkv[:, :E], preferred_element_type=jnp.float32)
             + bqkv[:, :E]) * scale                # queries from tgt
        kv = jnp.dot(xkv, wqkv[:, E:], preferred_element_type=jnp.float32) + bqkv[:, E:]
        k = kv[:, :E]
        v = kv[:, E:]

    out = jnp.zeros((S, E), jnp.float32)
    for h in range(num_heads):                     # static unroll; tiny S, dh
        sl = slice(h * dh, (h + 1) * dh)
        s = jnp.einsum('qd,kd->qk', q[:, sl], k[:, sl],
                       preferred_element_type=jnp.float32)
        s = s - jnp.max(s, axis=-1, keepdims=True)
        p = jnp.exp(s)
        p = p / jnp.sum(p, axis=-1, keepdims=True)
        ctx = jnp.dot(p, v[:, sl], preferred_element_type=jnp.float32)       # [S, dh]
        # accumulate the output projection per head -> no lane concat needed
        out = out + jnp.dot(ctx, wo[sl, :], preferred_element_type=jnp.float32)
    return out + bo


# ----------------------------- fused decoder + head kernel --------------------------

def _fusion_decoder_kernel(num_heads,
                           s1_ref, s2_ref, gt_ref,
                           wqkv_ref, bqkv_ref, wo_ref, bo_ref,
                           w1_ref, b1_ref, w2_ref, b2_ref,
                           lng_ref, lnb_ref, wp_ref, bp_ref,
                           probs_ref):
    num_layers = wqkv_ref.shape[0]

    # Fuse the three encoder streams in-kernel (saves a wrapper op + HBM round trip).
    x = s1_ref[...] + s2_ref[...] + gt_ref[...]                      # [S, E] fp32

    for l in range(num_layers):        # static unroll; all layer weights VMEM-resident
        lng = lng_ref[l]                                             # [3, E]
        lnb = lnb_ref[l]

        # self-attention + residual + LN
        sa = _mha(x, x, wqkv_ref[l, 0], bqkv_ref[l, 0], wo_ref[l, 0], bo_ref[l, 0],
                  num_heads, self_attn=True)
        x1 = _layer_norm(x + sa, lng[0:1], lnb[0:1])

        # cross-attention; memory == layer input (forward calls layer(fused, fused))
        ca = _mha(x1, x, wqkv_ref[l, 1], bqkv_ref[l, 1], wo_ref[l, 1], bo_ref[l, 1],
                  num_heads, self_attn=False)
        x2 = _layer_norm(x1 + ca, lng[1:2], lnb[1:2])

        # position-wise feed-forward + residual + LN
        h = jnp.maximum(
            jnp.dot(x2, w1_ref[l], preferred_element_type=jnp.float32) + b1_ref[l], 0.0)
        ff = jnp.dot(h, w2_ref[l], preferred_element_type=jnp.float32) + b2_ref[l]
        x = _layer_norm(x2 + ff, lng[2:3], lnb[2:3])

    # prediction head (Linear + softmax); exact normalization
    logits = jnp.dot(x, wp_ref[...], preferred_element_type=jnp.float32) + bp_ref[...]
    logits = logits - jnp.max(logits, axis=-1, keepdims=True)
    e = jnp.exp(logits)
    probs_ref[0] = e / jnp.sum(e, axis=-1, keepdims=True)


def _vmem_limit_bytes(S, E, F, V, L):
    """Scoped-VMEM request from the real (8,128)-padded working set (v7x: 64 MiB phys)."""
    def padded(shape, itemsize=4):
        sub = -(-shape[-2] // 8) * 8
        lane = -(-shape[-1] // 128) * 128
        lead = 1
        for d in shape[:-2]:
            lead *= d
        return lead * sub * lane * itemsize

    blocks = [
        (S, E), (S, E), (S, E),                          # s1 / s2 / gt input blocks
        (L, 2, E, 3 * E), (L, 2, 1, 3 * E),              # QKV weights / biases
        (L, 2, E, E), (L, 2, 1, E),                      # out-proj weights / biases
        (L, E, F), (L, 1, F), (L, F, E), (L, 1, E),      # FFN
        (L, 3, E), (L, 3, E),                            # LN gammas / betas
        (E, V), (1, V),                                  # head
        (S, V),                                          # output block
    ]
    working = sum(padded(s) for s in blocks)
    # 2x double-buffering + 2x headroom for compiler scratch/spills; floor 4 MiB,
    # cap 32 MiB (well under every generation's physical VMEM).
    return int(min(32 * 1024 * 1024, max(4 * 1024 * 1024, 4 * working)))


def sensor_fusion_decoder(sensor1, sensor2, ground_truth, params, num_heads):
    B, S, E = sensor1.shape
    L = params['wqkv'].shape[0]
    F = params['w1'].shape[-1]
    V = params['wp'].shape[-1]

    sq = pl.Squeezed()

    def full(nd):                       # whole-array resident block (constant index map)
        return lambda b: (0,) * nd

    in_specs = [
        pl.BlockSpec((sq, S, E), lambda b: (b, 0, 0)),          # sensor1
        pl.BlockSpec((sq, S, E), lambda b: (b, 0, 0)),          # sensor2
        pl.BlockSpec((sq, S, E), lambda b: (b, 0, 0)),          # ground truth
        pl.BlockSpec((L, 2, E, 3 * E), full(4)),                # QKV weights   (resident)
        pl.BlockSpec((L, 2, 1, 3 * E), full(4)),                # QKV biases    (resident)
        pl.BlockSpec((L, 2, E, E), full(4)),                    # out-proj W    (resident)
        pl.BlockSpec((L, 2, 1, E), full(4)),                    # out-proj b    (resident)
        pl.BlockSpec((L, E, F), full(3)),                       # FFN W1        (resident)
        pl.BlockSpec((L, 1, F), full(3)),                       # FFN b1        (resident)
        pl.BlockSpec((L, F, E), full(3)),                       # FFN W2        (resident)
        pl.BlockSpec((L, 1, E), full(3)),                       # FFN b2        (resident)
        pl.BlockSpec((L, 3, E), full(3)),                       # LN gammas     (resident)
        pl.BlockSpec((L, 3, E), full(3)),                       # LN betas      (resident)
        pl.BlockSpec((E, V), full(2)),                          # head W        (resident)
        pl.BlockSpec((1, V), full(2)),                          # head b        (resident)
    ]

    return pl.pallas_call(
        functools.partial(_fusion_decoder_kernel, num_heads),
        out_shape=jax.ShapeDtypeStruct((B, S, V), jnp.float32),
        grid=(B,),
        in_specs=in_specs,
        out_specs=pl.BlockSpec((1, S, V), lambda b: (b, 0, 0)),
        compiler_params=pltpu.CompilerParams(
            dimension_semantics=("parallel",),                  # v7x: split batch over TCs
            vmem_limit_bytes=_vmem_limit_bytes(S, E, F, V, L),
        ),
    )(sensor1, sensor2, ground_truth,
      params['wqkv'], params['bqkv'], params['wo'], params['bo'],
      params['w1'], params['b1'], params['w2'], params['b2'],
      params['lng'], params['lnb'], params['wp'], params['bp'])


# ----------------------------- params & pure-JAX fp32 reference ---------------------

def init_params(key, num_layers, E, F, V):
    ks = jax.random.split(key, 10)
    s = 0.02
    return {
        'wqkv': s * jax.random.normal(ks[0], (num_layers, 2, E, 3 * E), jnp.float32),
        'bqkv': s * jax.random.normal(ks[1], (num_layers, 2, 1, 3 * E), jnp.float32),
        'wo':   s * jax.random.normal(ks[2], (num_layers, 2, E, E),     jnp.float32),
        'bo':   s * jax.random.normal(ks[3], (num_layers, 2, 1, E),     jnp.float32),
        'w1':   s * jax.random.normal(ks[4], (num_layers, E, F),        jnp.float32),
        'b1':   s * jax.random.normal(ks[5], (num_layers, 1, F),        jnp.float32),
        'w2':   s * jax.random.normal(ks[6], (num_layers, F, E),        jnp.float32),
        'b2':   s * jax.random.normal(ks[7], (num_layers, 1, E),        jnp.float32),
        'lng':  jnp.ones((num_layers, 3, E), jnp.float32),
        'lnb':  jnp.zeros((num_layers, 3, E), jnp.float32),
        'wp':   s * jax.random.normal(ks[8], (E, V),                    jnp.float32),
        'bp':   s * jax.random.normal(ks[9], (1, V),                    jnp.float32),
    }


def reference_forward(s1, s2, gt, params, num_heads):
    x = s1 + s2 + gt
    B, S, E = x.shape
    H = num_heads
    dh = E // H
    L = params['wqkv'].shape[0]

    def mha(xq, xkv, w_qkv, b_qkv, w_o, b_o):
        b_qkv = b_qkv[0]
        q = xq @ w_qkv[:, :E] + b_qkv[:E]
        k = xkv @ w_qkv[:, E:2 * E] + b_qkv[E:2 * E]
        v = xkv @ w_qkv[:, 2 * E:] + b_qkv[2 * E:]
        qh, kh, vh = (t.reshape(B, S, H, dh) for t in (q, k, v))
        sc = jnp.einsum('bqhd,bkhd->bhqk', qh, kh) / math.sqrt(dh)
        p = jax.nn.softmax(sc, axis=-1)
        ctx = jnp.einsum('bhqk,bkhd->bqhd', p, vh).reshape(B, S, E)
        return ctx @ w_o + b_o[0]

    def ln(y, g, b, eps=1e-5):
        mu = y.mean(-1, keepdims=True)
        var = ((y - mu) ** 2).mean(-1, keepdims=True)
        return (y - mu) / jnp.sqrt(var + eps) * g + b

    for l in range(L):
        sa = mha(x, x, params['wqkv'][l, 0], params['bqkv'][l, 0],
                 params['wo'][l, 0], params['bo'][l, 0])
        x1 = ln(x + sa, params['lng'][l, 0], params['lnb'][l, 0])
        ca = mha(x1, x, params['wqkv'][l, 1], params['bqkv'][l, 1],
                 params['wo'][l, 1], params['bo'][l, 1])
        x2 = ln(x1 + ca, params['lng'][l, 1], params['lnb'][l, 1])
        h = jax.nn.relu(x2 @ params['w1'][l] + params['b1'][l])
        ff = h @ params['w2'][l] + params['b2'][l]
        x = ln(x2 + ff, params['lng'][l, 2], params['lnb'][l, 2])
    logits = x @ params['wp'] + params['bp'][0]
    return jax.nn.softmax(logits, axis=-1)


# ----------------------------- main --------------------------------------------------

if __name__ == "__main__":
    num_layers, embed_dim, num_heads, ffn_dim, vocab = 2, 32, 4, 64, 64
    B, S = 2, 8

    key = jax.random.PRNGKey(0)
    k1, k2, k3, kp = jax.random.split(key, 4)
    sensor1 = jax.random.normal(k1, (B, S, embed_dim), jnp.float32)
    sensor2 = jax.random.normal(k2, (B, S, embed_dim), jnp.float32)
    ground_truth = jax.random.normal(k3, (B, S, embed_dim), jnp.float32)
    params = init_params(kp, num_layers, embed_dim, ffn_dim, vocab)

    preds = sensor_fusion_decoder(sensor1, sensor2, ground_truth, params, num_heads)
    preds = jax.block_until_ready(preds)

    ref = reference_forward(sensor1, sensor2, ground_truth, params, num_heads)
    np.testing.assert_allclose(np.asarray(preds), np.asarray(ref), rtol=2e-2, atol=2e-3)
    print("KERNEL_OK")
</pallas_src>

<mosaic_0001>
module attributes {stable_mosaic.version = 11 : i64} {
  func.func @_fusion_decoder_kernel(%arg0: i32, %arg1: memref<1x8x32xf32, #tpu.memory_space<vmem>>, %arg2: memref<1x8x32xf32, #tpu.memory_space<vmem>>, %arg3: memref<1x8x32xf32, #tpu.memory_space<vmem>>, %arg4: memref<2x2x32x96xf32, #tpu.memory_space<vmem>>, %arg5: memref<2x2x1x96xf32, #tpu.memory_space<vmem>>, %arg6: memref<2x2x32x32xf32, #tpu.memory_space<vmem>>, %arg7: memref<2x2x1x32xf32, #tpu.memory_space<vmem>>, %arg8: memref<2x32x64xf32, #tpu.memory_space<vmem>>, %arg9: memref<2x1x64xf32, #tpu.memory_space<vmem>>, %arg10: memref<2x64x32xf32, #tpu.memory_space<vmem>>, %arg11: memref<2x1x32xf32, #tpu.memory_space<vmem>>, %arg12: memref<2x3x32xf32, #tpu.memory_space<vmem>>, %arg13: memref<2x3x32xf32, #tpu.memory_space<vmem>>, %arg14: memref<32x64xf32, #tpu.memory_space<vmem>>, %arg15: memref<1x64xf32, #tpu.memory_space<vmem>>, %arg16: memref<1x8x64xf32, #tpu.memory_space<vmem>>) attributes {dimension_semantics = [#tpu.dimension_semantics<parallel>], iteration_bounds = array<i64: 2>, scalar_prefetch = 0 : i64, scratch_operands = 0 : i64, tpu.core_type = #tpu.core_type<tc>, window_params = [{transform_indices = @transform_0, window_bounds = array<i64: 1, 8, 32>}, {transform_indices = @transform_1, window_bounds = array<i64: 1, 8, 32>}, {transform_indices = @transform_2, window_bounds = array<i64: 1, 8, 32>}, {pipeline_mode = #tpu.pipeline_mode<synchronous>, transform_indices = @transform_3, window_bounds = array<i64: 2, 2, 32, 96>}, {pipeline_mode = #tpu.pipeline_mode<synchronous>, transform_indices = @transform_4, window_bounds = array<i64: 2, 2, 1, 96>}, {pipeline_mode = #tpu.pipeline_mode<synchronous>, transform_indices = @transform_5, window_bounds = array<i64: 2, 2, 32, 32>}, {pipeline_mode = #tpu.pipeline_mode<synchronous>, transform_indices = @transform_6, window_bounds = array<i64: 2, 2, 1, 32>}, {pipeline_mode = #tpu.pipeline_mode<synchronous>, transform_indices = @transform_7, window_bounds = array<i64: 2, 32, 64>}, {pipeline_mode = #tpu.pipeline_mode<synchronous>, transform_indices = @transform_8, window_bounds = array<i64: 2, 1, 64>}, {pipeline_mode = #tpu.pipeline_mode<synchronous>, transform_indices = @transform_9, window_bounds = array<i64: 2, 64, 32>}, {pipeline_mode = #tpu.pipeline_mode<synchronous>, transform_indices = @transform_10, window_bounds = array<i64: 2, 1, 32>}, {pipeline_mode = #tpu.pipeline_mode<synchronous>, transform_indices = @transform_11, window_bounds = array<i64: 2, 3, 32>}, {pipeline_mode = #tpu.pipeline_mode<synchronous>, transform_indices = @transform_12, window_bounds = array<i64: 2, 3, 32>}, {pipeline_mode = #tpu.pipeline_mode<synchronous>, transform_indices = @transform_13, window_bounds = array<i64: 32, 64>}, {pipeline_mode = #tpu.pipeline_mode<synchronous>, transform_indices = @transform_14, window_bounds = array<i64: 1, 64>}, {transform_indices = @transform_15, window_bounds = array<i64: 1, 8, 64>}]} {
    %c0 = arith.constant 0 : index
    %c0_0 = arith.constant 0 : index
    %c0_1 = arith.constant 0 : index
    %0 = vector.load %arg1[%c0, %c0_0, %c0_1] : memref<1x8x32xf32, #tpu.memory_space<vmem>>, vector<1x8x32xf32>
    %1 = vector.shape_cast %0 : vector<1x8x32xf32> to vector<8x32xf32>
    %c0_2 = arith.constant 0 : index
    %c0_3 = arith.constant 0 : index
    %c0_4 = arith.constant 0 : index
    %2 = vector.load %arg2[%c0_2, %c0_3, %c0_4] : memref<1x8x32xf32, #tpu.memory_space<vmem>>, vector<1x8x32xf32>
    %3 = vector.shape_cast %2 : vector<1x8x32xf32> to vector<8x32xf32>
    %4 = arith.addf %1, %3 : vector<8x32xf32>
    %c0_5 = arith.constant 0 : index
    %c0_6 = arith.constant 0 : index
    %c0_7 = arith.constant 0 : index
    %5 = vector.load %arg3[%c0_5, %c0_6, %c0_7] : memref<1x8x32xf32, #tpu.memory_space<vmem>>, vector<1x8x32xf32>
    %6 = vector.shape_cast %5 : vector<1x8x32xf32> to vector<8x32xf32>
    %7 = arith.addf %4, %6 : vector<8x32xf32>
    %c0_8 = arith.constant 0 : index
    %c0_9 = arith.constant 0 : index
    %c0_10 = arith.constant 0 : index
    %8 = vector.load %arg12[%c0_8, %c0_9, %c0_10] : memref<2x3x32xf32, #tpu.memory_space<vmem>>, vector<1x3x32xf32>
    %9 = vector.shape_cast %8 : vector<1x3x32xf32> to vector<3x32xf32>
    %c0_11 = arith.constant 0 : index
    %c0_12 = arith.constant 0 : index
    %c0_13 = arith.constant 0 : index
    %10 = vector.load %arg13[%c0_11, %c0_12, %c0_13] : memref<2x3x32xf32, #tpu.memory_space<vmem>>, vector<1x3x32xf32>
    %11 = vector.shape_cast %10 : vector<1x3x32xf32> to vector<3x32xf32>
    %c0_14 = arith.constant 0 : index
    %c0_15 = arith.constant 0 : index
    %c0_16 = arith.constant 0 : index
    %c0_17 = arith.constant 0 : index
    %12 = vector.load %arg4[%c0_14, %c0_15, %c0_16, %c0_17] : memref<2x2x32x96xf32, #tpu.memory_space<vmem>>, vector<1x1x32x96xf32>
    %13 = vector.shape_cast %12 : vector<1x1x32x96xf32> to vector<32x96xf32>
    %c0_18 = arith.constant 0 : index
    %c0_19 = arith.constant 0 : index
    %c0_20 = arith.constant 0 : index
    %c0_21 = arith.constant 0 : index
    %14 = vector.load %arg5[%c0_18, %c0_19, %c0_20, %c0_21] : memref<2x2x1x96xf32, #tpu.memory_space<vmem>>, vector<1x1x1x96xf32>
    %15 = vector.shape_cast %14 : vector<1x1x1x96xf32> to vector<1x96xf32>
    %c0_22 = arith.constant 0 : index
    %c0_23 = arith.constant 0 : index
    %c0_24 = arith.constant 0 : index
    %c0_25 = arith.constant 0 : index
    %16 = vector.load %arg6[%c0_22, %c0_23, %c0_24, %c0_25] : memref<2x2x32x32xf32, #tpu.memory_space<vmem>>, vector<1x1x32x32xf32>
    %17 = vector.shape_cast %16 : vector<1x1x32x32xf32> to vector<32x32xf32>
    %c0_26 = arith.constant 0 : index
    %c0_27 = arith.constant 0 : index
    %c0_28 = arith.constant 0 : index
    %c0_29 = arith.constant 0 : index
    %18 = vector.load %arg7[%c0_26, %c0_27, %c0_28, %c0_29] : memref<2x2x1x32xf32, #tpu.memory_space<vmem>>, vector<1x1x1x32xf32>
    %19 = vector.shape_cast %18 : vector<1x1x1x32xf32> to vector<1x32xf32>
    %cst = arith.constant dense<0.000000e+00> : vector<8x96xf32>
    %20 = tpu.matmul %7, %13, %cst {dimension_numbers = #tpu.dot_dimension_numbers<[1], [0], [0], [1], [0, 0, 1, 1], [], []>} : vector<8x32xf32>, vector<32x96xf32>, vector<8x96xf32> -> vector<8x96xf32>
    %21 = vector.broadcast %15 : vector<1x96xf32> to vector<8x96xf32>
    %22 = arith.addf %20, %21 : vector<8x96xf32>
    %23 = vector.extract_strided_slice %22 {offsets = [0, 0], sizes = [8, 32], strides = [1, 1]} : vector<8x96xf32> to vector<8x32xf32>
    %cst_30 = arith.constant 0.353553385 : f32
    %24 = vector.broadcast %cst_30 : f32 to vector<8x32xf32>
    %25 = arith.mulf %23, %24 : vector<8x32xf32>
    %26 = vector.extract_strided_slice %22 {offsets = [0, 32], sizes = [8, 32], strides = [1, 1]} : vector<8x96xf32> to vector<8x32xf32>
    %27 = vector.extract_strided_slice %22 {offsets = [0, 64], sizes = [8, 32], strides = [1, 1]} : vector<8x96xf32> to vector<8x32xf32>
    %cst_31 = arith.constant 0.000000e+00 : f32
    %28 = vector.broadcast %cst_31 : f32 to vector<8x32xf32>
    %29 = vector.extract_strided_slice %25 {offsets = [0, 0], sizes = [8, 8], strides = [1, 1]} : vector<8x32xf32> to vector<8x8xf32>
    %30 = vector.extract_strided_slice %26 {offsets = [0, 0], sizes = [8, 8], strides = [1, 1]} : vector<8x32xf32> to vector<8x8xf32>
    "tpu.trace_start"() <{level = 10 : i32, message = "qd,kd->qk"}> : () -> ()
    %cst_32 = arith.constant dense<0.000000e+00> : vector<8x8xf32>
    %31 = tpu.matmul %29, %30, %cst_32 {dimension_numbers = #tpu.dot_dimension_numbers<[1], [1], [0], [0], [0, 0, 1, 0], [], []>} : vector<8x8xf32>, vector<8x8xf32>, vector<8x8xf32> -> vector<8x8xf32>
    "tpu.trace_stop"() : () -> ()
    %cst_33 = arith.constant dense<0xFF800000> : vector<8xf32>
    %32 = vector.multi_reduction <maximumf>, %31, %cst_33 [1] : vector<8x8xf32> to vector<8xf32>
    %33 = vector.shape_cast %32 : vector<8xf32> to vector<8x1xf32>
    %34 = vector.broadcast %33 : vector<8x1xf32> to vector<8x8xf32>
    %35 = arith.subf %31, %34 : vector<8x8xf32>
    %36 = math.exp %35 : vector<8x8xf32>
    %cst_34 = arith.constant dense<0.000000e+00> : vector<8xf32>
    %37 = vector.multi_reduction <add>, %36, %cst_34 [1] : vector<8x8xf32> to vector<8xf32>
    %38 = vector.shape_cast %37 : vector<8xf32> to vector<8x1xf32>
    %39 = vector.broadcast %38 : vector<8x1xf32> to vector<8x8xf32>
    %40 = arith.divf %36, %39 : vector<8x8xf32>
    %41 = vector.extract_strided_slice %27 {offsets = [0, 0], sizes = [8, 8], strides = [1, 1]} : vector<8x32xf32> to vector<8x8xf32>
    %cst_35 = arith.constant dense<0.000000e+00> : vector<8x8xf32>
    %42 = tpu.matmul %40, %41, %cst_35 {dimension_numbers = #tpu.dot_dimension_numbers<[1], [0], [0], [1], [0, 0, 1, 1], [], []>} : vector<8x8xf32>, vector<8x8xf32>, vector<8x8xf32> -> vector<8x8xf32>
    %43 = vector.extract_strided_slice %17 {offsets = [0, 0], sizes = [8, 32], strides = [1, 1]} : vector<32x32xf32> to vector<8x32xf32>
    %cst_36 = arith.constant dense<0.000000e+00> : vector<8x32xf32>
    %44 = tpu.matmul %42, %43, %cst_36 {dimension_numbers = #tpu.dot_dimension_numbers<[1], [0], [0], [1], [0, 0, 1, 1], [], []>} : vector<8x8xf32>, vector<8x32xf32>, vector<8x32xf32> -> vector<8x32xf32>
    %45 = arith.addf %28, %44 : vector<8x32xf32>
    %46 = vector.extract_strided_slice %25 {offsets = [0, 8], sizes = [8, 8], strides = [1, 1]} : vector<8x32xf32> to vector<8x8xf32>
    %47 = vector.extract_strided_slice %26 {offsets = [0, 8], sizes = [8, 8], strides = [1, 1]} : vector<8x32xf32> to vector<8x8xf32>
    "tpu.trace_start"() <{level = 10 : i32, message = "qd,kd->qk"}> : () -> ()
    %cst_37 = arith.constant dense<0.000000e+00> : vector<8x8xf32>
    %48 = tpu.matmul %46, %47, %cst_37 {dimension_numbers = #tpu.dot_dimension_numbers<[1], [1], [0], [0], [0, 0, 1, 0], [], []>} : vector<8x8xf32>, vector<8x8xf32>, vector<8x8xf32> -> vector<8x8xf32>
    "tpu.trace_stop"() : () -> ()
    %cst_38 = arith.constant dense<0xFF800000> : vector<8xf32>
    %49 = vector.multi_reduction <maximumf>, %48, %cst_38 [1] : vector<8x8xf32> to vector<8xf32>
    %50 = vector.shape_cast %49 : vector<8xf32> to vector<8x1xf32>
    %51 = vector.broadcast %50 : vector<8x1xf32> to vector<8x8xf32>
    %52 = arith.subf %48, %51 : vector<8x8xf32>
    %53 = math.exp %52 : vector<8x8xf32>
    %cst_39 = arith.constant dense<0.000000e+00> : vector<8xf32>
    %54 = vector.multi_reduction <add>, %53, %cst_39 [1] : vector<8x8xf32> to vector<8xf32>
    %55 = vector.shape_cast %54 : vector<8xf32> to vector<8x1xf32>
    %56 = vector.broadcast %55 : vector<8x1xf32> to vector<8x8xf32>
    %57 = arith.divf %53, %56 : vector<8x8xf32>
    %58 = vector.extract_strided_slice %27 {offsets = [0, 8], sizes = [8, 8], strides = [1, 1]} : vector<8x32xf32> to vector<8x8xf32>
    %cst_40 = arith.constant dense<0.000000e+00> : vector<8x8xf32>
    %59 = tpu.matmul %57, %58, %cst_40 {dimension_numbers = #tpu.dot_dimension_numbers<[1], [0], [0], [1], [0, 0, 1, 1], [], []>} : vector<8x8xf32>, vector<8x8xf32>, vector<8x8xf32> -> vector<8x8xf32>
    %60 = vector.extract_strided_slice %17 {offsets = [8, 0], sizes = [8, 32], strides = [1, 1]} : vector<32x32xf32> to vector<8x32xf32>
    %cst_41 = arith.constant dense<0.000000e+00> : vector<8x32xf32>
    %61 = tpu.matmul %59, %60, %cst_41 {dimension_numbers = #tpu.dot_dimension_numbers<[1], [0], [0], [1], [0, 0, 1, 1], [], []>} : vector<8x8xf32>, vector<8x32xf32>, vector<8x32xf32> -> vector<8x32xf32>
    %62 = arith.addf %45, %61 : vector<8x32xf32>
    %63 = vector.extract_strided_slice %25 {offsets = [0, 16], sizes = [8, 8], strides = [1, 1]} : vector<8x32xf32> to vector<8x8xf32>
    %64 = vector.extract_strided_slice %26 {offsets = [0, 16], sizes = [8, 8], strides = [1, 1]} : vector<8x32xf32> to vector<8x8xf32>
    "tpu.trace_start"() <{level = 10 : i32, message = "qd,kd->qk"}> : () -> ()
    %cst_42 = arith.constant dense<0.000000e+00> : vector<8x8xf32>
    %65 = tpu.matmul %63, %64, %cst_42 {dimension_numbers = #tpu.dot_dimension_numbers<[1], [1], [0], [0], [0, 0, 1, 0], [], []>} : vector<8x8xf32>, vector<8x8xf32>, vector<8x8xf32> -> vector<8x8xf32>
    "tpu.trace_stop"() : () -> ()
    %cst_43 = arith.constant dense<0xFF800000> : vector<8xf32>
    %66 = vector.multi_reduction <maximumf>, %65, %cst_43 [1] : vector<8x8xf32> to vector<8xf32>
    %67 = vector.shape_cast %66 : vector<8xf32> to vector<8x1xf32>
    %68 = vector.broadcast %67 : vector<8x1xf32> to vector<8x8xf32>
    %69 = arith.subf %65, %68 : vector<8x8xf32>
    %70 = math.exp %69 : vector<8x8xf32>
    %cst_44 = arith.constant dense<0.000000e+00> : vector<8xf32>
    %71 = vector.multi_reduction <add>, %70, %cst_44 [1] : vector<8x8xf32> to vector<8xf32>
    %72 = vector.shape_cast %71 : vector<8xf32> to vector<8x1xf32>
    %73 = vector.broadcast %72 : vector<8x1xf32> to vector<8x8xf32>
    %74 = arith.divf %70, %73 : vector<8x8xf32>
    %75 = vector.extract_strided_slice %27 {offsets = [0, 16], sizes = [8, 8], strides = [1, 1]} : vector<8x32xf32> to vector<8x8xf32>
    %cst_45 = arith.constant dense<0.000000e+00> : vector<8x8xf32>
    %76 = tpu.matmul %74, %75, %cst_45 {dimension_numbers = #tpu.dot_dimension_numbers<[1], [0], [0], [1], [0, 0, 1, 1], [], []>} : vector<8x8xf32>, vector<8x8xf32>, vector<8x8xf32> -> vector<8x8xf32>
    %77 = vector.extract_strided_slice %17 {offsets = [16, 0], sizes = [8, 32], strides = [1, 1]} : vector<32x32xf32> to vector<8x32xf32>
    %cst_46 = arith.constant dense<0.000000e+00> : vector<8x32xf32>
    %78 = tpu.matmul %76, %77, %cst_46 {dimension_numbers = #tpu.dot_dimension_numbers<[1], [0], [0], [1], [0, 0, 1, 1], [], []>} : vector<8x8xf32>, vector<8x32xf32>, vector<8x32xf32> -> vector<8x32xf32>
    %79 = arith.addf %62, %78 : vector<8x32xf32>
    %80 = vector.extract_strided_slice %25 {offsets = [0, 24], sizes = [8, 8], strides = [1, 1]} : vector<8x32xf32> to vector<8x8xf32>
    %81 = vector.extract_strided_slice %26 {offsets = [0, 24], sizes = [8, 8], strides = [1, 1]} : vector<8x32xf32> to vector<8x8xf32>
    "tpu.trace_start"() <{level = 10 : i32, message = "qd,kd->qk"}> : () -> ()
    %cst_47 = arith.constant dense<0.000000e+00> : vector<8x8xf32>
    %82 = tpu.matmul %80, %81, %cst_47 {dimension_numbers = #tpu.dot_dimension_numbers<[1], [1], [0], [0], [0, 0, 1, 0], [], []>} : vector<8x8xf32>, vector<8x8xf32>, vector<8x8xf32> -> vector<8x8xf32>
    "tpu.trace_stop"() : () -> ()
    %cst_48 = arith.constant dense<0xFF800000> : vector<8xf32>
    %83 = vector.multi_reduction <maximumf>, %82, %cst_48 [1] : vector<8x8xf32> to vector<8xf32>
    %84 = vector.shape_cast %83 : vector<8xf32> to vector<8x1xf32>
    %85 = vector.broadcast %84 : vector<8x1xf32> to vector<8x8xf32>
    %86 = arith.subf %82, %85 : vector<8x8xf32>
    %87 = math.exp %86 : vector<8x8xf32>
    %cst_49 = arith.constant dense<0.000000e+00> : vector<8xf32>
    %88 = vector.multi_reduction <add>, %87, %cst_49 [1] : vector<8x8xf32> to vector<8xf32>
    %89 = vector.shape_cast %88 : vector<8xf32> to vector<8x1xf32>
    %90 = vector.broadcast %89 : vector<8x1xf32> to vector<8x8xf32>
    %91 = arith.divf %87, %90 : vector<8x8xf32>
    %92 = vector.extract_strided_slice %27 {offsets = [0, 24], sizes = [8, 8], strides = [1, 1]} : vector<8x32xf32> to vector<8x8xf32>
    %cst_50 = arith.constant dense<0.000000e+00> : vector<8x8xf32>
    %93 = tpu.matmul %91, %92, %cst_50 {dimension_numbers = #tpu.dot_dimension_numbers<[1], [0], [0], [1], [0, 0, 1, 1], [], []>} : vector<8x8xf32>, vector<8x8xf32>, vector<8x8xf32> -> vector<8x8xf32>
    %94 = vector.extract_strided_slice %17 {offsets = [24, 0], sizes = [8, 32], strides = [1, 1]} : vector<32x32xf32> to vector<8x32xf32>
    %cst_51 = arith.constant dense<0.000000e+00> : vector<8x32xf32>
    %95 = tpu.matmul %93, %94, %cst_51 {dimension_numbers = #tpu.dot_dimension_numbers<[1], [0], [0], [1], [0, 0, 1, 1], [], []>} : vector<8x8xf32>, vector<8x32xf32>, vector<8x32xf32> -> vector<8x32xf32>
    %96 = arith.addf %79, %95 : vector<8x32xf32>
    %97 = vector.broadcast %19 : vector<1x32xf32> to vector<8x32xf32>
    %98 = arith.addf %96, %97 : vector<8x32xf32>
    %99 = arith.addf %7, %98 : vector<8x32xf32>
    %100 = vector.extract_strided_slice %9 {offsets = [0, 0], sizes = [1, 32], strides = [1, 1]} : vector<3x32xf32> to vector<1x32xf32>
    %101 = vector.extract_strided_slice %11 {offsets = [0, 0], sizes = [1, 32], strides = [1, 1]} : vector<3x32xf32> to vector<1x32xf32>
    %cst_52 = arith.constant dense<0.000000e+00> : vector<8xf32>
    %102 = vector.multi_reduction <add>, %99, %cst_52 [1] : vector<8x32xf32> to vector<8xf32>
    %103 = vector.shape_cast %102 : vector<8xf32> to vector<8x1xf32>
    %cst_53 = arith.constant 3.200000e+01 : f32
    %104 = vector.broadcast %cst_53 : f32 to vector<8x1xf32>
    %105 = arith.divf %103, %104 : vector<8x1xf32>
    %106 = vector.broadcast %105 : vector<8x1xf32> to vector<8x32xf32>
    %107 = arith.subf %99, %106 : vector<8x32xf32>
    %108 = arith.mulf %107, %107 : vector<8x32xf32>
    %cst_54 = arith.constant dense<0.000000e+00> : vector<8xf32>
    %109 = vector.multi_reduction <add>, %108, %cst_54 [1] : vector<8x32xf32> to vector<8xf32>
    %110 = vector.shape_cast %109 : vector<8xf32> to vector<8x1xf32>
    %cst_55 = arith.constant 3.200000e+01 : f32
    %111 = vector.broadcast %cst_55 : f32 to vector<8x1xf32>
    %112 = arith.divf %110, %111 : vector<8x1xf32>
    %113 = vector.broadcast %105 : vector<8x1xf32> to vector<8x32xf32>
    %114 = arith.subf %99, %113 : vector<8x32xf32>
    %cst_56 = arith.constant 9.99999974E-6 : f32
    %115 = vector.broadcast %cst_56 : f32 to vector<8x1xf32>
    %116 = arith.addf %112, %115 : vector<8x1xf32>
    %117 = math.rsqrt %116 : vector<8x1xf32>
    %118 = vector.broadcast %117 : vector<8x1xf32> to vector<8x32xf32>
    %119 = arith.mulf %114, %118 : vector<8x32xf32>
    %120 = vector.broadcast %100 : vector<1x32xf32> to vector<8x32xf32>
    %121 = arith.mulf %119, %120 : vector<8x32xf32>
    %122 = vector.broadcast %101 : vector<1x32xf32> to vector<8x32xf32>
    %123 = arith.addf %121, %122 : vector<8x32xf32>
    %c0_57 = arith.constant 0 : index
    %c1 = arith.constant 1 : index
    %c0_58 = arith.constant 0 : index
    %c0_59 = arith.constant 0 : index
    %124 = vector.load %arg4[%c0_57, %c1, %c0_58, %c0_59] : memref<2x2x32x96xf32, #tpu.memory_space<vmem>>, vector<1x1x32x96xf32>
    %125 = vector.shape_cast %124 : vector<1x1x32x96xf32> to vector<32x96xf32>
    %c0_60 = arith.constant 0 : index
    %c1_61 = arith.constant 1 : index
    %c0_62 = arith.constant 0 : index
    %c0_63 = arith.constant 0 : index
    %126 = vector.load %arg5[%c0_60, %c1_61, %c0_62, %c0_63] : memref<2x2x1x96xf32, #tpu.memory_space<vmem>>, vector<1x1x1x96xf32>
    %127 = vector.shape_cast %126 : vector<1x1x1x96xf32> to vector<1x96xf32>
    %c0_64 = arith.constant 0 : index
    %c1_65 = arith.constant 1 : index
    %c0_66 = arith.constant 0 : index
    %c0_67 = arith.constant 0 : index
    %128 = vector.load %arg6[%c0_64, %c1_65, %c0_66, %c0_67] : memref<2x2x32x32xf32, #tpu.memory_space<vmem>>, vector<1x1x32x32xf32>
    %129 = vector.shape_cast %128 : vector<1x1x32x32xf32> to vector<32x32xf32>
    %c0_68 = arith.constant 0 : index
    %c1_69 = arith.constant 1 : index
    %c0_70 = arith.constant 0 : index
    %c0_71 = arith.constant 0 : index
    %130 = vector.load %arg7[%c0_68, %c1_69, %c0_70, %c0_71] : memref<2x2x1x32xf32, #tpu.memory_space<vmem>>, vector<1x1x1x32xf32>
    %131 = vector.shape_cast %130 : vector<1x1x1x32xf32> to vector<1x32xf32>
    %132 = vector.extract_strided_slice %125 {offsets = [0, 0], sizes = [32, 32], strides = [1, 1]} : vector<32x96xf32> to vector<32x32xf32>
    %cst_72 = arith.constant dense<0.000000e+00> : vector<8x32xf32>
    %133 = tpu.matmul %123, %132, %cst_72 {dimension_numbers = #tpu.dot_dimension_numbers<[1], [0], [0], [1], [0, 0, 1, 1], [], []>} : vector<8x32xf32>, vector<32x32xf32>, vector<8x32xf32> -> vector<8x32xf32>
    %134 = vector.extract_strided_slice %127 {offsets = [0, 0], sizes = [1, 32], strides = [1, 1]} : vector<1x96xf32> to vector<1x32xf32>
    %135 = vector.broadcast %134 : vector<1x32xf32> to vector<8x32xf32>
    %136 = arith.addf %133, %135 : vector<8x32xf32>
    %cst_73 = arith.constant 0.353553385 : f32
    %137 = vector.broadcast %cst_73 : f32 to vector<8x32xf32>
    %138 = arith.mulf %136, %137 : vector<8x32xf32>
    %139 = vector.extract_strided_slice %125 {offsets = [0, 32], sizes = [32, 64], strides = [1, 1]} : vector<32x96xf32> to vector<32x64xf32>
    %cst_74 = arith.constant dense<0.000000e+00> : vector<8x64xf32>
    %140 = tpu.matmul %7, %139, %cst_74 {dimension_numbers = #tpu.dot_dimension_numbers<[1], [0], [0], [1], [0, 0, 1, 1], [], []>} : vector<8x32xf32>, vector<32x64xf32>, vector<8x64xf32> -> vector<8x64xf32>
    %141 = vector.extract_strided_slice %127 {offsets = [0, 32], sizes = [1, 64], strides = [1, 1]} : vector<1x96xf32> to vector<1x64xf32>
    %142 = vector.broadcast %141 : vector<1x64xf32> to vector<8x64xf32>
    %143 = arith.addf %140, %142 : vector<8x64xf32>
    %144 = vector.extract_strided_slice %143 {offsets = [0, 0], sizes = [8, 32], strides = [1, 1]} : vector<8x64xf32> to vector<8x32xf32>
    %145 = vector.extract_strided_slice %143 {offsets = [0, 32], sizes = [8, 32], strides = [1, 1]} : vector<8x64xf32> to vector<8x32xf32>
    %cst_75 = arith.constant 0.000000e+00 : f32
    %146 = vector.broadcast %cst_75 : f32 to vector<8x32xf32>
    %147 = vector.extract_strided_slice %138 {offsets = [0, 0], sizes = [8, 8], strides = [1, 1]} : vector<8x32xf32> to vector<8x8xf32>
    %148 = vector.extract_strided_slice %144 {offsets = [0, 0], sizes = [8, 8], strides = [1, 1]} : vector<8x32xf32> to vector<8x8xf32>
    "tpu.trace_start"() <{level = 10 : i32, message = "qd,kd->qk"}> : () -> ()
    %cst_76 = arith.constant dense<0.000000e+00> : vector<8x8xf32>
    %149 = tpu.matmul %147, %148, %cst_76 {dimension_numbers = #tpu.dot_dimension_numbers<[1], [1], [0], [0], [0, 0, 1, 0], [], []>} : vector<8x8xf32>, vector<8x8xf32>, vector<8x8xf32> -> vector<8x8xf32>
    "tpu.trace_stop"() : () -> ()
    %cst_77 = arith.constant dense<0xFF800000> : vector<8xf32>
    %150 = vector.multi_reduction <maximumf>, %149, %cst_77 [1] : vector<8x8xf32> to vector<8xf32>
    %151 = vector.shape_cast %150 : vector<8xf32> to vector<8x1xf32>
    %152 = vector.broadcast %151 : vector<8x1xf32> to vector<8x8xf32>
    %153 = arith.subf %149, %152 : vector<8x8xf32>
    %154 = math.exp %153 : vector<8x8xf32>
    %cst_78 = arith.constant dense<0.000000e+00> : vector<8xf32>
    %155 = vector.multi_reduction <add>, %154, %cst_78 [1] : vector<8x8xf32> to vector<8xf32>
    %156 = vector.shape_cast %155 : vector<8xf32> to vector<8x1xf32>
    %157 = vector.broadcast %156 : vector<8x1xf32> to vector<8x8xf32>
    %158 = arith.divf %154, %157 : vector<8x8xf32>
    %159 = vector.extract_strided_slice %145 {offsets = [0, 0], sizes = [8, 8], strides = [1, 1]} : vector<8x32xf32> to vector<8x8xf32>
    %cst_79 = arith.constant dense<0.000000e+00> : vector<8x8xf32>
    %160 = tpu.matmul %158, %159, %cst_79 {dimension_numbers = #tpu.dot_dimension_numbers<[1], [0], [0], [1], [0, 0, 1, 1], [], []>} : vector<8x8xf32>, vector<8x8xf32>, vector<8x8xf32> -> vector<8x8xf32>
    %161 = vector.extract_strided_slice %129 {offsets = [0, 0], sizes = [8, 32], strides = [1, 1]} : vector<32x32xf32> to vector<8x32xf32>
    %cst_80 = arith.constant dense<0.000000e+00> : vector<8x32xf32>
    %162 = tpu.matmul %160, %161, %cst_80 {dimension_numbers = #tpu.dot_dimension_numbers<[1], [0], [0], [1], [0, 0, 1, 1], [], []>} : vector<8x8xf32>, vector<8x32xf32>, vector<8x32xf32> -> vector<8x32xf32>
    %163 = arith.addf %146, %162 : vector<8x32xf32>
    %164 = vector.extract_strided_slice %138 {offsets = [0, 8], sizes = [8, 8], strides = [1, 1]} : vector<8x32xf32> to vector<8x8xf32>
    %165 = vector.extract_strided_slice %144 {offsets = [0, 8], sizes = [8, 8], strides = [1, 1]} : vector<8x32xf32> to vector<8x8xf32>
    "tpu.trace_start"() <{level = 10 : i32, message = "qd,kd->qk"}> : () -> ()
    %cst_81 = arith.constant dense<0.000000e+00> : vector<8x8xf32>
    %166 = tpu.matmul %164, %165, %cst_81 {dimension_numbers = #tpu.dot_dimension_numbers<[1], [1], [0], [0], [0, 0, 1, 0], [], []>} : vector<8x8xf32>, vector<8x8xf32>, vector<8x8xf32> -> vector<8x8xf32>
    "tpu.trace_stop"() : () -> ()
    %cst_82 = arith.constant dense<0xFF800000> : vector<8xf32>
    %167 = vector.multi_reduction <maximumf>, %166, %cst_82 [1] : vector<8x8xf32> to vector<8xf32>
    %168 = vector.shape_cast %167 : vector<8xf32> to vector<8x1xf32>
    %169 = vector.broadcast %168 : vector<8x1xf32> to vector<8x8xf32>
    %170 = arith.subf %166, %169 : vector<8x8xf32>
    %171 = math.exp %170 : vector<8x8xf32>
    %cst_83 = arith.constant dense<0.000000e+00> : vector<8xf32>
    %172 = vector.multi_reduction <add>, %171, %cst_83 [1] : vector<8x8xf32> to vector<8xf32>
    %173 = vector.shape_cast %172 : vector<8xf32> to vector<8x1xf32>
    %174 = vector.broadcast %173 : vector<8x1xf32> to vector<8x8xf32>
    %175 = arith.divf %171, %174 : vector<8x8xf32>
    %176 = vector.extract_strided_slice %145 {offsets = [0, 8], sizes = [8, 8], strides = [1, 1]} : vector<8x32xf32> to vector<8x8xf32>
    %cst_84 = arith.constant dense<0.000000e+00> : vector<8x8xf32>
    %177 = tpu.matmul %175, %176, %cst_84 {dimension_numbers = #tpu.dot_dimension_numbers<[1], [0], [0], [1], [0, 0, 1, 1], [], []>} : vector<8x8xf32>, vector<8x8xf32>, vector<8x8xf32> -> vector<8x8xf32>
    %178 = vector.extract_strided_slice %129 {offsets = [8, 0], sizes = [8, 32], strides = [1, 1]} : vector<32x32xf32> to vector<8x32xf32>
    %cst_85 = arith.constant dense<0.000000e+00> : vector<8x32xf32>
    %179 = tpu.matmul %177, %178, %cst_85 {dimension_numbers = #tpu.dot_dimension_numbers<[1], [0], [0], [1], [0, 0, 1, 1], [], []>} : vector<8x8xf32>, vector<8x32xf32>, vector<8x32xf32> -> vector<8x32xf32>
    %180 = arith.addf %163, %179 : vector<8x32xf32>
    %181 = vector.extract_strided_slice %138 {offsets = [0, 16], sizes = [8, 8], strides = [1, 1]} : vector<8x32xf32> to vector<8x8xf32>
    %182 = vector.extract_strided_slice %144 {offsets = [0, 16], sizes = [8, 8], strides = [1, 1]} : vector<8x32xf32> to vector<8x8xf32>
    "tpu.trace_start"() <{level = 10 : i32, message = "qd,kd->qk"}> : () -> ()
    %cst_86 = arith.constant dense<0.000000e+00> : vector<8x8xf32>
    %183 = tpu.matmul %181, %182, %cst_86 {dimension_numbers = #tpu.dot_dimension_numbers<[1], [1], [0], [0], [0, 0, 1, 0], [], []>} : vector<8x8xf32>, vector<8x8xf32>, vector<8x8xf32> -> vector<8x8xf32>
    "tpu.trace_stop"() : () -> ()
    %cst_87 = arith.constant dense<0xFF800000> : vector<8xf32>
    %184 = vector.multi_reduction <maximumf>, %183, %cst_87 [1] : vector<8x8xf32> to vector<8xf32>
    %185 = vector.shape_cast %184 : vector<8xf32> to vector<8x1xf32>
    %186 = vector.broadcast %185 : vector<8x1xf32> to vector<8x8xf32>
    %187 = arith.subf %183, %186 : vector<8x8xf32>
    %188 = math.exp %187 : vector<8x8xf32>
    %cst_88 = arith.constant dense<0.000000e+00> : vector<8xf32>
    %189 = vector.multi_reduction <add>, %188, %cst_88 [1] : vector<8x8xf32> to vector<8xf32>
    %190 = vector.shape_cast %189 : vector<8xf32> to vector<8x1xf32>
    %191 = vector.broadcast %190 : vector<8x1xf32> to vector<8x8xf32>
    %192 = arith.divf %188, %191 : vector<8x8xf32>
    %193 = vector.extract_strided_slice %145 {offsets = [0, 16], sizes = [8, 8], strides = [1, 1]} : vector<8x32xf32> to vector<8x8xf32>
    %cst_89 = arith.constant dense<0.000000e+00> : vector<8x8xf32>
    %194 = tpu.matmul %192, %193, %cst_89 {dimension_numbers = #tpu.dot_dimension_numbers<[1], [0], [0], [1], [0, 0, 1, 1], [], []>} : vector<8x8xf32>, vector<8x8xf32>, vector<8x8xf32> -> vector<8x8xf32>
    %195 = vector.extract_strided_slice %129 {offsets = [16, 0], sizes = [8, 32], strides = [1, 1]} : vector<32x32xf32> to vector<8x32xf32>
    %cst_90 = arith.constant dense<0.000000e+00> : vector<8x32xf32>
    %196 = tpu.matmul %194, %195, %cst_90 {dimension_numbers = #tpu.dot_dimension_numbers<[1], [0], [0], [1], [0, 0, 1, 1], [], []>} : vector<8x8xf32>, vector<8x32xf32>, vector<8x32xf32> -> vector<8x32xf32>
    %197 = arith.addf %180, %196 : vector<8x32xf32>
    %198 = vector.extract_strided_slice %138 {offsets = [0, 24], sizes = [8, 8], strides = [1, 1]} : vector<8x32xf32> to vector<8x8xf32>
    %199 = vector.extract_strided_slice %144 {offsets = [0, 24], sizes = [8, 8], strides = [1, 1]} : vector<8x32xf32> to vector<8x8xf32>
    "tpu.trace_start"() <{level = 10 : i32, message = "qd,kd->qk"}> : () -> ()
    %cst_91 = arith.constant dense<0.000000e+00> : vector<8x8xf32>
    %200 = tpu.matmul %198, %199, %cst_91 {dimension_numbers = #tpu.dot_dimension_numbers<[1], [1], [0], [0], [0, 0, 1, 0], [], []>} : vector<8x8xf32>, vector<8x8xf32>, vector<8x8xf32> -> vector<8x8xf32>
    "tpu.trace_stop"() : () -> ()
    %cst_92 = arith.constant dense<0xFF800000> : vector<8xf32>
    %201 = vector.multi_reduction <maximumf>, %200, %cst_92 [1] : vector<8x8xf32> to vector<8xf32>
    %202 = vector.shape_cast %201 : vector<8xf32> to vector<8x1xf32>
    %203 = vector.broadcast %202 : vector<8x1xf32> to vector<8x8xf32>
    %204 = arith.subf %200, %203 : vector<8x8xf32>
    %205 = math.exp %204 : vector<8x8xf32>
    %cst_93 = arith.constant dense<0.000000e+00> : vector<8xf32>
    %206 = vector.multi_reduction <add>, %205, %cst_93 [1] : vector<8x8xf32> to vector<8xf32>
    %207 = vector.shape_cast %206 : vector<8xf32> to vector<8x1xf32>
    %208 = vector.broadcast %207 : vector<8x1xf32> to vector<8x8xf32>
    %209 = arith.divf %205, %208 : vector<8x8xf32>
    %210 = vector.extract_strided_slice %145 {offsets = [0, 24], sizes = [8, 8], strides = [1, 1]} : vector<8x32xf32> to vector<8x8xf32>
    %cst_94 = arith.constant dense<0.000000e+00> : vector<8x8xf32>
    %211 = tpu.matmul %209, %210, %cst_94 {dimension_numbers = #tpu.dot_dimension_numbers<[1], [0], [0], [1], [0, 0, 1, 1], [], []>} : vector<8x8xf32>, vector<8x8xf32>, vector<8x8xf32> -> vector<8x8xf32>
    %212 = vector.extract_strided_slice %129 {offsets = [24, 0], sizes = [8, 32], strides = [1, 1]} : vector<32x32xf32> to vector<8x32xf32>
    %cst_95 = arith.constant dense<0.000000e+00> : vector<8x32xf32>
    %213 = tpu.matmul %211, %212, %cst_95 {dimension_numbers = #tpu.dot_dimension_numbers<[1], [0], [0], [1], [0, 0, 1, 1], [], []>} : vector<8x8xf32>, vector<8x32xf32>, vector<8x32xf32> -> vector<8x32xf32>
    %214 = arith.addf %197, %213 : vector<8x32xf32>
    %215 = vector.broadcast %131 : vector<1x32xf32> to vector<8x32xf32>
    %216 = arith.addf %214, %215 : vector<8x32xf32>
    %217 = arith.addf %123, %216 : vector<8x32xf32>
    %218 = vector.extract_strided_slice %9 {offsets = [1, 0], sizes = [1, 32], strides = [1, 1]} : vector<3x32xf32> to vector<1x32xf32>
    %219 = vector.extract_strided_slice %11 {offsets = [1, 0], sizes = [1, 32], strides = [1, 1]} : vector<3x32xf32> to vector<1x32xf32>
    %cst_96 = arith.constant dense<0.000000e+00> : vector<8xf32>
    %220 = vector.multi_reduction <add>, %217, %cst_96 [1] : vector<8x32xf32> to vector<8xf32>
    %221 = vector.shape_cast %220 : vector<8xf32> to vector<8x1xf32>
    %cst_97 = arith.constant 3.200000e+01 : f32
    %222 = vector.broadcast %cst_97 : f32 to vector<8x1xf32>
    %223 = arith.divf %221, %222 : vector<8x1xf32>
    %224 = vector.broadcast %223 : vector<8x1xf32> to vector<8x32xf32>
    %225 = arith.subf %217, %224 : vector<8x32xf32>
    %226 = arith.mulf %225, %225 : vector<8x32xf32>
    %cst_98 = arith.constant dense<0.000000e+00> : vector<8xf32>
    %227 = vector.multi_reduction <add>, %226, %cst_98 [1] : vector<8x32xf32> to vector<8xf32>
    %228 = vector.shape_cast %227 : vector<8xf32> to vector<8x1xf32>
    %cst_99 = arith.constant 3.200000e+01 : f32
    %229 = vector.broadcast %cst_99 : f32 to vector<8x1xf32>
    %230 = arith.divf %228, %229 : vector<8x1xf32>
    %231 = vector.broadcast %223 : vector<8x1xf32> to vector<8x32xf32>
    %232 = arith.subf %217, %231 : vector<8x32xf32>
    %cst_100 = arith.constant 9.99999974E-6 : f32
    %233 = vector.broadcast %cst_100 : f32 to vector<8x1xf32>
    %234 = arith.addf %230, %233 : vector<8x1xf32>
    %235 = math.rsqrt %234 : vector<8x1xf32>
    %236 = vector.broadcast %235 : vector<8x1xf32> to vector<8x32xf32>
    %237 = arith.mulf %232, %236 : vector<8x32xf32>
    %238 = vector.broadcast %218 : vector<1x32xf32> to vector<8x32xf32>
    %239 = arith.mulf %237, %238 : vector<8x32xf32>
    %240 = vector.broadcast %219 : vector<1x32xf32> to vector<8x32xf32>
    %241 = arith.addf %239, %240 : vector<8x32xf32>
    %c0_101 = arith.constant 0 : index
    %c0_102 = arith.constant 0 : index
    %c0_103 = arith.constant 0 : index
    %242 = vector.load %arg8[%c0_101, %c0_102, %c0_103] : memref<2x32x64xf32, #tpu.memory_space<vmem>>, vector<1x32x64xf32>
    %243 = vector.shape_cast %242 : vector<1x32x64xf32> to vector<32x64xf32>
    %cst_104 = arith.constant dense<0.000000e+00> : vector<8x64xf32>
    %244 = tpu.matmul %241, %243, %cst_104 {dimension_numbers = #tpu.dot_dimension_numbers<[1], [0], [0], [1], [0, 0, 1, 1], [], []>} : vector<8x32xf32>, vector<32x64xf32>, vector<8x64xf32> -> vector<8x64xf32>
    %c0_105 = arith.constant 0 : index
    %c0_106 = arith.constant 0 : index
    %c0_107 = arith.constant 0 : index
    %245 = vector.load %arg9[%c0_105, %c0_106, %c0_107] : memref<2x1x64xf32, #tpu.memory_space<vmem>>, vector<1x1x64xf32>
    %246 = vector.shape_cast %245 : vector<1x1x64xf32> to vector<1x64xf32>
    %247 = vector.broadcast %246 : vector<1x64xf32> to vector<8x64xf32>
    %248 = arith.addf %244, %247 : vector<8x64xf32>
    %cst_108 = arith.constant 0.000000e+00 : f32
    %249 = vector.broadcast %cst_108 : f32 to vector<8x64xf32>
    %250 = arith.maximumf %248, %249 : vector<8x64xf32>
    %c0_109 = arith.constant 0 : index
    %c0_110 = arith.constant 0 : index
    %c0_111 = arith.constant 0 : index
    %251 = vector.load %arg10[%c0_109, %c0_110, %c0_111] : memref<2x64x32xf32, #tpu.memory_space<vmem>>, vector<1x64x32xf32>
    %252 = vector.shape_cast %251 : vector<1x64x32xf32> to vector<64x32xf32>
    %cst_112 = arith.constant dense<0.000000e+00> : vector<8x32xf32>
    %253 = tpu.matmul %250, %252, %cst_112 {dimension_numbers = #tpu.dot_dimension_numbers<[1], [0], [0], [1], [0, 0, 1, 1], [], []>} : vector<8x64xf32>, vector<64x32xf32>, vector<8x32xf32> -> vector<8x32xf32>
    %c0_113 = arith.constant 0 : index
    %c0_114 = arith.constant 0 : index
    %c0_115 = arith.constant 0 : index
    %254 = vector.load %arg11[%c0_113, %c0_114, %c0_115] : memref<2x1x32xf32, #tpu.memory_space<vmem>>, vector<1x1x32xf32>
    %255 = vector.shape_cast %254 : vector<1x1x32xf32> to vector<1x32xf32>
    %256 = vector.broadcast %255 : vector<1x32xf32> to vector<8x32xf32>
    %257 = arith.addf %253, %256 : vector<8x32xf32>
    %258 = arith.addf %241, %257 : vector<8x32xf32>
    %259 = vector.extract_strided_slice %9 {offsets = [2, 0], sizes = [1, 32], strides = [1, 1]} : vector<3x32xf32> to vector<1x32xf32>
    %260 = vector.extract_strided_slice %11 {offsets = [2, 0], sizes = [1, 32], strides = [1, 1]} : vector<3x32xf32> to vector<1x32xf32>
    %cst_116 = arith.constant dense<0.000000e+00> : vector<8xf32>
    %261 = vector.multi_reduction <add>, %258, %cst_116 [1] : vector<8x32xf32> to vector<8xf32>
    %262 = vector.shape_cast %261 : vector<8xf32> to vector<8x1xf32>
    %cst_117 = arith.constant 3.200000e+01 : f32
    %263 = vector.broadcast %cst_117 : f32 to vector<8x1xf32>
    %264 = arith.divf %262, %263 : vector<8x1xf32>
    %265 = vector.broadcast %264 : vector<8x1xf32> to vector<8x32xf32>
    %266 = arith.subf %258, %265 : vector<8x32xf32>
    %267 = arith.mulf %266, %266 : vector<8x32xf32>
    %cst_118 = arith.constant dense<0.000000e+00> : vector<8xf32>
    %268 = vector.multi_reduction <add>, %267, %cst_118 [1] : vector<8x32xf32> to vector<8xf32>
    %269 = vector.shape_cast %268 : vector<8xf32> to vector<8x1xf32>
    %cst_119 = arith.constant 3.200000e+01 : f32
    %270 = vector.broadcast %cst_119 : f32 to vector<8x1xf32>
    %271 = arith.divf %269, %270 : vector<8x1xf32>
    %272 = vector.broadcast %264 : vector<8x1xf32> to vector<8x32xf32>
    %273 = arith.subf %258, %272 : vector<8x32xf32>
    %cst_120 = arith.constant 9.99999974E-6 : f32
    %274 = vector.broadcast %cst_120 : f32 to vector<8x1xf32>
    %275 = arith.addf %271, %274 : vector<8x1xf32>
    %276 = math.rsqrt %275 : vector<8x1xf32>
    %277 = vector.broadcast %276 : vector<8x1xf32> to vector<8x32xf32>
    %278 = arith.mulf %273, %277 : vector<8x32xf32>
    %279 = vector.broadcast %259 : vector<1x32xf32> to vector<8x32xf32>
    %280 = arith.mulf %278, %279 : vector<8x32xf32>
    %281 = vector.broadcast %260 : vector<1x32xf32> to vector<8x32xf32>
    %282 = arith.addf %280, %281 : vector<8x32xf32>
    %c1_121 = arith.constant 1 : index
    %c0_122 = arith.constant 0 : index
    %c0_123 = arith.constant 0 : index
    %283 = vector.load %arg12[%c1_121, %c0_122, %c0_123] : memref<2x3x32xf32, #tpu.memory_space<vmem>>, vector<1x3x32xf32>
    %284 = vector.shape_cast %283 : vector<1x3x32xf32> to vector<3x32xf32>
    %c1_124 = arith.constant 1 : index
    %c0_125 = arith.constant 0 : index
    %c0_126 = arith.constant 0 : index
    %285 = vector.load %arg13[%c1_124, %c0_125, %c0_126] : memref<2x3x32xf32, #tpu.memory_space<vmem>>, vector<1x3x32xf32>
    %286 = vector.shape_cast %285 : vector<1x3x32xf32> to vector<3x32xf32>
    %c1_127 = arith.constant 1 : index
    %c0_128 = arith.constant 0 : index
    %c0_129 = arith.constant 0 : index
    %c0_130 = arith.constant 0 : index
    %287 = vector.load %arg4[%c1_127, %c0_128, %c0_129, %c0_130] : memref<2x2x32x96xf32, #tpu.memory_space<vmem>>, vector<1x1x32x96xf32>
    %288 = vector.shape_cast %287 : vector<1x1x32x96xf32> to vector<32x96xf32>
    %c1_131 = arith.constant 1 : index
    %c0_132 = arith.constant 0 : index
    %c0_133 = arith.constant 0 : index
    %c0_134 = arith.constant 0 : index
    %289 = vector.load %arg5[%c1_131, %c0_132, %c0_133, %c0_134] : memref<2x2x1x96xf32, #tpu.memory_space<vmem>>, vector<1x1x1x96xf32>
    %290 = vector.shape_cast %289 : vector<1x1x1x96xf32> to vector<1x96xf32>
    %c1_135 = arith.constant 1 : index
    %c0_136 = arith.constant 0 : index
    %c0_137 = arith.constant 0 : index
    %c0_138 = arith.constant 0 : index
    %291 = vector.load %arg6[%c1_135, %c0_136, %c0_137, %c0_138] : memref<2x2x32x32xf32, #tpu.memory_space<vmem>>, vector<1x1x32x32xf32>
    %292 = vector.shape_cast %291 : vector<1x1x32x32xf32> to vector<32x32xf32>
    %c1_139 = arith.constant 1 : index
    %c0_140 = arith.constant 0 : index
    %c0_141 = arith.constant 0 : index
    %c0_142 = arith.constant 0 : index
    %293 = vector.load %arg7[%c1_139, %c0_140, %c0_141, %c0_142] : memref<2x2x1x32xf32, #tpu.memory_space<vmem>>, vector<1x1x1x32xf32>
    %294 = vector.shape_cast %293 : vector<1x1x1x32xf32> to vector<1x32xf32>
    %cst_143 = arith.constant dense<0.000000e+00> : vector<8x96xf32>
    %295 = tpu.matmul %282, %288, %cst_143 {dimension_numbers = #tpu.dot_dimension_numbers<[1], [0], [0], [1], [0, 0, 1, 1], [], []>} : vector<8x32xf32>, vector<32x96xf32>, vector<8x96xf32> -> vector<8x96xf32>
    %296 = vector.broadcast %290 : vector<1x96xf32> to vector<8x96xf32>
    %297 = arith.addf %295, %296 : vector<8x96xf32>
    %298 = vector.extract_strided_slice %297 {offsets = [0, 0], sizes = [8, 32], strides = [1, 1]} : vector<8x96xf32> to vector<8x32xf32>
    %cst_144 = arith.constant 0.353553385 : f32
    %299 = vector.broadcast %cst_144 : f32 to vector<8x32xf32>
    %300 = arith.mulf %298, %299 : vector<8x32xf32>
    %301 = vector.extract_strided_slice %297 {offsets = [0, 32], sizes = [8, 32], strides = [1, 1]} : vector<8x96xf32> to vector<8x32xf32>
    %302 = vector.extract_strided_slice %297 {offsets = [0, 64], sizes = [8, 32], strides = [1, 1]} : vector<8x96xf32> to vector<8x32xf32>
    %cst_145 = arith.constant 0.000000e+00 : f32
    %303 = vector.broadcast %cst_145 : f32 to vector<8x32xf32>
    %304 = vector.extract_strided_slice %300 {offsets = [0, 0], sizes = [8, 8], strides = [1, 1]} : vector<8x32xf32> to vector<8x8xf32>
    %305 = vector.extract_strided_slice %301 {offsets = [0, 0], sizes = [8, 8], strides = [1, 1]} : vector<8x32xf32> to vector<8x8xf32>
    "tpu.trace_start"() <{level = 10 : i32, message = "qd,kd->qk"}> : () -> ()
    %cst_146 = arith.constant dense<0.000000e+00> : vector<8x8xf32>
    %306 = tpu.matmul %304, %305, %cst_146 {dimension_numbers = #tpu.dot_dimension_numbers<[1], [1], [0], [0], [0, 0, 1, 0], [], []>} : vector<8x8xf32>, vector<8x8xf32>, vector<8x8xf32> -> vector<8x8xf32>
    "tpu.trace_stop"() : () -> ()
    %cst_147 = arith.constant dense<0xFF800000> : vector<8xf32>
    %307 = vector.multi_reduction <maximumf>, %306, %cst_147 [1] : vector<8x8xf32> to vector<8xf32>
    %308 = vector.shape_cast %307 : vector<8xf32> to vector<8x1xf32>
    %309 = vector.broadcast %308 : vector<8x1xf32> to vector<8x8xf32>
    %310 = arith.subf %306, %309 : vector<8x8xf32>
    %311 = math.exp %310 : vector<8x8xf32>
    %cst_148 = arith.constant dense<0.000000e+00> : vector<8xf32>
    %312 = vector.multi_reduction <add>, %311, %cst_148 [1] : vector<8x8xf32> to vector<8xf32>
    %313 = vector.shape_cast %312 : vector<8xf32> to vector<8x1xf32>
    %314 = vector.broadcast %313 : vector<8x1xf32> to vector<8x8xf32>
    %315 = arith.divf %311, %314 : vector<8x8xf32>
    %316 = vector.extract_strided_slice %302 {offsets = [0, 0], sizes = [8, 8], strides = [1, 1]} : vector<8x32xf32> to vector<8x8xf32>
    %cst_149 = arith.constant dense<0.000000e+00> : vector<8x8xf32>
    %317 = tpu.matmul %315, %316, %cst_149 {dimension_numbers = #tpu.dot_dimension_numbers<[1], [0], [0], [1], [0, 0, 1, 1], [], []>} : vector<8x8xf32>, vector<8x8xf32>, vector<8x8xf32> -> vector<8x8xf32>
    %318 = vector.extract_strided_slice %292 {offsets = [0, 0], sizes = [8, 32], strides = [1, 1]} : vector<32x32xf32> to vector<8x32xf32>
    %cst_150 = arith.constant dense<0.000000e+00> : vector<8x32xf32>
    %319 = tpu.matmul %317, %318, %cst_150 {dimension_numbers = #tpu.dot_dimension_numbers<[1], [0], [0], [1], [0, 0, 1, 1], [], []>} : vector<8x8xf32>, vector<8x32xf32>, vector<8x32xf32> -> vector<8x32xf32>
    %320 = arith.addf %303, %319 : vector<8x32xf32>
    %321 = vector.extract_strided_slice %300 {offsets = [0, 8], sizes = [8, 8], strides = [1, 1]} : vector<8x32xf32> to vector<8x8xf32>
    %322 = vector.extract_strided_slice %301 {offsets = [0, 8], sizes = [8, 8], strides = [1, 1]} : vector<8x32xf32> to vector<8x8xf32>
    "tpu.trace_start"() <{level = 10 : i32, message = "qd,kd->qk"}> : () -> ()
    %cst_151 = arith.constant dense<0.000000e+00> : vector<8x8xf32>
    %323 = tpu.matmul %321, %322, %cst_151 {dimension_numbers = #tpu.dot_dimension_numbers<[1], [1], [0], [0], [0, 0, 1, 0], [], []>} : vector<8x8xf32>, vector<8x8xf32>, vector<8x8xf32> -> vector<8x8xf32>
    "tpu.trace_stop"() : () -> ()
    %cst_152 = arith.constant dense<0xFF800000> : vector<8xf32>
    %324 = vector.multi_reduction <maximumf>, %323, %cst_152 [1] : vector<8x8xf32> to vector<8xf32>
    %325 = vector.shape_cast %324 : vector<8xf32> to vector<8x1xf32>
    %326 = vector.broadcast %325 : vector<8x1xf32> to vector<8x8xf32>
    %327 = arith.subf %323, %326 : vector<8x8xf32>
    %328 = math.exp %327 : vector<8x8xf32>
    %cst_153 = arith.constant dense<0.000000e+00> : vector<8xf32>
    %329 = vector.multi_reduction <add>, %328, %cst_153 [1] : vector<8x8xf32> to vector<8xf32>
    %330 = vector.shape_cast %329 : vector<8xf32> to vector<8x1xf32>
    %331 = vector.broadcast %330 : vector<8x1xf32> to vector<8x8xf32>
    %332 = arith.divf %328, %331 : vector<8x8xf32>
    %333 = vector.extract_strided_slice %302 {offsets = [0, 8], sizes = [8, 8], strides = [1, 1]} : vector<8x32xf32> to vector<8x8xf32>
    %cst_154 = arith.constant dense<0.000000e+00> : vector<8x8xf32>
    %334 = tpu.matmul %332, %333, %cst_154 {dimension_numbers = #tpu.dot_dimension_numbers<[1], [0], [0], [1], [0, 0, 1, 1], [], []>} : vector<8x8xf32>, vector<8x8xf32>, vector<8x8xf32> -> vector<8x8xf32>
    %335 = vector.extract_strided_slice %292 {offsets = [8, 0], sizes = [8, 32], strides = [1, 1]} : vector<32x32xf32> to vector<8x32xf32>
    %cst_155 = arith.constant dense<0.000000e+00> : vector<8x32xf32>
    %336 = tpu.matmul %334, %335, %cst_155 {dimension_numbers = #tpu.dot_dimension_numbers<[1], [0], [0], [1], [0, 0, 1, 1], [], []>} : vector<8x8xf32>, vector<8x32xf32>, vector<8x32xf32> -> vector<8x32xf32>
    %337 = arith.addf %320, %336 : vector<8x32xf32>
    %338 = vector.extract_strided_slice %300 {offsets = [0, 16], sizes = [8, 8], strides = [1, 1]} : vector<8x32xf32> to vector<8x8xf32>
    %339 = vector.extract_strided_slice %301 {offsets = [0, 16], sizes = [8, 8], strides = [1, 1]} : vector<8x32xf32> to vector<8x8xf32>
    "tpu.trace_start"() <{level = 10 : i32, message = "qd,kd->qk"}> : () -> ()
    %cst_156 = arith.constant dense<0.000000e+00> : vector<8x8xf32>
    %340 = tpu.matmul %338, %339, %cst_156 {dimension_numbers = #tpu.dot_dimension_numbers<[1], [1], [0], [0], [0, 0, 1, 0], [], []>} : vector<8x8xf32>, vector<8x8xf32>, vector<8x8xf32> -> vector<8x8xf32>
    "tpu.trace_stop"() : () -> ()
    %cst_157 = arith.constant dense<0xFF800000> : vector<8xf32>
    %341 = vector.multi_reduction <maximumf>, %340, %cst_157 [1] : vector<8x8xf32> to vector<8xf32>
    %342 = vector.shape_cast %341 : vector<8xf32> to vector<8x1xf32>
    %343 = vector.broadcast %342 : vector<8x1xf32> to vector<8x8xf32>
    %344 = arith.subf %340, %343 : vector<8x8xf32>
    %345 = math.exp %344 : vector<8x8xf32>
    %cst_158 = arith.constant dense<0.000000e+00> : vector<8xf32>
    %346 = vector.multi_reduction <add>, %345, %cst_158 [1] : vector<8x8xf32> to vector<8xf32>
    %347 = vector.shape_cast %346 : vector<8xf32> to vector<8x1xf32>
    %348 = vector.broadcast %347 : vector<8x1xf32> to vector<8x8xf32>
    %349 = arith.divf %345, %348 : vector<8x8xf32>
    %350 = vector.extract_strided_slice %302 {offsets = [0, 16], sizes = [8, 8], strides = [1, 1]} : vector<8x32xf32> to vector<8x8xf32>
    %cst_159 = arith.constant dense<0.000000e+00> : vector<8x8xf32>
    %351 = tpu.matmul %349, %350, %cst_159 {dimension_numbers = #tpu.dot_dimension_numbers<[1], [0], [0], [1], [0, 0, 1, 1], [], []>} : vector<8x8xf32>, vector<8x8xf32>, vector<8x8xf32> -> vector<8x8xf32>
    %352 = vector.extract_strided_slice %292 {offsets = [16, 0], sizes = [8, 32], strides = [1, 1]} : vector<32x32xf32> to vector<8x32xf32>
    %cst_160 = arith.constant dense<0.000000e+00> : vector<8x32xf32>
    %353 = tpu.matmul %351, %352, %cst_160 {dimension_numbers = #tpu.dot_dimension_numbers<[1], [0], [0], [1], [0, 0, 1, 1], [], []>} : vector<8x8xf32>, vector<8x32xf32>, vector<8x32xf32> -> vector<8x32xf32>
    %354 = arith.addf %337, %353 : vector<8x32xf32>
    %355 = vector.extract_strided_slice %300 {offsets = [0, 24], sizes = [8, 8], strides = [1, 1]} : vector<8x32xf32> to vector<8x8xf32>
    %356 = vector.extract_strided_slice %301 {offsets = [0, 24], sizes = [8, 8], strides = [1, 1]} : vector<8x32xf32> to vector<8x8xf32>
    "tpu.trace_start"() <{level = 10 : i32, message = "qd,kd->qk"}> : () -> ()
    %cst_161 = arith.constant dense<0.000000e+00> : vector<8x8xf32>
    %357 = tpu.matmul %355, %356, %cst_161 {dimension_numbers = #tpu.dot_dimension_numbers<[1], [1], [0], [0], [0, 0, 1, 0], [], []>} : vector<8x8xf32>, vector<8x8xf32>, vector<8x8xf32> -> vector<8x8xf32>
    "tpu.trace_stop"() : () -> ()
    %cst_162 = arith.constant dense<0xFF800000> : vector<8xf32>
    %358 = vector.multi_reduction <maximumf>, %357, %cst_162 [1] : vector<8x8xf32> to vector<8xf32>
    %359 = vector.shape_cast %358 : vector<8xf32> to vector<8x1xf32>
    %360 = vector.broadcast %359 : vector<8x1xf32> to vector<8x8xf32>
    %361 = arith.subf %357, %360 : vector<8x8xf32>
    %362 = math.exp %361 : vector<8x8xf32>
    %cst_163 = arith.constant dense<0.000000e+00> : vector<8xf32>
    %363 = vector.multi_reduction <add>, %362, %cst_163 [1] : vector<8x8xf32> to vector<8xf32>
    %364 = vector.shape_cast %363 : vector<8xf32> to vector<8x1xf32>
    %365 = vector.broadcast %364 : vector<8x1xf32> to vector<8x8xf32>
    %366 = arith.divf %362, %365 : vector<8x8xf32>
    %367 = vector.extract_strided_slice %302 {offsets = [0, 24], sizes = [8, 8], strides = [1, 1]} : vector<8x32xf32> to vector<8x8xf32>
    %cst_164 = arith.constant dense<0.000000e+00> : vector<8x8xf32>
    %368 = tpu.matmul %366, %367, %cst_164 {dimension_numbers = #tpu.dot_dimension_numbers<[1], [0], [0], [1], [0, 0, 1, 1], [], []>} : vector<8x8xf32>, vector<8x8xf32>, vector<8x8xf32> -> vector<8x8xf32>
    %369 = vector.extract_strided_slice %292 {offsets = [24, 0], sizes = [8, 32], strides = [1, 1]} : vector<32x32xf32> to vector<8x32xf32>
    %cst_165 = arith.constant dense<0.000000e+00> : vector<8x32xf32>
    %370 = tpu.matmul %368, %369, %cst_165 {dimension_numbers = #tpu.dot_dimension_numbers<[1], [0], [0], [1], [0, 0, 1, 1], [], []>} : vector<8x8xf32>, vector<8x32xf32>, vector<8x32xf32> -> vector<8x32xf32>
    %371 = arith.addf %354, %370 : vector<8x32xf32>
    %372 = vector.broadcast %294 : vector<1x32xf32> to vector<8x32xf32>
    %373 = arith.addf %371, %372 : vector<8x32xf32>
    %374 = arith.addf %282, %373 : vector<8x32xf32>
    %375 = vector.extract_strided_slice %284 {offsets = [0, 0], sizes = [1, 32], strides = [1, 1]} : vector<3x32xf32> to vector<1x32xf32>
    %376 = vector.extract_strided_slice %286 {offsets = [0, 0], sizes = [1, 32], strides = [1, 1]} : vector<3x32xf32> to vector<1x32xf32>
    %cst_166 = arith.constant dense<0.000000e+00> : vector<8xf32>
    %377 = vector.multi_reduction <add>, %374, %cst_166 [1] : vector<8x32xf32> to vector<8xf32>
    %378 = vector.shape_cast %377 : vector<8xf32> to vector<8x1xf32>
    %cst_167 = arith.constant 3.200000e+01 : f32
    %379 = vector.broadcast %cst_167 : f32 to vector<8x1xf32>
    %380 = arith.divf %378, %379 : vector<8x1xf32>
    %381 = vector.broadcast %380 : vector<8x1xf32> to vector<8x32xf32>
    %382 = arith.subf %374, %381 : vector<8x32xf32>
    %383 = arith.mulf %382, %382 : vector<8x32xf32>
    %cst_168 = arith.constant dense<0.000000e+00> : vector<8xf32>
    %384 = vector.multi_reduction <add>, %383, %cst_168 [1] : vector<8x32xf32> to vector<8xf32>
    %385 = vector.shape_cast %384 : vector<8xf32> to vector<8x1xf32>
    %cst_169 = arith.constant 3.200000e+01 : f32
    %386 = vector.broadcast %cst_169 : f32 to vector<8x1xf32>
    %387 = arith.divf %385, %386 : vector<8x1xf32>
    %388 = vector.broadcast %380 : vector<8x1xf32> to vector<8x32xf32>
    %389 = arith.subf %374, %388 : vector<8x32xf32>
    %cst_170 = arith.constant 9.99999974E-6 : f32
    %390 = vector.broadcast %cst_170 : f32 to vector<8x1xf32>
    %391 = arith.addf %387, %390 : vector<8x1xf32>
    %392 = math.rsqrt %391 : vector<8x1xf32>
    %393 = vector.broadcast %392 : vector<8x1xf32> to vector<8x32xf32>
    %394 = arith.mulf %389, %393 : vector<8x32xf32>
    %395 = vector.broadcast %375 : vector<1x32xf32> to vector<8x32xf32>
    %396 = arith.mulf %394, %395 : vector<8x32xf32>
    %397 = vector.broadcast %376 : vector<1x32xf32> to vector<8x32xf32>
    %398 = arith.addf %396, %397 : vector<8x32xf32>
    %c1_171 = arith.constant 1 : index
    %c1_172 = arith.constant 1 : index
    %c0_173 = arith.constant 0 : index
    %c0_174 = arith.constant 0 : index
    %399 = vector.load %arg4[%c1_171, %c1_172, %c0_173, %c0_174] : memref<2x2x32x96xf32, #tpu.memory_space<vmem>>, vector<1x1x32x96xf32>
    %400 = vector.shape_cast %399 : vector<1x1x32x96xf32> to vector<32x96xf32>
    %c1_175 = arith.constant 1 : index
    %c1_176 = arith.constant 1 : index
    %c0_177 = arith.constant 0 : index
    %c0_178 = arith.constant 0 : index
    %401 = vector.load %arg5[%c1_175, %c1_176, %c0_177, %c0_178] : memref<2x2x1x96xf32, #tpu.memory_space<vmem>>, vector<1x1x1x96xf32>
    %402 = vector.shape_cast %401 : vector<1x1x1x96xf32> to vector<1x96xf32>
    %c1_179 = arith.constant 1 : index
    %c1_180 = arith.constant 1 : index
    %c0_181 = arith.constant 0 : index
    %c0_182 = arith.constant 0 : index
    %403 = vector.load %arg6[%c1_179, %c1_180, %c0_181, %c0_182] : memref<2x2x32x32xf32, #tpu.memory_space<vmem>>, vector<1x1x32x32xf32>
    %404 = vector.shape_cast %403 : vector<1x1x32x32xf32> to vector<32x32xf32>
    %c1_183 = arith.constant 1 : index
    %c1_184 = arith.constant 1 : index
    %c0_185 = arith.constant 0 : index
    %c0_186 = arith.constant 0 : index
    %405 = vector.load %arg7[%c1_183, %c1_184, %c0_185, %c0_186] : memref<2x2x1x32xf32, #tpu.memory_space<vmem>>, vector<1x1x1x32xf32>
    %406 = vector.shape_cast %405 : vector<1x1x1x32xf32> to vector<1x32xf32>
    %407 = vector.extract_strided_slice %400 {offsets = [0, 0], sizes = [32, 32], strides = [1, 1]} : vector<32x96xf32> to vector<32x32xf32>
    %cst_187 = arith.constant dense<0.000000e+00> : vector<8x32xf32>
    %408 = tpu.matmul %398, %407, %cst_187 {dimension_numbers = #tpu.dot_dimension_numbers<[1], [0], [0], [1], [0, 0, 1, 1], [], []>} : vector<8x32xf32>, vector<32x32xf32>, vector<8x32xf32> -> vector<8x32xf32>
    %409 = vector.extract_strided_slice %402 {offsets = [0, 0], sizes = [1, 32], strides = [1, 1]} : vector<1x96xf32> to vector<1x32xf32>
    %410 = vector.broadcast %409 : vector<1x32xf32> to vector<8x32xf32>
    %411 = arith.addf %408, %410 : vector<8x32xf32>
    %cst_188 = arith.constant 0.353553385 : f32
    %412 = vector.broadcast %cst_188 : f32 to vector<8x32xf32>
    %413 = arith.mulf %411, %412 : vector<8x32xf32>
    %414 = vector.extract_strided_slice %400 {offsets = [0, 32], sizes = [32, 64], strides = [1, 1]} : vector<32x96xf32> to vector<32x64xf32>
    %cst_189 = arith.constant dense<0.000000e+00> : vector<8x64xf32>
    %415 = tpu.matmul %282, %414, %cst_189 {dimension_numbers = #tpu.dot_dimension_numbers<[1], [0], [0], [1], [0, 0, 1, 1], [], []>} : vector<8x32xf32>, vector<32x64xf32>, vector<8x64xf32> -> vector<8x64xf32>
    %416 = vector.extract_strided_slice %402 {offsets = [0, 32], sizes = [1, 64], strides = [1, 1]} : vector<1x96xf32> to vector<1x64xf32>
    %417 = vector.broadcast %416 : vector<1x64xf32> to vector<8x64xf32>
    %418 = arith.addf %415, %417 : vector<8x64xf32>
    %419 = vector.extract_strided_slice %418 {offsets = [0, 0], sizes = [8, 32], strides = [1, 1]} : vector<8x64xf32> to vector<8x32xf32>
    %420 = vector.extract_strided_slice %418 {offsets = [0, 32], sizes = [8, 32], strides = [1, 1]} : vector<8x64xf32> to vector<8x32xf32>
    %cst_190 = arith.constant 0.000000e+00 : f32
    %421 = vector.broadcast %cst_190 : f32 to vector<8x32xf32>
    %422 = vector.extract_strided_slice %413 {offsets = [0, 0], sizes = [8, 8], strides = [1, 1]} : vector<8x32xf32> to vector<8x8xf32>
    %423 = vector.extract_strided_slice %419 {offsets = [0, 0], sizes = [8, 8], strides = [1, 1]} : vector<8x32xf32> to vector<8x8xf32>
    "tpu.trace_start"() <{level = 10 : i32, message = "qd,kd->qk"}> : () -> ()
    %cst_191 = arith.constant dense<0.000000e+00> : vector<8x8xf32>
    %424 = tpu.matmul %422, %423, %cst_191 {dimension_numbers = #tpu.dot_dimension_numbers<[1], [1], [0], [0], [0, 0, 1, 0], [], []>} : vector<8x8xf32>, vector<8x8xf32>, vector<8x8xf32> -> vector<8x8xf32>
    "tpu.trace_stop"() : () -> ()
    %cst_192 = arith.constant dense<0xFF800000> : vector<8xf32>
    %425 = vector.multi_reduction <maximumf>, %424, %cst_192 [1] : vector<8x8xf32> to vector<8xf32>
    %426 = vector.shape_cast %425 : vector<8xf32> to vector<8x1xf32>
    %427 = vector.broadcast %426 : vector<8x1xf32> to vector<8x8xf32>
    %428 = arith.subf %424, %427 : vector<8x8xf32>
    %429 = math.exp %428 : vector<8x8xf32>
    %cst_193 = arith.constant dense<0.000000e+00> : vector<8xf32>
    %430 = vector.multi_reduction <add>, %429, %cst_193 [1] : vector<8x8xf32> to vector<8xf32>
    %431 = vector.shape_cast %430 : vector<8xf32> to vector<8x1xf32>
    %432 = vector.broadcast %431 : vector<8x1xf32> to vector<8x8xf32>
    %433 = arith.divf %429, %432 : vector<8x8xf32>
    %434 = vector.extract_strided_slice %420 {offsets = [0, 0], sizes = [8, 8], strides = [1, 1]} : vector<8x32xf32> to vector<8x8xf32>
    %cst_194 = arith.constant dense<0.000000e+00> : vector<8x8xf32>
    %435 = tpu.matmul %433, %434, %cst_194 {dimension_numbers = #tpu.dot_dimension_numbers<[1], [0], [0], [1], [0, 0, 1, 1], [], []>} : vector<8x8xf32>, vector<8x8xf32>, vector<8x8xf32> -> vector<8x8xf32>
    %436 = vector.extract_strided_slice %404 {offsets = [0, 0], sizes = [8, 32], strides = [1, 1]} : vector<32x32xf32> to vector<8x32xf32>
    %cst_195 = arith.constant dense<0.000000e+00> : vector<8x32xf32>
    %437 = tpu.matmul %435, %436, %cst_195 {dimension_numbers = #tpu.dot_dimension_numbers<[1], [0], [0], [1], [0, 0, 1, 1], [], []>} : vector<8x8xf32>, vector<8x32xf32>, vector<8x32xf32> -> vector<8x32xf32>
    %438 = arith.addf %421, %437 : vector<8x32xf32>
    %439 = vector.extract_strided_slice %413 {offsets = [0, 8], sizes = [8, 8], strides = [1, 1]} : vector<8x32xf32> to vector<8x8xf32>
    %440 = vector.extract_strided_slice %419 {offsets = [0, 8], sizes = [8, 8], strides = [1, 1]} : vector<8x32xf32> to vector<8x8xf32>
    "tpu.trace_start"() <{level = 10 : i32, message = "qd,kd->qk"}> : () -> ()
    %cst_196 = arith.constant dense<0.000000e+00> : vector<8x8xf32>
    %441 = tpu.matmul %439, %440, %cst_196 {dimension_numbers = #tpu.dot_dimension_numbers<[1], [1], [0], [0], [0, 0, 1, 0], [], []>} : vector<8x8xf32>, vector<8x8xf32>, vector<8x8xf32> -> vector<8x8xf32>
    "tpu.trace_stop"() : () -> ()
    %cst_197 = arith.constant dense<0xFF800000> : vector<8xf32>
    %442 = vector.multi_reduction <maximumf>, %441, %cst_197 [1] : vector<8x8xf32> to vector<8xf32>
    %443 = vector.shape_cast %442 : vector<8xf32> to vector<8x1xf32>
    %444 = vector.broadcast %443 : vector<8x1xf32> to vector<8x8xf32>
    %445 = arith.subf %441, %444 : vector<8x8xf32>
    %446 = math.exp %445 : vector<8x8xf32>
    %cst_198 = arith.constant dense<0.000000e+00> : vector<8xf32>
    %447 = vector.multi_reduction <add>, %446, %cst_198 [1] : vector<8x8xf32> to vector<8xf32>
    %448 = vector.shape_cast %447 : vector<8xf32> to vector<8x1xf32>
    %449 = vector.broadcast %448 : vector<8x1xf32> to vector<8x8xf32>
    %450 = arith.divf %446, %449 : vector<8x8xf32>
    %451 = vector.extract_strided_slice %420 {offsets = [0, 8], sizes = [8, 8], strides = [1, 1]} : vector<8x32xf32> to vector<8x8xf32>
    %cst_199 = arith.constant dense<0.000000e+00> : vector<8x8xf32>
    %452 = tpu.matmul %450, %451, %cst_199 {dimension_numbers = #tpu.dot_dimension_numbers<[1], [0], [0], [1], [0, 0, 1, 1], [], []>} : vector<8x8xf32>, vector<8x8xf32>, vector<8x8xf32> -> vector<8x8xf32>
    %453 = vector.extract_strided_slice %404 {offsets = [8, 0], sizes = [8, 32], strides = [1, 1]} : vector<32x32xf32> to vector<8x32xf32>
    %cst_200 = arith.constant dense<0.000000e+00> : vector<8x32xf32>
    %454 = tpu.matmul %452, %453, %cst_200 {dimension_numbers = #tpu.dot_dimension_numbers<[1], [0], [0], [1], [0, 0, 1, 1], [], []>} : vector<8x8xf32>, vector<8x32xf32>, vector<8x32xf32> -> vector<8x32xf32>
    %455 = arith.addf %438, %454 : vector<8x32xf32>
    %456 = vector.extract_strided_slice %413 {offsets = [0, 16], sizes = [8, 8], strides = [1, 1]} : vector<8x32xf32> to vector<8x8xf32>
    %457 = vector.extract_strided_slice %419 {offsets = [0, 16], sizes = [8, 8], strides = [1, 1]} : vector<8x32xf32> to vector<8x8xf32>
    "tpu.trace_start"() <{level = 10 : i32, message = "qd,kd->qk"}> : () -> ()
    %cst_201 = arith.constant dense<0.000000e+00> : vector<8x8xf32>
    %458 = tpu.matmul %456, %457, %cst_201 {dimension_numbers = #tpu.dot_dimension_numbers<[1], [1], [0], [0], [0, 0, 1, 0], [], []>} : vector<8x8xf32>, vector<8x8xf32>, vector<8x8xf32> -> vector<8x8xf32>
    "tpu.trace_stop"() : () -> ()
    %cst_202 = arith.constant dense<0xFF800000> : vector<8xf32>
    %459 = vector.multi_reduction <maximumf>, %458, %cst_202 [1] : vector<8x8xf32> to vector<8xf32>
    %460 = vector.shape_cast %459 : vector<8xf32> to vector<8x1xf32>
    %461 = vector.broadcast %460 : vector<8x1xf32> to vector<8x8xf32>
    %462 = arith.subf %458, %461 : vector<8x8xf32>
    %463 = math.exp %462 : vector<8x8xf32>
    %cst_203 = arith.constant dense<0.000000e+00> : vector<8xf32>
    %464 = vector.multi_reduction <add>, %463, %cst_203 [1] : vector<8x8xf32> to vector<8xf32>
    %465 = vector.shape_cast %464 : vector<8xf32> to vector<8x1xf32>
    %466 = vector.broadcast %465 : vector<8x1xf32> to vector<8x8xf32>
    %467 = arith.divf %463, %466 : vector<8x8xf32>
    %468 = vector.extract_strided_slice %420 {offsets = [0, 16], sizes = [8, 8], strides = [1, 1]} : vector<8x32xf32> to vector<8x8xf32>
    %cst_204 = arith.constant dense<0.000000e+00> : vector<8x8xf32>
    %469 = tpu.matmul %467, %468, %cst_204 {dimension_numbers = #tpu.dot_dimension_numbers<[1], [0], [0], [1], [0, 0, 1, 1], [], []>} : vector<8x8xf32>, vector<8x8xf32>, vector<8x8xf32> -> vector<8x8xf32>
    %470 = vector.extract_strided_slice %404 {offsets = [16, 0], sizes = [8, 32], strides = [1, 1]} : vector<32x32xf32> to vector<8x32xf32>
    %cst_205 = arith.constant dense<0.000000e+00> : vector<8x32xf32>
    %471 = tpu.matmul %469, %470, %cst_205 {dimension_numbers = #tpu.dot_dimension_numbers<[1], [0], [0], [1], [0, 0, 1, 1], [], []>} : vector<8x8xf32>, vector<8x32xf32>, vector<8x32xf32> -> vector<8x32xf32>
    %472 = arith.addf %455, %471 : vector<8x32xf32>
    %473 = vector.extract_strided_slice %413 {offsets = [0, 24], sizes = [8, 8], strides = [1, 1]} : vector<8x32xf32> to vector<8x8xf32>
    %474 = vector.extract_strided_slice %419 {offsets = [0, 24], sizes = [8, 8], strides = [1, 1]} : vector<8x32xf32> to vector<8x8xf32>
    "tpu.trace_start"() <{level = 10 : i32, message = "qd,kd->qk"}> : () -> ()
    %cst_206 = arith.constant dense<0.000000e+00> : vector<8x8xf32>
    %475 = tpu.matmul %473, %474, %cst_206 {dimension_numbers = #tpu.dot_dimension_numbers<[1], [1], [0], [0], [0, 0, 1, 0], [], []>} : vector<8x8xf32>, vector<8x8xf32>, vector<8x8xf32> -> vector<8x8xf32>
    "tpu.trace_stop"() : () -> ()
    %cst_207 = arith.constant dense<0xFF800000> : vector<8xf32>
    %476 = vector.multi_reduction <maximumf>, %475, %cst_207 [1] : vector<8x8xf32> to vector<8xf32>
    %477 = vector.shape_cast %476 : vector<8xf32> to vector<8x1xf32>
    %478 = vector.broadcast %477 : vector<8x1xf32> to vector<8x8xf32>
    %479 = arith.subf %475, %478 : vector<8x8xf32>
    %480 = math.exp %479 : vector<8x8xf32>
    %cst_208 = arith.constant dense<0.000000e+00> : vector<8xf32>
    %481 = vector.multi_reduction <add>, %480, %cst_208 [1] : vector<8x8xf32> to vector<8xf32>
    %482 = vector.shape_cast %481 : vector<8xf32> to vector<8x1xf32>
    %483 = vector.broadcast %482 : vector<8x1xf32> to vector<8x8xf32>
    %484 = arith.divf %480, %483 : vector<8x8xf32>
    %485 = vector.extract_strided_slice %420 {offsets = [0, 24], sizes = [8, 8], strides = [1, 1]} : vector<8x32xf32> to vector<8x8xf32>
    %cst_209 = arith.constant dense<0.000000e+00> : vector<8x8xf32>
    %486 = tpu.matmul %484, %485, %cst_209 {dimension_numbers = #tpu.dot_dimension_numbers<[1], [0], [0], [1], [0, 0, 1, 1], [], []>} : vector<8x8xf32>, vector<8x8xf32>, vector<8x8xf32> -> vector<8x8xf32>
    %487 = vector.extract_strided_slice %404 {offsets = [24, 0], sizes = [8, 32], strides = [1, 1]} : vector<32x32xf32> to vector<8x32xf32>
    %cst_210 = arith.constant dense<0.000000e+00> : vector<8x32xf32>
    %488 = tpu.matmul %486, %487, %cst_210 {dimension_numbers = #tpu.dot_dimension_numbers<[1], [0], [0], [1], [0, 0, 1, 1], [], []>} : vector<8x8xf32>, vector<8x32xf32>, vector<8x32xf32> -> vector<8x32xf32>
    %489 = arith.addf %472, %488 : vector<8x32xf32>
    %490 = vector.broadcast %406 : vector<1x32xf32> to vector<8x32xf32>
    %491 = arith.addf %489, %490 : vector<8x32xf32>
    %492 = arith.addf %398, %491 : vector<8x32xf32>
    %493 = vector.extract_strided_slice %284 {offsets = [1, 0], sizes = [1, 32], strides = [1, 1]} : vector<3x32xf32> to vector<1x32xf32>
    %494 = vector.extract_strided_slice %286 {offsets = [1, 0], sizes = [1, 32], strides = [1, 1]} : vector<3x32xf32> to vector<1x32xf32>
    %cst_211 = arith.constant dense<0.000000e+00> : vector<8xf32>
    %495 = vector.multi_reduction <add>, %492, %cst_211 [1] : vector<8x32xf32> to vector<8xf32>
    %496 = vector.shape_cast %495 : vector<8xf32> to vector<8x1xf32>
    %cst_212 = arith.constant 3.200000e+01 : f32
    %497 = vector.broadcast %cst_212 : f32 to vector<8x1xf32>
    %498 = arith.divf %496, %497 : vector<8x1xf32>
    %499 = vector.broadcast %498 : vector<8x1xf32> to vector<8x32xf32>
    %500 = arith.subf %492, %499 : vector<8x32xf32>
    %501 = arith.mulf %500, %500 : vector<8x32xf32>
    %cst_213 = arith.constant dense<0.000000e+00> : vector<8xf32>
    %502 = vector.multi_reduction <add>, %501, %cst_213 [1] : vector<8x32xf32> to vector<8xf32>
    %503 = vector.shape_cast %502 : vector<8xf32> to vector<8x1xf32>
    %cst_214 = arith.constant 3.200000e+01 : f32
    %504 = vector.broadcast %cst_214 : f32 to vector<8x1xf32>
    %505 = arith.divf %503, %504 : vector<8x1xf32>
    %506 = vector.broadcast %498 : vector<8x1xf32> to vector<8x32xf32>
    %507 = arith.subf %492, %506 : vector<8x32xf32>
    %cst_215 = arith.constant 9.99999974E-6 : f32
    %508 = vector.broadcast %cst_215 : f32 to vector<8x1xf32>
    %509 = arith.addf %505, %508 : vector<8x1xf32>
    %510 = math.rsqrt %509 : vector<8x1xf32>
    %511 = vector.broadcast %510 : vector<8x1xf32> to vector<8x32xf32>
    %512 = arith.mulf %507, %511 : vector<8x32xf32>
    %513 = vector.broadcast %493 : vector<1x32xf32> to vector<8x32xf32>
    %514 = arith.mulf %512, %513 : vector<8x32xf32>
    %515 = vector.broadcast %494 : vector<1x32xf32> to vector<8x32xf32>
    %516 = arith.addf %514, %515 : vector<8x32xf32>
    %c1_216 = arith.constant 1 : index
    %c0_217 = arith.constant 0 : index
    %c0_218 = arith.constant 0 : index
    %517 = vector.load %arg8[%c1_216, %c0_217, %c0_218] : memref<2x32x64xf32, #tpu.memory_space<vmem>>, vector<1x32x64xf32>
    %518 = vector.shape_cast %517 : vector<1x32x64xf32> to vector<32x64xf32>
    %cst_219 = arith.constant dense<0.000000e+00> : vector<8x64xf32>
    %519 = tpu.matmul %516, %518, %cst_219 {dimension_numbers = #tpu.dot_dimension_numbers<[1], [0], [0], [1], [0, 0, 1, 1], [], []>} : vector<8x32xf32>, vector<32x64xf32>, vector<8x64xf32> -> vector<8x64xf32>
    %c1_220 = arith.constant 1 : index
    %c0_221 = arith.constant 0 : index
    %c0_222 = arith.constant 0 : index
    %520 = vector.load %arg9[%c1_220, %c0_221, %c0_222] : memref<2x1x64xf32, #tpu.memory_space<vmem>>, vector<1x1x64xf32>
    %521 = vector.shape_cast %520 : vector<1x1x64xf32> to vector<1x64xf32>
    %522 = vector.broadcast %521 : vector<1x64xf32> to vector<8x64xf32>
    %523 = arith.addf %519, %522 : vector<8x64xf32>
    %cst_223 = arith.constant 0.000000e+00 : f32
    %524 = vector.broadcast %cst_223 : f32 to vector<8x64xf32>
    %525 = arith.maximumf %523, %524 : vector<8x64xf32>
    %c1_224 = arith.constant 1 : index
    %c0_225 = arith.constant 0 : index
    %c0_226 = arith.constant 0 : index
    %526 = vector.load %arg10[%c1_224, %c0_225, %c0_226] : memref<2x64x32xf32, #tpu.memory_space<vmem>>, vector<1x64x32xf32>
    %527 = vector.shape_cast %526 : vector<1x64x32xf32> to vector<64x32xf32>
    %cst_227 = arith.constant dense<0.000000e+00> : vector<8x32xf32>
    %528 = tpu.matmul %525, %527, %cst_227 {dimension_numbers = #tpu.dot_dimension_numbers<[1], [0], [0], [1], [0, 0, 1, 1], [], []>} : vector<8x64xf32>, vector<64x32xf32>, vector<8x32xf32> -> vector<8x32xf32>
    %c1_228 = arith.constant 1 : index
    %c0_229 = arith.constant 0 : index
    %c0_230 = arith.constant 0 : index
    %529 = vector.load %arg11[%c1_228, %c0_229, %c0_230] : memref<2x1x32xf32, #tpu.memory_space<vmem>>, vector<1x1x32xf32>
    %530 = vector.shape_cast %529 : vector<1x1x32xf32> to vector<1x32xf32>
    %531 = vector.broadcast %530 : vector<1x32xf32> to vector<8x32xf32>
    %532 = arith.addf %528, %531 : vector<8x32xf32>
    %533 = arith.addf %516, %532 : vector<8x32xf32>
    %534 = vector.extract_strided_slice %284 {offsets = [2, 0], sizes = [1, 32], strides = [1, 1]} : vector<3x32xf32> to vector<1x32xf32>
    %535 = vector.extract_strided_slice %286 {offsets = [2, 0], sizes = [1, 32], strides = [1, 1]} : vector<3x32xf32> to vector<1x32xf32>
    %cst_231 = arith.constant dense<0.000000e+00> : vector<8xf32>
    %536 = vector.multi_reduction <add>, %533, %cst_231 [1] : vector<8x32xf32> to vector<8xf32>
    %537 = vector.shape_cast %536 : vector<8xf32> to vector<8x1xf32>
    %cst_232 = arith.constant 3.200000e+01 : f32
    %538 = vector.broadcast %cst_232 : f32 to vector<8x1xf32>
    %539 = arith.divf %537, %538 : vector<8x1xf32>
    %540 = vector.broadcast %539 : vector<8x1xf32> to vector<8x32xf32>
    %541 = arith.subf %533, %540 : vector<8x32xf32>
    %542 = arith.mulf %541, %541 : vector<8x32xf32>
    %cst_233 = arith.constant dense<0.000000e+00> : vector<8xf32>
    %543 = vector.multi_reduction <add>, %542, %cst_233 [1] : vector<8x32xf32> to vector<8xf32>
    %544 = vector.shape_cast %543 : vector<8xf32> to vector<8x1xf32>
    %cst_234 = arith.constant 3.200000e+01 : f32
    %545 = vector.broadcast %cst_234 : f32 to vector<8x1xf32>
    %546 = arith.divf %544, %545 : vector<8x1xf32>
    %547 = vector.broadcast %539 : vector<8x1xf32> to vector<8x32xf32>
    %548 = arith.subf %533, %547 : vector<8x32xf32>
    %cst_235 = arith.constant 9.99999974E-6 : f32
    %549 = vector.broadcast %cst_235 : f32 to vector<8x1xf32>
    %550 = arith.addf %546, %549 : vector<8x1xf32>
    %551 = math.rsqrt %550 : vector<8x1xf32>
    %552 = vector.broadcast %551 : vector<8x1xf32> to vector<8x32xf32>
    %553 = arith.mulf %548, %552 : vector<8x32xf32>
    %554 = vector.broadcast %534 : vector<1x32xf32> to vector<8x32xf32>
    %555 = arith.mulf %553, %554 : vector<8x32xf32>
    %556 = vector.broadcast %535 : vector<1x32xf32> to vector<8x32xf32>
    %557 = arith.addf %555, %556 : vector<8x32xf32>
    %c0_236 = arith.constant 0 : index
    %c0_237 = arith.constant 0 : index
    %558 = vector.load %arg14[%c0_236, %c0_237] : memref<32x64xf32, #tpu.memory_space<vmem>>, vector<32x64xf32>
    %cst_238 = arith.constant dense<0.000000e+00> : vector<8x64xf32>
    %559 = tpu.matmul %557, %558, %cst_238 {dimension_numbers = #tpu.dot_dimension_numbers<[1], [0], [0], [1], [0, 0, 1, 1], [], []>} : vector<8x32xf32>, vector<32x64xf32>, vector<8x64xf32> -> vector<8x64xf32>
    %c0_239 = arith.constant 0 : index
    %c0_240 = arith.constant 0 : index
    %560 = vector.load %arg15[%c0_239, %c0_240] : memref<1x64xf32, #tpu.memory_space<vmem>>, vector<1x64xf32>
    %561 = vector.broadcast %560 : vector<1x64xf32> to vector<8x64xf32>
    %562 = arith.addf %559, %561 : vector<8x64xf32>
    %cst_241 = arith.constant dense<0xFF800000> : vector<8xf32>
    %563 = vector.multi_reduction <maximumf>, %562, %cst_241 [1] : vector<8x64xf32> to vector<8xf32>
    %564 = vector.shape_cast %563 : vector<8xf32> to vector<8x1xf32>
    %565 = vector.broadcast %564 : vector<8x1xf32> to vector<8x64xf32>
    %566 = arith.subf %562, %565 : vector<8x64xf32>
    %567 = math.exp %566 : vector<8x64xf32>
    %cst_242 = arith.constant dense<0.000000e+00> : vector<8xf32>
    %568 = vector.multi_reduction <add>, %567, %cst_242 [1] : vector<8x64xf32> to vector<8xf32>
    %569 = vector.shape_cast %568 : vector<8xf32> to vector<8x1xf32>
    %570 = vector.broadcast %569 : vector<8x1xf32> to vector<8x64xf32>
    %571 = arith.divf %567, %570 : vector<8x64xf32>
    %c0_243 = arith.constant 0 : index
    %c0_244 = arith.constant 0 : index
    %c0_245 = arith.constant 0 : index
    %572 = vector.load %arg16[%c0_243, %c0_244, %c0_245] : memref<1x8x64xf32, #tpu.memory_space<vmem>>, vector<1x8x64xf32>
    %573 = vector.shape_cast %572 : vector<1x8x64xf32> to vector<8x64xf32>
    %574 = vector.shape_cast %571 : vector<8x64xf32> to vector<1x8x64xf32>
    tpu.vector_store %arg16[%c0_243, %c0_244, %c0_245], %574 {strides = array<i32>} : memref<1x8x64xf32, #tpu.memory_space<vmem>>, vector<1x8x64xf32>,
    return
  }
  func.func @transform_0(%arg0: i32) -> (i32, i32, i32) {
    %c0_i32 = arith.constant 0 : i32
    %c0_i32_0 = arith.constant 0 : i32
    %c0_i32_1 = arith.constant 0 : i32
    return %arg0, %c0_i32, %c0_i32_0 : i32, i32, i32
  }
  func.func @transform_1(%arg0: i32) -> (i32, i32, i32) {
    %c0_i32 = arith.constant 0 : i32
    %c0_i32_0 = arith.constant 0 : i32
    %c0_i32_1 = arith.constant 0 : i32
    return %arg0, %c0_i32, %c0_i32_0 : i32, i32, i32
  }
  func.func @transform_2(%arg0: i32) -> (i32, i32, i32) {
    %c0_i32 = arith.constant 0 : i32
    %c0_i32_0 = arith.constant 0 : i32
    %c0_i32_1 = arith.constant 0 : i32
    return %arg0, %c0_i32, %c0_i32_0 : i32, i32, i32
  }
  func.func @transform_3(%arg0: i32) -> (i32, i32, i32, i32) {
    %c0_i32 = arith.constant 0 : i32
    %c0_i32_0 = arith.constant 0 : i32
    %c0_i32_1 = arith.constant 0 : i32
    %c0_i32_2 = arith.constant 0 : i32
    %c0_i32_3 = arith.constant 0 : i32
    return %c0_i32, %c0_i32_0, %c0_i32_1, %c0_i32_2 : i32, i32, i32, i32
  }
  func.func @transform_4(%arg0: i32) -> (i32, i32, i32, i32) {
    %c0_i32 = arith.constant 0 : i32
    %c0_i32_0 = arith.constant 0 : i32
    %c0_i32_1 = arith.constant 0 : i32
    %c0_i32_2 = arith.constant 0 : i32
    %c0_i32_3 = arith.constant 0 : i32
    return %c0_i32, %c0_i32_0, %c0_i32_1, %c0_i32_2 : i32, i32, i32, i32
  }
  func.func @transform_5(%arg0: i32) -> (i32, i32, i32, i32) {
    %c0_i32 = arith.constant 0 : i32
    %c0_i32_0 = arith.constant 0 : i32
    %c0_i32_1 = arith.constant 0 : i32
    %c0_i32_2 = arith.constant 0 : i32
    %c0_i32_3 = arith.constant 0 : i32
    return %c0_i32, %c0_i32_0, %c0_i32_1, %c0_i32_2 : i32, i32, i32, i32
  }
  func.func @transform_6(%arg0: i32) -> (i32, i32, i32, i32) {
    %c0_i32 = arith.constant 0 : i32
    %c0_i32_0 = arith.constant 0 : i32
    %c0_i32_1 = arith.constant 0 : i32
    %c0_i32_2 = arith.constant 0 : i32
    %c0_i32_3 = arith.constant 0 : i32
    return %c0_i32, %c0_i32_0, %c0_i32_1, %c0_i32_2 : i32, i32, i32, i32
  }
  func.func @transform_7(%arg0: i32) -> (i32, i32, i32) {
    %c0_i32 = arith.constant 0 : i32
    %c0_i32_0 = arith.constant 0 : i32
    %c0_i32_1 = arith.constant 0 : i32
    %c0_i32_2 = arith.constant 0 : i32
    return %c0_i32, %c0_i32_0, %c0_i32_1 : i32, i32, i32
  }
  func.func @transform_8(%arg0: i32) -> (i32, i32, i32) {
    %c0_i32 = arith.constant 0 : i32
    %c0_i32_0 = arith.constant 0 : i32
    %c0_i32_1 = arith.constant 0 : i32
    %c0_i32_2 = arith.constant 0 : i32
    return %c0_i32, %c0_i32_0, %c0_i32_1 : i32, i32, i32
  }
  func.func @transform_9(%arg0: i32) -> (i32, i32, i32) {
    %c0_i32 = arith.constant 0 : i32
    %c0_i32_0 = arith.constant 0 : i32
    %c0_i32_1 = arith.constant 0 : i32
    %c0_i32_2 = arith.constant 0 : i32
    return %c0_i32, %c0_i32_0, %c0_i32_1 : i32, i32, i32
  }
  func.func @transform_10(%arg0: i32) -> (i32, i32, i32) {
    %c0_i32 = arith.constant 0 : i32
    %c0_i32_0 = arith.constant 0 : i32
    %c0_i32_1 = arith.constant 0 : i32
    %c0_i32_2 = arith.constant 0 : i32
    return %c0_i32, %c0_i32_0, %c0_i32_1 : i32, i32, i32
  }
  func.func @transform_11(%arg0: i32) -> (i32, i32, i32) {
    %c0_i32 = arith.constant 0 : i32
    %c0_i32_0 = arith.constant 0 : i32
    %c0_i32_1 = arith.constant 0 : i32
    %c0_i32_2 = arith.constant 0 : i32
    return %c0_i32, %c0_i32_0, %c0_i32_1 : i32, i32, i32
  }
  func.func @transform_12(%arg0: i32) -> (i32, i32, i32) {
    %c0_i32 = arith.constant 0 : i32
    %c0_i32_0 = arith.constant 0 : i32
    %c0_i32_1 = arith.constant 0 : i32
    %c0_i32_2 = arith.constant 0 : i32
    return %c0_i32, %c0_i32_0, %c0_i32_1 : i32, i32, i32
  }
  func.func @transform_13(%arg0: i32) -> (i32, i32) {
    %c0_i32 = arith.constant 0 : i32
    %c0_i32_0 = arith.constant 0 : i32
    %c0_i32_1 = arith.constant 0 : i32
    return %c0_i32, %c0_i32_0 : i32, i32
  }
  func.func @transform_14(%arg0: i32) -> (i32, i32) {
    %c0_i32 = arith.constant 0 : i32
    %c0_i32_0 = arith.constant 0 : i32
    %c0_i32_1 = arith.constant 0 : i32
    return %c0_i32, %c0_i32_0 : i32, i32
  }
  func.func @transform_15(%arg0: i32) -> (i32, i32, i32) {
    %c0_i32 = arith.constant 0 : i32
    %c0_i32_0 = arith.constant 0 : i32
    %c0_i32_1 = arith.constant 0 : i32
    return %arg0, %c0_i32, %c0_i32_0 : i32, i32, i32
  }
}

</mosaic_0001>

<llo_original>
// kernel: tpu_custom_call.1
$region0: #{tpu_custom_call.1}
  #allocation0 [shape = 'u32[]', space=smem, size = 0x4, offset = 0x4, fixed_abs, tag = 'smem constant byte address 0x4 - core index']
  #allocation1 [shape = 'u32[144,128]{1,0:T(1,128)}', space=vmem, size = 0x12000, scoped, tag = 'internal scratch']
  %s0 = inlined_call_operand.hbm [shape: f32[2,8,32], index: 0, kind: input, shape index: {}]
  %s1 = inlined_call_operand.hbm [shape: f32[2,8,32], index: 1, kind: input, shape index: {}]
  %s2 = inlined_call_operand.hbm [shape: f32[2,8,32], index: 2, kind: input, shape index: {}]
  %s3 = inlined_call_operand.vmem [shape: f32[2,2,32,96], index: 3, kind: input, shape index: {}]
  %s4 = inlined_call_operand.hbm [shape: f32[2,2,1,96], index: 4, kind: input, shape index: {}]
  %s5 = inlined_call_operand.hbm [shape: f32[2,2,32,32], index: 5, kind: input, shape index: {}]
  %s6 = inlined_call_operand.vmem [shape: f32[2,2,1,32], index: 6, kind: input, shape index: {}]
  %s7 = inlined_call_operand.vmem [shape: f32[2,32,64], index: 7, kind: input, shape index: {}]
  %s8 = inlined_call_operand.vmem [shape: f32[2,1,64], index: 8, kind: input, shape index: {}]
  %s9 = inlined_call_operand.vmem [shape: f32[2,64,32], index: 9, kind: input, shape index: {}]
  %s10 = inlined_call_operand.vmem [shape: f32[2,1,32], index: 10, kind: input, shape index: {}]
  %s11 = inlined_call_operand.vmem [shape: f32[2,3,32], index: 11, kind: input, shape index: {}]
  %s12 = inlined_call_operand.vmem [shape: f32[2,3,32], index: 12, kind: input, shape index: {}]
  %s13 = inlined_call_operand.vmem [shape: f32[32,64], index: 13, kind: input, shape index: {}]
  %s14 = inlined_call_operand.vmem [shape: f32[1,64], index: 14, kind: input, shape index: {}]
  %s15 = inlined_call_operand.hbm [shape: f32[2,8,64], index: 15, kind: output, shape index: {}]
  %s16 = sld [smem:[#allocation0]]
  $region113: #{tpu_custom_call.1} parent=0
    _
  %s18 = ssub.s32 1, %s16
  %s19 = scalar_select 0, %s18, %s16
  $region1: #{tpu_custom_call.1} parent=0
    #allocation2 [shape = 'u8[8192]{0}', space=vmem, size = 0x2000, scoped, tag = 'input window, operand 0']
    #allocation3 [shape = 's32[2]{0}', space=sflag, size = 0x8, scoped, tag = 'scoped memory for tpu_custom_call.1']
    #allocation4 [shape = 's32[2]{0}', space=sflag, size = 0x8, scoped, tag = 'scoped memory for tpu_custom_call.1']
    #allocation5 [shape = 'u8[8192]{0}', space=vmem, size = 0x2000, scoped, tag = 'input window, operand 1']
    #allocation6 [shape = 's32[2]{0}', space=sflag, size = 0x8, scoped, tag = 'scoped memory for tpu_custom_call.1']
    #allocation7 [shape = 'u8[8192]{0}', space=vmem, size = 0x2000, scoped, tag = 'input window, operand 2']
    #allocation8 [shape = 'u8[2048]{0}', space=vmem, size = 0x800, scoped, tag = 'input window, operand 4, single buffered']
    #allocation9 [shape = 's32[1]{0}', space=sflag, size = 0x4, scoped, tag = 'scoped memory for tpu_custom_call.1']
    #allocation10 [shape = 'u8[65536]{0}', space=vmem, size = 0x10000, scoped, tag = 'input window, operand 5, single buffered']
    #allocation11 [shape = 'u8[8192]{0}', space=vmem, size = 0x2000, scoped, tag = 'output window, operand 0']
    %20 = vsyncpa [#allocation3], 0
    %s21 = scalar_lea.sflag [#allocation3], 1
    %22 = vsyncpa %s21, 0
    %23 = vsyncpa [#allocation6], 0
    %s24 = scalar_lea.sflag [#allocation6], 1
    %25 = vsyncpa %s24, 0
    %26 = vsyncpa [#allocation9], 0
    %27 = vsyncpa [#allocation4], 0
    %s28 = scalar_lea.sflag [#allocation4], 1
    %29 = vsyncpa %s28, 0
    loop: start=0, step=1, limit=4
    $region2: #{tpu_custom_call.1} parent=1 // loop_pre_header
      _
    $region3: #{tpu_custom_call.1} parent=1 // loop_header
      %s31 = sphi 0, %s35
      %p32 = scmp.ge.s32.totalorder %s31, 4
      %s41 = sphi 0, %s43
      %s44 = sphi 0, %s41
      %s45 = sphi 0, %s44
      %s61 = sphi 0, %s45
      %s67 = sphi 0, %s69
      %s70 = sphi 0, %s67
      %s71 = sphi 0, %s70
      %s87 = sphi 0, %s71
      %s93 = sphi 0, %s95
      %s96 = sphi 0, %s93
      %s97 = sphi 0, %s96
      %s113 = sphi 0, %s97
      %s117 = sphi 0, %s117
      %s119 = sphi 0, %s117
      %s120 = sphi 0, %s119
      %s134 = sphi 0, %s120
      %s138 = sphi 0, %s138
      %s140 = sphi 0, %s138
      %s141 = sphi 0, %s140
      %s155 = sphi 0, %s141
      %s159 = sphi 0, %s159
      %s161 = sphi 0, %s159
      %s162 = sphi 0, %s161
      %s176 = sphi 0, %s162
      %s180 = sphi 0, %s180
      %s182 = sphi 0, %s180
      %s183 = sphi 0, %s182
      %s197 = sphi 0, %s183
      %s201 = sphi 0, %s201
      %s203 = sphi 0, %s201
      %s204 = sphi 0, %s203
      %s218 = sphi 0, %s204
      %s222 = sphi 0, %s222
      %s224 = sphi 0, %s222
      %s225 = sphi 0, %s224
      %s239 = sphi 0, %s225
      %s243 = sphi 0, %s243
      %s245 = sphi 0, %s243
      %s246 = sphi 0, %s245
      %s260 = sphi 0, %s246
      %s264 = sphi 0, %s264
      %s266 = sphi 0, %s264
      %s267 = sphi 0, %s266
      %s281 = sphi 0, %s267
      %s285 = sphi 0, %s285
      %s287 = sphi 0, %s285
      %s288 = sphi 0, %s287
      %s302 = sphi 0, %s288
      %s306 = sphi 0, %s306
      %s308 = sphi 0, %s306
      %s309 = sphi 0, %s308
      %s323 = sphi 0, %s309
      %s327 = sphi 0, %s327
      %s329 = sphi 0, %s327
      %s330 = sphi 0, %s329
      %s344 = sphi 0, %s330
      %s348 = sphi 0, %s348
      %s350 = sphi 0, %s348
      %s351 = sphi 0, %s350
      %s365 = sphi 0, %s351
      %s371 = sphi 0, %s373
      %s374 = sphi 0, %s371
      %s375 = sphi 0, %s374
      %s391 = sphi 0, %s375
    $region4: #{tpu_custom_call.1} parent=1 // loop_header_branch
      %34 = sbr.rel (%p32) target = $region8
    $region5: #{tpu_custom_call.1} parent=1 // loop_body
      %s36 = ssub.s32 %s31, 1
      %s37 = ssub.s32 %s31, 2
      %s38 = sadd.s32 %s31, 1
      %s39 = ssub.s32 %s31, %s38
      %p40 = scmp.eq.s32.totalorder %s39, 0
      %s42 = sadd.s32 %s41, 1
      %s43 = scalar_select %p40, %s41, %s42
      %p46 = pneg %p40
      %p47 = scmp.eq.s32.totalorder %s31, 1
      %p48 = por %p46, %p47
      %p49 = scmp.ne.s32.totalorder %s41, %s44
      %p50 = scmp.eq.s32.totalorder %s31, 0
      %p51 = por %p49, %p50
      %p52 = scmp.ne.s32.totalorder %s41, %s44
      %p53 = scmp.eq.s32.totalorder %s36, 1
      %p54 = por %p52, %p53
      %p55 = scmp.ne.s32.totalorder %s44, %s45
      %p56 = scmp.eq.s32.totalorder %s36, 0
      %p57 = por %p55, %p56
      %p58 = scmp.ne.s32.totalorder %s44, %s45
      %p59 = scmp.eq.s32.totalorder %s37, 1
      %p60 = por %p58, %p59
      %p62 = scmp.ne.s32.totalorder %s45, %s61
      %p63 = scmp.eq.s32.totalorder %s37, 0
      %p64 = por %p62, %p63
      %s65 = ssub.s32 %s31, %s38
      %p66 = scmp.eq.s32.totalorder %s65, 0
      %s68 = sadd.s32 %s67, 1
      %s69 = scalar_select %p66, %s67, %s68
      %p72 = pneg %p66
      %p73 = scmp.eq.s32.totalorder %s31, 1
      %p74 = por %p72, %p73
      %p75 = scmp.ne.s32.totalorder %s67, %s70
      %p76 = scmp.eq.s32.totalorder %s31, 0
      %p77 = por %p75, %p76
      %p78 = scmp.ne.s32.totalorder %s67, %s70
      %p79 = scmp.eq.s32.totalorder %s36, 1
      %p80 = por %p78, %p79
      %p81 = scmp.ne.s32.totalorder %s70, %s71
      %p82 = scmp.eq.s32.totalorder %s36, 0
      %p83 = por %p81, %p82
      %p84 = scmp.ne.s32.totalorder %s70, %s71
      %p85 = scmp.eq.s32.totalorder %s37, 1
      %p86 = por %p84, %p85
      %p88 = scmp.ne.s32.totalorder %s71, %s87
      %p89 = scmp.eq.s32.totalorder %s37, 0
      %p90 = por %p88, %p89
      %s91 = ssub.s32 %s31, %s38
      %p92 = scmp.eq.s32.totalorder %s91, 0
      %s94 = sadd.s32 %s93, 1
      %s95 = scalar_select %p92, %s93, %s94
      %p98 = pneg %p92
      %p99 = scmp.eq.s32.totalorder %s31, 1
      %p100 = por %p98, %p99
      %p101 = scmp.ne.s32.totalorder %s93, %s96
      %p102 = scmp.eq.s32.totalorder %s31, 0
      %p103 = por %p101, %p102
      %p104 = scmp.ne.s32.totalorder %s93, %s96
      %p105 = scmp.eq.s32.totalorder %s36, 1
      %p106 = por %p104, %p105
      %p107 = scmp.ne.s32.totalorder %s96, %s97
      %p108 = scmp.eq.s32.totalorder %s36, 0
      %p109 = por %p107, %p108
      %p110 = scmp.ne.s32.totalorder %s96, %s97
      %p111 = scmp.eq.s32.totalorder %s37, 1
      %p112 = por %p110, %p111
      %p114 = scmp.ne.s32.totalorder %s97, %s113
      %p115 = scmp.eq.s32.totalorder %s37, 0
      %p116 = por %p114, %p115
      %s118 = sadd.s32 %s117, 1
      %p121 = scmp.eq.s32.totalorder %s31, 1
      %p122 = scmp.ne.s32.totalorder %s117, %s119
      %p123 = scmp.eq.s32.totalorder %s31, 0
      %p124 = por %p122, %p123
      %p125 = scmp.ne.s32.totalorder %s117, %s119
      %p126 = scmp.eq.s32.totalorder %s36, 1
      %p127 = por %p125, %p126
      %p128 = scmp.ne.s32.totalorder %s119, %s120
      %p129 = scmp.eq.s32.totalorder %s36, 0
      %p130 = por %p128, %p129
      %p131 = scmp.ne.s32.totalorder %s119, %s120
      %p132 = scmp.eq.s32.totalorder %s37, 1
      %p133 = por %p131, %p132
      %p135 = scmp.ne.s32.totalorder %s120, %s134
      %p136 = scmp.eq.s32.totalorder %s37, 0
      %p137 = por %p135, %p136
      %s139 = sadd.s32 %s138, 1
      %p142 = scmp.eq.s32.totalorder %s31, 1
      %p143 = scmp.ne.s32.totalorder %s138, %s140
      %p144 = scmp.eq.s32.totalorder %s31, 0
      %p145 = por %p143, %p144
      %p146 = scmp.ne.s32.totalorder %s138, %s140
      %p147 = scmp.eq.s32.totalorder %s36, 1
      %p148 = por %p146, %p147
      %p149 = scmp.ne.s32.totalorder %s140, %s141
      %p150 = scmp.eq.s32.totalorder %s36, 0
      %p151 = por %p149, %p150
      %p152 = scmp.ne.s32.totalorder %s140, %s141
      %p153 = scmp.eq.s32.totalorder %s37, 1
      %p154 = por %p152, %p153
      %p156 = scmp.ne.s32.totalorder %s141, %s155
      %p157 = scmp.eq.s32.totalorder %s37, 0
      %p158 = por %p156, %p157
      %s160 = sadd.s32 %s159, 1
      %p163 = scmp.eq.s32.totalorder %s31, 1
      %p164 = scmp.ne.s32.totalorder %s159, %s161
      %p165 = scmp.eq.s32.totalorder %s31, 0
      %p166 = por %p164, %p165
      %p167 = scmp.ne.s32.totalorder %s159, %s161
      %p168 = scmp.eq.s32.totalorder %s36, 1
      %p169 = por %p167, %p168
      %p170 = scmp.ne.s32.totalorder %s161, %s162
      %p171 = scmp.eq.s32.totalorder %s36, 0
      %p172 = por %p170, %p171
      %p173 = scmp.ne.s32.totalorder %s161, %s162
      %p174 = scmp.eq.s32.totalorder %s37, 1
      %p175 = por %p173, %p174
      %p177 = scmp.ne.s32.totalorder %s162, %s176
      %p178 = scmp.eq.s32.totalorder %s37, 0
      %p179 = por %p177, %p178
      %s181 = sadd.s32 %s180, 1
      %p184 = scmp.eq.s32.totalorder %s31, 1
      %p185 = scmp.ne.s32.totalorder %s180, %s182
      %p186 = scmp.eq.s32.totalorder %s31, 0
      %p187 = por %p185, %p186
      %p188 = scmp.ne.s32.totalorder %s180, %s182
      %p189 = scmp.eq.s32.totalorder %s36, 1
      %p190 = por %p188, %p189
      %p191 = scmp.ne.s32.totalorder %s182, %s183
      %p192 = scmp.eq.s32.totalorder %s36, 0
      %p193 = por %p191, %p192
      %p194 = scmp.ne.s32.totalorder %s182, %s183
      %p195 = scmp.eq.s32.totalorder %s37, 1
      %p196 = por %p194, %p195
      %p198 = scmp.ne.s32.totalorder %s183, %s197
      %p199 = scmp.eq.s32.totalorder %s37, 0
      %p200 = por %p198, %p199
      %s202 = sadd.s32 %s201, 1
      %p205 = scmp.eq.s32.totalorder %s31, 1
      %p206 = scmp.ne.s32.totalorder %s201, %s203
      %p207 = scmp.eq.s32.totalorder %s31, 0
      %p208 = por %p206, %p207
      %p209 = scmp.ne.s32.totalorder %s201, %s203
      %p210 = scmp.eq.s32.totalorder %s36, 1
      %p211 = por %p209, %p210
      %p212 = scmp.ne.s32.totalorder %s203, %s204
      %p213 = scmp.eq.s32.totalorder %s36, 0
      %p214 = por %p212, %p213
      %p215 = scmp.ne.s32.totalorder %s203, %s204
      %p216 = scmp.eq.s32.totalorder %s37, 1
      %p217 = por %p215, %p216
      %p219 = scmp.ne.s32.totalorder %s204, %s218
      %p220 = scmp.eq.s32.totalorder %s37, 0
      %p221 = por %p219, %p220
      %s223 = sadd.s32 %s222, 1
      %p226 = scmp.eq.s32.totalorder %s31, 1
      %p227 = scmp.ne.s32.totalorder %s222, %s224
      %p228 = scmp.eq.s32.totalorder %s31, 0
      %p229 = por %p227, %p228
      %p230 = scmp.ne.s32.totalorder %s222, %s224
      %p231 = scmp.eq.s32.totalorder %s36, 1
      %p232 = por %p230, %p231
      %p233 = scmp.ne.s32.totalorder %s224, %s225
      %p234 = scmp.eq.s32.totalorder %s36, 0
      %p235 = por %p233, %p234
      %p236 = scmp.ne.s32.totalorder %s224, %s225
      %p237 = scmp.eq.s32.totalorder %s37, 1
      %p238 = por %p236, %p237
      %p240 = scmp.ne.s32.totalorder %s225, %s239
      %p241 = scmp.eq.s32.totalorder %s37, 0
      %p242 = por %p240, %p241
      %s244 = sadd.s32 %s243, 1
      %p247 = scmp.eq.s32.totalorder %s31, 1
      %p248 = scmp.ne.s32.totalorder %s243, %s245
      %p249 = scmp.eq.s32.totalorder %s31, 0
      %p250 = por %p248, %p249
      %p251 = scmp.ne.s32.totalorder %s243, %s245
      %p252 = scmp.eq.s32.totalorder %s36, 1
      %p253 = por %p251, %p252
      %p254 = scmp.ne.s32.totalorder %s245, %s246
      %p255 = scmp.eq.s32.totalorder %s36, 0
      %p256 = por %p254, %p255
      %p257 = scmp.ne.s32.totalorder %s245, %s246
      %p258 = scmp.eq.s32.totalorder %s37, 1
      %p259 = por %p257, %p258
      %p261 = scmp.ne.s32.totalorder %s246, %s260
      %p262 = scmp.eq.s32.totalorder %s37, 0
      %p263 = por %p261, %p262
      %s265 = sadd.s32 %s264, 1
      %p268 = scmp.eq.s32.totalorder %s31, 1
      %p269 = scmp.ne.s32.totalorder %s264, %s266
      %p270 = scmp.eq.s32.totalorder %s31, 0
      %p271 = por %p269, %p270
      %p272 = scmp.ne.s32.totalorder %s264, %s266
      %p273 = scmp.eq.s32.totalorder %s36, 1
      %p274 = por %p272, %p273
      %p275 = scmp.ne.s32.totalorder %s266, %s267
      %p276 = scmp.eq.s32.totalorder %s36, 0
      %p277 = por %p275, %p276
      %p278 = scmp.ne.s32.totalorder %s266, %s267
      %p279 = scmp.eq.s32.totalorder %s37, 1
      %p280 = por %p278, %p279
      %p282 = scmp.ne.s32.totalorder %s267, %s281
      %p283 = scmp.eq.s32.totalorder %s37, 0
      %p284 = por %p282, %p283
      %s286 = sadd.s32 %s285, 1
      %p289 = scmp.eq.s32.totalorder %s31, 1
      %p290 = scmp.ne.s32.totalorder %s285, %s287
      %p291 = scmp.eq.s32.totalorder %s31, 0
      %p292 = por %p290, %p291
      %p293 = scmp.ne.s32.totalorder %s285, %s287
      %p294 = scmp.eq.s32.totalorder %s36, 1
      %p295 = por %p293, %p294
      %p296 = scmp.ne.s32.totalorder %s287, %s288
      %p297 = scmp.eq.s32.totalorder %s36, 0
      %p298 = por %p296, %p297
      %p299 = scmp.ne.s32.totalorder %s287, %s288
      %p300 = scmp.eq.s32.totalorder %s37, 1
      %p301 = por %p299, %p300
      %p303 = scmp.ne.s32.totalorder %s288, %s302
      %p304 = scmp.eq.s32.totalorder %s37, 0
      %p305 = por %p303, %p304
      %s307 = sadd.s32 %s306, 1
      %p310 = scmp.eq.s32.totalorder %s31, 1
      %p311 = scmp.ne.s32.totalorder %s306, %s308
      %p312 = scmp.eq.s32.totalorder %s31, 0
      %p313 = por %p311, %p312
      %p314 = scmp.ne.s32.totalorder %s306, %s308
      %p315 = scmp.eq.s32.totalorder %s36, 1
      %p316 = por %p314, %p315
      %p317 = scmp.ne.s32.totalorder %s308, %s309
      %p318 = scmp.eq.s32.totalorder %s36, 0
      %p319 = por %p317, %p318
      %p320 = scmp.ne.s32.totalorder %s308, %s309
      %p321 = scmp.eq.s32.totalorder %s37, 1
      %p322 = por %p320, %p321
      %p324 = scmp.ne.s32.totalorder %s309, %s323
      %p325 = scmp.eq.s32.totalorder %s37, 0
      %p326 = por %p324, %p325
      %s328 = sadd.s32 %s327, 1
      %p331 = scmp.eq.s32.totalorder %s31, 1
      %p332 = scmp.ne.s32.totalorder %s327, %s329
      %p333 = scmp.eq.s32.totalorder %s31, 0
      %p334 = por %p332, %p333
      %p335 = scmp.ne.s32.totalorder %s327, %s329
      %p336 = scmp.eq.s32.totalorder %s36, 1
      %p337 = por %p335, %p336
      %p338 = scmp.ne.s32.totalorder %s329, %s330
      %p339 = scmp.eq.s32.totalorder %s36, 0
      %p340 = por %p338, %p339
      %p341 = scmp.ne.s32.totalorder %s329, %s330
      %p342 = scmp.eq.s32.totalorder %s37, 1
      %p343 = por %p341, %p342
      %p345 = scmp.ne.s32.totalorder %s330, %s344
      %p346 = scmp.eq.s32.totalorder %s37, 0
      %p347 = por %p345, %p346
      %s349 = sadd.s32 %s348, 1
      %p352 = scmp.eq.s32.totalorder %s31, 1
      %p353 = scmp.ne.s32.totalorder %s348, %s350
      %p354 = scmp.eq.s32.totalorder %s31, 0
      %p355 = por %p353, %p354
      %p356 = scmp.ne.s32.totalorder %s348, %s350
      %p357 = scmp.eq.s32.totalorder %s36, 1
      %p358 = por %p356, %p357
      %p359 = scmp.ne.s32.totalorder %s350, %s351
      %p360 = scmp.eq.s32.totalorder %s36, 0
      %p361 = por %p359, %p360
      %p362 = scmp.ne.s32.totalorder %s350, %s351
      %p363 = scmp.eq.s32.totalorder %s37, 1
      %p364 = por %p362, %p363
      %p366 = scmp.ne.s32.totalorder %s351, %s365
      %p367 = scmp.eq.s32.totalorder %s37, 0
      %p368 = por %p366, %p367
      %s369 = ssub.s32 %s31, %s38
      %p370 = scmp.eq.s32.totalorder %s369, 0
      %s372 = sadd.s32 %s371, 1
      %s373 = scalar_select %p370, %s371, %s372
      %p376 = pneg %p370
      %p377 = scmp.eq.s32.totalorder %s31, 1
      %p378 = por %p376, %p377
      %p379 = scmp.ne.s32.totalorder %s371, %s374
      %p380 = scmp.eq.s32.totalorder %s31, 0
      %p381 = por %p379, %p380
      %p382 = scmp.ne.s32.totalorder %s371, %s374
      %p383 = scmp.eq.s32.totalorder %s36, 1
      %p384 = por %p382, %p383
      %p385 = scmp.ne.s32.totalorder %s374, %s375
      %p386 = scmp.eq.s32.totalorder %s36, 0
      %p387 = por %p385, %p386
      %p388 = scmp.ne.s32.totalorder %s374, %s375
      %p389 = scmp.eq.s32.totalorder %s37, 1
      %p390 = por %p388, %p389
      %p392 = scmp.ne.s32.totalorder %s375, %s391
      %p393 = scmp.eq.s32.totalorder %s37, 0
      %p394 = por %p392, %p393
      %p395 = scmp.le.s32.totalorder 1, %s31
      %p396 = scmp.lt.s32.totalorder %s31, 3
      %p397 = pnand %p395, %p396
      %p398 = pneg %p397
      // Predicated region
      $region9: #{tpu_custom_call.1} parent=5 // pred_check
        _
      $region10: #{tpu_custom_call.1} parent=5 // pred_check_branch
        %400 = sbr.rel (%p397) target = $region12
      $region11: #{tpu_custom_call.1} parent=5 // pred_region
        %s401 = ssub.s32 %s31, 1
        // Predicated region
        $region13: #{tpu_custom_call.1} parent=11 // pred_check
          %p402 = pneg %p130
        $region14: #{tpu_custom_call.1} parent=11 // pred_check_branch
          %404 = sbr.rel (%p402) target = $region16
        $region15: #{tpu_custom_call.1} parent=11 // pred_region
          _
        $region16: #{tpu_custom_call.1} parent=11 // pred_fallthru
          _
        // Predicated region
        $region17: #{tpu_custom_call.1} parent=11 // pred_check
          %p405 = pneg %p151
        $region18: #{tpu_custom_call.1} parent=11 // pred_check_branch
          %407 = sbr.rel (%p405) target = $region20
        $region19: #{tpu_custom_call.1} parent=11 // pred_region
          %s409 = ssub.s32 64, 64
          %410 = vsyncadd [#allocation9], %s409
          %s411 = sshll.u32 [#allocation8], 4
          %s412 = int_to_ptr.vmem [resolvable:$true] %s411
          %417 = dma.hbm_to_vmem [thread:$0]  %s4, 64, %s412, [#allocation9], 16, 16, 1
        $region20: #{tpu_custom_call.1} parent=11 // pred_fallthru
          _
        // Predicated region
        $region21: #{tpu_custom_call.1} parent=11 // pred_check
          %p418 = pneg %p172
        $region22: #{tpu_custom_call.1} parent=11 // pred_check_branch
          %420 = sbr.rel (%p418) target = $region24
        $region23: #{tpu_custom_call.1} parent=11 // pred_region
          %s422 = ssub.s32 2048, 2048
          %423 = vsyncadd [#allocation9], %s422
          %s424 = sshll.u32 [#allocation10], 4
          %s425 = int_to_ptr.vmem [resolvable:$true] %s424
          %430 = dma.hbm_to_vmem [thread:$0]  %s5, 2048, %s425, [#allocation9], 128, 128, 8
        $region24: #{tpu_custom_call.1} parent=11 // pred_fallthru
          _
        // Predicated region
        $region25: #{tpu_custom_call.1} parent=11 // pred_check
          %p431 = pneg %p193
        $region26: #{tpu_custom_call.1} parent=11 // pred_check_branch
          %433 = sbr.rel (%p431) target = $region28
        $region27: #{tpu_custom_call.1} parent=11 // pred_region
          _
        $region28: #{tpu_custom_call.1} parent=11 // pred_fallthru
          _
        // Predicated region
        $region29: #{tpu_custom_call.1} parent=11 // pred_check
          %p434 = pneg %p214
        $region30: #{tpu_custom_call.1} parent=11 // pred_check_branch
          %436 = sbr.rel (%p434) target = $region32
        $region31: #{tpu_custom_call.1} parent=11 // pred_region
          _
        $region32: #{tpu_custom_call.1} parent=11 // pred_fallthru
          _
        // Predicated region
        $region33: #{tpu_custom_call.1} parent=11 // pred_check
          %p437 = pneg %p235
        $region34: #{tpu_custom_call.1} parent=11 // pred_check_branch
          %439 = sbr.rel (%p437) target = $region36
        $region35: #{tpu_custom_call.1} parent=11 // pred_region
          _
        $region36: #{tpu_custom_call.1} parent=11 // pred_fallthru
          _
        // Predicated region
        $region37: #{tpu_custom_call.1} parent=11 // pred_check
          %p440 = pneg %p256
        $region38: #{tpu_custom_call.1} parent=11 // pred_check_branch
          %442 = sbr.rel (%p440) target = $region40
        $region39: #{tpu_custom_call.1} parent=11 // pred_region
          _
        $region40: #{tpu_custom_call.1} parent=11 // pred_fallthru
          _
        // Predicated region
        $region41: #{tpu_custom_call.1} parent=11 // pred_check
          %p443 = pneg %p277
        $region42: #{tpu_custom_call.1} parent=11 // pred_check_branch
          %445 = sbr.rel (%p443) target = $region44
        $region43: #{tpu_custom_call.1} parent=11 // pred_region
          _
        $region44: #{tpu_custom_call.1} parent=11 // pred_fallthru
          _
        // Predicated region
        $region45: #{tpu_custom_call.1} parent=11 // pred_check
          %p446 = pneg %p298
        $region46: #{tpu_custom_call.1} parent=11 // pred_check_branch
          %448 = sbr.rel (%p446) target = $region48
        $region47: #{tpu_custom_call.1} parent=11 // pred_region
          _
        $region48: #{tpu_custom_call.1} parent=11 // pred_fallthru
          _
        // Predicated region
        $region49: #{tpu_custom_call.1} parent=11 // pred_check
          %p449 = pneg %p319
        $region50: #{tpu_custom_call.1} parent=11 // pred_check_branch
          %451 = sbr.rel (%p449) target = $region52
        $region51: #{tpu_custom_call.1} parent=11 // pred_region
          _
        $region52: #{tpu_custom_call.1} parent=11 // pred_fallthru
          _
        // Predicated region
        $region53: #{tpu_custom_call.1} parent=11 // pred_check
          %p452 = pneg %p340
        $region54: #{tpu_custom_call.1} parent=11 // pred_check_branch
          %454 = sbr.rel (%p452) target = $region56
        $region55: #{tpu_custom_call.1} parent=11 // pred_region
          _
        $region56: #{tpu_custom_call.1} parent=11 // pred_fallthru
          _
        // Predicated region
        $region57: #{tpu_custom_call.1} parent=11 // pred_check
          %p455 = pneg %p361
        $region58: #{tpu_custom_call.1} parent=11 // pred_check_branch
          %457 = sbr.rel (%p455) target = $region60
        $region59: #{tpu_custom_call.1} parent=11 // pred_region
          _
        $region60: #{tpu_custom_call.1} parent=11 // pred_fallthru
          _
      $region12: #{tpu_custom_call.1} parent=5 // pred_fallthru
        _
      %p458 = scmp.lt.s32.totalorder %s31, 2
      // Predicated region
      $region61: #{tpu_custom_call.1} parent=5 // pred_check
        %p459 = pneg %p458
      $region62: #{tpu_custom_call.1} parent=5 // pred_check_branch
        %461 = sbr.rel (%p459) target = $region64
      $region63: #{tpu_custom_call.1} parent=5 // pred_region
        // Predicated region
        $region65: #{tpu_custom_call.1} parent=63 // pred_check
          %p462 = pneg %p51
        $region66: #{tpu_custom_call.1} parent=63 // pred_check_branch
          %464 = sbr.rel (%p462) target = $region68
        $region67: #{tpu_custom_call.1} parent=63 // pred_region
          %s465 = sand.u32 %s41, 1
          %s466 = scalar_lea.sflag [#allocation3], %s465
          %s467 = sand.u32 %s41, 1
          %s468 = smul.addr %s467, 8
          %s469 = scalar_lea.vmem [#allocation2], %s468
          %s471 = ssub.s32 128, 128
          %472 = vsyncadd %s466, %s471
          %s473 = smul.addr %s31, 128
          %s474 = scalar_lea.hbm %s0, %s473
          %s476 = sshll.u32 %s469, 4
          %s477 = int_to_ptr.vmem [resolvable:$true] %s476
          %479 = dma.hbm_to_vmem [thread:$0]  %s474, 128, %s477, %s466
        $region68: #{tpu_custom_call.1} parent=63 // pred_fallthru
          _
        // Predicated region
        $region69: #{tpu_custom_call.1} parent=63 // pred_check
          %p480 = pneg %p77
        $region70: #{tpu_custom_call.1} parent=63 // pred_check_branch
          %482 = sbr.rel (%p480) target = $region72
        $region71: #{tpu_custom_call.1} parent=63 // pred_region
          %s483 = sand.u32 %s31, 1
          %s484 = scalar_lea.sflag [#allocation6], %s483
          %s485 = sand.u32 %s67, 1
          %s486 = smul.addr %s485, 8
          %s487 = scalar_lea.vmem [#allocation5], %s486
          %s489 = ssub.s32 128, 128
          %490 = vsyncadd %s484, %s489
          %s491 = smul.addr %s31, 128
          %s492 = scalar_lea.hbm %s1, %s491
          %s494 = sshll.u32 %s487, 4
          %s495 = int_to_ptr.vmem [resolvable:$true] %s494
          %497 = dma.hbm_to_vmem [thread:$0]  %s492, 128, %s495, %s484
        $region72: #{tpu_custom_call.1} parent=63 // pred_fallthru
          _
        // Predicated region
        $region73: #{tpu_custom_call.1} parent=63 // pred_check
          %p498 = pneg %p103
        $region74: #{tpu_custom_call.1} parent=63 // pred_check_branch
          %500 = sbr.rel (%p498) target = $region76
        $region75: #{tpu_custom_call.1} parent=63 // pred_region
          %s501 = sand.u32 %s31, 1
          %s502 = scalar_lea.sflag [#allocation6], %s501
          %s503 = sand.u32 %s93, 1
          %s504 = smul.addr %s503, 8
          %s505 = scalar_lea.vmem [#allocation7], %s504
          %s507 = ssub.s32 128, 128
          %508 = vsyncadd %s502, %s507
          %s509 = smul.addr %s31, 128
          %s510 = scalar_lea.hbm %s2, %s509
          %s512 = sshll.u32 %s505, 4
          %s513 = int_to_ptr.vmem [resolvable:$true] %s512
          %515 = dma.hbm_to_vmem [thread:$0]  %s510, 128, %s513, %s502
        $region76: #{tpu_custom_call.1} parent=63 // pred_fallthru
          _
      $region64: #{tpu_custom_call.1} parent=5 // pred_fallthru
        _
      %p516 = scmp.le.s32.totalorder 1, %s31
      %p517 = scmp.lt.s32.totalorder %s31, 3
      %p518 = pnand %p516, %p517
      %p519 = pneg %p518
      // Predicated region
      $region77: #{tpu_custom_call.1} parent=5 // pred_check
        _
      $region78: #{tpu_custom_call.1} parent=5 // pred_check_branch
        %521 = sbr.rel (%p518) target = $region80
      $region79: #{tpu_custom_call.1} parent=5 // pred_region
        %s522 = ssub.s32 %s31, 1
        %s523 = sand.u32 %s44, 1
        %s524 = scalar_lea.sflag [#allocation3], %s523
        %s525 = sand.u32 %s44, 1
        %s526 = smul.addr %s525, 8
        %s527 = scalar_lea.vmem [#allocation2], %s526
        // Predicated region
        $region81: #{tpu_custom_call.1} parent=79 // pred_check
          %p528 = pneg %p57
        $region82: #{tpu_custom_call.1} parent=79 // pred_check_branch
          %530 = sbr.rel (%p528) target = $region84
        $region83: #{tpu_custom_call.1} parent=79 // pred_region
          %531 = dma.done %s524, 128
        $region84: #{tpu_custom_call.1} parent=79 // pred_fallthru
          _
        %s532 = sand.u32 %s36, 1
        %s533 = scalar_lea.sflag [#allocation6], %s532
        %s534 = sand.u32 %s70, 1
        %s535 = smul.addr %s534, 8
        %s536 = scalar_lea.vmem [#allocation5], %s535
        // Predicated region
        $region85: #{tpu_custom_call.1} parent=79 // pred_check
          %p537 = pneg %p83
        $region86: #{tpu_custom_call.1} parent=79 // pred_check_branch
          %539 = sbr.rel (%p537) target = $region88
        $region87: #{tpu_custom_call.1} parent=79 // pred_region
          %540 = dma.done %s533, 128
        $region88: #{tpu_custom_call.1} parent=79 // pred_fallthru
          _
        %s541 = sand.u32 %s36, 1
        %s542 = scalar_lea.sflag [#allocation6], %s541
        %s543 = sand.u32 %s96, 1
        %s544 = smul.addr %s543, 8
        %s545 = scalar_lea.vmem [#allocation7], %s544
        // Predicated region
        $region89: #{tpu_custom_call.1} parent=79 // pred_check
          %p546 = pneg %p109
        $region90: #{tpu_custom_call.1} parent=79 // pred_check_branch
          %548 = sbr.rel (%p546) target = $region92
        $region91: #{tpu_custom_call.1} parent=79 // pred_region
          %549 = dma.done %s542, 128
        $region92: #{tpu_custom_call.1} parent=79 // pred_fallthru
          _
        // Predicated region
        $region93: #{tpu_custom_call.1} parent=79 // pred_check
          %p550 = pneg %p151
        $region94: #{tpu_custom_call.1} parent=79 // pred_check_branch
          %552 = sbr.rel (%p550) target = $region96
        $region95: #{tpu_custom_call.1} parent=79 // pred_region
          %553 = dma.done [#allocation9], 64
        $region96: #{tpu_custom_call.1} parent=79 // pred_fallthru
          _
        // Predicated region
        $region97: #{tpu_custom_call.1} parent=79 // pred_check
          %p554 = pneg %p172
        $region98: #{tpu_custom_call.1} parent=79 // pred_check_branch
          %556 = sbr.rel (%p554) target = $region100
        $region99: #{tpu_custom_call.1} parent=79 // pred_region
          %557 = dma.done [#allocation9], 2048
        $region100: #{tpu_custom_call.1} parent=79 // pred_fallthru
          _
        %s558 = sand.u32 %s44, 1
        %s559 = scalar_lea.sflag [#allocation3], %s558
        %s560 = sand.u32 %s44, 1
        %s561 = smul.addr %s560, 8
        %s562 = scalar_lea.vmem [#allocation2], %s561
        %p563 = pneg %p57
        %p564 = pneg %p54
        %s565 = sand.u32 %s36, 1
        %s566 = scalar_lea.sflag [#allocation6], %s565
        %s567 = sand.u32 %s70, 1
        %s568 = smul.addr %s567, 8
        %s569 = scalar_lea.vmem [#allocation5], %s568
        %p570 = pneg %p83
        %p571 = pneg %p80
        %s572 = sand.u32 %s36, 1
        %s573 = scalar_lea.sflag [#allocation6], %s572
        %s574 = sand.u32 %s96, 1
        %s575 = smul.addr %s574, 8
        %s576 = scalar_lea.vmem [#allocation7], %s575
        %p577 = pneg %p109
        %p578 = pneg %p106
        %p579 = pneg %p130
        %p580 = pneg %p127
        %p581 = pneg %p151
        %p582 = pneg %p148
        %p583 = pneg %p172
        %p584 = pneg %p169
        %p585 = pneg %p193
        %p586 = pneg %p190
        %p587 = pneg %p214
        %p588 = pneg %p211
        %p589 = pneg %p235
        %p590 = pneg %p232
        %p591 = pneg %p256
        %p592 = pneg %p253
        %p593 = pneg %p277
        %p594 = pneg %p274
        %p595 = pneg %p298
        %p596 = pneg %p295
        %p597 = pneg %p319
        %p598 = pneg %p316
        %p599 = pneg %p340
        %p600 = pneg %p337
        %p601 = pneg %p361
        %p602 = pneg %p358
        %p603 = pneg %p387
        %p604 = pneg %p384
        %s605 = sand.u32 %s374, 1
        %s606 = scalar_lea.sflag [#allocation4], %s605
        %s607 = sand.u32 %s374, 1
        %s608 = smul.addr %s607, 8
        %s609 = scalar_lea.vmem [#allocation11], %s608
        %v610 = vld [vmem:[%s527] sm:$0xff]
        %v611 = vld [vmem:[%s536] sm:$0xff]
        %v612 = vadd.f32 %v610, %v611
        %v613 = vld [vmem:[%s545] sm:$0xff]
        %v614 = vadd.f32 %v612, %v613
        %v615 = vld [vmem:[%s11] sm:$0x7]
        %v616 = vld [vmem:[%s12] sm:$0x7]
        %v617 = vld [vmem:[%s3] sm:$0xff]
        %v618 = vld [vmem:[%s3 + $0x8] sm:$0xff]
        %v619 = vld [vmem:[%s3 + $0x10] sm:$0xff]
        %v620 = vld [vmem:[%s3 + $0x18] sm:$0xff]
        %v621 = vld [vmem:[#allocation8] sm:$0x1]
        %v622 = vld [vmem:[#allocation10] sm:$0xff]
        %v623 = vld [vmem:[#allocation10 + $0x8] sm:$0xff]
        %v624 = vld [vmem:[#allocation10 + $0x10] sm:$0xff]
        %v625 = vld [vmem:[#allocation10 + $0x18] sm:$0xff]
        %v626 = vld [vmem:[%s6] sm:$0x1]
        %v628 = vlaneseq
        %v629 = vshrl.u32 %v628, 7
        %v630 = vsub.s32 0, %v629
        %v631 = vrot.slane %v621, %v630
        %vm633 = vcmask 261120
        %v635 = vsel %vm633, %v614, 0
        %637 = vmatprep.subr.mxu0 0.0
        %638 = vmatpush1.msra.mxu0 %v617
        %639 = vmatprep.subr.mxu0 0.0
        %640 = vmatpush1.msra.mxu0 %v618
        %641 = vmatprep.subr.mxu0 0.0
        %642 = vmatpush1.msra.mxu0 %v619
        %643 = vmatprep.subr.mxu0 0.0
        %644 = vmatpush1.msra.mxu0 %v620
        %645 = vmatprep.subr.mxu0 0.0
        %646 = vmatpush1.msra.mxu0 0.0
        %647 = vmatprep.subr.mxu0 0.0
        %648 = vmatpush1.msra.mxu0 0.0
        %649 = vmatprep.subr.mxu0 0.0
        %650 = vmatpush1.msra.mxu0 0.0
        %651 = vmatprep.subr.mxu0 0.0
        %652 = vmatpush1.msra.mxu0 0.0
        %653 = vmatprep.subr.mxu0 0.0
        %654 = vmatpush1.msra.mxu0 0.0
        %655 = vmatprep.subr.mxu0 0.0
        %656 = vmatpush1.msra.mxu0 0.0
        %657 = vmatprep.subr.mxu0 0.0
        %658 = vmatpush1.msra.mxu0 0.0
        %659 = vmatprep.subr.mxu0 0.0
        %660 = vmatpush1.msra.mxu0 0.0
        %661 = vmatprep.subr.mxu0 0.0
        %662 = vmatpush1.msra.mxu0 0.0
        %663 = vmatprep.subr.mxu0 0.0
        %664 = vmatpush1.msra.mxu0 0.0
        %665 = vmatprep.subr.mxu0 0.0
        %666 = vmatpush1.msra.mxu0 0.0
        %667 = vmatprep.subr.mxu0 0.0
        %668 = vmatpush1.msra.mxu0 0.0
        %669 = vmatprep.subr.mxu0 0.0
        %670 = vmatpush1.msra.mxu0 0.0
        %671 = vmatprep.subr.mxu0 0.0
        %672 = vmatpush1.msra.mxu0 0.0
        %673 = vmatprep.subr.mxu0 0.0
        %674 = vmatpush1.msra.mxu0 0.0
        %675 = vmatprep.subr.mxu0 0.0
        %676 = vmatpush1.msra.mxu0 0.0
        %677 = vmatprep.subr.mxu0 0.0
        %678 = vmatpush1.msra.mxu0 0.0
        %679 = vmatprep.subr.mxu0 0.0
        %680 = vmatpush1.msra.mxu0 0.0
        %681 = vmatprep.subr.mxu0 0.0
        %682 = vmatpush1.msra.mxu0 0.0
        %683 = vmatprep.subr.mxu0 0.0
        %684 = vmatpush1.msra.mxu0 0.0
        %685 = vmatprep.subr.mxu0 0.0
        %686 = vmatpush1.msra.mxu0 0.0
        %687 = vmatprep.subr.mxu0 0.0
        %688 = vmatpush1.msra.mxu0 0.0
        %689 = vmatprep.subr.mxu0 0.0
        %690 = vmatpush1.msra.mxu0 0.0
        %691 = vmatprep.subr.mxu0 0.0
        %692 = vmatpush1.msra.mxu0 0.0
        %693 = vmatprep.subr.mxu0 0.0
        %694 = vmatpush1.msra.mxu0 0.0
        %695 = vmatprep.subr.mxu0 0.0
        %696 = vmatpush1.msra.mxu0 0.0
        %697 = vmatprep.subr.mxu0 0.0
        %698 = vmatpush1.msra.mxu0 0.0
        %699 = vmatprep.subr.mxu0 0.0
        %700 = vmatpush1.msra.mxu0 0.0
        %701 = vmatprep.mubr.f32.mxu0 0.0
        %702 = vmatmul.mubr.f32.gmra.mrb[0].mxu0 %v635
        %v703 = vpop.f32.mrb[0].mxu0
        %v704 = vadd.f32 %v631, %v703
        %v705 = vpop.f32.mrb[0].mxu0
        %706 = vdwg.mxu0
        %v707 = vmul.f32 %v704, 0.35355338
        %709 = vrot.lane.b32.xlu0 %v704, 96
        %v710 = vpop.permute.xlu0 %709
        %vm711 = vcmask 64512
        %v713 = vsel %vm711, %v707, 0
        %v715 = vsel %vm711, %v710, 0
        %717 = vmatprep.subr.mxu0 0.0
        %718 = vmatpush1.xpose.msra.mxu0 %v715
        %719 = vmatprep.subr.mxu0 0.0
        %720 = vmatpush1.xpose.msra.mxu0 0.0
        %721 = vmatprep.subr.mxu0 0.0
        %722 = vmatpush1.xpose.msra.mxu0 0.0
        %723 = vmatprep.subr.mxu0 0.0
        %724 = vmatpush1.xpose.msra.mxu0 0.0
        %725 = vmatprep.subr.mxu0 0.0
        %726 = vmatpush1.xpose.msra.mxu0 0.0
        %727 = vmatprep.subr.mxu0 0.0
        %728 = vmatpush1.xpose.msra.mxu0 0.0
        %729 = vmatprep.subr.mxu0 0.0
        %730 = vmatpush1.xpose.msra.mxu0 0.0
        %731 = vmatprep.subr.mxu0 0.0
        %732 = vmatpush1.xpose.msra.mxu0 0.0
        %733 = vmatprep.subr.mxu0 0.0
        %734 = vmatpush1.xpose.msra.mxu0 0.0
        %735 = vmatprep.subr.mxu0 0.0
        %736 = vmatpush1.xpose.msra.mxu0 0.0
        %737 = vmatprep.subr.mxu0 0.0
        %738 = vmatpush1.xpose.msra.mxu0 0.0
        %739 = vmatprep.subr.mxu0 0.0
        %740 = vmatpush1.xpose.msra.mxu0 0.0
        %741 = vmatprep.subr.mxu0 0.0
        %742 = vmatpush1.xpose.msra.mxu0 0.0
        %743 = vmatprep.subr.mxu0 0.0
        %744 = vmatpush1.xpose.msra.mxu0 0.0
        %745 = vmatprep.subr.mxu0 0.0
        %746 = vmatpush1.xpose.msra.mxu0 0.0
        %747 = vmatprep.subr.mxu0 0.0
        %748 = vmatpush1.xpose.msra.mxu0 0.0
        %749 = vmatprep.subr.mxu0 0.0
        %750 = vmatpush1.xpose.msra.mxu0 0.0
        %751 = vmatprep.subr.mxu0 0.0
        %752 = vmatpush1.xpose.msra.mxu0 0.0
        %753 = vmatprep.subr.mxu0 0.0
        %754 = vmatpush1.xpose.msra.mxu0 0.0
        %755 = vmatprep.subr.mxu0 0.0
        %756 = vmatpush1.xpose.msra.mxu0 0.0
        %757 = vmatprep.subr.mxu0 0.0
        %758 = vmatpush1.xpose.msra.mxu0 0.0
        %759 = vmatprep.subr.mxu0 0.0
        %760 = vmatpush1.xpose.msra.mxu0 0.0
        %761 = vmatprep.subr.mxu0 0.0
        %762 = vmatpush1.xpose.msra.mxu0 0.0
        %763 = vmatprep.subr.mxu0 0.0
        %764 = vmatpush1.xpose.msra.mxu0 0.0
        %765 = vmatprep.subr.mxu0 0.0
        %766 = vmatpush1.xpose.msra.mxu0 0.0
        %767 = vmatprep.subr.mxu0 0.0
        %768 = vmatpush1.xpose.msra.mxu0 0.0
        %769 = vmatprep.subr.mxu0 0.0
        %770 = vmatpush1.xpose.msra.mxu0 0.0
        %771 = vmatprep.subr.mxu0 0.0
        %772 = vmatpush1.xpose.msra.mxu0 0.0
        %773 = vmatprep.subr.mxu0 0.0
        %774 = vmatpush1.xpose.msra.mxu0 0.0
        %775 = vmatprep.subr.mxu0 0.0
        %776 = vmatpush1.xpose.msra.mxu0 0.0
        %777 = vmatprep.subr.mxu0 0.0
        %778 = vmatpush1.xpose.msra.mxu0 0.0
        %779 = vmatprep.subr.mxu0 0.0
        %780 = vmatpush1.xpose.msra.mxu0 0.0
        %781 = vmatprep.mubr.f32.mxu0 0.0
        %782 = vmatmul.mubr.f32.gmra.mrb[0].mxu0 %v713
        %v783 = vpop.f32.mrb[0].mxu0
        %v784 = vadd.f32 0.0, %v783
        %v785 = vpop.f32.mrb[0].mxu0
        %786 = vdwg.mxu0
        %v787 = vsel %vm711, %v784, -inf
        %788 = vmax.xlane.f32.xlu0 %v787
        %v789 = vpop.xlane.xlu0 %788
        %v790 = vsub.f32 %v784, %v789
        %v791 = vmul.f32 %v790, 1.442695
        %v792 = vpow.pop %v791
        %v793 = vsel %vm711, %v792, 0.0
        %794 = vadd.xlane.f32.xlu0 %v793
        %v795 = vpop.xlane.xlu0 %794
        %v796 = vrcp.pop %v795
        %v797 = vmul.f32 %v792, %v796
        %798 = vrot.lane.b32.xlu0 %v704, 64
        %v799 = vpop.permute.xlu0 %798
        %v802 = vsel %vm711, %v797, 0
        %804 = vmatprep.subr.mxu0 0.0
        %805 = vmatpush1.msra.mxu0 %v799
        %806 = vmatprep.subr.mxu0 0.0
        %807 = vmatpush1.msra.mxu0 0.0
        %808 = vmatprep.subr.mxu0 0.0
        %809 = vmatpush1.msra.mxu0 0.0
        %810 = vmatprep.subr.mxu0 0.0
        %811 = vmatpush1.msra.mxu0 0.0
        %812 = vmatprep.subr.mxu0 0.0
        %813 = vmatpush1.msra.mxu0 0.0
        %814 = vmatprep.subr.mxu0 0.0
        %815 = vmatpush1.msra.mxu0 0.0
        %816 = vmatprep.subr.mxu0 0.0
        %817 = vmatpush1.msra.mxu0 0.0
        %818 = vmatprep.subr.mxu0 0.0
        %819 = vmatpush1.msra.mxu0 0.0
        %820 = vmatprep.subr.mxu0 0.0
        %821 = vmatpush1.msra.mxu0 0.0
        %822 = vmatprep.subr.mxu0 0.0
        %823 = vmatpush1.msra.mxu0 0.0
        %824 = vmatprep.subr.mxu0 0.0
        %825 = vmatpush1.msra.mxu0 0.0
        %826 = vmatprep.subr.mxu0 0.0
        %827 = vmatpush1.msra.mxu0 0.0
        %828 = vmatprep.subr.mxu0 0.0
        %829 = vmatpush1.msra.mxu0 0.0
        %830 = vmatprep.subr.mxu0 0.0
        %831 = vmatpush1.msra.mxu0 0.0
        %832 = vmatprep.subr.mxu0 0.0
        %833 = vmatpush1.msra.mxu0 0.0
        %834 = vmatprep.subr.mxu0 0.0
        %835 = vmatpush1.msra.mxu0 0.0
        %836 = vmatprep.subr.mxu0 0.0
        %837 = vmatpush1.msra.mxu0 0.0
        %838 = vmatprep.subr.mxu0 0.0
        %839 = vmatpush1.msra.mxu0 0.0
        %840 = vmatprep.subr.mxu0 0.0
        %841 = vmatpush1.msra.mxu0 0.0
        %842 = vmatprep.subr.mxu0 0.0
        %843 = vmatpush1.msra.mxu0 0.0
        %844 = vmatprep.subr.mxu0 0.0
        %845 = vmatpush1.msra.mxu0 0.0
        %846 = vmatprep.subr.mxu0 0.0
        %847 = vmatpush1.msra.mxu0 0.0
        %848 = vmatprep.subr.mxu0 0.0
        %849 = vmatpush1.msra.mxu0 0.0
        %850 = vmatprep.subr.mxu0 0.0
        %851 = vmatpush1.msra.mxu0 0.0
        %852 = vmatprep.subr.mxu0 0.0
        %853 = vmatpush1.msra.mxu0 0.0
        %854 = vmatprep.subr.mxu0 0.0
        %855 = vmatpush1.msra.mxu0 0.0
        %856 = vmatprep.subr.mxu0 0.0
        %857 = vmatpush1.msra.mxu0 0.0
        %858 = vmatprep.subr.mxu0 0.0
        %859 = vmatpush1.msra.mxu0 0.0
        %860 = vmatprep.subr.mxu0 0.0
        %861 = vmatpush1.msra.mxu0 0.0
        %862 = vmatprep.subr.mxu0 0.0
        %863 = vmatpush1.msra.mxu0 0.0
        %864 = vmatprep.subr.mxu0 0.0
        %865 = vmatpush1.msra.mxu0 0.0
        %866 = vmatprep.subr.mxu0 0.0
        %867 = vmatpush1.msra.mxu0 0.0
        %868 = vmatprep.mubr.f32.mxu0 0.0
        %869 = vmatmul.mubr.f32.gmra.mrb[0].mxu0 %v802
        %v870 = vpop.f32.mrb[0].mxu0
        %v871 = vadd.f32 0.0, %v870
        %v872 = vpop.f32.mrb[0].mxu0
        %873 = vdwg.mxu0
        %874 = vrot.lane.b32.xlu0 %v707, 120
        %v875 = vpop.permute.xlu0 %874
        %876 = vrot.lane.b32.xlu0 %v704, 88
        %v877 = vpop.permute.xlu0 %876
        %v878 = vsel %vm711, %v875, 0
        %v880 = vsel %vm711, %v877, 0
        %882 = vmatprep.subr.mxu0 0.0
        %883 = vmatpush1.xpose.msra.mxu0 %v880
        %884 = vmatprep.subr.mxu0 0.0
        %885 = vmatpush1.xpose.msra.mxu0 0.0
        %886 = vmatprep.subr.mxu0 0.0
        %887 = vmatpush1.xpose.msra.mxu0 0.0
        %888 = vmatprep.subr.mxu0 0.0
        %889 = vmatpush1.xpose.msra.mxu0 0.0
        %890 = vmatprep.subr.mxu0 0.0
        %891 = vmatpush1.xpose.msra.mxu0 0.0
        %892 = vmatprep.subr.mxu0 0.0
        %893 = vmatpush1.xpose.msra.mxu0 0.0
        %894 = vmatprep.subr.mxu0 0.0
        %895 = vmatpush1.xpose.msra.mxu0 0.0
        %896 = vmatprep.subr.mxu0 0.0
        %897 = vmatpush1.xpose.msra.mxu0 0.0
        %898 = vmatprep.subr.mxu0 0.0
        %899 = vmatpush1.xpose.msra.mxu0 0.0
        %900 = vmatprep.subr.mxu0 0.0
        %901 = vmatpush1.xpose.msra.mxu0 0.0
        %902 = vmatprep.subr.mxu0 0.0
        %903 = vmatpush1.xpose.msra.mxu0 0.0
        %904 = vmatprep.subr.mxu0 0.0
        %905 = vmatpush1.xpose.msra.mxu0 0.0
        %906 = vmatprep.subr.mxu0 0.0
        %907 = vmatpush1.xpose.msra.mxu0 0.0
        %908 = vmatprep.subr.mxu0 0.0
        %909 = vmatpush1.xpose.msra.mxu0 0.0
        %910 = vmatprep.subr.mxu0 0.0
        %911 = vmatpush1.xpose.msra.mxu0 0.0
        %912 = vmatprep.subr.mxu0 0.0
        %913 = vmatpush1.xpose.msra.mxu0 0.0
        %914 = vmatprep.subr.mxu0 0.0
        %915 = vmatpush1.xpose.msra.mxu0 0.0
        %916 = vmatprep.subr.mxu0 0.0
        %917 = vmatpush1.xpose.msra.mxu0 0.0
        %918 = vmatprep.subr.mxu0 0.0
        %919 = vmatpush1.xpose.msra.mxu0 0.0
        %920 = vmatprep.subr.mxu0 0.0
        %921 = vmatpush1.xpose.msra.mxu0 0.0
        %922 = vmatprep.subr.mxu0 0.0
        %923 = vmatpush1.xpose.msra.mxu0 0.0
        %924 = vmatprep.subr.mxu0 0.0
        %925 = vmatpush1.xpose.msra.mxu0 0.0
        %926 = vmatprep.subr.mxu0 0.0
        %927 = vmatpush1.xpose.msra.mxu0 0.0
        %928 = vmatprep.subr.mxu0 0.0
        %929 = vmatpush1.xpose.msra.mxu0 0.0
        %930 = vmatprep.subr.mxu0 0.0
        %931 = vmatpush1.xpose.msra.mxu0 0.0
        %932 = vmatprep.subr.mxu0 0.0
        %933 = vmatpush1.xpose.msra.mxu0 0.0
        %934 = vmatprep.subr.mxu0 0.0
        %935 = vmatpush1.xpose.msra.mxu0 0.0
        %936 = vmatprep.subr.mxu0 0.0
        %937 = vmatpush1.xpose.msra.mxu0 0.0
        %938 = vmatprep.subr.mxu0 0.0
        %939 = vmatpush1.xpose.msra.mxu0 0.0
        %940 = vmatprep.subr.mxu0 0.0
        %941 = vmatpush1.xpose.msra.mxu0 0.0
        %942 = vmatprep.subr.mxu0 0.0
        %943 = vmatpush1.xpose.msra.mxu0 0.0
        %944 = vmatprep.subr.mxu0 0.0
        %945 = vmatpush1.xpose.msra.mxu0 0.0
        %946 = vmatprep.mubr.f32.mxu0 0.0
        %947 = vmatmul.mubr.f32.gmra.mrb[0].mxu0 %v878
        %v948 = vpop.f32.mrb[0].mxu0
        %v949 = vadd.f32 0.0, %v948
        %v950 = vpop.f32.mrb[0].mxu0
        %951 = vdwg.mxu0
        %v952 = vsel %vm711, %v949, -inf
        %953 = vmax.xlane.f32.xlu0 %v952
        %v954 = vpop.xlane.xlu0 %953
        %v955 = vsub.f32 %v949, %v954
        %v956 = vmul.f32 %v955, 1.442695
        %v957 = vpow.pop %v956
        %v958 = vsel %vm711, %v957, 0.0
        %959 = vadd.xlane.f32.xlu0 %v958
        %v960 = vpop.xlane.xlu0 %959
        %v961 = vrcp.pop %v960
        %v962 = vmul.f32 %v957, %v961
        %963 = vrot.lane.b32.xlu0 %v704, 56
        %v964 = vpop.permute.xlu0 %963
        %v967 = vsel %vm711, %v962, 0
        %969 = vmatprep.subr.mxu0 0.0
        %970 = vmatpush1.msra.mxu0 %v964
        %971 = vmatprep.subr.mxu0 0.0
        %972 = vmatpush1.msra.mxu0 0.0
        %973 = vmatprep.subr.mxu0 0.0
        %974 = vmatpush1.msra.mxu0 0.0
        %975 = vmatprep.subr.mxu0 0.0
        %976 = vmatpush1.msra.mxu0 0.0
        %977 = vmatprep.subr.mxu0 0.0
        %978 = vmatpush1.msra.mxu0 0.0
        %979 = vmatprep.subr.mxu0 0.0
        %980 = vmatpush1.msra.mxu0 0.0
        %981 = vmatprep.subr.mxu0 0.0
        %982 = vmatpush1.msra.mxu0 0.0
        %983 = vmatprep.subr.mxu0 0.0
        %984 = vmatpush1.msra.mxu0 0.0
        %985 = vmatprep.subr.mxu0 0.0
        %986 = vmatpush1.msra.mxu0 0.0
        %987 = vmatprep.subr.mxu0 0.0
        %988 = vmatpush1.msra.mxu0 0.0
        %989 = vmatprep.subr.mxu0 0.0
        %990 = vmatpush1.msra.mxu0 0.0
        %991 = vmatprep.subr.mxu0 0.0
        %992 = vmatpush1.msra.mxu0 0.0
        %993 = vmatprep.subr.mxu0 0.0
        %994 = vmatpush1.msra.mxu0 0.0
        %995 = vmatprep.subr.mxu0 0.0
        %996 = vmatpush1.msra.mxu0 0.0
        %997 = vmatprep.subr.mxu0 0.0
        %998 = vmatpush1.msra.mxu0 0.0
        %999 = vmatprep.subr.mxu0 0.0
        %1000 = vmatpush1.msra.mxu0 0.0
        %1001 = vmatprep.subr.mxu0 0.0
        %1002 = vmatpush1.msra.mxu0 0.0
        %1003 = vmatprep.subr.mxu0 0.0
        %1004 = vmatpush1.msra.mxu0 0.0
        %1005 = vmatprep.subr.mxu0 0.0
        %1006 = vmatpush1.msra.mxu0 0.0
        %1007 = vmatprep.subr.mxu0 0.0
        %1008 = vmatpush1.msra.mxu0 0.0
        %1009 = vmatprep.subr.mxu0 0.0
        %1010 = vmatpush1.msra.mxu0 0.0
        %1011 = vmatprep.subr.mxu0 0.0
        %1012 = vmatpush1.msra.mxu0 0.0
        %1013 = vmatprep.subr.mxu0 0.0
        %1014 = vmatpush1.msra.mxu0 0.0
        %1015 = vmatprep.subr.mxu0 0.0
        %1016 = vmatpush1.msra.mxu0 0.0
        %1017 = vmatprep.subr.mxu0 0.0
        %1018 = vmatpush1.msra.mxu0 0.0
        %1019 = vmatprep.subr.mxu0 0.0
        %1020 = vmatpush1.msra.mxu0 0.0
        %1021 = vmatprep.subr.mxu0 0.0
        %1022 = vmatpush1.msra.mxu0 0.0
        %1023 = vmatprep.subr.mxu0 0.0
        %1024 = vmatpush1.msra.mxu0 0.0
        %1025 = vmatprep.subr.mxu0 0.0
        %1026 = vmatpush1.msra.mxu0 0.0
        %1027 = vmatprep.subr.mxu0 0.0
        %1028 = vmatpush1.msra.mxu0 0.0
        %1029 = vmatprep.subr.mxu0 0.0
        %1030 = vmatpush1.msra.mxu0 0.0
        %1031 = vmatprep.subr.mxu0 0.0
        %1032 = vmatpush1.msra.mxu0 0.0
        %1033 = vmatprep.mubr.f32.mxu0 0.0
        %1034 = vmatmul.mubr.f32.gmra.mrb[0].mxu0 %v967
        %v1035 = vpop.f32.mrb[0].mxu0
        %v1036 = vadd.f32 0.0, %v1035
        %v1037 = vpop.f32.mrb[0].mxu0
        %1038 = vdwg.mxu0
        %v1040 = vsel %vm711, %v1036, 0
        %1042 = vmatprep.subr.mxu0 0.0
        %1043 = vmatpush1.msra.mxu0 %v623
        %1044 = vmatprep.subr.mxu0 0.0
        %1045 = vmatpush1.msra.mxu0 0.0
        %1046 = vmatprep.subr.mxu0 0.0
        %1047 = vmatpush1.msra.mxu0 0.0
        %1048 = vmatprep.subr.mxu0 0.0
        %1049 = vmatpush1.msra.mxu0 0.0
        %1050 = vmatprep.subr.mxu0 0.0
        %1051 = vmatpush1.msra.mxu0 0.0
        %1052 = vmatprep.subr.mxu0 0.0
        %1053 = vmatpush1.msra.mxu0 0.0
        %1054 = vmatprep.subr.mxu0 0.0
        %1055 = vmatpush1.msra.mxu0 0.0
        %1056 = vmatprep.subr.mxu0 0.0
        %1057 = vmatpush1.msra.mxu0 0.0
        %1058 = vmatprep.subr.mxu0 0.0
        %1059 = vmatpush1.msra.mxu0 0.0
        %1060 = vmatprep.subr.mxu0 0.0
        %1061 = vmatpush1.msra.mxu0 0.0
        %1062 = vmatprep.subr.mxu0 0.0
        %1063 = vmatpush1.msra.mxu0 0.0
        %1064 = vmatprep.subr.mxu0 0.0
        %1065 = vmatpush1.msra.mxu0 0.0
        %1066 = vmatprep.subr.mxu0 0.0
        %1067 = vmatpush1.msra.mxu0 0.0
        %1068 = vmatprep.subr.mxu0 0.0
        %1069 = vmatpush1.msra.mxu0 0.0
        %1070 = vmatprep.subr.mxu0 0.0
        %1071 = vmatpush1.msra.mxu0 0.0
        %1072 = vmatprep.subr.mxu0 0.0
        %1073 = vmatpush1.msra.mxu0 0.0
        %1074 = vmatprep.subr.mxu0 0.0
        %1075 = vmatpush1.msra.mxu0 0.0
        %1076 = vmatprep.subr.mxu0 0.0
        %1077 = vmatpush1.msra.mxu0 0.0
        %1078 = vmatprep.subr.mxu0 0.0
        %1079 = vmatpush1.msra.mxu0 0.0
        %1080 = vmatprep.subr.mxu0 0.0
        %1081 = vmatpush1.msra.mxu0 0.0
        %1082 = vmatprep.subr.mxu0 0.0
        %1083 = vmatpush1.msra.mxu0 0.0
        %1084 = vmatprep.subr.mxu0 0.0
        %1085 = vmatpush1.msra.mxu0 0.0
        %1086 = vmatprep.subr.mxu0 0.0
        %1087 = vmatpush1.msra.mxu0 0.0
        %1088 = vmatprep.subr.mxu0 0.0
        %1089 = vmatpush1.msra.mxu0 0.0
        %1090 = vmatprep.subr.mxu0 0.0
        %1091 = vmatpush1.msra.mxu0 0.0
        %1092 = vmatprep.subr.mxu0 0.0
        %1093 = vmatpush1.msra.mxu0 0.0
        %1094 = vmatprep.subr.mxu0 0.0
        %1095 = vmatpush1.msra.mxu0 0.0
        %1096 = vmatprep.subr.mxu0 0.0
        %1097 = vmatpush1.msra.mxu0 0.0
        %1098 = vmatprep.subr.mxu0 0.0
        %1099 = vmatpush1.msra.mxu0 0.0
        %1100 = vmatprep.subr.mxu0 0.0
        %1101 = vmatpush1.msra.mxu0 0.0
        %1102 = vmatprep.subr.mxu0 0.0
        %1103 = vmatpush1.msra.mxu0 0.0
        %1104 = vmatprep.subr.mxu0 0.0
        %1105 = vmatpush1.msra.mxu0 0.0
        %1106 = vmatprep.mubr.f32.mxu0 0.0
        %1107 = vmatmul.mubr.f32.gmra.mrb[0].mxu0 %v1040
        %v1108 = vpop.f32.mrb[0].mxu0
        %v1109 = vadd.f32 0.0, %v1108
        %v1110 = vpop.f32.mrb[0].mxu0
        %1111 = vdwg.mxu0
        %v1113 = vsel %vm711, %v871, 0
        %1115 = vmatprep.subr.mxu0 0.0
        %1116 = vmatpush1.msra.mxu0 %v622
        %1117 = vmatprep.subr.mxu0 0.0
        %1118 = vmatpush1.msra.mxu0 0.0
        %1119 = vmatprep.subr.mxu0 0.0
        %1120 = vmatpush1.msra.mxu0 0.0
        %1121 = vmatprep.subr.mxu0 0.0
        %1122 = vmatpush1.msra.mxu0 0.0
        %1123 = vmatprep.subr.mxu0 0.0
        %1124 = vmatpush1.msra.mxu0 0.0
        %1125 = vmatprep.subr.mxu0 0.0
        %1126 = vmatpush1.msra.mxu0 0.0
        %1127 = vmatprep.subr.mxu0 0.0
        %1128 = vmatpush1.msra.mxu0 0.0
        %1129 = vmatprep.subr.mxu0 0.0
        %1130 = vmatpush1.msra.mxu0 0.0
        %1131 = vmatprep.subr.mxu0 0.0
        %1132 = vmatpush1.msra.mxu0 0.0
        %1133 = vmatprep.subr.mxu0 0.0
        %1134 = vmatpush1.msra.mxu0 0.0
        %1135 = vmatprep.subr.mxu0 0.0
        %1136 = vmatpush1.msra.mxu0 0.0
        %1137 = vmatprep.subr.mxu0 0.0
        %1138 = vmatpush1.msra.mxu0 0.0
        %1139 = vmatprep.subr.mxu0 0.0
        %1140 = vmatpush1.msra.mxu0 0.0
        %1141 = vmatprep.subr.mxu0 0.0
        %1142 = vmatpush1.msra.mxu0 0.0
        %1143 = vmatprep.subr.mxu0 0.0
        %1144 = vmatpush1.msra.mxu0 0.0
        %1145 = vmatprep.subr.mxu0 0.0
        %1146 = vmatpush1.msra.mxu0 0.0
        %1147 = vmatprep.subr.mxu0 0.0
        %1148 = vmatpush1.msra.mxu0 0.0
        %1149 = vmatprep.subr.mxu0 0.0
        %1150 = vmatpush1.msra.mxu0 0.0
        %1151 = vmatprep.subr.mxu0 0.0
        %1152 = vmatpush1.msra.mxu0 0.0
        %1153 = vmatprep.subr.mxu0 0.0
        %1154 = vmatpush1.msra.mxu0 0.0
        %1155 = vmatprep.subr.mxu0 0.0
        %1156 = vmatpush1.msra.mxu0 0.0
        %1157 = vmatprep.subr.mxu0 0.0
        %1158 = vmatpush1.msra.mxu0 0.0
        %1159 = vmatprep.subr.mxu0 0.0
        %1160 = vmatpush1.msra.mxu0 0.0
        %1161 = vmatprep.subr.mxu0 0.0
        %1162 = vmatpush1.msra.mxu0 0.0
        %1163 = vmatprep.subr.mxu0 0.0
        %1164 = vmatpush1.msra.mxu0 0.0
        %1165 = vmatprep.subr.mxu0 0.0
        %1166 = vmatpush1.msra.mxu0 0.0
        %1167 = vmatprep.subr.mxu0 0.0
        %1168 = vmatpush1.msra.mxu0 0.0
        %1169 = vmatprep.subr.mxu0 0.0
        %1170 = vmatpush1.msra.mxu0 0.0
        %1171 = vmatprep.subr.mxu0 0.0
        %1172 = vmatpush1.msra.mxu0 0.0
        %1173 = vmatprep.subr.mxu0 0.0
        %1174 = vmatpush1.msra.mxu0 0.0
        %1175 = vmatprep.subr.mxu0 0.0
        %1176 = vmatpush1.msra.mxu0 0.0
        %1177 = vmatprep.subr.mxu0 0.0
        %1178 = vmatpush1.msra.mxu0 0.0
        %1179 = vmatprep.mubr.f32.mxu0 0.0
        %1180 = vmatmul.mubr.f32.gmra.mrb[0].mxu0 %v1113
        %v1181 = vpop.f32.mrb[0].mxu0
        %v1182 = vadd.f32 %v1109, %v1181
        %v1183 = vpop.f32.mrb[0].mxu0
        %1184 = vdwg.mxu0
        %1185 = vrot.lane.b32.xlu0 %v707, 112
        %v1186 = vpop.permute.xlu0 %1185
        %1187 = vrot.lane.b32.xlu0 %v704, 80
        %v1188 = vpop.permute.xlu0 %1187
        %v1189 = vsel %vm711, %v1186, 0
        %v1191 = vsel %vm711, %v1188, 0
        %1193 = vmatprep.subr.mxu0 0.0
        %1194 = vmatpush1.xpose.msra.mxu0 %v1191
        %1195 = vmatprep.subr.mxu0 0.0
        %1196 = vmatpush1.xpose.msra.mxu0 0.0
        %1197 = vmatprep.subr.mxu0 0.0
        %1198 = vmatpush1.xpose.msra.mxu0 0.0
        %1199 = vmatprep.subr.mxu0 0.0
        %1200 = vmatpush1.xpose.msra.mxu0 0.0
        %1201 = vmatprep.subr.mxu0 0.0
        %1202 = vmatpush1.xpose.msra.mxu0 0.0
        %1203 = vmatprep.subr.mxu0 0.0
        %1204 = vmatpush1.xpose.msra.mxu0 0.0
        %1205 = vmatprep.subr.mxu0 0.0
        %1206 = vmatpush1.xpose.msra.mxu0 0.0
        %1207 = vmatprep.subr.mxu0 0.0
        %1208 = vmatpush1.xpose.msra.mxu0 0.0
        %1209 = vmatprep.subr.mxu0 0.0
        %1210 = vmatpush1.xpose.msra.mxu0 0.0
        %1211 = vmatprep.subr.mxu0 0.0
        %1212 = vmatpush1.xpose.msra.mxu0 0.0
        %1213 = vmatprep.subr.mxu0 0.0
        %1214 = vmatpush1.xpose.msra.mxu0 0.0
        %1215 = vmatprep.subr.mxu0 0.0
        %1216 = vmatpush1.xpose.msra.mxu0 0.0
        %1217 = vmatprep.subr.mxu0 0.0
        %1218 = vmatpush1.xpose.msra.mxu0 0.0
        %1219 = vmatprep.subr.mxu0 0.0
        %1220 = vmatpush1.xpose.msra.mxu0 0.0
        %1221 = vmatprep.subr.mxu0 0.0
        %1222 = vmatpush1.xpose.msra.mxu0 0.0
        %1223 = vmatprep.subr.mxu0 0.0
        %1224 = vmatpush1.xpose.msra.mxu0 0.0
        %1225 = vmatprep.subr.mxu0 0.0
        %1226 = vmatpush1.xpose.msra.mxu0 0.0
        %1227 = vmatprep.subr.mxu0 0.0
        %1228 = vmatpush1.xpose.msra.mxu0 0.0
        %1229 = vmatprep.subr.mxu0 0.0
        %1230 = vmatpush1.xpose.msra.mxu0 0.0
        %1231 = vmatprep.subr.mxu0 0.0
        %1232 = vmatpush1.xpose.msra.mxu0 0.0
        %1233 = vmatprep.subr.mxu0 0.0
        %1234 = vmatpush1.xpose.msra.mxu0 0.0
        %1235 = vmatprep.subr.mxu0 0.0
        %1236 = vmatpush1.xpose.msra.mxu0 0.0
        %1237 = vmatprep.subr.mxu0 0.0
        %1238 = vmatpush1.xpose.msra.mxu0 0.0
        %1239 = vmatprep.subr.mxu0 0.0
        %1240 = vmatpush1.xpose.msra.mxu0 0.0
        %1241 = vmatprep.subr.mxu0 0.0
        %1242 = vmatpush1.xpose.msra.mxu0 0.0
        %1243 = vmatprep.subr.mxu0 0.0
        %1244 = vmatpush1.xpose.msra.mxu0 0.0
        %1245 = vmatprep.subr.mxu0 0.0
        %1246 = vmatpush1.xpose.msra.mxu0 0.0
        %1247 = vmatprep.subr.mxu0 0.0
        %1248 = vmatpush1.xpose.msra.mxu0 0.0
        %1249 = vmatprep.subr.mxu0 0.0
        %1250 = vmatpush1.xpose.msra.mxu0 0.0
        %1251 = vmatprep.subr.mxu0 0.0
        %1252 = vmatpush1.xpose.msra.mxu0 0.0
        %1253 = vmatprep.subr.mxu0 0.0
        %1254 = vmatpush1.xpose.msra.mxu0 0.0
        %1255 = vmatprep.subr.mxu0 0.0
        %1256 = vmatpush1.xpose.msra.mxu0 0.0
        %1257 = vmatprep.mubr.f32.mxu0 0.0
        %1258 = vmatmul.mubr.f32.gmra.mrb[0].mxu0 %v1189
        %v1259 = vpop.f32.mrb[0].mxu0
        %v1260 = vadd.f32 0.0, %v1259
        %v1261 = vpop.f32.mrb[0].mxu0
        %1262 = vdwg.mxu0
        %v1263 = vsel %vm711, %v1260, -inf
        %1264 = vmax.xlane.f32.xlu0 %v1263
        %v1265 = vpop.xlane.xlu0 %1264
        %v1266 = vsub.f32 %v1260, %v1265
        %v1267 = vmul.f32 %v1266, 1.442695
        %v1268 = vpow.pop %v1267
        %v1269 = vsel %vm711, %v1268, 0.0
        %1270 = vadd.xlane.f32.xlu0 %v1269
        %v1271 = vpop.xlane.xlu0 %1270
        %v1272 = vrcp.pop %v1271
        %v1273 = vmul.f32 %v1268, %v1272
        %1274 = vrot.lane.b32.xlu0 %v704, 48
        %v1275 = vpop.permute.xlu0 %1274
        %v1278 = vsel %vm711, %v1273, 0
        %1280 = vmatprep.subr.mxu0 0.0
        %1281 = vmatpush1.msra.mxu0 %v1275
        %1282 = vmatprep.subr.mxu0 0.0
        %1283 = vmatpush1.msra.mxu0 0.0
        %1284 = vmatprep.subr.mxu0 0.0
        %1285 = vmatpush1.msra.mxu0 0.0
        %1286 = vmatprep.subr.mxu0 0.0
        %1287 = vmatpush1.msra.mxu0 0.0
        %1288 = vmatprep.subr.mxu0 0.0
        %1289 = vmatpush1.msra.mxu0 0.0
        %1290 = vmatprep.subr.mxu0 0.0
        %1291 = vmatpush1.msra.mxu0 0.0
        %1292 = vmatprep.subr.mxu0 0.0
        %1293 = vmatpush1.msra.mxu0 0.0
        %1294 = vmatprep.subr.mxu0 0.0
        %1295 = vmatpush1.msra.mxu0 0.0
        %1296 = vmatprep.subr.mxu0 0.0
        %1297 = vmatpush1.msra.mxu0 0.0
        %1298 = vmatprep.subr.mxu0 0.0
        %1299 = vmatpush1.msra.mxu0 0.0
        %1300 = vmatprep.subr.mxu0 0.0
        %1301 = vmatpush1.msra.mxu0 0.0
        %1302 = vmatprep.subr.mxu0 0.0
        %1303 = vmatpush1.msra.mxu0 0.0
        %1304 = vmatprep.subr.mxu0 0.0
        %1305 = vmatpush1.msra.mxu0 0.0
        %1306 = vmatprep.subr.mxu0 0.0
        %1307 = vmatpush1.msra.mxu0 0.0
        %1308 = vmatprep.subr.mxu0 0.0
        %1309 = vmatpush1.msra.mxu0 0.0
        %1310 = vmatprep.subr.mxu0 0.0
        %1311 = vmatpush1.msra.mxu0 0.0
        %1312 = vmatprep.subr.mxu0 0.0
        %1313 = vmatpush1.msra.mxu0 0.0
        %1314 = vmatprep.subr.mxu0 0.0
        %1315 = vmatpush1.msra.mxu0 0.0
        %1316 = vmatprep.subr.mxu0 0.0
        %1317 = vmatpush1.msra.mxu0 0.0
        %1318 = vmatprep.subr.mxu0 0.0
        %1319 = vmatpush1.msra.mxu0 0.0
        %1320 = vmatprep.subr.mxu0 0.0
        %1321 = vmatpush1.msra.mxu0 0.0
        %1322 = vmatprep.subr.mxu0 0.0
        %1323 = vmatpush1.msra.mxu0 0.0
        %1324 = vmatprep.subr.mxu0 0.0
        %1325 = vmatpush1.msra.mxu0 0.0
        %1326 = vmatprep.subr.mxu0 0.0
        %1327 = vmatpush1.msra.mxu0 0.0
        %1328 = vmatprep.subr.mxu0 0.0
        %1329 = vmatpush1.msra.mxu0 0.0
        %1330 = vmatprep.subr.mxu0 0.0
        %1331 = vmatpush1.msra.mxu0 0.0
        %1332 = vmatprep.subr.mxu0 0.0
        %1333 = vmatpush1.msra.mxu0 0.0
        %1334 = vmatprep.subr.mxu0 0.0
        %1335 = vmatpush1.msra.mxu0 0.0
        %1336 = vmatprep.subr.mxu0 0.0
        %1337 = vmatpush1.msra.mxu0 0.0
        %1338 = vmatprep.subr.mxu0 0.0
        %1339 = vmatpush1.msra.mxu0 0.0
        %1340 = vmatprep.subr.mxu0 0.0
        %1341 = vmatpush1.msra.mxu0 0.0
        %1342 = vmatprep.subr.mxu0 0.0
        %1343 = vmatpush1.msra.mxu0 0.0
        %1344 = vmatprep.mubr.f32.mxu0 0.0
        %1345 = vmatmul.mubr.f32.gmra.mrb[0].mxu0 %v1278
        %v1346 = vpop.f32.mrb[0].mxu0
        %v1347 = vadd.f32 0.0, %v1346
        %v1348 = vpop.f32.mrb[0].mxu0
        %1349 = vdwg.mxu0
        %v1351 = vsel %vm711, %v1347, 0
        %1353 = vmatprep.subr.mxu0 0.0
        %1354 = vmatpush1.msra.mxu0 %v624
        %1355 = vmatprep.subr.mxu0 0.0
        %1356 = vmatpush1.msra.mxu0 0.0
        %1357 = vmatprep.subr.mxu0 0.0
        %1358 = vmatpush1.msra.mxu0 0.0
        %1359 = vmatprep.subr.mxu0 0.0
        %1360 = vmatpush1.msra.mxu0 0.0
        %1361 = vmatprep.subr.mxu0 0.0
        %1362 = vmatpush1.msra.mxu0 0.0
        %1363 = vmatprep.subr.mxu0 0.0
        %1364 = vmatpush1.msra.mxu0 0.0
        %1365 = vmatprep.subr.mxu0 0.0
        %1366 = vmatpush1.msra.mxu0 0.0
        %1367 = vmatprep.subr.mxu0 0.0
        %1368 = vmatpush1.msra.mxu0 0.0
        %1369 = vmatprep.subr.mxu0 0.0
        %1370 = vmatpush1.msra.mxu0 0.0
        %1371 = vmatprep.subr.mxu0 0.0
        %1372 = vmatpush1.msra.mxu0 0.0
        %1373 = vmatprep.subr.mxu0 0.0
        %1374 = vmatpush1.msra.mxu0 0.0
        %1375 = vmatprep.subr.mxu0 0.0
        %1376 = vmatpush1.msra.mxu0 0.0
        %1377 = vmatprep.subr.mxu0 0.0
        %1378 = vmatpush1.msra.mxu0 0.0
        %1379 = vmatprep.subr.mxu0 0.0
        %1380 = vmatpush1.msra.mxu0 0.0
        %1381 = vmatprep.subr.mxu0 0.0
        %1382 = vmatpush1.msra.mxu0 0.0
        %1383 = vmatprep.subr.mxu0 0.0
        %1384 = vmatpush1.msra.mxu0 0.0
        %1385 = vmatprep.subr.mxu0 0.0
        %1386 = vmatpush1.msra.mxu0 0.0
        %1387 = vmatprep.subr.mxu0 0.0
        %1388 = vmatpush1.msra.mxu0 0.0
        %1389 = vmatprep.subr.mxu0 0.0
        %1390 = vmatpush1.msra.mxu0 0.0
        %1391 = vmatprep.subr.mxu0 0.0
        %1392 = vmatpush1.msra.mxu0 0.0
        %1393 = vmatprep.subr.mxu0 0.0
        %1394 = vmatpush1.msra.mxu0 0.0
        %1395 = vmatprep.subr.mxu0 0.0
        %1396 = vmatpush1.msra.mxu0 0.0
        %1397 = vmatprep.subr.mxu0 0.0
        %1398 = vmatpush1.msra.mxu0 0.0
        %1399 = vmatprep.subr.mxu0 0.0
        %1400 = vmatpush1.msra.mxu0 0.0
        %1401 = vmatprep.subr.mxu0 0.0
        %1402 = vmatpush1.msra.mxu0 0.0
        %1403 = vmatprep.subr.mxu0 0.0
        %1404 = vmatpush1.msra.mxu0 0.0
        %1405 = vmatprep.subr.mxu0 0.0
        %1406 = vmatpush1.msra.mxu0 0.0
        %1407 = vmatprep.subr.mxu0 0.0
        %1408 = vmatpush1.msra.mxu0 0.0
        %1409 = vmatprep.subr.mxu0 0.0
        %1410 = vmatpush1.msra.mxu0 0.0
        %1411 = vmatprep.subr.mxu0 0.0
        %1412 = vmatpush1.msra.mxu0 0.0
        %1413 = vmatprep.subr.mxu0 0.0
        %1414 = vmatpush1.msra.mxu0 0.0
        %1415 = vmatprep.subr.mxu0 0.0
        %1416 = vmatpush1.msra.mxu0 0.0
        %1417 = vmatprep.mubr.f32.mxu0 0.0
        %1418 = vmatmul.mubr.f32.gmra.mrb[0].mxu0 %v1351
        %v1419 = vpop.f32.mrb[0].mxu0
        %v1420 = vadd.f32 0.0, %v1419
        %v1421 = vpop.f32.mrb[0].mxu0
        %1422 = vdwg.mxu0
        %v1423 = vadd.f32 %v1182, %v1420
        %1424 = vrot.lane.b32.xlu0 %v707, 104
        %v1425 = vpop.permute.xlu0 %1424
        %1426 = vrot.lane.b32.xlu0 %v704, 72
        %v1427 = vpop.permute.xlu0 %1426
        %v1428 = vsel %vm711, %v1425, 0
        %v1430 = vsel %vm711, %v1427, 0
        %1432 = vmatprep.subr.mxu0 0.0
        %1433 = vmatpush1.xpose.msra.mxu0 %v1430
        %1434 = vmatprep.subr.mxu0 0.0
        %1435 = vmatpush1.xpose.msra.mxu0 0.0
        %1436 = vmatprep.subr.mxu0 0.0
        %1437 = vmatpush1.xpose.msra.mxu0 0.0
        %1438 = vmatprep.subr.mxu0 0.0
        %1439 = vmatpush1.xpose.msra.mxu0 0.0
        %1440 = vmatprep.subr.mxu0 0.0
        %1441 = vmatpush1.xpose.msra.mxu0 0.0
        %1442 = vmatprep.subr.mxu0 0.0
        %1443 = vmatpush1.xpose.msra.mxu0 0.0
        %1444 = vmatprep.subr.mxu0 0.0
        %1445 = vmatpush1.xpose.msra.mxu0 0.0
        %1446 = vmatprep.subr.mxu0 0.0
        %1447 = vmatpush1.xpose.msra.mxu0 0.0
        %1448 = vmatprep.subr.mxu0 0.0
        %1449 = vmatpush1.xpose.msra.mxu0 0.0
        %1450 = vmatprep.subr.mxu0 0.0
        %1451 = vmatpush1.xpose.msra.mxu0 0.0
        %1452 = vmatprep.subr.mxu0 0.0
        %1453 = vmatpush1.xpose.msra.mxu0 0.0
        %1454 = vmatprep.subr.mxu0 0.0
        %1455 = vmatpush1.xpose.msra.mxu0 0.0
        %1456 = vmatprep.subr.mxu0 0.0
        %1457 = vmatpush1.xpose.msra.mxu0 0.0
        %1458 = vmatprep.subr.mxu0 0.0
        %1459 = vmatpush1.xpose.msra.mxu0 0.0
        %1460 = vmatprep.subr.mxu0 0.0
        %1461 = vmatpush1.xpose.msra.mxu0 0.0
        %1462 = vmatprep.subr.mxu0 0.0
        %1463 = vmatpush1.xpose.msra.mxu0 0.0
        %1464 = vmatprep.subr.mxu0 0.0
        %1465 = vmatpush1.xpose.msra.mxu0 0.0
        %1466 = vmatprep.subr.mxu0 0.0
        %1467 = vmatpush1.xpose.msra.mxu0 0.0
        %1468 = vmatprep.subr.mxu0 0.0
        %1469 = vmatpush1.xpose.msra.mxu0 0.0
        %1470 = vmatprep.subr.mxu0 0.0
        %1471 = vmatpush1.xpose.msra.mxu0 0.0
        %1472 = vmatprep.subr.mxu0 0.0
        %1473 = vmatpush1.xpose.msra.mxu0 0.0
        %1474 = vmatprep.subr.mxu0 0.0
        %1475 = vmatpush1.xpose.msra.mxu0 0.0
        %1476 = vmatprep.subr.mxu0 0.0
        %1477 = vmatpush1.xpose.msra.mxu0 0.0
        %1478 = vmatprep.subr.mxu0 0.0
        %1479 = vmatpush1.xpose.msra.mxu0 0.0
        %1480 = vmatprep.subr.mxu0 0.0
        %1481 = vmatpush1.xpose.msra.mxu0 0.0
        %1482 = vmatprep.subr.mxu0 0.0
        %1483 = vmatpush1.xpose.msra.mxu0 0.0
        %1484 = vmatprep.subr.mxu0 0.0
        %1485 = vmatpush1.xpose.msra.mxu0 0.0
        %1486 = vmatprep.subr.mxu0 0.0
        %1487 = vmatpush1.xpose.msra.mxu0 0.0
        %1488 = vmatprep.subr.mxu0 0.0
        %1489 = vmatpush1.xpose.msra.mxu0 0.0
        %1490 = vmatprep.subr.mxu0 0.0
        %1491 = vmatpush1.xpose.msra.mxu0 0.0
        %1492 = vmatprep.subr.mxu0 0.0
        %1493 = vmatpush1.xpose.msra.mxu0 0.0
        %1494 = vmatprep.subr.mxu0 0.0
        %1495 = vmatpush1.xpose.msra.mxu0 0.0
        %1496 = vmatprep.mubr.f32.mxu0 0.0
        %1497 = vmatmul.mubr.f32.gmra.mrb[0].mxu0 %v1428
        %v1498 = vpop.f32.mrb[0].mxu0
        %v1499 = vadd.f32 0.0, %v1498
        %v1500 = vpop.f32.mrb[0].mxu0
        %1501 = vdwg.mxu0
        %v1502 = vsel %vm711, %v1499, -inf
        %1503 = vmax.xlane.f32.xlu0 %v1502
        %v1504 = vpop.xlane.xlu0 %1503
        %v1505 = vsub.f32 %v1499, %v1504
        %v1506 = vmul.f32 %v1505, 1.442695
        %v1507 = vpow.pop %v1506
        %v1508 = vsel %vm711, %v1507, 0.0
        %1509 = vadd.xlane.f32.xlu0 %v1508
        %v1510 = vpop.xlane.xlu0 %1509
        %v1511 = vrcp.pop %v1510
        %v1512 = vmul.f32 %v1507, %v1511
        %1513 = vrot.lane.b32.xlu0 %v704, 40
        %v1514 = vpop.permute.xlu0 %1513
        %v1517 = vsel %vm711, %v1512, 0
        %1519 = vmatprep.subr.mxu0 0.0
        %1520 = vmatpush1.msra.mxu0 %v1514
        %1521 = vmatprep.subr.mxu0 0.0
        %1522 = vmatpush1.msra.mxu0 0.0
        %1523 = vmatprep.subr.mxu0 0.0
        %1524 = vmatpush1.msra.mxu0 0.0
        %1525 = vmatprep.subr.mxu0 0.0
        %1526 = vmatpush1.msra.mxu0 0.0
        %1527 = vmatprep.subr.mxu0 0.0
        %1528 = vmatpush1.msra.mxu0 0.0
        %1529 = vmatprep.subr.mxu0 0.0
        %1530 = vmatpush1.msra.mxu0 0.0
        %1531 = vmatprep.subr.mxu0 0.0
        %1532 = vmatpush1.msra.mxu0 0.0
        %1533 = vmatprep.subr.mxu0 0.0
        %1534 = vmatpush1.msra.mxu0 0.0
        %1535 = vmatprep.subr.mxu0 0.0
        %1536 = vmatpush1.msra.mxu0 0.0
        %1537 = vmatprep.subr.mxu0 0.0
        %1538 = vmatpush1.msra.mxu0 0.0
        %1539 = vmatprep.subr.mxu0 0.0
        %1540 = vmatpush1.msra.mxu0 0.0
        %1541 = vmatprep.subr.mxu0 0.0
        %1542 = vmatpush1.msra.mxu0 0.0
        %1543 = vmatprep.subr.mxu0 0.0
        %1544 = vmatpush1.msra.mxu0 0.0
        %1545 = vmatprep.subr.mxu0 0.0
        %1546 = vmatpush1.msra.mxu0 0.0
        %1547 = vmatprep.subr.mxu0 0.0
        %1548 = vmatpush1.msra.mxu0 0.0
        %1549 = vmatprep.subr.mxu0 0.0
        %1550 = vmatpush1.msra.mxu0 0.0
        %1551 = vmatprep.subr.mxu0 0.0
        %1552 = vmatpush1.msra.mxu0 0.0
        %1553 = vmatprep.subr.mxu0 0.0
        %1554 = vmatpush1.msra.mxu0 0.0
        %1555 = vmatprep.subr.mxu0 0.0
        %1556 = vmatpush1.msra.mxu0 0.0
        %1557 = vmatprep.subr.mxu0 0.0
        %1558 = vmatpush1.msra.mxu0 0.0
        %1559 = vmatprep.subr.mxu0 0.0
        %1560 = vmatpush1.msra.mxu0 0.0
        %1561 = vmatprep.subr.mxu0 0.0
        %1562 = vmatpush1.msra.mxu0 0.0
        %1563 = vmatprep.subr.mxu0 0.0
        %1564 = vmatpush1.msra.mxu0 0.0
        %1565 = vmatprep.subr.mxu0 0.0
        %1566 = vmatpush1.msra.mxu0 0.0
        %1567 = vmatprep.subr.mxu0 0.0
        %1568 = vmatpush1.msra.mxu0 0.0
        %1569 = vmatprep.subr.mxu0 0.0
        %1570 = vmatpush1.msra.mxu0 0.0
        %1571 = vmatprep.subr.mxu0 0.0
        %1572 = vmatpush1.msra.mxu0 0.0
        %1573 = vmatprep.subr.mxu0 0.0
        %1574 = vmatpush1.msra.mxu0 0.0
        %1575 = vmatprep.subr.mxu0 0.0
        %1576 = vmatpush1.msra.mxu0 0.0
        %1577 = vmatprep.subr.mxu0 0.0
        %1578 = vmatpush1.msra.mxu0 0.0
        %1579 = vmatprep.subr.mxu0 0.0
        %1580 = vmatpush1.msra.mxu0 0.0
        %1581 = vmatprep.subr.mxu0 0.0
        %1582 = vmatpush1.msra.mxu0 0.0
        %1583 = vmatprep.mubr.f32.mxu0 0.0
        %1584 = vmatmul.mubr.f32.gmra.mrb[0].mxu0 %v1517
        %v1585 = vpop.f32.mrb[0].mxu0
        %v1586 = vadd.f32 0.0, %v1585
        %v1587 = vpop.f32.mrb[0].mxu0
        %1588 = vdwg.mxu0
        %v1590 = vsel %vm711, %v1586, 0
        %1592 = vmatprep.subr.mxu0 0.0
        %1593 = vmatpush1.msra.mxu0 %v625
        %1594 = vmatprep.subr.mxu0 0.0
        %1595 = vmatpush1.msra.mxu0 0.0
        %1596 = vmatprep.subr.mxu0 0.0
        %1597 = vmatpush1.msra.mxu0 0.0
        %1598 = vmatprep.subr.mxu0 0.0
        %1599 = vmatpush1.msra.mxu0 0.0
        %1600 = vmatprep.subr.mxu0 0.0
        %1601 = vmatpush1.msra.mxu0 0.0
        %1602 = vmatprep.subr.mxu0 0.0
        %1603 = vmatpush1.msra.mxu0 0.0
        %1604 = vmatprep.subr.mxu0 0.0
        %1605 = vmatpush1.msra.mxu0 0.0
        %1606 = vmatprep.subr.mxu0 0.0
        %1607 = vmatpush1.msra.mxu0 0.0
        %1608 = vmatprep.subr.mxu0 0.0
        %1609 = vmatpush1.msra.mxu0 0.0
        %1610 = vmatprep.subr.mxu0 0.0
        %1611 = vmatpush1.msra.mxu0 0.0
        %1612 = vmatprep.subr.mxu0 0.0
        %1613 = vmatpush1.msra.mxu0 0.0
        %1614 = vmatprep.subr.mxu0 0.0
        %1615 = vmatpush1.msra.mxu0 0.0
        %1616 = vmatprep.subr.mxu0 0.0
        %1617 = vmatpush1.msra.mxu0 0.0
        %1618 = vmatprep.subr.mxu0 0.0
        %1619 = vmatpush1.msra.mxu0 0.0
        %1620 = vmatprep.subr.mxu0 0.0
        %1621 = vmatpush1.msra.mxu0 0.0
        %1622 = vmatprep.subr.mxu0 0.0
        %1623 = vmatpush1.msra.mxu0 0.0
        %1624 = vmatprep.subr.mxu0 0.0
        %1625 = vmatpush1.msra.mxu0 0.0
        %1626 = vmatprep.subr.mxu0 0.0
        %1627 = vmatpush1.msra.mxu0 0.0
        %1628 = vmatprep.subr.mxu0 0.0
        %1629 = vmatpush1.msra.mxu0 0.0
        %1630 = vmatprep.subr.mxu0 0.0
        %1631 = vmatpush1.msra.mxu0 0.0
        %1632 = vmatprep.subr.mxu0 0.0
        %1633 = vmatpush1.msra.mxu0 0.0
        %1634 = vmatprep.subr.mxu0 0.0
        %1635 = vmatpush1.msra.mxu0 0.0
        %1636 = vmatprep.subr.mxu0 0.0
        %1637 = vmatpush1.msra.mxu0 0.0
        %1638 = vmatprep.subr.mxu0 0.0
        %1639 = vmatpush1.msra.mxu0 0.0
        %1640 = vmatprep.subr.mxu0 0.0
        %1641 = vmatpush1.msra.mxu0 0.0
        %1642 = vmatprep.subr.mxu0 0.0
        %1643 = vmatpush1.msra.mxu0 0.0
        %1644 = vmatprep.subr.mxu0 0.0
        %1645 = vmatpush1.msra.mxu0 0.0
        %1646 = vmatprep.subr.mxu0 0.0
        %1647 = vmatpush1.msra.mxu0 0.0
        %1648 = vmatprep.subr.mxu0 0.0
        %1649 = vmatpush1.msra.mxu0 0.0
        %1650 = vmatprep.subr.mxu0 0.0
        %1651 = vmatpush1.msra.mxu0 0.0
        %1652 = vmatprep.subr.mxu0 0.0
        %1653 = vmatpush1.msra.mxu0 0.0
        %1654 = vmatprep.subr.mxu0 0.0
        %1655 = vmatpush1.msra.mxu0 0.0
        %1656 = vmatprep.mubr.f32.mxu0 0.0
        %1657 = vmatmul.mubr.f32.gmra.mrb[0].mxu0 %v1590
        %v1658 = vpop.f32.mrb[0].mxu0
        %v1659 = vadd.f32 0.0, %v1658
        %v1660 = vpop.f32.mrb[0].mxu0
        %1661 = vdwg.mxu0
        %v1662 = vadd.f32 %v1423, %v1659
        %v1664 = vlaneseq
        %v1665 = vshrl.u32 %v1664, 7
        %v1666 = vsub.s32 0, %v1665
        %v1667 = vrot.slane %v626, %v1666
        %v1669 = vadd.f32 %v1662, %v1667
        %v1670 = vadd.f32 %v614, %v1669
        %v1671 = vsel %vm633, %v1670, 0.0
        %1672 = vadd.xlane.f32.xlu0 %v1671
        %v1673 = vpop.xlane.xlu0 %1672
        %v1674 = vrcp.pop 32.0
        %v1675 = vmul.f32 %v1673, %v1674
        %v1676 = vsub.f32 %v1670, %v1675
        %v1677 = vmul.f32 %v1676, %v1676
        %v1678 = vsel %vm633, %v1677, 0.0
        %1679 = vadd.xlane.f32.xlu0 %v1678
        %v1680 = vpop.xlane.xlu0 %1679
        %v1681 = vmul.f32 %v1680, %v1674
        %v1682 = vadd.f32 %v1681, 1e-05
        %v1683 = vrsqrt.pop %v1682
        %v1684 = vmul.f32 %v1676, %v1683
        %v1685 = vlaneseq
        %v1686 = vshrl.u32 %v1685, 7
        %v1687 = vsub.s32 0, %v1686
        %v1688 = vrot.slane %v615, %v1687
        %v1689 = vmul.f32 %v1684, %v1688
        %v1690 = vlaneseq
        %v1691 = vshrl.u32 %v1690, 7
        %v1692 = vsub.s32 0, %v1691
        %v1693 = vrot.slane %v616, %v1692
        %v1694 = vadd.f32 %v1689, %v1693
        %s1695 = scalar_lea.vmem %s3, 32
        %v1696 = vld [vmem:[%s1695] sm:$0xff]
        %v1697 = vld [vmem:[%s1695 + $0x8] sm:$0xff]
        %v1698 = vld [vmem:[%s1695 + $0x10] sm:$0xff]
        %v1699 = vld [vmem:[%s1695 + $0x18] sm:$0xff]
        %s1700 = scalar_lea.vmem [#allocation8], 1
        %v1701 = vld [vmem:[%s1700] sm:$0x1]
        %s1702 = scalar_lea.vmem [#allocation10], 32
        %v1703 = vld [vmem:[%s1702] sm:$0xff]
        %v1704 = vld [vmem:[%s1702 + $0x8] sm:$0xff]
        %v1705 = vld [vmem:[%s1702 + $0x10] sm:$0xff]
        %v1706 = vld [vmem:[%s1702 + $0x18] sm:$0xff]
        %s1707 = scalar_lea.vmem %s6, 1
        %v1708 = vld [vmem:[%s1707] sm:$0x1]
        %v1710 = vlaneseq
        %v1711 = vshrl.u32 %v1710, 7
        %v1712 = vsub.s32 0, %v1711
        %v1713 = vrot.slane %v1701, %v1712
        %v1716 = vsel %vm633, %v1694, 0
        %1718 = vmatprep.subr.mxu0 0.0
        %1719 = vmatpush1.msra.mxu0 %v1696
        %1720 = vmatprep.subr.mxu0 0.0
        %1721 = vmatpush1.msra.mxu0 %v1697
        %1722 = vmatprep.subr.mxu0 0.0
        %1723 = vmatpush1.msra.mxu0 %v1698
        %1724 = vmatprep.subr.mxu0 0.0
        %1725 = vmatpush1.msra.mxu0 %v1699
        %1726 = vmatprep.subr.mxu0 0.0
        %1727 = vmatpush1.msra.mxu0 0.0
        %1728 = vmatprep.subr.mxu0 0.0
        %1729 = vmatpush1.msra.mxu0 0.0
        %1730 = vmatprep.subr.mxu0 0.0
        %1731 = vmatpush1.msra.mxu0 0.0
        %1732 = vmatprep.subr.mxu0 0.0
        %1733 = vmatpush1.msra.mxu0 0.0
        %1734 = vmatprep.subr.mxu0 0.0
        %1735 = vmatpush1.msra.mxu0 0.0
        %1736 = vmatprep.subr.mxu0 0.0
        %1737 = vmatpush1.msra.mxu0 0.0
        %1738 = vmatprep.subr.mxu0 0.0
        %1739 = vmatpush1.msra.mxu0 0.0
        %1740 = vmatprep.subr.mxu0 0.0
        %1741 = vmatpush1.msra.mxu0 0.0
        %1742 = vmatprep.subr.mxu0 0.0
        %1743 = vmatpush1.msra.mxu0 0.0
        %1744 = vmatprep.subr.mxu0 0.0
        %1745 = vmatpush1.msra.mxu0 0.0
        %1746 = vmatprep.subr.mxu0 0.0
        %1747 = vmatpush1.msra.mxu0 0.0
        %1748 = vmatprep.subr.mxu0 0.0
        %1749 = vmatpush1.msra.mxu0 0.0
        %1750 = vmatprep.subr.mxu0 0.0
        %1751 = vmatpush1.msra.mxu0 0.0
        %1752 = vmatprep.subr.mxu0 0.0
        %1753 = vmatpush1.msra.mxu0 0.0
        %1754 = vmatprep.subr.mxu0 0.0
        %1755 = vmatpush1.msra.mxu0 0.0
        %1756 = vmatprep.subr.mxu0 0.0
        %1757 = vmatpush1.msra.mxu0 0.0
        %1758 = vmatprep.subr.mxu0 0.0
        %1759 = vmatpush1.msra.mxu0 0.0
        %1760 = vmatprep.subr.mxu0 0.0
        %1761 = vmatpush1.msra.mxu0 0.0
        %1762 = vmatprep.subr.mxu0 0.0
        %1763 = vmatpush1.msra.mxu0 0.0
        %1764 = vmatprep.subr.mxu0 0.0
        %1765 = vmatpush1.msra.mxu0 0.0
        %1766 = vmatprep.subr.mxu0 0.0
        %1767 = vmatpush1.msra.mxu0 0.0
        %1768 = vmatprep.subr.mxu0 0.0
        %1769 = vmatpush1.msra.mxu0 0.0
        %1770 = vmatprep.subr.mxu0 0.0
        %1771 = vmatpush1.msra.mxu0 0.0
        %1772 = vmatprep.subr.mxu0 0.0
        %1773 = vmatpush1.msra.mxu0 0.0
        %1774 = vmatprep.subr.mxu0 0.0
        %1775 = vmatpush1.msra.mxu0 0.0
        %1776 = vmatprep.subr.mxu0 0.0
        %1777 = vmatpush1.msra.mxu0 0.0
        %1778 = vmatprep.subr.mxu0 0.0
        %1779 = vmatpush1.msra.mxu0 0.0
        %1780 = vmatprep.subr.mxu0 0.0
        %1781 = vmatpush1.msra.mxu0 0.0
        %1782 = vmatprep.mubr.f32.mxu0 0.0
        %1783 = vmatmul.mubr.f32.gmra.mrb[0].mxu0 %v1716
        %v1784 = vpop.f32.mrb[0].mxu0
        %v1785 = vadd.f32 %v1713, %v1784
        %v1786 = vpop.f32.mrb[0].mxu0
        %1787 = vdwg.mxu0
        %v1788 = vmul.f32 %v1785, 0.35355338
        %1793 = vrot.lane.b32.xlu0 %v1696, 96
        %v1794 = vpop.permute.xlu0 %1793
        %1795 = vrot.lane.b32.xlu0 %v1697, 96
        %v1796 = vpop.permute.xlu0 %1795
        %1797 = vrot.lane.b32.xlu0 %v1698, 96
        %v1798 = vpop.permute.xlu0 %1797
        %1799 = vrot.lane.b32.xlu0 %v1699, 96
        %v1800 = vpop.permute.xlu0 %1799
        %1805 = vrot.lane.b32.xlu0 %v1713, 96
        %v1806 = vpop.permute.xlu0 %1805
        %1808 = vmatprep.subr.mxu0 0.0
        %1809 = vmatpush1.msra.mxu0 %v1794
        %1810 = vmatprep.subr.mxu0 0.0
        %1811 = vmatpush1.msra.mxu0 %v1796
        %1812 = vmatprep.subr.mxu0 0.0
        %1813 = vmatpush1.msra.mxu0 %v1798
        %1814 = vmatprep.subr.mxu0 0.0
        %1815 = vmatpush1.msra.mxu0 %v1800
        %1816 = vmatprep.subr.mxu0 0.0
        %1817 = vmatpush1.msra.mxu0 0.0
        %1818 = vmatprep.subr.mxu0 0.0
        %1819 = vmatpush1.msra.mxu0 0.0
        %1820 = vmatprep.subr.mxu0 0.0
        %1821 = vmatpush1.msra.mxu0 0.0
        %1822 = vmatprep.subr.mxu0 0.0
        %1823 = vmatpush1.msra.mxu0 0.0
        %1824 = vmatprep.subr.mxu0 0.0
        %1825 = vmatpush1.msra.mxu0 0.0
        %1826 = vmatprep.subr.mxu0 0.0
        %1827 = vmatpush1.msra.mxu0 0.0
        %1828 = vmatprep.subr.mxu0 0.0
        %1829 = vmatpush1.msra.mxu0 0.0
        %1830 = vmatprep.subr.mxu0 0.0
        %1831 = vmatpush1.msra.mxu0 0.0
        %1832 = vmatprep.subr.mxu0 0.0
        %1833 = vmatpush1.msra.mxu0 0.0
        %1834 = vmatprep.subr.mxu0 0.0
        %1835 = vmatpush1.msra.mxu0 0.0
        %1836 = vmatprep.subr.mxu0 0.0
        %1837 = vmatpush1.msra.mxu0 0.0
        %1838 = vmatprep.subr.mxu0 0.0
        %1839 = vmatpush1.msra.mxu0 0.0
        %1840 = vmatprep.subr.mxu0 0.0
        %1841 = vmatpush1.msra.mxu0 0.0
        %1842 = vmatprep.subr.mxu0 0.0
        %1843 = vmatpush1.msra.mxu0 0.0
        %1844 = vmatprep.subr.mxu0 0.0
        %1845 = vmatpush1.msra.mxu0 0.0
        %1846 = vmatprep.subr.mxu0 0.0
        %1847 = vmatpush1.msra.mxu0 0.0
        %1848 = vmatprep.subr.mxu0 0.0
        %1849 = vmatpush1.msra.mxu0 0.0
        %1850 = vmatprep.subr.mxu0 0.0
        %1851 = vmatpush1.msra.mxu0 0.0
        %1852 = vmatprep.subr.mxu0 0.0
        %1853 = vmatpush1.msra.mxu0 0.0
        %1854 = vmatprep.subr.mxu0 0.0
        %1855 = vmatpush1.msra.mxu0 0.0
        %1856 = vmatprep.subr.mxu0 0.0
        %1857 = vmatpush1.msra.mxu0 0.0
        %1858 = vmatprep.subr.mxu0 0.0
        %1859 = vmatpush1.msra.mxu0 0.0
        %1860 = vmatprep.subr.mxu0 0.0
        %1861 = vmatpush1.msra.mxu0 0.0
        %1862 = vmatprep.subr.mxu0 0.0
        %1863 = vmatpush1.msra.mxu0 0.0
        %1864 = vmatprep.subr.mxu0 0.0
        %1865 = vmatpush1.msra.mxu0 0.0
        %1866 = vmatprep.subr.mxu0 0.0
        %1867 = vmatpush1.msra.mxu0 0.0
        %1868 = vmatprep.subr.mxu0 0.0
        %1869 = vmatpush1.msra.mxu0 0.0
        %1870 = vmatprep.subr.mxu0 0.0
        %1871 = vmatpush1.msra.mxu0 0.0
        %1872 = vmatprep.mubr.f32.mxu0 0.0
        %1873 = vmatmul.mubr.f32.gmra.mrb[0].mxu0 %v635
        %v1874 = vpop.f32.mrb[0].mxu0
        %v1875 = vadd.f32 %v1806, %v1874
        %v1876 = vpop.f32.mrb[0].mxu0
        %1877 = vdwg.mxu0
        %v1879 = vsel %vm711, %v1788, 0
        %v1882 = vsel %vm711, %v1875, 0
        %1884 = vmatprep.subr.mxu0 0.0
        %1885 = vmatpush1.xpose.msra.mxu0 %v1882
        %1886 = vmatprep.subr.mxu0 0.0
        %1887 = vmatpush1.xpose.msra.mxu0 0.0
        %1888 = vmatprep.subr.mxu0 0.0
        %1889 = vmatpush1.xpose.msra.mxu0 0.0
        %1890 = vmatprep.subr.mxu0 0.0
        %1891 = vmatpush1.xpose.msra.mxu0 0.0
        %1892 = vmatprep.subr.mxu0 0.0
        %1893 = vmatpush1.xpose.msra.mxu0 0.0
        %1894 = vmatprep.subr.mxu0 0.0
        %1895 = vmatpush1.xpose.msra.mxu0 0.0
        %1896 = vmatprep.subr.mxu0 0.0
        %1897 = vmatpush1.xpose.msra.mxu0 0.0
        %1898 = vmatprep.subr.mxu0 0.0
        %1899 = vmatpush1.xpose.msra.mxu0 0.0
        %1900 = vmatprep.subr.mxu0 0.0
        %1901 = vmatpush1.xpose.msra.mxu0 0.0
        %1902 = vmatprep.subr.mxu0 0.0
        %1903 = vmatpush1.xpose.msra.mxu0 0.0
        %1904 = vmatprep.subr.mxu0 0.0
        %1905 = vmatpush1.xpose.msra.mxu0 0.0
        %1906 = vmatprep.subr.mxu0 0.0
        %1907 = vmatpush1.xpose.msra.mxu0 0.0
        %1908 = vmatprep.subr.mxu0 0.0
        %1909 = vmatpush1.xpose.msra.mxu0 0.0
        %1910 = vmatprep.subr.mxu0 0.0
        %1911 = vmatpush1.xpose.msra.mxu0 0.0
        %1912 = vmatprep.subr.mxu0 0.0
        %1913 = vmatpush1.xpose.msra.mxu0 0.0
        %1914 = vmatprep.subr.mxu0 0.0
        %1915 = vmatpush1.xpose.msra.mxu0 0.0
        %1916 = vmatprep.subr.mxu0 0.0
        %1917 = vmatpush1.xpose.msra.mxu0 0.0
        %1918 = vmatprep.subr.mxu0 0.0
        %1919 = vmatpush1.xpose.msra.mxu0 0.0
        %1920 = vmatprep.subr.mxu0 0.0
        %1921 = vmatpush1.xpose.msra.mxu0 0.0
        %1922 = vmatprep.subr.mxu0 0.0
        %1923 = vmatpush1.xpose.msra.mxu0 0.0
        %1924 = vmatprep.subr.mxu0 0.0
        %1925 = vmatpush1.xpose.msra.mxu0 0.0
        %1926 = vmatprep.subr.mxu0 0.0
        %1927 = vmatpush1.xpose.msra.mxu0 0.0
        %1928 = vmatprep.subr.mxu0 0.0
        %1929 = vmatpush1.xpose.msra.mxu0 0.0
        %1930 = vmatprep.subr.mxu0 0.0
        %1931 = vmatpush1.xpose.msra.mxu0 0.0
        %1932 = vmatprep.subr.mxu0 0.0
        %1933 = vmatpush1.xpose.msra.mxu0 0.0
        %1934 = vmatprep.subr.mxu0 0.0
        %1935 = vmatpush1.xpose.msra.mxu0 0.0
        %1936 = vmatprep.subr.mxu0 0.0
        %1937 = vmatpush1.xpose.msra.mxu0 0.0
        %1938 = vmatprep.subr.mxu0 0.0
        %1939 = vmatpush1.xpose.msra.mxu0 0.0
        %1940 = vmatprep.subr.mxu0 0.0
        %1941 = vmatpush1.xpose.msra.mxu0 0.0
        %1942 = vmatprep.subr.mxu0 0.0
        %1943 = vmatpush1.xpose.msra.mxu0 0.0
        %1944 = vmatprep.subr.mxu0 0.0
        %1945 = vmatpush1.xpose.msra.mxu0 0.0
        %1946 = vmatprep.subr.mxu0 0.0
        %1947 = vmatpush1.xpose.msra.mxu0 0.0
        %1948 = vmatprep.mubr.f32.mxu0 0.0
        %1949 = vmatmul.mubr.f32.gmra.mrb[0].mxu0 %v1879
        %v1950 = vpop.f32.mrb[0].mxu0
        %v1951 = vadd.f32 0.0, %v1950
        %v1952 = vpop.f32.mrb[0].mxu0
        %1953 = vdwg.mxu0
        %v1954 = vsel %vm711, %v1951, -inf
        %1955 = vmax.xlane.f32.xlu0 %v1954
        %v1956 = vpop.xlane.xlu0 %1955
        %v1957 = vsub.f32 %v1951, %v1956
        %v1958 = vmul.f32 %v1957, 1.442695
        %v1959 = vpow.pop %v1958
        %v1960 = vsel %vm711, %v1959, 0.0
        %1961 = vadd.xlane.f32.xlu0 %v1960
        %v1962 = vpop.xlane.xlu0 %1961
        %v1963 = vrcp.pop %v1962
        %v1964 = vmul.f32 %v1959, %v1963
        %1965 = vrot.lane.b32.xlu0 %v1875, 96
        %v1966 = vpop.permute.xlu0 %1965
        %v1969 = vsel %vm711, %v1964, 0
        %1971 = vmatprep.subr.mxu0 0.0
        %1972 = vmatpush1.msra.mxu0 %v1966
        %1973 = vmatprep.subr.mxu0 0.0
        %1974 = vmatpush1.msra.mxu0 0.0
        %1975 = vmatprep.subr.mxu0 0.0
        %1976 = vmatpush1.msra.mxu0 0.0
        %1977 = vmatprep.subr.mxu0 0.0
        %1978 = vmatpush1.msra.mxu0 0.0
        %1979 = vmatprep.subr.mxu0 0.0
        %1980 = vmatpush1.msra.mxu0 0.0
        %1981 = vmatprep.subr.mxu0 0.0
        %1982 = vmatpush1.msra.mxu0 0.0
        %1983 = vmatprep.subr.mxu0 0.0
        %1984 = vmatpush1.msra.mxu0 0.0
        %1985 = vmatprep.subr.mxu0 0.0
        %1986 = vmatpush1.msra.mxu0 0.0
        %1987 = vmatprep.subr.mxu0 0.0
        %1988 = vmatpush1.msra.mxu0 0.0
        %1989 = vmatprep.subr.mxu0 0.0
        %1990 = vmatpush1.msra.mxu0 0.0
        %1991 = vmatprep.subr.mxu0 0.0
        %1992 = vmatpush1.msra.mxu0 0.0
        %1993 = vmatprep.subr.mxu0 0.0
        %1994 = vmatpush1.msra.mxu0 0.0
        %1995 = vmatprep.subr.mxu0 0.0
        %1996 = vmatpush1.msra.mxu0 0.0
        %1997 = vmatprep.subr.mxu0 0.0
        %1998 = vmatpush1.msra.mxu0 0.0
        %1999 = vmatprep.subr.mxu0 0.0
        %2000 = vmatpush1.msra.mxu0 0.0
        %2001 = vmatprep.subr.mxu0 0.0
        %2002 = vmatpush1.msra.mxu0 0.0
        %2003 = vmatprep.subr.mxu0 0.0
        %2004 = vmatpush1.msra.mxu0 0.0
        %2005 = vmatprep.subr.mxu0 0.0
        %2006 = vmatpush1.msra.mxu0 0.0
        %2007 = vmatprep.subr.mxu0 0.0
        %2008 = vmatpush1.msra.mxu0 0.0
        %2009 = vmatprep.subr.mxu0 0.0
        %2010 = vmatpush1.msra.mxu0 0.0
        %2011 = vmatprep.subr.mxu0 0.0
        %2012 = vmatpush1.msra.mxu0 0.0
        %2013 = vmatprep.subr.mxu0 0.0
        %2014 = vmatpush1.msra.mxu0 0.0
        %2015 = vmatprep.subr.mxu0 0.0
        %2016 = vmatpush1.msra.mxu0 0.0
        %2017 = vmatprep.subr.mxu0 0.0
        %2018 = vmatpush1.msra.mxu0 0.0
        %2019 = vmatprep.subr.mxu0 0.0
        %2020 = vmatpush1.msra.mxu0 0.0
        %2021 = vmatprep.subr.mxu0 0.0
        %2022 = vmatpush1.msra.mxu0 0.0
        %2023 = vmatprep.subr.mxu0 0.0
        %2024 = vmatpush1.msra.mxu0 0.0
        %2025 = vmatprep.subr.mxu0 0.0
        %2026 = vmatpush1.msra.mxu0 0.0
        %2027 = vmatprep.subr.mxu0 0.0
        %2028 = vmatpush1.msra.mxu0 0.0
        %2029 = vmatprep.subr.mxu0 0.0
        %2030 = vmatpush1.msra.mxu0 0.0
        %2031 = vmatprep.subr.mxu0 0.0
        %2032 = vmatpush1.msra.mxu0 0.0
        %2033 = vmatprep.subr.mxu0 0.0
        %2034 = vmatpush1.msra.mxu0 0.0
        %2035 = vmatprep.mubr.f32.mxu0 0.0
        %2036 = vmatmul.mubr.f32.gmra.mrb[0].mxu0 %v1969
        %v2037 = vpop.f32.mrb[0].mxu0
        %v2038 = vadd.f32 0.0, %v2037
        %v2039 = vpop.f32.mrb[0].mxu0
        %2040 = vdwg.mxu0
        %2041 = vrot.lane.b32.xlu0 %v1788, 120
        %v2042 = vpop.permute.xlu0 %2041
        %2043 = vrot.lane.b32.xlu0 %v1875, 120
        %v2044 = vpop.permute.xlu0 %2043
        %v2045 = vsel %vm711, %v2042, 0
        %v2047 = vsel %vm711, %v2044, 0
        %2049 = vmatprep.subr.mxu0 0.0
        %2050 = vmatpush1.xpose.msra.mxu0 %v2047
        %2051 = vmatprep.subr.mxu0 0.0
        %2052 = vmatpush1.xpose.msra.mxu0 0.0
        %2053 = vmatprep.subr.mxu0 0.0
        %2054 = vmatpush1.xpose.msra.mxu0 0.0
        %2055 = vmatprep.subr.mxu0 0.0
        %2056 = vmatpush1.xpose.msra.mxu0 0.0
        %2057 = vmatprep.subr.mxu0 0.0
        %2058 = vmatpush1.xpose.msra.mxu0 0.0
        %2059 = vmatprep.subr.mxu0 0.0
        %2060 = vmatpush1.xpose.msra.mxu0 0.0
        %2061 = vmatprep.subr.mxu0 0.0
        %2062 = vmatpush1.xpose.msra.mxu0 0.0
        %2063 = vmatprep.subr.mxu0 0.0
        %2064 = vmatpush1.xpose.msra.mxu0 0.0
        %2065 = vmatprep.subr.mxu0 0.0
        %2066 = vmatpush1.xpose.msra.mxu0 0.0
        %2067 = vmatprep.subr.mxu0 0.0
        %2068 = vmatpush1.xpose.msra.mxu0 0.0
        %2069 = vmatprep.subr.mxu0 0.0
        %2070 = vmatpush1.xpose.msra.mxu0 0.0
        %2071 = vmatprep.subr.mxu0 0.0
        %2072 = vmatpush1.xpose.msra.mxu0 0.0
        %2073 = vmatprep.subr.mxu0 0.0
        %2074 = vmatpush1.xpose.msra.mxu0 0.0
        %2075 = vmatprep.subr.mxu0 0.0
        %2076 = vmatpush1.xpose.msra.mxu0 0.0
        %2077 = vmatprep.subr.mxu0 0.0
        %2078 = vmatpush1.xpose.msra.mxu0 0.0
        %2079 = vmatprep.subr.mxu0 0.0
        %2080 = vmatpush1.xpose.msra.mxu0 0.0
        %2081 = vmatprep.subr.mxu0 0.0
        %2082 = vmatpush1.xpose.msra.mxu0 0.0
        %2083 = vmatprep.subr.mxu0 0.0
        %2084 = vmatpush1.xpose.msra.mxu0 0.0
        %2085 = vmatprep.subr.mxu0 0.0
        %2086 = vmatpush1.xpose.msra.mxu0 0.0
        %2087 = vmatprep.subr.mxu0 0.0
        %2088 = vmatpush1.xpose.msra.mxu0 0.0
        %2089 = vmatprep.subr.mxu0 0.0
        %2090 = vmatpush1.xpose.msra.mxu0 0.0
        %2091 = vmatprep.subr.mxu0 0.0
        %2092 = vmatpush1.xpose.msra.mxu0 0.0
        %2093 = vmatprep.subr.mxu0 0.0
        %2094 = vmatpush1.xpose.msra.mxu0 0.0
        %2095 = vmatprep.subr.mxu0 0.0
        %2096 = vmatpush1.xpose.msra.mxu0 0.0
        %2097 = vmatprep.subr.mxu0 0.0
        %2098 = vmatpush1.xpose.msra.mxu0 0.0
        %2099 = vmatprep.subr.mxu0 0.0
        %2100 = vmatpush1.xpose.msra.mxu0 0.0
        %2101 = vmatprep.subr.mxu0 0.0
        %2102 = vmatpush1.xpose.msra.mxu0 0.0
        %2103 = vmatprep.subr.mxu0 0.0
        %2104 = vmatpush1.xpose.msra.mxu0 0.0
        %2105 = vmatprep.subr.mxu0 0.0
        %2106 = vmatpush1.xpose.msra.mxu0 0.0
        %2107 = vmatprep.subr.mxu0 0.0
        %2108 = vmatpush1.xpose.msra.mxu0 0.0
        %2109 = vmatprep.subr.mxu0 0.0
        %2110 = vmatpush1.xpose.msra.mxu0 0.0
        %2111 = vmatprep.subr.mxu0 0.0
        %2112 = vmatpush1.xpose.msra.mxu0 0.0
        %2113 = vmatprep.mubr.f32.mxu0 0.0
        %2114 = vmatmul.mubr.f32.gmra.mrb[0].mxu0 %v2045
        %v2115 = vpop.f32.mrb[0].mxu0
        %v2116 = vadd.f32 0.0, %v2115
        %v2117 = vpop.f32.mrb[0].mxu0
        %2118 = vdwg.mxu0
        %v2119 = vsel %vm711, %v2116, -inf
        %2120 = vmax.xlane.f32.xlu0 %v2119
        %v2121 = vpop.xlane.xlu0 %2120
        %v2122 = vsub.f32 %v2116, %v2121
        %v2123 = vmul.f32 %v2122, 1.442695
        %v2124 = vpow.pop %v2123
        %v2125 = vsel %vm711, %v2124, 0.0
        %2126 = vadd.xlane.f32.xlu0 %v2125
        %v2127 = vpop.xlane.xlu0 %2126
        %v2128 = vrcp.pop %v2127
        %v2129 = vmul.f32 %v2124, %v2128
        %2130 = vrot.lane.b32.xlu0 %v1875, 88
        %v2131 = vpop.permute.xlu0 %2130
        %v2134 = vsel %vm711, %v2129, 0
        %2136 = vmatprep.subr.mxu0 0.0
        %2137 = vmatpush1.msra.mxu0 %v2131
        %2138 = vmatprep.subr.mxu0 0.0
        %2139 = vmatpush1.msra.mxu0 0.0
        %2140 = vmatprep.subr.mxu0 0.0
        %2141 = vmatpush1.msra.mxu0 0.0
        %2142 = vmatprep.subr.mxu0 0.0
        %2143 = vmatpush1.msra.mxu0 0.0
        %2144 = vmatprep.subr.mxu0 0.0
        %2145 = vmatpush1.msra.mxu0 0.0
        %2146 = vmatprep.subr.mxu0 0.0
        %2147 = vmatpush1.msra.mxu0 0.0
        %2148 = vmatprep.subr.mxu0 0.0
        %2149 = vmatpush1.msra.mxu0 0.0
        %2150 = vmatprep.subr.mxu0 0.0
        %2151 = vmatpush1.msra.mxu0 0.0
        %2152 = vmatprep.subr.mxu0 0.0
        %2153 = vmatpush1.msra.mxu0 0.0
        %2154 = vmatprep.subr.mxu0 0.0
        %2155 = vmatpush1.msra.mxu0 0.0
        %2156 = vmatprep.subr.mxu0 0.0
        %2157 = vmatpush1.msra.mxu0 0.0
        %2158 = vmatprep.subr.mxu0 0.0
        %2159 = vmatpush1.msra.mxu0 0.0
        %2160 = vmatprep.subr.mxu0 0.0
        %2161 = vmatpush1.msra.mxu0 0.0
        %2162 = vmatprep.subr.mxu0 0.0
        %2163 = vmatpush1.msra.mxu0 0.0
        %2164 = vmatprep.subr.mxu0 0.0
        %2165 = vmatpush1.msra.mxu0 0.0
        %2166 = vmatprep.subr.mxu0 0.0
        %2167 = vmatpush1.msra.mxu0 0.0
        %2168 = vmatprep.subr.mxu0 0.0
        %2169 = vmatpush1.msra.mxu0 0.0
        %2170 = vmatprep.subr.mxu0 0.0
        %2171 = vmatpush1.msra.mxu0 0.0
        %2172 = vmatprep.subr.mxu0 0.0
        %2173 = vmatpush1.msra.mxu0 0.0
        %2174 = vmatprep.subr.mxu0 0.0
        %2175 = vmatpush1.msra.mxu0 0.0
        %2176 = vmatprep.subr.mxu0 0.0
        %2177 = vmatpush1.msra.mxu0 0.0
        %2178 = vmatprep.subr.mxu0 0.0
        %2179 = vmatpush1.msra.mxu0 0.0
        %2180 = vmatprep.subr.mxu0 0.0
        %2181 = vmatpush1.msra.mxu0 0.0
        %2182 = vmatprep.subr.mxu0 0.0
        %2183 = vmatpush1.msra.mxu0 0.0
        %2184 = vmatprep.subr.mxu0 0.0
        %2185 = vmatpush1.msra.mxu0 0.0
        %2186 = vmatprep.subr.mxu0 0.0
        %2187 = vmatpush1.msra.mxu0 0.0
        %2188 = vmatprep.subr.mxu0 0.0
        %2189 = vmatpush1.msra.mxu0 0.0
        %2190 = vmatprep.subr.mxu0 0.0
        %2191 = vmatpush1.msra.mxu0 0.0
        %2192 = vmatprep.subr.mxu0 0.0
        %2193 = vmatpush1.msra.mxu0 0.0
        %2194 = vmatprep.subr.mxu0 0.0
        %2195 = vmatpush1.msra.mxu0 0.0
        %2196 = vmatprep.subr.mxu0 0.0
        %2197 = vmatpush1.msra.mxu0 0.0
        %2198 = vmatprep.subr.mxu0 0.0
        %2199 = vmatpush1.msra.mxu0 0.0
        %2200 = vmatprep.mubr.f32.mxu0 0.0
        %2201 = vmatmul.mubr.f32.gmra.mrb[0].mxu0 %v2134
        %v2202 = vpop.f32.mrb[0].mxu0
        %v2203 = vadd.f32 0.0, %v2202
        %v2204 = vpop.f32.mrb[0].mxu0
        %2205 = vdwg.mxu0
        %v2207 = vsel %vm711, %v2203, 0
        %2209 = vmatprep.subr.mxu0 0.0
        %2210 = vmatpush1.msra.mxu0 %v1704
        %2211 = vmatprep.subr.mxu0 0.0
        %2212 = vmatpush1.msra.mxu0 0.0
        %2213 = vmatprep.subr.mxu0 0.0
        %2214 = vmatpush1.msra.mxu0 0.0
        %2215 = vmatprep.subr.mxu0 0.0
        %2216 = vmatpush1.msra.mxu0 0.0
        %2217 = vmatprep.subr.mxu0 0.0
        %2218 = vmatpush1.msra.mxu0 0.0
        %2219 = vmatprep.subr.mxu0 0.0
        %2220 = vmatpush1.msra.mxu0 0.0
        %2221 = vmatprep.subr.mxu0 0.0
        %2222 = vmatpush1.msra.mxu0 0.0
        %2223 = vmatprep.subr.mxu0 0.0
        %2224 = vmatpush1.msra.mxu0 0.0
        %2225 = vmatprep.subr.mxu0 0.0
        %2226 = vmatpush1.msra.mxu0 0.0
        %2227 = vmatprep.subr.mxu0 0.0
        %2228 = vmatpush1.msra.mxu0 0.0
        %2229 = vmatprep.subr.mxu0 0.0
        %2230 = vmatpush1.msra.mxu0 0.0
        %2231 = vmatprep.subr.mxu0 0.0
        %2232 = vmatpush1.msra.mxu0 0.0
        %2233 = vmatprep.subr.mxu0 0.0
        %2234 = vmatpush1.msra.mxu0 0.0
        %2235 = vmatprep.subr.mxu0 0.0
        %2236 = vmatpush1.msra.mxu0 0.0
        %2237 = vmatprep.subr.mxu0 0.0
        %2238 = vmatpush1.msra.mxu0 0.0
        %2239 = vmatprep.subr.mxu0 0.0
        %2240 = vmatpush1.msra.mxu0 0.0
        %2241 = vmatprep.subr.mxu0 0.0
        %2242 = vmatpush1.msra.mxu0 0.0
        %2243 = vmatprep.subr.mxu0 0.0
        %2244 = vmatpush1.msra.mxu0 0.0
        %2245 = vmatprep.subr.mxu0 0.0
        %2246 = vmatpush1.msra.mxu0 0.0
        %2247 = vmatprep.subr.mxu0 0.0
        %2248 = vmatpush1.msra.mxu0 0.0
        %2249 = vmatprep.subr.mxu0 0.0
        %2250 = vmatpush1.msra.mxu0 0.0
        %2251 = vmatprep.subr.mxu0 0.0
        %2252 = vmatpush1.msra.mxu0 0.0
        %2253 = vmatprep.subr.mxu0 0.0
        %2254 = vmatpush1.msra.mxu0 0.0
        %2255 = vmatprep.subr.mxu0 0.0
        %2256 = vmatpush1.msra.mxu0 0.0
        %2257 = vmatprep.subr.mxu0 0.0
        %2258 = vmatpush1.msra.mxu0 0.0
        %2259 = vmatprep.subr.mxu0 0.0
        %2260 = vmatpush1.msra.mxu0 0.0
        %2261 = vmatprep.subr.mxu0 0.0
        %2262 = vmatpush1.msra.mxu0 0.0
        %2263 = vmatprep.subr.mxu0 0.0
        %2264 = vmatpush1.msra.mxu0 0.0
        %2265 = vmatprep.subr.mxu0 0.0
        %2266 = vmatpush1.msra.mxu0 0.0
        %2267 = vmatprep.subr.mxu0 0.0
        %2268 = vmatpush1.msra.mxu0 0.0
        %2269 = vmatprep.subr.mxu0 0.0
        %2270 = vmatpush1.msra.mxu0 0.0
        %2271 = vmatprep.subr.mxu0 0.0
        %2272 = vmatpush1.msra.mxu0 0.0
        %2273 = vmatprep.mubr.f32.mxu0 0.0
        %2274 = vmatmul.mubr.f32.gmra.mrb[0].mxu0 %v2207
        %v2275 = vpop.f32.mrb[0].mxu0
        %v2276 = vadd.f32 0.0, %v2275
        %v2277 = vpop.f32.mrb[0].mxu0
        %2278 = vdwg.mxu0
        %v2280 = vsel %vm711, %v2038, 0
        %2282 = vmatprep.subr.mxu0 0.0
        %2283 = vmatpush1.msra.mxu0 %v1703
        %2284 = vmatprep.subr.mxu0 0.0
        %2285 = vmatpush1.msra.mxu0 0.0
        %2286 = vmatprep.subr.mxu0 0.0
        %2287 = vmatpush1.msra.mxu0 0.0
        %2288 = vmatprep.subr.mxu0 0.0
        %2289 = vmatpush1.msra.mxu0 0.0
        %2290 = vmatprep.subr.mxu0 0.0
        %2291 = vmatpush1.msra.mxu0 0.0
        %2292 = vmatprep.subr.mxu0 0.0
        %2293 = vmatpush1.msra.mxu0 0.0
        %2294 = vmatprep.subr.mxu0 0.0
        %2295 = vmatpush1.msra.mxu0 0.0
        %2296 = vmatprep.subr.mxu0 0.0
        %2297 = vmatpush1.msra.mxu0 0.0
        %2298 = vmatprep.subr.mxu0 0.0
        %2299 = vmatpush1.msra.mxu0 0.0
        %2300 = vmatprep.subr.mxu0 0.0
        %2301 = vmatpush1.msra.mxu0 0.0
        %2302 = vmatprep.subr.mxu0 0.0
        %2303 = vmatpush1.msra.mxu0 0.0
        %2304 = vmatprep.subr.mxu0 0.0
        %2305 = vmatpush1.msra.mxu0 0.0
        %2306 = vmatprep.subr.mxu0 0.0
        %2307 = vmatpush1.msra.mxu0 0.0
        %2308 = vmatprep.subr.mxu0 0.0
        %2309 = vmatpush1.msra.mxu0 0.0
        %2310 = vmatprep.subr.mxu0 0.0
        %2311 = vmatpush1.msra.mxu0 0.0
        %2312 = vmatprep.subr.mxu0 0.0
        %2313 = vmatpush1.msra.mxu0 0.0
        %2314 = vmatprep.subr.mxu0 0.0
        %2315 = vmatpush1.msra.mxu0 0.0
        %2316 = vmatprep.subr.mxu0 0.0
        %2317 = vmatpush1.msra.mxu0 0.0
        %2318 = vmatprep.subr.mxu0 0.0
        %2319 = vmatpush1.msra.mxu0 0.0
        %2320 = vmatprep.subr.mxu0 0.0
        %2321 = vmatpush1.msra.mxu0 0.0
        %2322 = vmatprep.subr.mxu0 0.0
        %2323 = vmatpush1.msra.mxu0 0.0
        %2324 = vmatprep.subr.mxu0 0.0
        %2325 = vmatpush1.msra.mxu0 0.0
        %2326 = vmatprep.subr.mxu0 0.0
        %2327 = vmatpush1.msra.mxu0 0.0
        %2328 = vmatprep.subr.mxu0 0.0
        %2329 = vmatpush1.msra.mxu0 0.0
        %2330 = vmatprep.subr.mxu0 0.0
        %2331 = vmatpush1.msra.mxu0 0.0
        %2332 = vmatprep.subr.mxu0 0.0
        %2333 = vmatpush1.msra.mxu0 0.0
        %2334 = vmatprep.subr.mxu0 0.0
        %2335 = vmatpush1.msra.mxu0 0.0
        %2336 = vmatprep.subr.mxu0 0.0
        %2337 = vmatpush1.msra.mxu0 0.0
        %2338 = vmatprep.subr.mxu0 0.0
        %2339 = vmatpush1.msra.mxu0 0.0
        %2340 = vmatprep.subr.mxu0 0.0
        %2341 = vmatpush1.msra.mxu0 0.0
        %2342 = vmatprep.subr.mxu0 0.0
        %2343 = vmatpush1.msra.mxu0 0.0
        %2344 = vmatprep.subr.mxu0 0.0
        %2345 = vmatpush1.msra.mxu0 0.0
        %2346 = vmatprep.mubr.f32.mxu0 0.0
        %2347 = vmatmul.mubr.f32.gmra.mrb[0].mxu0 %v2280
        %v2348 = vpop.f32.mrb[0].mxu0
        %v2349 = vadd.f32 %v2276, %v2348
        %v2350 = vpop.f32.mrb[0].mxu0
        %2351 = vdwg.mxu0
        %2352 = vrot.lane.b32.xlu0 %v1788, 112
        %v2353 = vpop.permute.xlu0 %2352
        %2354 = vrot.lane.b32.xlu0 %v1875, 112
        %v2355 = vpop.permute.xlu0 %2354
        %v2356 = vsel %vm711, %v2353, 0
        %v2358 = vsel %vm711, %v2355, 0
        %2360 = vmatprep.subr.mxu0 0.0
        %2361 = vmatpush1.xpose.msra.mxu0 %v2358
        %2362 = vmatprep.subr.mxu0 0.0
        %2363 = vmatpush1.xpose.msra.mxu0 0.0
        %2364 = vmatprep.subr.mxu0 0.0
        %2365 = vmatpush1.xpose.msra.mxu0 0.0
        %2366 = vmatprep.subr.mxu0 0.0
        %2367 = vmatpush1.xpose.msra.mxu0 0.0
        %2368 = vmatprep.subr.mxu0 0.0
        %2369 = vmatpush1.xpose.msra.mxu0 0.0
        %2370 = vmatprep.subr.mxu0 0.0
        %2371 = vmatpush1.xpose.msra.mxu0 0.0
        %2372 = vmatprep.subr.mxu0 0.0
        %2373 = vmatpush1.xpose.msra.mxu0 0.0
        %2374 = vmatprep.subr.mxu0 0.0
        %2375 = vmatpush1.xpose.msra.mxu0 0.0
        %2376 = vmatprep.subr.mxu0 0.0
        %2377 = vmatpush1.xpose.msra.mxu0 0.0
        %2378 = vmatprep.subr.mxu0 0.0
        %2379 = vmatpush1.xpose.msra.mxu0 0.0
        %2380 = vmatprep.subr.mxu0 0.0
        %2381 = vmatpush1.xpose.msra.mxu0 0.0
        %2382 = vmatprep.subr.mxu0 0.0
        %2383 = vmatpush1.xpose.msra.mxu0 0.0
        %2384 = vmatprep.subr.mxu0 0.0
        %2385 = vmatpush1.xpose.msra.mxu0 0.0
        %2386 = vmatprep.subr.mxu0 0.0
        %2387 = vmatpush1.xpose.msra.mxu0 0.0
        %2388 = vmatprep.subr.mxu0 0.0
        %2389 = vmatpush1.xpose.msra.mxu0 0.0
        %2390 = vmatprep.subr.mxu0 0.0
        %2391 = vmatpush1.xpose.msra.mxu0 0.0
        %2392 = vmatprep.subr.mxu0 0.0
        %2393 = vmatpush1.xpose.msra.mxu0 0.0
        %2394 = vmatprep.subr.mxu0 0.0
        %2395 = vmatpush1.xpose.msra.mxu0 0.0
        %2396 = vmatprep.subr.mxu0 0.0
        %2397 = vmatpush1.xpose.msra.mxu0 0.0
        %2398 = vmatprep.subr.mxu0 0.0
        %2399 = vmatpush1.xpose.msra.mxu0 0.0
        %2400 = vmatprep.subr.mxu0 0.0
        %2401 = vmatpush1.xpose.msra.mxu0 0.0
        %2402 = vmatprep.subr.mxu0 0.0
        %2403 = vmatpush1.xpose.msra.mxu0 0.0
        %2404 = vmatprep.subr.mxu0 0.0
        %2405 = vmatpush1.xpose.msra.mxu0 0.0
        %2406 = vmatprep.subr.mxu0 0.0
        %2407 = vmatpush1.xpose.msra.mxu0 0.0
        %2408 = vmatprep.subr.mxu0 0.0
        %2409 = vmatpush1.xpose.msra.mxu0 0.0
        %2410 = vmatprep.subr.mxu0 0.0
        %2411 = vmatpush1.xpose.msra.mxu0 0.0
        %2412 = vmatprep.subr.mxu0 0.0
        %2413 = vmatpush1.xpose.msra.mxu0 0.0
        %2414 = vmatprep.subr.mxu0 0.0
        %2415 = vmatpush1.xpose.msra.mxu0 0.0
        %2416 = vmatprep.subr.mxu0 0.0
        %2417 = vmatpush1.xpose.msra.mxu0 0.0
        %2418 = vmatprep.subr.mxu0 0.0
        %2419 = vmatpush1.xpose.msra.mxu0 0.0
        %2420 = vmatprep.subr.mxu0 0.0
        %2421 = vmatpush1.xpose.msra.mxu0 0.0
        %2422 = vmatprep.subr.mxu0 0.0
        %2423 = vmatpush1.xpose.msra.mxu0 0.0
        %2424 = vmatprep.mubr.f32.mxu0 0.0
        %2425 = vmatmul.mubr.f32.gmra.mrb[0].mxu0 %v2356
        %v2426 = vpop.f32.mrb[0].mxu0
        %v2427 = vadd.f32 0.0, %v2426
        %v2428 = vpop.f32.mrb[0].mxu0
        %2429 = vdwg.mxu0
        %v2430 = vsel %vm711, %v2427, -inf
        %2431 = vmax.xlane.f32.xlu0 %v2430
        %v2432 = vpop.xlane.xlu0 %2431
        %v2433 = vsub.f32 %v2427, %v2432
        %v2434 = vmul.f32 %v2433, 1.442695
        %v2435 = vpow.pop %v2434
        %v2436 = vsel %vm711, %v2435, 0.0
        %2437 = vadd.xlane.f32.xlu0 %v2436
        %v2438 = vpop.xlane.xlu0 %2437
        %v2439 = vrcp.pop %v2438
        %v2440 = vmul.f32 %v2435, %v2439
        %2441 = vrot.lane.b32.xlu0 %v1875, 80
        %v2442 = vpop.permute.xlu0 %2441
        %v2445 = vsel %vm711, %v2440, 0
        %2447 = vmatprep.subr.mxu0 0.0
        %2448 = vmatpush1.msra.mxu0 %v2442
        %2449 = vmatprep.subr.mxu0 0.0
        %2450 = vmatpush1.msra.mxu0 0.0
        %2451 = vmatprep.subr.mxu0 0.0
        %2452 = vmatpush1.msra.mxu0 0.0
        %2453 = vmatprep.subr.mxu0 0.0
        %2454 = vmatpush1.msra.mxu0 0.0
        %2455 = vmatprep.subr.mxu0 0.0
        %2456 = vmatpush1.msra.mxu0 0.0
        %2457 = vmatprep.subr.mxu0 0.0
        %2458 = vmatpush1.msra.mxu0 0.0
        %2459 = vmatprep.subr.mxu0 0.0
        %2460 = vmatpush1.msra.mxu0 0.0
        %2461 = vmatprep.subr.mxu0 0.0
        %2462 = vmatpush1.msra.mxu0 0.0
        %2463 = vmatprep.subr.mxu0 0.0
        %2464 = vmatpush1.msra.mxu0 0.0
        %2465 = vmatprep.subr.mxu0 0.0
        %2466 = vmatpush1.msra.mxu0 0.0
        %2467 = vmatprep.subr.mxu0 0.0
        %2468 = vmatpush1.msra.mxu0 0.0
        %2469 = vmatprep.subr.mxu0 0.0
        %2470 = vmatpush1.msra.mxu0 0.0
        %2471 = vmatprep.subr.mxu0 0.0
        %2472 = vmatpush1.msra.mxu0 0.0
        %2473 = vmatprep.subr.mxu0 0.0
        %2474 = vmatpush1.msra.mxu0 0.0
        %2475 = vmatprep.subr.mxu0 0.0
        %2476 = vmatpush1.msra.mxu0 0.0
        %2477 = vmatprep.subr.mxu0 0.0
        %2478 = vmatpush1.msra.mxu0 0.0
        %2479 = vmatprep.subr.mxu0 0.0
        %2480 = vmatpush1.msra.mxu0 0.0
        %2481 = vmatprep.subr.mxu0 0.0
        %2482 = vmatpush1.msra.mxu0 0.0
        %2483 = vmatprep.subr.mxu0 0.0
        %2484 = vmatpush1.msra.mxu0 0.0
        %2485 = vmatprep.subr.mxu0 0.0
        %2486 = vmatpush1.msra.mxu0 0.0
        %2487 = vmatprep.subr.mxu0 0.0
        %2488 = vmatpush1.msra.mxu0 0.0
        %2489 = vmatprep.subr.mxu0 0.0
        %2490 = vmatpush1.msra.mxu0 0.0
        %2491 = vmatprep.subr.mxu0 0.0
        %2492 = vmatpush1.msra.mxu0 0.0
        %2493 = vmatprep.subr.mxu0 0.0
        %2494 = vmatpush1.msra.mxu0 0.0
        %2495 = vmatprep.subr.mxu0 0.0
        %2496 = vmatpush1.msra.mxu0 0.0
        %2497 = vmatprep.subr.mxu0 0.0
        %2498 = vmatpush1.msra.mxu0 0.0
        %2499 = vmatprep.subr.mxu0 0.0
        %2500 = vmatpush1.msra.mxu0 0.0
        %2501 = vmatprep.subr.mxu0 0.0
        %2502 = vmatpush1.msra.mxu0 0.0
        %2503 = vmatprep.subr.mxu0 0.0
        %2504 = vmatpush1.msra.mxu0 0.0
        %2505 = vmatprep.subr.mxu0 0.0
        %2506 = vmatpush1.msra.mxu0 0.0
        %2507 = vmatprep.subr.mxu0 0.0
        %2508 = vmatpush1.msra.mxu0 0.0
        %2509 = vmatprep.subr.mxu0 0.0
        %2510 = vmatpush1.msra.mxu0 0.0
        %2511 = vmatprep.mubr.f32.mxu0 0.0
        %2512 = vmatmul.mubr.f32.gmra.mrb[0].mxu0 %v2445
        %v2513 = vpop.f32.mrb[0].mxu0
        %v2514 = vadd.f32 0.0, %v2513
        %v2515 = vpop.f32.mrb[0].mxu0
        %2516 = vdwg.mxu0
        %v2518 = vsel %vm711, %v2514, 0
        %2520 = vmatprep.subr.mxu0 0.0
        %2521 = vmatpush1.msra.mxu0 %v1705
        %2522 = vmatprep.subr.mxu0 0.0
        %2523 = vmatpush1.msra.mxu0 0.0
        %2524 = vmatprep.subr.mxu0 0.0
        %2525 = vmatpush1.msra.mxu0 0.0
        %2526 = vmatprep.subr.mxu0 0.0
        %2527 = vmatpush1.msra.mxu0 0.0
        %2528 = vmatprep.subr.mxu0 0.0
        %2529 = vmatpush1.msra.mxu0 0.0
        %2530 = vmatprep.subr.mxu0 0.0
        %2531 = vmatpush1.msra.mxu0 0.0
        %2532 = vmatprep.subr.mxu0 0.0
        %2533 = vmatpush1.msra.mxu0 0.0
        %2534 = vmatprep.subr.mxu0 0.0
        %2535 = vmatpush1.msra.mxu0 0.0
        %2536 = vmatprep.subr.mxu0 0.0
        %2537 = vmatpush1.msra.mxu0 0.0
        %2538 = vmatprep.subr.mxu0 0.0
        %2539 = vmatpush1.msra.mxu0 0.0
        %2540 = vmatprep.subr.mxu0 0.0
        %2541 = vmatpush1.msra.mxu0 0.0
        %2542 = vmatprep.subr.mxu0 0.0
        %2543 = vmatpush1.msra.mxu0 0.0
        %2544 = vmatprep.subr.mxu0 0.0
        %2545 = vmatpush1.msra.mxu0 0.0
        %2546 = vmatprep.subr.mxu0 0.0
        %2547 = vmatpush1.msra.mxu0 0.0
        %2548 = vmatprep.subr.mxu0 0.0
        %2549 = vmatpush1.msra.mxu0 0.0
        %2550 = vmatprep.subr.mxu0 0.0
        %2551 = vmatpush1.msra.mxu0 0.0
        %2552 = vmatprep.subr.mxu0 0.0
        %2553 = vmatpush1.msra.mxu0 0.0
        %2554 = vmatprep.subr.mxu0 0.0
        %2555 = vmatpush1.msra.mxu0 0.0
        %2556 = vmatprep.subr.mxu0 0.0
        %2557 = vmatpush1.msra.mxu0 0.0
        %2558 = vmatprep.subr.mxu0 0.0
        %2559 = vmatpush1.msra.mxu0 0.0
        %2560 = vmatprep.subr.mxu0 0.0
        %2561 = vmatpush1.msra.mxu0 0.0
        %2562 = vmatprep.subr.mxu0 0.0
        %2563 = vmatpush1.msra.mxu0 0.0
        %2564 = vmatprep.subr.mxu0 0.0
        %2565 = vmatpush1.msra.mxu0 0.0
        %2566 = vmatprep.subr.mxu0 0.0
        %2567 = vmatpush1.msra.mxu0 0.0
        %2568 = vmatprep.subr.mxu0 0.0
        %2569 = vmatpush1.msra.mxu0 0.0
        %2570 = vmatprep.subr.mxu0 0.0
        %2571 = vmatpush1.msra.mxu0 0.0
        %2572 = vmatprep.subr.mxu0 0.0
        %2573 = vmatpush1.msra.mxu0 0.0
        %2574 = vmatprep.subr.mxu0 0.0
        %2575 = vmatpush1.msra.mxu0 0.0
        %2576 = vmatprep.subr.mxu0 0.0
        %2577 = vmatpush1.msra.mxu0 0.0
        %2578 = vmatprep.subr.mxu0 0.0
        %2579 = vmatpush1.msra.mxu0 0.0
        %2580 = vmatprep.subr.mxu0 0.0
        %2581 = vmatpush1.msra.mxu0 0.0
        %2582 = vmatprep.subr.mxu0 0.0
        %2583 = vmatpush1.msra.mxu0 0.0
        %2584 = vmatprep.mubr.f32.mxu0 0.0
        %2585 = vmatmul.mubr.f32.gmra.mrb[0].mxu0 %v2518
        %v2586 = vpop.f32.mrb[0].mxu0
        %v2587 = vadd.f32 0.0, %v2586
        %v2588 = vpop.f32.mrb[0].mxu0
        %2589 = vdwg.mxu0
        %v2590 = vadd.f32 %v2349, %v2587
        %2591 = vrot.lane.b32.xlu0 %v1788, 104
        %v2592 = vpop.permute.xlu0 %2591
        %2593 = vrot.lane.b32.xlu0 %v1875, 104
        %v2594 = vpop.permute.xlu0 %2593
        %v2595 = vsel %vm711, %v2592, 0
        %v2597 = vsel %vm711, %v2594, 0
        %2599 = vmatprep.subr.mxu0 0.0
        %2600 = vmatpush1.xpose.msra.mxu0 %v2597
        %2601 = vmatprep.subr.mxu0 0.0
        %2602 = vmatpush1.xpose.msra.mxu0 0.0
        %2603 = vmatprep.subr.mxu0 0.0
        %2604 = vmatpush1.xpose.msra.mxu0 0.0
        %2605 = vmatprep.subr.mxu0 0.0
        %2606 = vmatpush1.xpose.msra.mxu0 0.0
        %2607 = vmatprep.subr.mxu0 0.0
        %2608 = vmatpush1.xpose.msra.mxu0 0.0
        %2609 = vmatprep.subr.mxu0 0.0
        %2610 = vmatpush1.xpose.msra.mxu0 0.0
        %2611 = vmatprep.subr.mxu0 0.0
        %2612 = vmatpush1.xpose.msra.mxu0 0.0
        %2613 = vmatprep.subr.mxu0 0.0
        %2614 = vmatpush1.xpose.msra.mxu0 0.0
        %2615 = vmatprep.subr.mxu0 0.0
        %2616 = vmatpush1.xpose.msra.mxu0 0.0
        %2617 = vmatprep.subr.mxu0 0.0
        %2618 = vmatpush1.xpose.msra.mxu0 0.0
        %2619 = vmatprep.subr.mxu0 0.0
        %2620 = vmatpush1.xpose.msra.mxu0 0.0
        %2621 = vmatprep.subr.mxu0 0.0
        %2622 = vmatpush1.xpose.msra.mxu0 0.0
        %2623 = vmatprep.subr.mxu0 0.0
        %2624 = vmatpush1.xpose.msra.mxu0 0.0
        %2625 = vmatprep.subr.mxu0 0.0
        %2626 = vmatpush1.xpose.msra.mxu0 0.0
        %2627 = vmatprep.subr.mxu0 0.0
        %2628 = vmatpush1.xpose.msra.mxu0 0.0
        %2629 = vmatprep.subr.mxu0 0.0
        %2630 = vmatpush1.xpose.msra.mxu0 0.0
        %2631 = vmatprep.subr.mxu0 0.0
        %2632 = vmatpush1.xpose.msra.mxu0 0.0
        %2633 = vmatprep.subr.mxu0 0.0
        %2634 = vmatpush1.xpose.msra.mxu0 0.0
        %2635 = vmatprep.subr.mxu0 0.0
        %2636 = vmatpush1.xpose.msra.mxu0 0.0
        %2637 = vmatprep.subr.mxu0 0.0
        %2638 = vmatpush1.xpose.msra.mxu0 0.0
        %2639 = vmatprep.subr.mxu0 0.0
        %2640 = vmatpush1.xpose.msra.mxu0 0.0
        %2641 = vmatprep.subr.mxu0 0.0
        %2642 = vmatpush1.xpose.msra.mxu0 0.0
        %2643 = vmatprep.subr.mxu0 0.0
        %2644 = vmatpush1.xpose.msra.mxu0 0.0
        %2645 = vmatprep.subr.mxu0 0.0
        %2646 = vmatpush1.xpose.msra.mxu0 0.0
        %2647 = vmatprep.subr.mxu0 0.0
        %2648 = vmatpush1.xpose.msra.mxu0 0.0
        %2649 = vmatprep.subr.mxu0 0.0
        %2650 = vmatpush1.xpose.msra.mxu0 0.0
        %2651 = vmatprep.subr.mxu0 0.0
        %2652 = vmatpush1.xpose.msra.mxu0 0.0
        %2653 = vmatprep.subr.mxu0 0.0
        %2654 = vmatpush1.xpose.msra.mxu0 0.0
        %2655 = vmatprep.subr.mxu0 0.0
        %2656 = vmatpush1.xpose.msra.mxu0 0.0
        %2657 = vmatprep.subr.mxu0 0.0
        %2658 = vmatpush1.xpose.msra.mxu0 0.0
        %2659 = vmatprep.subr.mxu0 0.0
        %2660 = vmatpush1.xpose.msra.mxu0 0.0
        %2661 = vmatprep.subr.mxu0 0.0
        %2662 = vmatpush1.xpose.msra.mxu0 0.0
        %2663 = vmatprep.mubr.f32.mxu0 0.0
        %2664 = vmatmul.mubr.f32.gmra.mrb[0].mxu0 %v2595
        %v2665 = vpop.f32.mrb[0].mxu0
        %v2666 = vadd.f32 0.0, %v2665
        %v2667 = vpop.f32.mrb[0].mxu0
        %2668 = vdwg.mxu0
        %v2669 = vsel %vm711, %v2666, -inf
        %2670 = vmax.xlane.f32.xlu0 %v2669
        %v2671 = vpop.xlane.xlu0 %2670
        %v2672 = vsub.f32 %v2666, %v2671
        %v2673 = vmul.f32 %v2672, 1.442695
        %v2674 = vpow.pop %v2673
        %v2675 = vsel %vm711, %v2674, 0.0
        %2676 = vadd.xlane.f32.xlu0 %v2675
        %v2677 = vpop.xlane.xlu0 %2676
        %v2678 = vrcp.pop %v2677
        %v2679 = vmul.f32 %v2674, %v2678
        %2680 = vrot.lane.b32.xlu0 %v1875, 72
        %v2681 = vpop.permute.xlu0 %2680
        %v2684 = vsel %vm711, %v2679, 0
        %2686 = vmatprep.subr.mxu0 0.0
        %2687 = vmatpush1.msra.mxu0 %v2681
        %2688 = vmatprep.subr.mxu0 0.0
        %2689 = vmatpush1.msra.mxu0 0.0
        %2690 = vmatprep.subr.mxu0 0.0
        %2691 = vmatpush1.msra.mxu0 0.0
        %2692 = vmatprep.subr.mxu0 0.0
        %2693 = vmatpush1.msra.mxu0 0.0
        %2694 = vmatprep.subr.mxu0 0.0
        %2695 = vmatpush1.msra.mxu0 0.0
        %2696 = vmatprep.subr.mxu0 0.0
        %2697 = vmatpush1.msra.mxu0 0.0
        %2698 = vmatprep.subr.mxu0 0.0
        %2699 = vmatpush1.msra.mxu0 0.0
        %2700 = vmatprep.subr.mxu0 0.0
        %2701 = vmatpush1.msra.mxu0 0.0
        %2702 = vmatprep.subr.mxu0 0.0
        %2703 = vmatpush1.msra.mxu0 0.0
        %2704 = vmatprep.subr.mxu0 0.0
        %2705 = vmatpush1.msra.mxu0 0.0
        %2706 = vmatprep.subr.mxu0 0.0
        %2707 = vmatpush1.msra.mxu0 0.0
        %2708 = vmatprep.subr.mxu0 0.0
        %2709 = vmatpush1.msra.mxu0 0.0
        %2710 = vmatprep.subr.mxu0 0.0
        %2711 = vmatpush1.msra.mxu0 0.0
        %2712 = vmatprep.subr.mxu0 0.0
        %2713 = vmatpush1.msra.mxu0 0.0
        %2714 = vmatprep.subr.mxu0 0.0
        %2715 = vmatpush1.msra.mxu0 0.0
        %2716 = vmatprep.subr.mxu0 0.0
        %2717 = vmatpush1.msra.mxu0 0.0
        %2718 = vmatprep.subr.mxu0 0.0
        %2719 = vmatpush1.msra.mxu0 0.0
        %2720 = vmatprep.subr.mxu0 0.0
        %2721 = vmatpush1.msra.mxu0 0.0
        %2722 = vmatprep.subr.mxu0 0.0
        %2723 = vmatpush1.msra.mxu0 0.0
        %2724 = vmatprep.subr.mxu0 0.0
        %2725 = vmatpush1.msra.mxu0 0.0
        %2726 = vmatprep.subr.mxu0 0.0
        %2727 = vmatpush1.msra.mxu0 0.0
        %2728 = vmatprep.subr.mxu0 0.0
        %2729 = vmatpush1.msra.mxu0 0.0
        %2730 = vmatprep.subr.mxu0 0.0
        %2731 = vmatpush1.msra.mxu0 0.0
        %2732 = vmatprep.subr.mxu0 0.0
        %2733 = vmatpush1.msra.mxu0 0.0
        %2734 = vmatprep.subr.mxu0 0.0
        %2735 = vmatpush1.msra.mxu0 0.0
        %2736 = vmatprep.subr.mxu0 0.0
        %2737 = vmatpush1.msra.mxu0 0.0
        %2738 = vmatprep.subr.mxu0 0.0
        %2739 = vmatpush1.msra.mxu0 0.0
        %2740 = vmatprep.subr.mxu0 0.0
        %2741 = vmatpush1.msra.mxu0 0.0
        %2742 = vmatprep.subr.mxu0 0.0
        %2743 = vmatpush1.msra.mxu0 0.0
        %2744 = vmatprep.subr.mxu0 0.0
        %2745 = vmatpush1.msra.mxu0 0.0
        %2746 = vmatprep.subr.mxu0 0.0
        %2747 = vmatpush1.msra.mxu0 0.0
        %2748 = vmatprep.subr.mxu0 0.0
        %2749 = vmatpush1.msra.mxu0 0.0
        %2750 = vmatprep.mubr.f32.mxu0 0.0
        %2751 = vmatmul.mubr.f32.gmra.mrb[0].mxu0 %v2684
        %v2752 = vpop.f32.mrb[0].mxu0
        %v2753 = vadd.f32 0.0, %v2752
        %v2754 = vpop.f32.mrb[0].mxu0
        %2755 = vdwg.mxu0
        %v2757 = vsel %vm711, %v2753, 0
        %2759 = vmatprep.subr.mxu0 0.0
        %2760 = vmatpush1.msra.mxu0 %v1706
        %2761 = vmatprep.subr.mxu0 0.0
        %2762 = vmatpush1.msra.mxu0 0.0
        %2763 = vmatprep.subr.mxu0 0.0
        %2764 = vmatpush1.msra.mxu0 0.0
        %2765 = vmatprep.subr.mxu0 0.0
        %2766 = vmatpush1.msra.mxu0 0.0
        %2767 = vmatprep.subr.mxu0 0.0
        %2768 = vmatpush1.msra.mxu0 0.0
        %2769 = vmatprep.subr.mxu0 0.0
        %2770 = vmatpush1.msra.mxu0 0.0
        %2771 = vmatprep.subr.mxu0 0.0
        %2772 = vmatpush1.msra.mxu0 0.0
        %2773 = vmatprep.subr.mxu0 0.0
        %2774 = vmatpush1.msra.mxu0 0.0
        %2775 = vmatprep.subr.mxu0 0.0
        %2776 = vmatpush1.msra.mxu0 0.0
        %2777 = vmatprep.subr.mxu0 0.0
        %2778 = vmatpush1.msra.mxu0 0.0
        %2779 = vmatprep.subr.mxu0 0.0
        %2780 = vmatpush1.msra.mxu0 0.0
        %2781 = vmatprep.subr.mxu0 0.0
        %2782 = vmatpush1.msra.mxu0 0.0
        %2783 = vmatprep.subr.mxu0 0.0
        %2784 = vmatpush1.msra.mxu0 0.0
        %2785 = vmatprep.subr.mxu0 0.0
        %2786 = vmatpush1.msra.mxu0 0.0
        %2787 = vmatprep.subr.mxu0 0.0
        %2788 = vmatpush1.msra.mxu0 0.0
        %2789 = vmatprep.subr.mxu0 0.0
        %2790 = vmatpush1.msra.mxu0 0.0
        %2791 = vmatprep.subr.mxu0 0.0
        %2792 = vmatpush1.msra.mxu0 0.0
        %2793 = vmatprep.subr.mxu0 0.0
        %2794 = vmatpush1.msra.mxu0 0.0
        %2795 = vmatprep.subr.mxu0 0.0
        %2796 = vmatpush1.msra.mxu0 0.0
        %2797 = vmatprep.subr.mxu0 0.0
        %2798 = vmatpush1.msra.mxu0 0.0
        %2799 = vmatprep.subr.mxu0 0.0
        %2800 = vmatpush1.msra.mxu0 0.0
        %2801 = vmatprep.subr.mxu0 0.0
        %2802 = vmatpush1.msra.mxu0 0.0
        %2803 = vmatprep.subr.mxu0 0.0
        %2804 = vmatpush1.msra.mxu0 0.0
        %2805 = vmatprep.subr.mxu0 0.0
        %2806 = vmatpush1.msra.mxu0 0.0
        %2807 = vmatprep.subr.mxu0 0.0
        %2808 = vmatpush1.msra.mxu0 0.0
        %2809 = vmatprep.subr.mxu0 0.0
        %2810 = vmatpush1.msra.mxu0 0.0
        %2811 = vmatprep.subr.mxu0 0.0
        %2812 = vmatpush1.msra.mxu0 0.0
        %2813 = vmatprep.subr.mxu0 0.0
        %2814 = vmatpush1.msra.mxu0 0.0
        %2815 = vmatprep.subr.mxu0 0.0
        %2816 = vmatpush1.msra.mxu0 0.0
        %2817 = vmatprep.subr.mxu0 0.0
        %2818 = vmatpush1.msra.mxu0 0.0
        %2819 = vmatprep.subr.mxu0 0.0
        %2820 = vmatpush1.msra.mxu0 0.0
        %2821 = vmatprep.subr.mxu0 0.0
        %2822 = vmatpush1.msra.mxu0 0.0
        %2823 = vmatprep.mubr.f32.mxu0 0.0
        %2824 = vmatmul.mubr.f32.gmra.mrb[0].mxu0 %v2757
        %v2825 = vpop.f32.mrb[0].mxu0
        %v2826 = vadd.f32 0.0, %v2825
        %v2827 = vpop.f32.mrb[0].mxu0
        %2828 = vdwg.mxu0
        %v2829 = vadd.f32 %v2590, %v2826
        %v2831 = vlaneseq
        %v2832 = vshrl.u32 %v2831, 7
        %v2833 = vsub.s32 0, %v2832
        %v2834 = vrot.slane %v1708, %v2833
        %v2836 = vadd.f32 %v2829, %v2834
        %v2837 = vadd.f32 %v1694, %v2836
        %v2838 = vsel %vm633, %v2837, 0.0
        %2839 = vadd.xlane.f32.xlu0 %v2838
        %v2840 = vpop.xlane.xlu0 %2839
        %v2841 = vmul.f32 %v2840, %v1674
        %v2842 = vsub.f32 %v2837, %v2841
        %v2843 = vmul.f32 %v2842, %v2842
        %v2844 = vsel %vm633, %v2843, 0.0
        %2845 = vadd.xlane.f32.xlu0 %v2844
        %v2846 = vpop.xlane.xlu0 %2845
        %v2847 = vmul.f32 %v2846, %v1674
        %v2848 = vadd.f32 %v2847, 1e-05
        %v2849 = vrsqrt.pop %v2848
        %v2850 = vmul.f32 %v2842, %v2849
        %v2851 = vlaneseq
        %v2852 = vshrl.u32 %v2851, 7
        %v2853 = vsub.s32 1, %v2852
        %v2854 = vrot.slane %v615, %v2853
        %v2855 = vmul.f32 %v2850, %v2854
        %v2856 = vlaneseq
        %v2857 = vshrl.u32 %v2856, 7
        %v2858 = vsub.s32 1, %v2857
        %v2859 = vrot.slane %v616, %v2858
        %v2860 = vadd.f32 %v2855, %v2859
        %v2861 = vld [vmem:[%s7] sm:$0xff]
        %v2862 = vld [vmem:[%s7 + $0x8] sm:$0xff]
        %v2863 = vld [vmem:[%s7 + $0x10] sm:$0xff]
        %v2864 = vld [vmem:[%s7 + $0x18] sm:$0xff]
        %v2865 = vld [vmem:[%s8] sm:$0x1]
        %v2867 = vlaneseq
        %v2868 = vshrl.u32 %v2867, 7
        %v2869 = vsub.s32 0, %v2868
        %v2870 = vrot.slane %v2865, %v2869
        %v2873 = vsel %vm633, %v2860, 0
        %2875 = vmatprep.subr.mxu0 0.0
        %2876 = vmatpush1.msra.mxu0 %v2861
        %2877 = vmatprep.subr.mxu0 0.0
        %2878 = vmatpush1.msra.mxu0 %v2862
        %2879 = vmatprep.subr.mxu0 0.0
        %2880 = vmatpush1.msra.mxu0 %v2863
        %2881 = vmatprep.subr.mxu0 0.0
        %2882 = vmatpush1.msra.mxu0 %v2864
        %2883 = vmatprep.subr.mxu0 0.0
        %2884 = vmatpush1.msra.mxu0 0.0
        %2885 = vmatprep.subr.mxu0 0.0
        %2886 = vmatpush1.msra.mxu0 0.0
        %2887 = vmatprep.subr.mxu0 0.0
        %2888 = vmatpush1.msra.mxu0 0.0
        %2889 = vmatprep.subr.mxu0 0.0
        %2890 = vmatpush1.msra.mxu0 0.0
        %2891 = vmatprep.subr.mxu0 0.0
        %2892 = vmatpush1.msra.mxu0 0.0
        %2893 = vmatprep.subr.mxu0 0.0
        %2894 = vmatpush1.msra.mxu0 0.0
        %2895 = vmatprep.subr.mxu0 0.0
        %2896 = vmatpush1.msra.mxu0 0.0
        %2897 = vmatprep.subr.mxu0 0.0
        %2898 = vmatpush1.msra.mxu0 0.0
        %2899 = vmatprep.subr.mxu0 0.0
        %2900 = vmatpush1.msra.mxu0 0.0
        %2901 = vmatprep.subr.mxu0 0.0
        %2902 = vmatpush1.msra.mxu0 0.0
        %2903 = vmatprep.subr.mxu0 0.0
        %2904 = vmatpush1.msra.mxu0 0.0
        %2905 = vmatprep.subr.mxu0 0.0
        %2906 = vmatpush1.msra.mxu0 0.0
        %2907 = vmatprep.subr.mxu0 0.0
        %2908 = vmatpush1.msra.mxu0 0.0
        %2909 = vmatprep.subr.mxu0 0.0
        %2910 = vmatpush1.msra.mxu0 0.0
        %2911 = vmatprep.subr.mxu0 0.0
        %2912 = vmatpush1.msra.mxu0 0.0
        %2913 = vmatprep.subr.mxu0 0.0
        %2914 = vmatpush1.msra.mxu0 0.0
        %2915 = vmatprep.subr.mxu0 0.0
        %2916 = vmatpush1.msra.mxu0 0.0
        %2917 = vmatprep.subr.mxu0 0.0
        %2918 = vmatpush1.msra.mxu0 0.0
        %2919 = vmatprep.subr.mxu0 0.0
        %2920 = vmatpush1.msra.mxu0 0.0
        %2921 = vmatprep.subr.mxu0 0.0
        %2922 = vmatpush1.msra.mxu0 0.0
        %2923 = vmatprep.subr.mxu0 0.0
        %2924 = vmatpush1.msra.mxu0 0.0
        %2925 = vmatprep.subr.mxu0 0.0
        %2926 = vmatpush1.msra.mxu0 0.0
        %2927 = vmatprep.subr.mxu0 0.0
        %2928 = vmatpush1.msra.mxu0 0.0
        %2929 = vmatprep.subr.mxu0 0.0
        %2930 = vmatpush1.msra.mxu0 0.0
        %2931 = vmatprep.subr.mxu0 0.0
        %2932 = vmatpush1.msra.mxu0 0.0
        %2933 = vmatprep.subr.mxu0 0.0
        %2934 = vmatpush1.msra.mxu0 0.0
        %2935 = vmatprep.subr.mxu0 0.0
        %2936 = vmatpush1.msra.mxu0 0.0
        %2937 = vmatprep.subr.mxu0 0.0
        %2938 = vmatpush1.msra.mxu0 0.0
        %2939 = vmatprep.mubr.f32.mxu0 0.0
        %2940 = vmatmul.mubr.f32.gmra.mrb[0].mxu0 %v2873
        %v2941 = vpop.f32.mrb[0].mxu0
        %v2942 = vadd.f32 %v2870, %v2941
        %v2943 = vpop.f32.mrb[0].mxu0
        %2944 = vdwg.mxu0
        %v2945 = vmax.f32 %v2942, 0.0
        %v2946 = vld [vmem:[%s9] sm:$0xff]
        %v2947 = vld [vmem:[%s9 + $0x8] sm:$0xff]
        %v2948 = vld [vmem:[%s9 + $0x10] sm:$0xff]
        %v2949 = vld [vmem:[%s9 + $0x18] sm:$0xff]
        %v2950 = vld [vmem:[%s9 + $0x20] sm:$0xff]
        %v2951 = vld [vmem:[%s9 + $0x28] sm:$0xff]
        %v2952 = vld [vmem:[%s9 + $0x30] sm:$0xff]
        %v2953 = vld [vmem:[%s9 + $0x38] sm:$0xff]
        %v2954 = vld [vmem:[%s10] sm:$0x1]
        %v2956 = vlaneseq
        %v2957 = vshrl.u32 %v2956, 7
        %v2958 = vsub.s32 0, %v2957
        %v2959 = vrot.slane %v2954, %v2958
        %vm2961 = vcmask 523264
        %v2963 = vsel %vm2961, %v2945, 0
        %2965 = vmatprep.subr.mxu0 0.0
        %2966 = vmatpush1.msra.mxu0 %v2946
        %2967 = vmatprep.subr.mxu0 0.0
        %2968 = vmatpush1.msra.mxu0 %v2947
        %2969 = vmatprep.subr.mxu0 0.0
        %2970 = vmatpush1.msra.mxu0 %v2948
        %2971 = vmatprep.subr.mxu0 0.0
        %2972 = vmatpush1.msra.mxu0 %v2949
        %2973 = vmatprep.subr.mxu0 0.0
        %2974 = vmatpush1.msra.mxu0 %v2950
        %2975 = vmatprep.subr.mxu0 0.0
        %2976 = vmatpush1.msra.mxu0 %v2951
        %2977 = vmatprep.subr.mxu0 0.0
        %2978 = vmatpush1.msra.mxu0 %v2952
        %2979 = vmatprep.subr.mxu0 0.0
        %2980 = vmatpush1.msra.mxu0 %v2953
        %2981 = vmatprep.subr.mxu0 0.0
        %2982 = vmatpush1.msra.mxu0 0.0
        %2983 = vmatprep.subr.mxu0 0.0
        %2984 = vmatpush1.msra.mxu0 0.0
        %2985 = vmatprep.subr.mxu0 0.0
        %2986 = vmatpush1.msra.mxu0 0.0
        %2987 = vmatprep.subr.mxu0 0.0
        %2988 = vmatpush1.msra.mxu0 0.0
        %2989 = vmatprep.subr.mxu0 0.0
        %2990 = vmatpush1.msra.mxu0 0.0
        %2991 = vmatprep.subr.mxu0 0.0
        %2992 = vmatpush1.msra.mxu0 0.0
        %2993 = vmatprep.subr.mxu0 0.0
        %2994 = vmatpush1.msra.mxu0 0.0
        %2995 = vmatprep.subr.mxu0 0.0
        %2996 = vmatpush1.msra.mxu0 0.0
        %2997 = vmatprep.subr.mxu0 0.0
        %2998 = vmatpush1.msra.mxu0 0.0
        %2999 = vmatprep.subr.mxu0 0.0
        %3000 = vmatpush1.msra.mxu0 0.0
        %3001 = vmatprep.subr.mxu0 0.0
        %3002 = vmatpush1.msra.mxu0 0.0
        %3003 = vmatprep.subr.mxu0 0.0
        %3004 = vmatpush1.msra.mxu0 0.0
        %3005 = vmatprep.subr.mxu0 0.0
        %3006 = vmatpush1.msra.mxu0 0.0
        %3007 = vmatprep.subr.mxu0 0.0
        %3008 = vmatpush1.msra.mxu0 0.0
        %3009 = vmatprep.subr.mxu0 0.0
        %3010 = vmatpush1.msra.mxu0 0.0
        %3011 = vmatprep.subr.mxu0 0.0
        %3012 = vmatpush1.msra.mxu0 0.0
        %3013 = vmatprep.subr.mxu0 0.0
        %3014 = vmatpush1.msra.mxu0 0.0
        %3015 = vmatprep.subr.mxu0 0.0
        %3016 = vmatpush1.msra.mxu0 0.0
        %3017 = vmatprep.subr.mxu0 0.0
        %3018 = vmatpush1.msra.mxu0 0.0
        %3019 = vmatprep.subr.mxu0 0.0
        %3020 = vmatpush1.msra.mxu0 0.0
        %3021 = vmatprep.subr.mxu0 0.0
        %3022 = vmatpush1.msra.mxu0 0.0
        %3023 = vmatprep.subr.mxu0 0.0
        %3024 = vmatpush1.msra.mxu0 0.0
        %3025 = vmatprep.subr.mxu0 0.0
        %3026 = vmatpush1.msra.mxu0 0.0
        %3027 = vmatprep.subr.mxu0 0.0
        %3028 = vmatpush1.msra.mxu0 0.0
        %3029 = vmatprep.mubr.f32.mxu0 0.0
        %3030 = vmatmul.mubr.f32.gmra.mrb[0].mxu0 %v2963
        %v3031 = vpop.f32.mrb[0].mxu0
        %v3032 = vadd.f32 %v2959, %v3031
        %v3033 = vpop.f32.mrb[0].mxu0
        %3034 = vdwg.mxu0
        %v3035 = vadd.f32 %v2860, %v3032
        %v3036 = vsel %vm633, %v3035, 0.0
        %3037 = vadd.xlane.f32.xlu0 %v3036
        %v3038 = vpop.xlane.xlu0 %3037
        %v3039 = vmul.f32 %v3038, %v1674
        %v3040 = vsub.f32 %v3035, %v3039
        %v3041 = vmul.f32 %v3040, %v3040
        %v3042 = vsel %vm633, %v3041, 0.0
        %3043 = vadd.xlane.f32.xlu0 %v3042
        %v3044 = vpop.xlane.xlu0 %3043
        %v3045 = vmul.f32 %v3044, %v1674
        %v3046 = vadd.f32 %v3045, 1e-05
        %v3047 = vrsqrt.pop %v3046
        %v3048 = vmul.f32 %v3040, %v3047
        %v3049 = vlaneseq
        %v3050 = vshrl.u32 %v3049, 7
        %v3051 = vsub.s32 2, %v3050
        %v3052 = vrot.slane %v615, %v3051
        %v3053 = vmul.f32 %v3048, %v3052
        %v3054 = vlaneseq
        %v3055 = vshrl.u32 %v3054, 7
        %v3056 = vsub.s32 2, %v3055
        %v3057 = vrot.slane %v616, %v3056
        %v3058 = vadd.f32 %v3053, %v3057
        %s3059 = scalar_lea.vmem %s11, 4
        %v3060 = vld [vmem:[%s3059] sm:$0x7]
        %s3061 = scalar_lea.vmem %s12, 4
        %v3062 = vld [vmem:[%s3061] sm:$0x7]
        %s3063 = scalar_lea.vmem %s3, 64
        %v3064 = vld [vmem:[%s3063] sm:$0xff]
        %v3065 = vld [vmem:[%s3063 + $0x8] sm:$0xff]
        %v3066 = vld [vmem:[%s3063 + $0x10] sm:$0xff]
        %v3067 = vld [vmem:[%s3063 + $0x18] sm:$0xff]
        %s3068 = scalar_lea.vmem [#allocation8], 2
        %v3069 = vld [vmem:[%s3068] sm:$0x1]
        %s3070 = scalar_lea.vmem [#allocation10], 64
        %v3071 = vld [vmem:[%s3070] sm:$0xff]
        %v3072 = vld [vmem:[%s3070 + $0x8] sm:$0xff]
        %v3073 = vld [vmem:[%s3070 + $0x10] sm:$0xff]
        %v3074 = vld [vmem:[%s3070 + $0x18] sm:$0xff]
        %s3075 = scalar_lea.vmem %s6, 2
        %v3076 = vld [vmem:[%s3075] sm:$0x1]
        %v3078 = vlaneseq
        %v3079 = vshrl.u32 %v3078, 7
        %v3080 = vsub.s32 0, %v3079
        %v3081 = vrot.slane %v3069, %v3080
        %v3084 = vsel %vm633, %v3058, 0
        %3086 = vmatprep.subr.mxu0 0.0
        %3087 = vmatpush1.msra.mxu0 %v3064
        %3088 = vmatprep.subr.mxu0 0.0
        %3089 = vmatpush1.msra.mxu0 %v3065
        %3090 = vmatprep.subr.mxu0 0.0
        %3091 = vmatpush1.msra.mxu0 %v3066
        %3092 = vmatprep.subr.mxu0 0.0
        %3093 = vmatpush1.msra.mxu0 %v3067
        %3094 = vmatprep.subr.mxu0 0.0
        %3095 = vmatpush1.msra.mxu0 0.0
        %3096 = vmatprep.subr.mxu0 0.0
        %3097 = vmatpush1.msra.mxu0 0.0
        %3098 = vmatprep.subr.mxu0 0.0
        %3099 = vmatpush1.msra.mxu0 0.0
        %3100 = vmatprep.subr.mxu0 0.0
        %3101 = vmatpush1.msra.mxu0 0.0
        %3102 = vmatprep.subr.mxu0 0.0
        %3103 = vmatpush1.msra.mxu0 0.0
        %3104 = vmatprep.subr.mxu0 0.0
        %3105 = vmatpush1.msra.mxu0 0.0
        %3106 = vmatprep.subr.mxu0 0.0
        %3107 = vmatpush1.msra.mxu0 0.0
        %3108 = vmatprep.subr.mxu0 0.0
        %3109 = vmatpush1.msra.mxu0 0.0
        %3110 = vmatprep.subr.mxu0 0.0
        %3111 = vmatpush1.msra.mxu0 0.0
        %3112 = vmatprep.subr.mxu0 0.0
        %3113 = vmatpush1.msra.mxu0 0.0
        %3114 = vmatprep.subr.mxu0 0.0
        %3115 = vmatpush1.msra.mxu0 0.0
        %3116 = vmatprep.subr.mxu0 0.0
        %3117 = vmatpush1.msra.mxu0 0.0
        %3118 = vmatprep.subr.mxu0 0.0
        %3119 = vmatpush1.msra.mxu0 0.0
        %3120 = vmatprep.subr.mxu0 0.0
        %3121 = vmatpush1.msra.mxu0 0.0
        %3122 = vmatprep.subr.mxu0 0.0
        %3123 = vmatpush1.msra.mxu0 0.0
        %3124 = vmatprep.subr.mxu0 0.0
        %3125 = vmatpush1.msra.mxu0 0.0
        %3126 = vmatprep.subr.mxu0 0.0
        %3127 = vmatpush1.msra.mxu0 0.0
        %3128 = vmatprep.subr.mxu0 0.0
        %3129 = vmatpush1.msra.mxu0 0.0
        %3130 = vmatprep.subr.mxu0 0.0
        %3131 = vmatpush1.msra.mxu0 0.0
        %3132 = vmatprep.subr.mxu0 0.0
        %3133 = vmatpush1.msra.mxu0 0.0
        %3134 = vmatprep.subr.mxu0 0.0
        %3135 = vmatpush1.msra.mxu0 0.0
        %3136 = vmatprep.subr.mxu0 0.0
        %3137 = vmatpush1.msra.mxu0 0.0
        %3138 = vmatprep.subr.mxu0 0.0
        %3139 = vmatpush1.msra.mxu0 0.0
        %3140 = vmatprep.subr.mxu0 0.0
        %3141 = vmatpush1.msra.mxu0 0.0
        %3142 = vmatprep.subr.mxu0 0.0
        %3143 = vmatpush1.msra.mxu0 0.0
        %3144 = vmatprep.subr.mxu0 0.0
        %3145 = vmatpush1.msra.mxu0 0.0
        %3146 = vmatprep.subr.mxu0 0.0
        %3147 = vmatpush1.msra.mxu0 0.0
        %3148 = vmatprep.subr.mxu0 0.0
        %3149 = vmatpush1.msra.mxu0 0.0
        %3150 = vmatprep.mubr.f32.mxu0 0.0
        %3151 = vmatmul.mubr.f32.gmra.mrb[0].mxu0 %v3084
        %v3152 = vpop.f32.mrb[0].mxu0
        %v3153 = vadd.f32 %v3081, %v3152
        %v3154 = vpop.f32.mrb[0].mxu0
        %3155 = vdwg.mxu0
        %v3156 = vmul.f32 %v3153, 0.35355338
        %3158 = vrot.lane.b32.xlu0 %v3153, 96
        %v3159 = vpop.permute.xlu0 %3158
        %v3161 = vsel %vm711, %v3156, 0
        %v3163 = vsel %vm711, %v3159, 0
        %3165 = vmatprep.subr.mxu0 0.0
        %3166 = vmatpush1.xpose.msra.mxu0 %v3163
        %3167 = vmatprep.subr.mxu0 0.0
        %3168 = vmatpush1.xpose.msra.mxu0 0.0
        %3169 = vmatprep.subr.mxu0 0.0
        %3170 = vmatpush1.xpose.msra.mxu0 0.0
        %3171 = vmatprep.subr.mxu0 0.0
        %3172 = vmatpush1.xpose.msra.mxu0 0.0
        %3173 = vmatprep.subr.mxu0 0.0
        %3174 = vmatpush1.xpose.msra.mxu0 0.0
        %3175 = vmatprep.subr.mxu0 0.0
        %3176 = vmatpush1.xpose.msra.mxu0 0.0
        %3177 = vmatprep.subr.mxu0 0.0
        %3178 = vmatpush1.xpose.msra.mxu0 0.0
        %3179 = vmatprep.subr.mxu0 0.0
        %3180 = vmatpush1.xpose.msra.mxu0 0.0
        %3181 = vmatprep.subr.mxu0 0.0
        %3182 = vmatpush1.xpose.msra.mxu0 0.0
        %3183 = vmatprep.subr.mxu0 0.0
        %3184 = vmatpush1.xpose.msra.mxu0 0.0
        %3185 = vmatprep.subr.mxu0 0.0
        %3186 = vmatpush1.xpose.msra.mxu0 0.0
        %3187 = vmatprep.subr.mxu0 0.0
        %3188 = vmatpush1.xpose.msra.mxu0 0.0
        %3189 = vmatprep.subr.mxu0 0.0
        %3190 = vmatpush1.xpose.msra.mxu0 0.0
        %3191 = vmatprep.subr.mxu0 0.0
        %3192 = vmatpush1.xpose.msra.mxu0 0.0
        %3193 = vmatprep.subr.mxu0 0.0
        %3194 = vmatpush1.xpose.msra.mxu0 0.0
        %3195 = vmatprep.subr.mxu0 0.0
        %3196 = vmatpush1.xpose.msra.mxu0 0.0
        %3197 = vmatprep.subr.mxu0 0.0
        %3198 = vmatpush1.xpose.msra.mxu0 0.0
        %3199 = vmatprep.subr.mxu0 0.0
        %3200 = vmatpush1.xpose.msra.mxu0 0.0
        %3201 = vmatprep.subr.mxu0 0.0
        %3202 = vmatpush1.xpose.msra.mxu0 0.0
        %3203 = vmatprep.subr.mxu0 0.0
        %3204 = vmatpush1.xpose.msra.mxu0 0.0
        %3205 = vmatprep.subr.mxu0 0.0
        %3206 = vmatpush1.xpose.msra.mxu0 0.0
        %3207 = vmatprep.subr.mxu0 0.0
        %3208 = vmatpush1.xpose.msra.mxu0 0.0
        %3209 = vmatprep.subr.mxu0 0.0
        %3210 = vmatpush1.xpose.msra.mxu0 0.0
        %3211 = vmatprep.subr.mxu0 0.0
        %3212 = vmatpush1.xpose.msra.mxu0 0.0
        %3213 = vmatprep.subr.mxu0 0.0
        %3214 = vmatpush1.xpose.msra.mxu0 0.0
        %3215 = vmatprep.subr.mxu0 0.0
        %3216 = vmatpush1.xpose.msra.mxu0 0.0
        %3217 = vmatprep.subr.mxu0 0.0
        %3218 = vmatpush1.xpose.msra.mxu0 0.0
        %3219 = vmatprep.subr.mxu0 0.0
        %3220 = vmatpush1.xpose.msra.mxu0 0.0
        %3221 = vmatprep.subr.mxu0 0.0
        %3222 = vmatpush1.xpose.msra.mxu0 0.0
        %3223 = vmatprep.subr.mxu0 0.0
        %3224 = vmatpush1.xpose.msra.mxu0 0.0
        %3225 = vmatprep.subr.mxu0 0.0
        %3226 = vmatpush1.xpose.msra.mxu0 0.0
        %3227 = vmatprep.subr.mxu0 0.0
        %3228 = vmatpush1.xpose.msra.mxu0 0.0
        %3229 = vmatprep.mubr.f32.mxu0 0.0
        %3230 = vmatmul.mubr.f32.gmra.mrb[0].mxu0 %v3161
        %v3231 = vpop.f32.mrb[0].mxu0
        %v3232 = vadd.f32 0.0, %v3231
        %v3233 = vpop.f32.mrb[0].mxu0
        %3234 = vdwg.mxu0
        %v3235 = vsel %vm711, %v3232, -inf
        %3236 = vmax.xlane.f32.xlu0 %v3235
        %v3237 = vpop.xlane.xlu0 %3236
        %v3238 = vsub.f32 %v3232, %v3237
        %v3239 = vmul.f32 %v3238, 1.442695
        %v3240 = vpow.pop %v3239
        %v3241 = vsel %vm711, %v3240, 0.0
        %3242 = vadd.xlane.f32.xlu0 %v3241
        %v3243 = vpop.xlane.xlu0 %3242
        %v3244 = vrcp.pop %v3243
        %v3245 = vmul.f32 %v3240, %v3244
        %3246 = vrot.lane.b32.xlu0 %v3153, 64
        %v3247 = vpop.permute.xlu0 %3246
        %v3250 = vsel %vm711, %v3245, 0
        %3252 = vmatprep.subr.mxu0 0.0
        %3253 = vmatpush1.msra.mxu0 %v3247
        %3254 = vmatprep.subr.mxu0 0.0
        %3255 = vmatpush1.msra.mxu0 0.0
        %3256 = vmatprep.subr.mxu0 0.0
        %3257 = vmatpush1.msra.mxu0 0.0
        %3258 = vmatprep.subr.mxu0 0.0
        %3259 = vmatpush1.msra.mxu0 0.0
        %3260 = vmatprep.subr.mxu0 0.0
        %3261 = vmatpush1.msra.mxu0 0.0
        %3262 = vmatprep.subr.mxu0 0.0
        %3263 = vmatpush1.msra.mxu0 0.0
        %3264 = vmatprep.subr.mxu0 0.0
        %3265 = vmatpush1.msra.mxu0 0.0
        %3266 = vmatprep.subr.mxu0 0.0
        %3267 = vmatpush1.msra.mxu0 0.0
        %3268 = vmatprep.subr.mxu0 0.0
        %3269 = vmatpush1.msra.mxu0 0.0
        %3270 = vmatprep.subr.mxu0 0.0
        %3271 = vmatpush1.msra.mxu0 0.0
        %3272 = vmatprep.subr.mxu0 0.0
        %3273 = vmatpush1.msra.mxu0 0.0
        %3274 = vmatprep.subr.mxu0 0.0
        %3275 = vmatpush1.msra.mxu0 0.0
        %3276 = vmatprep.subr.mxu0 0.0
        %3277 = vmatpush1.msra.mxu0 0.0
        %3278 = vmatprep.subr.mxu0 0.0
        %3279 = vmatpush1.msra.mxu0 0.0
        %3280 = vmatprep.subr.mxu0 0.0
        %3281 = vmatpush1.msra.mxu0 0.0
        %3282 = vmatprep.subr.mxu0 0.0
        %3283 = vmatpush1.msra.mxu0 0.0
        %3284 = vmatprep.subr.mxu0 0.0
        %3285 = vmatpush1.msra.mxu0 0.0
        %3286 = vmatprep.subr.mxu0 0.0
        %3287 = vmatpush1.msra.mxu0 0.0
        %3288 = vmatprep.subr.mxu0 0.0
        %3289 = vmatpush1.msra.mxu0 0.0
        %3290 = vmatprep.subr.mxu0 0.0
        %3291 = vmatpush1.msra.mxu0 0.0
        %3292 = vmatprep.subr.mxu0 0.0
        %3293 = vmatpush1.msra.mxu0 0.0
        %3294 = vmatprep.subr.mxu0 0.0
        %3295 = vmatpush1.msra.mxu0 0.0
        %3296 = vmatprep.subr.mxu0 0.0
        %3297 = vmatpush1.msra.mxu0 0.0
        %3298 = vmatprep.subr.mxu0 0.0
        %3299 = vmatpush1.msra.mxu0 0.0
        %3300 = vmatprep.subr.mxu0 0.0
        %3301 = vmatpush1.msra.mxu0 0.0
        %3302 = vmatprep.subr.mxu0 0.0
        %3303 = vmatpush1.msra.mxu0 0.0
        %3304 = vmatprep.subr.mxu0 0.0
        %3305 = vmatpush1.msra.mxu0 0.0
        %3306 = vmatprep.subr.mxu0 0.0
        %3307 = vmatpush1.msra.mxu0 0.0
        %3308 = vmatprep.subr.mxu0 0.0
        %3309 = vmatpush1.msra.mxu0 0.0
        %3310 = vmatprep.subr.mxu0 0.0
        %3311 = vmatpush1.msra.mxu0 0.0
        %3312 = vmatprep.subr.mxu0 0.0
        %3313 = vmatpush1.msra.mxu0 0.0
        %3314 = vmatprep.subr.mxu0 0.0
        %3315 = vmatpush1.msra.mxu0 0.0
        %3316 = vmatprep.mubr.f32.mxu0 0.0
        %3317 = vmatmul.mubr.f32.gmra.mrb[0].mxu0 %v3250
        %v3318 = vpop.f32.mrb[0].mxu0
        %v3319 = vadd.f32 0.0, %v3318
        %v3320 = vpop.f32.mrb[0].mxu0
        %3321 = vdwg.mxu0
        %3322 = vrot.lane.b32.xlu0 %v3156, 120
        %v3323 = vpop.permute.xlu0 %3322
        %3324 = vrot.lane.b32.xlu0 %v3153, 88
        %v3325 = vpop.permute.xlu0 %3324
        %v3326 = vsel %vm711, %v3323, 0
        %v3328 = vsel %vm711, %v3325, 0
        %3330 = vmatprep.subr.mxu0 0.0
        %3331 = vmatpush1.xpose.msra.mxu0 %v3328
        %3332 = vmatprep.subr.mxu0 0.0
        %3333 = vmatpush1.xpose.msra.mxu0 0.0
        %3334 = vmatprep.subr.mxu0 0.0
        %3335 = vmatpush1.xpose.msra.mxu0 0.0
        %3336 = vmatprep.subr.mxu0 0.0
        %3337 = vmatpush1.xpose.msra.mxu0 0.0
        %3338 = vmatprep.subr.mxu0 0.0
        %3339 = vmatpush1.xpose.msra.mxu0 0.0
        %3340 = vmatprep.subr.mxu0 0.0
        %3341 = vmatpush1.xpose.msra.mxu0 0.0
        %3342 = vmatprep.subr.mxu0 0.0
        %3343 = vmatpush1.xpose.msra.mxu0 0.0
        %3344 = vmatprep.subr.mxu0 0.0
        %3345 = vmatpush1.xpose.msra.mxu0 0.0
        %3346 = vmatprep.subr.mxu0 0.0
        %3347 = vmatpush1.xpose.msra.mxu0 0.0
        %3348 = vmatprep.subr.mxu0 0.0
        %3349 = vmatpush1.xpose.msra.mxu0 0.0
        %3350 = vmatprep.subr.mxu0 0.0
        %3351 = vmatpush1.xpose.msra.mxu0 0.0
        %3352 = vmatprep.subr.mxu0 0.0
        %3353 = vmatpush1.xpose.msra.mxu0 0.0
        %3354 = vmatprep.subr.mxu0 0.0
        %3355 = vmatpush1.xpose.msra.mxu0 0.0
        %3356 = vmatprep.subr.mxu0 0.0
        %3357 = vmatpush1.xpose.msra.mxu0 0.0
        %3358 = vmatprep.subr.mxu0 0.0
        %3359 = vmatpush1.xpose.msra.mxu0 0.0
        %3360 = vmatprep.subr.mxu0 0.0
        %3361 = vmatpush1.xpose.msra.mxu0 0.0
        %3362 = vmatprep.subr.mxu0 0.0
        %3363 = vmatpush1.xpose.msra.mxu0 0.0
        %3364 = vmatprep.subr.mxu0 0.0
        %3365 = vmatpush1.xpose.msra.mxu0 0.0
        %3366 = vmatprep.subr.mxu0 0.0
        %3367 = vmatpush1.xpose.msra.mxu0 0.0
        %3368 = vmatprep.subr.mxu0 0.0
        %3369 = vmatpush1.xpose.msra.mxu0 0.0
        %3370 = vmatprep.subr.mxu0 0.0
        %3371 = vmatpush1.xpose.msra.mxu0 0.0
        %3372 = vmatprep.subr.mxu0 0.0
        %3373 = vmatpush1.xpose.msra.mxu0 0.0
        %3374 = vmatprep.subr.mxu0 0.0
        %3375 = vmatpush1.xpose.msra.mxu0 0.0
        %3376 = vmatprep.subr.mxu0 0.0
        %3377 = vmatpush1.xpose.msra.mxu0 0.0
        %3378 = vmatprep.subr.mxu0 0.0
        %3379 = vmatpush1.xpose.msra.mxu0 0.0
        %3380 = vmatprep.subr.mxu0 0.0
        %3381 = vmatpush1.xpose.msra.mxu0 0.0
        %3382 = vmatprep.subr.mxu0 0.0
        %3383 = vmatpush1.xpose.msra.mxu0 0.0
        %3384 = vmatprep.subr.mxu0 0.0
        %3385 = vmatpush1.xpose.msra.mxu0 0.0
        %3386 = vmatprep.subr.mxu0 0.0
        %3387 = vmatpush1.xpose.msra.mxu0 0.0
        %3388 = vmatprep.subr.mxu0 0.0
        %3389 = vmatpush1.xpose.msra.mxu0 0.0
        %3390 = vmatprep.subr.mxu0 0.0
        %3391 = vmatpush1.xpose.msra.mxu0 0.0
        %3392 = vmatprep.subr.mxu0 0.0
        %3393 = vmatpush1.xpose.msra.mxu0 0.0
        %3394 = vmatprep.mubr.f32.mxu0 0.0
        %3395 = vmatmul.mubr.f32.gmra.mrb[0].mxu0 %v3326
        %v3396 = vpop.f32.mrb[0].mxu0
        %v3397 = vadd.f32 0.0, %v3396
        %v3398 = vpop.f32.mrb[0].mxu0
        %3399 = vdwg.mxu0
        %v3400 = vsel %vm711, %v3397, -inf
        %3401 = vmax.xlane.f32.xlu0 %v3400
        %v3402 = vpop.xlane.xlu0 %3401
        %v3403 = vsub.f32 %v3397, %v3402
        %v3404 = vmul.f32 %v3403, 1.442695
        %v3405 = vpow.pop %v3404
        %v3406 = vsel %vm711, %v3405, 0.0
        %3407 = vadd.xlane.f32.xlu0 %v3406
        %v3408 = vpop.xlane.xlu0 %3407
        %v3409 = vrcp.pop %v3408
        %v3410 = vmul.f32 %v3405, %v3409
        %3411 = vrot.lane.b32.xlu0 %v3153, 56
        %v3412 = vpop.permute.xlu0 %3411
        %v3415 = vsel %vm711, %v3410, 0
        %3417 = vmatprep.subr.mxu0 0.0
        %3418 = vmatpush1.msra.mxu0 %v3412
        %3419 = vmatprep.subr.mxu0 0.0
        %3420 = vmatpush1.msra.mxu0 0.0
        %3421 = vmatprep.subr.mxu0 0.0
        %3422 = vmatpush1.msra.mxu0 0.0
        %3423 = vmatprep.subr.mxu0 0.0
        %3424 = vmatpush1.msra.mxu0 0.0
        %3425 = vmatprep.subr.mxu0 0.0
        %3426 = vmatpush1.msra.mxu0 0.0
        %3427 = vmatprep.subr.mxu0 0.0
        %3428 = vmatpush1.msra.mxu0 0.0
        %3429 = vmatprep.subr.mxu0 0.0
        %3430 = vmatpush1.msra.mxu0 0.0
        %3431 = vmatprep.subr.mxu0 0.0
        %3432 = vmatpush1.msra.mxu0 0.0
        %3433 = vmatprep.subr.mxu0 0.0
        %3434 = vmatpush1.msra.mxu0 0.0
        %3435 = vmatprep.subr.mxu0 0.0
        %3436 = vmatpush1.msra.mxu0 0.0
        %3437 = vmatprep.subr.mxu0 0.0
        %3438 = vmatpush1.msra.mxu0 0.0
        %3439 = vmatprep.subr.mxu0 0.0
        %3440 = vmatpush1.msra.mxu0 0.0
        %3441 = vmatprep.subr.mxu0 0.0
        %3442 = vmatpush1.msra.mxu0 0.0
        %3443 = vmatprep.subr.mxu0 0.0
        %3444 = vmatpush1.msra.mxu0 0.0
        %3445 = vmatprep.subr.mxu0 0.0
        %3446 = vmatpush1.msra.mxu0 0.0
        %3447 = vmatprep.subr.mxu0 0.0
        %3448 = vmatpush1.msra.mxu0 0.0
        %3449 = vmatprep.subr.mxu0 0.0
        %3450 = vmatpush1.msra.mxu0 0.0
        %3451 = vmatprep.subr.mxu0 0.0
        %3452 = vmatpush1.msra.mxu0 0.0
        %3453 = vmatprep.subr.mxu0 0.0
        %3454 = vmatpush1.msra.mxu0 0.0
        %3455 = vmatprep.subr.mxu0 0.0
        %3456 = vmatpush1.msra.mxu0 0.0
        %3457 = vmatprep.subr.mxu0 0.0
        %3458 = vmatpush1.msra.mxu0 0.0
        %3459 = vmatprep.subr.mxu0 0.0
        %3460 = vmatpush1.msra.mxu0 0.0
        %3461 = vmatprep.subr.mxu0 0.0
        %3462 = vmatpush1.msra.mxu0 0.0
        %3463 = vmatprep.subr.mxu0 0.0
        %3464 = vmatpush1.msra.mxu0 0.0
        %3465 = vmatprep.subr.mxu0 0.0
        %3466 = vmatpush1.msra.mxu0 0.0
        %3467 = vmatprep.subr.mxu0 0.0
        %3468 = vmatpush1.msra.mxu0 0.0
        %3469 = vmatprep.subr.mxu0 0.0
        %3470 = vmatpush1.msra.mxu0 0.0
        %3471 = vmatprep.subr.mxu0 0.0
        %3472 = vmatpush1.msra.mxu0 0.0
        %3473 = vmatprep.subr.mxu0 0.0
        %3474 = vmatpush1.msra.mxu0 0.0
        %3475 = vmatprep.subr.mxu0 0.0
        %3476 = vmatpush1.msra.mxu0 0.0
        %3477 = vmatprep.subr.mxu0 0.0
        %3478 = vmatpush1.msra.mxu0 0.0
        %3479 = vmatprep.subr.mxu0 0.0
        %3480 = vmatpush1.msra.mxu0 0.0
        %3481 = vmatprep.mubr.f32.mxu0 0.0
        %3482 = vmatmul.mubr.f32.gmra.mrb[0].mxu0 %v3415
        %v3483 = vpop.f32.mrb[0].mxu0
        %v3484 = vadd.f32 0.0, %v3483
        %v3485 = vpop.f32.mrb[0].mxu0
        %3486 = vdwg.mxu0
        %v3488 = vsel %vm711, %v3484, 0
        %3490 = vmatprep.subr.mxu0 0.0
        %3491 = vmatpush1.msra.mxu0 %v3072
        %3492 = vmatprep.subr.mxu0 0.0
        %3493 = vmatpush1.msra.mxu0 0.0
        %3494 = vmatprep.subr.mxu0 0.0
        %3495 = vmatpush1.msra.mxu0 0.0
        %3496 = vmatprep.subr.mxu0 0.0
        %3497 = vmatpush1.msra.mxu0 0.0
        %3498 = vmatprep.subr.mxu0 0.0
        %3499 = vmatpush1.msra.mxu0 0.0
        %3500 = vmatprep.subr.mxu0 0.0
        %3501 = vmatpush1.msra.mxu0 0.0
        %3502 = vmatprep.subr.mxu0 0.0
        %3503 = vmatpush1.msra.mxu0 0.0
        %3504 = vmatprep.subr.mxu0 0.0
        %3505 = vmatpush1.msra.mxu0 0.0
        %3506 = vmatprep.subr.mxu0 0.0
        %3507 = vmatpush1.msra.mxu0 0.0
        %3508 = vmatprep.subr.mxu0 0.0
        %3509 = vmatpush1.msra.mxu0 0.0
        %3510 = vmatprep.subr.mxu0 0.0
        %3511 = vmatpush1.msra.mxu0 0.0
        %3512 = vmatprep.subr.mxu0 0.0
        %3513 = vmatpush1.msra.mxu0 0.0
        %3514 = vmatprep.subr.mxu0 0.0
        %3515 = vmatpush1.msra.mxu0 0.0
        %3516 = vmatprep.subr.mxu0 0.0
        %3517 = vmatpush1.msra.mxu0 0.0
        %3518 = vmatprep.subr.mxu0 0.0
        %3519 = vmatpush1.msra.mxu0 0.0
        %3520 = vmatprep.subr.mxu0 0.0
        %3521 = vmatpush1.msra.mxu0 0.0
        %3522 = vmatprep.subr.mxu0 0.0
        %3523 = vmatpush1.msra.mxu0 0.0
        %3524 = vmatprep.subr.mxu0 0.0
        %3525 = vmatpush1.msra.mxu0 0.0
        %3526 = vmatprep.subr.mxu0 0.0
        %3527 = vmatpush1.msra.mxu0 0.0
        %3528 = vmatprep.subr.mxu0 0.0
        %3529 = vmatpush1.msra.mxu0 0.0
        %3530 = vmatprep.subr.mxu0 0.0
        %3531 = vmatpush1.msra.mxu0 0.0
        %3532 = vmatprep.subr.mxu0 0.0
        %3533 = vmatpush1.msra.mxu0 0.0
        %3534 = vmatprep.subr.mxu0 0.0
        %3535 = vmatpush1.msra.mxu0 0.0
        %3536 = vmatprep.subr.mxu0 0.0
        %3537 = vmatpush1.msra.mxu0 0.0
        %3538 = vmatprep.subr.mxu0 0.0
        %3539 = vmatpush1.msra.mxu0 0.0
        %3540 = vmatprep.subr.mxu0 0.0
        %3541 = vmatpush1.msra.mxu0 0.0
        %3542 = vmatprep.subr.mxu0 0.0
        %3543 = vmatpush1.msra.mxu0 0.0
        %3544 = vmatprep.subr.mxu0 0.0
        %3545 = vmatpush1.msra.mxu0 0.0
        %3546 = vmatprep.subr.mxu0 0.0
        %3547 = vmatpush1.msra.mxu0 0.0
        %3548 = vmatprep.subr.mxu0 0.0
        %3549 = vmatpush1.msra.mxu0 0.0
        %3550 = vmatprep.subr.mxu0 0.0
        %3551 = vmatpush1.msra.mxu0 0.0
        %3552 = vmatprep.subr.mxu0 0.0
        %3553 = vmatpush1.msra.mxu0 0.0
        %3554 = vmatprep.mubr.f32.mxu0 0.0
        %3555 = vmatmul.mubr.f32.gmra.mrb[0].mxu0 %v3488
        %v3556 = vpop.f32.mrb[0].mxu0
        %v3557 = vadd.f32 0.0, %v3556
        %v3558 = vpop.f32.mrb[0].mxu0
        %3559 = vdwg.mxu0
        %v3561 = vsel %vm711, %v3319, 0
        %3563 = vmatprep.subr.mxu0 0.0
        %3564 = vmatpush1.msra.mxu0 %v3071
        %3565 = vmatprep.subr.mxu0 0.0
        %3566 = vmatpush1.msra.mxu0 0.0
        %3567 = vmatprep.subr.mxu0 0.0
        %3568 = vmatpush1.msra.mxu0 0.0
        %3569 = vmatprep.subr.mxu0 0.0
        %3570 = vmatpush1.msra.mxu0 0.0
        %3571 = vmatprep.subr.mxu0 0.0
        %3572 = vmatpush1.msra.mxu0 0.0
        %3573 = vmatprep.subr.mxu0 0.0
        %3574 = vmatpush1.msra.mxu0 0.0
        %3575 = vmatprep.subr.mxu0 0.0
        %3576 = vmatpush1.msra.mxu0 0.0
        %3577 = vmatprep.subr.mxu0 0.0
        %3578 = vmatpush1.msra.mxu0 0.0
        %3579 = vmatprep.subr.mxu0 0.0
        %3580 = vmatpush1.msra.mxu0 0.0
        %3581 = vmatprep.subr.mxu0 0.0
        %3582 = vmatpush1.msra.mxu0 0.0
        %3583 = vmatprep.subr.mxu0 0.0
        %3584 = vmatpush1.msra.mxu0 0.0
        %3585 = vmatprep.subr.mxu0 0.0
        %3586 = vmatpush1.msra.mxu0 0.0
        %3587 = vmatprep.subr.mxu0 0.0
        %3588 = vmatpush1.msra.mxu0 0.0
        %3589 = vmatprep.subr.mxu0 0.0
        %3590 = vmatpush1.msra.mxu0 0.0
        %3591 = vmatprep.subr.mxu0 0.0
        %3592 = vmatpush1.msra.mxu0 0.0
        %3593 = vmatprep.subr.mxu0 0.0
        %3594 = vmatpush1.msra.mxu0 0.0
        %3595 = vmatprep.subr.mxu0 0.0
        %3596 = vmatpush1.msra.mxu0 0.0
        %3597 = vmatprep.subr.mxu0 0.0
        %3598 = vmatpush1.msra.mxu0 0.0
        %3599 = vmatprep.subr.mxu0 0.0
        %3600 = vmatpush1.msra.mxu0 0.0
        %3601 = vmatprep.subr.mxu0 0.0
        %3602 = vmatpush1.msra.mxu0 0.0
        %3603 = vmatprep.subr.mxu0 0.0
        %3604 = vmatpush1.msra.mxu0 0.0
        %3605 = vmatprep.subr.mxu0 0.0
        %3606 = vmatpush1.msra.mxu0 0.0
        %3607 = vmatprep.subr.mxu0 0.0
        %3608 = vmatpush1.msra.mxu0 0.0
        %3609 = vmatprep.subr.mxu0 0.0
        %3610 = vmatpush1.msra.mxu0 0.0
        %3611 = vmatprep.subr.mxu0 0.0
        %3612 = vmatpush1.msra.mxu0 0.0
        %3613 = vmatprep.subr.mxu0 0.0
        %3614 = vmatpush1.msra.mxu0 0.0
        %3615 = vmatprep.subr.mxu0 0.0
        %3616 = vmatpush1.msra.mxu0 0.0
        %3617 = vmatprep.subr.mxu0 0.0
        %3618 = vmatpush1.msra.mxu0 0.0
        %3619 = vmatprep.subr.mxu0 0.0
        %3620 = vmatpush1.msra.mxu0 0.0
        %3621 = vmatprep.subr.mxu0 0.0
        %3622 = vmatpush1.msra.mxu0 0.0
        %3623 = vmatprep.subr.mxu0 0.0
        %3624 = vmatpush1.msra.mxu0 0.0
        %3625 = vmatprep.subr.mxu0 0.0
        %3626 = vmatpush1.msra.mxu0 0.0
        %3627 = vmatprep.mubr.f32.mxu0 0.0
        %3628 = vmatmul.mubr.f32.gmra.mrb[0].mxu0 %v3561
        %v3629 = vpop.f32.mrb[0].mxu0
        %v3630 = vadd.f32 %v3557, %v3629
        %v3631 = vpop.f32.mrb[0].mxu0
        %3632 = vdwg.mxu0
        %3633 = vrot.lane.b32.xlu0 %v3156, 112
        %v3634 = vpop.permute.xlu0 %3633
        %3635 = vrot.lane.b32.xlu0 %v3153, 80
        %v3636 = vpop.permute.xlu0 %3635
        %v3637 = vsel %vm711, %v3634, 0
        %v3639 = vsel %vm711, %v3636, 0
        %3641 = vmatprep.subr.mxu0 0.0
        %3642 = vmatpush1.xpose.msra.mxu0 %v3639
        %3643 = vmatprep.subr.mxu0 0.0
        %3644 = vmatpush1.xpose.msra.mxu0 0.0
        %3645 = vmatprep.subr.mxu0 0.0
        %3646 = vmatpush1.xpose.msra.mxu0 0.0
        %3647 = vmatprep.subr.mxu0 0.0
        %3648 = vmatpush1.xpose.msra.mxu0 0.0
        %3649 = vmatprep.subr.mxu0 0.0
        %3650 = vmatpush1.xpose.msra.mxu0 0.0
        %3651 = vmatprep.subr.mxu0 0.0
        %3652 = vmatpush1.xpose.msra.mxu0 0.0
        %3653 = vmatprep.subr.mxu0 0.0
        %3654 = vmatpush1.xpose.msra.mxu0 0.0
        %3655 = vmatprep.subr.mxu0 0.0
        %3656 = vmatpush1.xpose.msra.mxu0 0.0
        %3657 = vmatprep.subr.mxu0 0.0
        %3658 = vmatpush1.xpose.msra.mxu0 0.0
        %3659 = vmatprep.subr.mxu0 0.0
        %3660 = vmatpush1.xpose.msra.mxu0 0.0
        %3661 = vmatprep.subr.mxu0 0.0
        %3662 = vmatpush1.xpose.msra.mxu0 0.0
        %3663 = vmatprep.subr.mxu0 0.0
        %3664 = vmatpush1.xpose.msra.mxu0 0.0
        %3665 = vmatprep.subr.mxu0 0.0
        %3666 = vmatpush1.xpose.msra.mxu0 0.0
        %3667 = vmatprep.subr.mxu0 0.0
        %3668 = vmatpush1.xpose.msra.mxu0 0.0
        %3669 = vmatprep.subr.mxu0 0.0
        %3670 = vmatpush1.xpose.msra.mxu0 0.0
        %3671 = vmatprep.subr.mxu0 0.0
        %3672 = vmatpush1.xpose.msra.mxu0 0.0
        %3673 = vmatprep.subr.mxu0 0.0
        %3674 = vmatpush1.xpose.msra.mxu0 0.0
        %3675 = vmatprep.subr.mxu0 0.0
        %3676 = vmatpush1.xpose.msra.mxu0 0.0
        %3677 = vmatprep.subr.mxu0 0.0
        %3678 = vmatpush1.xpose.msra.mxu0 0.0
        %3679 = vmatprep.subr.mxu0 0.0
        %3680 = vmatpush1.xpose.msra.mxu0 0.0
        %3681 = vmatprep.subr.mxu0 0.0
        %3682 = vmatpush1.xpose.msra.mxu0 0.0
        %3683 = vmatprep.subr.mxu0 0.0
        %3684 = vmatpush1.xpose.msra.mxu0 0.0
        %3685 = vmatprep.subr.mxu0 0.0
        %3686 = vmatpush1.xpose.msra.mxu0 0.0
        %3687 = vmatprep.subr.mxu0 0.0
        %3688 = vmatpush1.xpose.msra.mxu0 0.0
        %3689 = vmatprep.subr.mxu0 0.0
        %3690 = vmatpush1.xpose.msra.mxu0 0.0
        %3691 = vmatprep.subr.mxu0 0.0
        %3692 = vmatpush1.xpose.msra.mxu0 0.0
        %3693 = vmatprep.subr.mxu0 0.0
        %3694 = vmatpush1.xpose.msra.mxu0 0.0
        %3695 = vmatprep.subr.mxu0 0.0
        %3696 = vmatpush1.xpose.msra.mxu0 0.0
        %3697 = vmatprep.subr.mxu0 0.0
        %3698 = vmatpush1.xpose.msra.mxu0 0.0
        %3699 = vmatprep.subr.mxu0 0.0
        %3700 = vmatpush1.xpose.msra.mxu0 0.0
        %3701 = vmatprep.subr.mxu0 0.0
        %3702 = vmatpush1.xpose.msra.mxu0 0.0
        %3703 = vmatprep.subr.mxu0 0.0
        %3704 = vmatpush1.xpose.msra.mxu0 0.0
        %3705 = vmatprep.mubr.f32.mxu0 0.0
        %3706 = vmatmul.mubr.f32.gmra.mrb[0].mxu0 %v3637
        %v3707 = vpop.f32.mrb[0].mxu0
        %v3708 = vadd.f32 0.0, %v3707
        %v3709 = vpop.f32.mrb[0].mxu0
        %3710 = vdwg.mxu0
        %v3711 = vsel %vm711, %v3708, -inf
        %3712 = vmax.xlane.f32.xlu0 %v3711
        %v3713 = vpop.xlane.xlu0 %3712
        %v3714 = vsub.f32 %v3708, %v3713
        %v3715 = vmul.f32 %v3714, 1.442695
        %v3716 = vpow.pop %v3715
        %v3717 = vsel %vm711, %v3716, 0.0
        %3718 = vadd.xlane.f32.xlu0 %v3717
        %v3719 = vpop.xlane.xlu0 %3718
        %v3720 = vrcp.pop %v3719
        %v3721 = vmul.f32 %v3716, %v3720
        %3722 = vrot.lane.b32.xlu0 %v3153, 48
        %v3723 = vpop.permute.xlu0 %3722
        %v3726 = vsel %vm711, %v3721, 0
        %3728 = vmatprep.subr.mxu0 0.0
        %3729 = vmatpush1.msra.mxu0 %v3723
        %3730 = vmatprep.subr.mxu0 0.0
        %3731 = vmatpush1.msra.mxu0 0.0
        %3732 = vmatprep.subr.mxu0 0.0
        %3733 = vmatpush1.msra.mxu0 0.0
        %3734 = vmatprep.subr.mxu0 0.0
        %3735 = vmatpush1.msra.mxu0 0.0
        %3736 = vmatprep.subr.mxu0 0.0
        %3737 = vmatpush1.msra.mxu0 0.0
        %3738 = vmatprep.subr.mxu0 0.0
        %3739 = vmatpush1.msra.mxu0 0.0
        %3740 = vmatprep.subr.mxu0 0.0
        %3741 = vmatpush1.msra.mxu0 0.0
        %3742 = vmatprep.subr.mxu0 0.0
        %3743 = vmatpush1.msra.mxu0 0.0
        %3744 = vmatprep.subr.mxu0 0.0
        %3745 = vmatpush1.msra.mxu0 0.0
        %3746 = vmatprep.subr.mxu0 0.0
        %3747 = vmatpush1.msra.mxu0 0.0
        %3748 = vmatprep.subr.mxu0 0.0
        %3749 = vmatpush1.msra.mxu0 0.0
        %3750 = vmatprep.subr.mxu0 0.0
        %3751 = vmatpush1.msra.mxu0 0.0
        %3752 = vmatprep.subr.mxu0 0.0
        %3753 = vmatpush1.msra.mxu0 0.0
        %3754 = vmatprep.subr.mxu0 0.0
        %3755 = vmatpush1.msra.mxu0 0.0
        %3756 = vmatprep.subr.mxu0 0.0
        %3757 = vmatpush1.msra.mxu0 0.0
        %3758 = vmatprep.subr.mxu0 0.0
        %3759 = vmatpush1.msra.mxu0 0.0
        %3760 = vmatprep.subr.mxu0 0.0
        %3761 = vmatpush1.msra.mxu0 0.0
        %3762 = vmatprep.subr.mxu0 0.0
        %3763 = vmatpush1.msra.mxu0 0.0
        %3764 = vmatprep.subr.mxu0 0.0
        %3765 = vmatpush1.msra.mxu0 0.0
        %3766 = vmatprep.subr.mxu0 0.0
        %3767 = vmatpush1.msra.mxu0 0.0
        %3768 = vmatprep.subr.mxu0 0.0
        %3769 = vmatpush1.msra.mxu0 0.0
        %3770 = vmatprep.subr.mxu0 0.0
        %3771 = vmatpush1.msra.mxu0 0.0
        %3772 = vmatprep.subr.mxu0 0.0
        %3773 = vmatpush1.msra.mxu0 0.0
        %3774 = vmatprep.subr.mxu0 0.0
        %3775 = vmatpush1.msra.mxu0 0.0
        %3776 = vmatprep.subr.mxu0 0.0
        %3777 = vmatpush1.msra.mxu0 0.0
        %3778 = vmatprep.subr.mxu0 0.0
        %3779 = vmatpush1.msra.mxu0 0.0
        %3780 = vmatprep.subr.mxu0 0.0
        %3781 = vmatpush1.msra.mxu0 0.0
        %3782 = vmatprep.subr.mxu0 0.0
        %3783 = vmatpush1.msra.mxu0 0.0
        %3784 = vmatprep.subr.mxu0 0.0
        %3785 = vmatpush1.msra.mxu0 0.0
        %3786 = vmatprep.subr.mxu0 0.0
        %3787 = vmatpush1.msra.mxu0 0.0
        %3788 = vmatprep.subr.mxu0 0.0
        %3789 = vmatpush1.msra.mxu0 0.0
        %3790 = vmatprep.subr.mxu0 0.0
        %3791 = vmatpush1.msra.mxu0 0.0
        %3792 = vmatprep.mubr.f32.mxu0 0.0
        %3793 = vmatmul.mubr.f32.gmra.mrb[0].mxu0 %v3726
        %v3794 = vpop.f32.mrb[0].mxu0
        %v3795 = vadd.f32 0.0, %v3794
        %v3796 = vpop.f32.mrb[0].mxu0
        %3797 = vdwg.mxu0
        %v3799 = vsel %vm711, %v3795, 0
        %3801 = vmatprep.subr.mxu0 0.0
        %3802 = vmatpush1.msra.mxu0 %v3073
        %3803 = vmatprep.subr.mxu0 0.0
        %3804 = vmatpush1.msra.mxu0 0.0
        %3805 = vmatprep.subr.mxu0 0.0
        %3806 = vmatpush1.msra.mxu0 0.0
        %3807 = vmatprep.subr.mxu0 0.0
        %3808 = vmatpush1.msra.mxu0 0.0
        %3809 = vmatprep.subr.mxu0 0.0
        %3810 = vmatpush1.msra.mxu0 0.0
        %3811 = vmatprep.subr.mxu0 0.0
        %3812 = vmatpush1.msra.mxu0 0.0
        %3813 = vmatprep.subr.mxu0 0.0
        %3814 = vmatpush1.msra.mxu0 0.0
        %3815 = vmatprep.subr.mxu0 0.0
        %3816 = vmatpush1.msra.mxu0 0.0
        %3817 = vmatprep.subr.mxu0 0.0
        %3818 = vmatpush1.msra.mxu0 0.0
        %3819 = vmatprep.subr.mxu0 0.0
        %3820 = vmatpush1.msra.mxu0 0.0
        %3821 = vmatprep.subr.mxu0 0.0
        %3822 = vmatpush1.msra.mxu0 0.0
        %3823 = vmatprep.subr.mxu0 0.0
        %3824 = vmatpush1.msra.mxu0 0.0
        %3825 = vmatprep.subr.mxu0 0.0
        %3826 = vmatpush1.msra.mxu0 0.0
        %3827 = vmatprep.subr.mxu0 0.0
        %3828 = vmatpush1.msra.mxu0 0.0
        %3829 = vmatprep.subr.mxu0 0.0
        %3830 = vmatpush1.msra.mxu0 0.0
        %3831 = vmatprep.subr.mxu0 0.0
        %3832 = vmatpush1.msra.mxu0 0.0
        %3833 = vmatprep.subr.mxu0 0.0
        %3834 = vmatpush1.msra.mxu0 0.0
        %3835 = vmatprep.subr.mxu0 0.0
        %3836 = vmatpush1.msra.mxu0 0.0
        %3837 = vmatprep.subr.mxu0 0.0
        %3838 = vmatpush1.msra.mxu0 0.0
        %3839 = vmatprep.subr.mxu0 0.0
        %3840 = vmatpush1.msra.mxu0 0.0
        %3841 = vmatprep.subr.mxu0 0.0
        %3842 = vmatpush1.msra.mxu0 0.0
        %3843 = vmatprep.subr.mxu0 0.0
        %3844 = vmatpush1.msra.mxu0 0.0
        %3845 = vmatprep.subr.mxu0 0.0
        %3846 = vmatpush1.msra.mxu0 0.0
        %3847 = vmatprep.subr.mxu0 0.0
        %3848 = vmatpush1.msra.mxu0 0.0
        %3849 = vmatprep.subr.mxu0 0.0
        %3850 = vmatpush1.msra.mxu0 0.0
        %3851 = vmatprep.subr.mxu0 0.0
        %3852 = vmatpush1.msra.mxu0 0.0
        %3853 = vmatprep.subr.mxu0 0.0
        %3854 = vmatpush1.msra.mxu0 0.0
        %3855 = vmatprep.subr.mxu0 0.0
        %3856 = vmatpush1.msra.mxu0 0.0
        %3857 = vmatprep.subr.mxu0 0.0
        %3858 = vmatpush1.msra.mxu0 0.0
        %3859 = vmatprep.subr.mxu0 0.0
        %3860 = vmatpush1.msra.mxu0 0.0
        %3861 = vmatprep.subr.mxu0 0.0
        %3862 = vmatpush1.msra.mxu0 0.0
        %3863 = vmatprep.subr.mxu0 0.0
        %3864 = vmatpush1.msra.mxu0 0.0
        %3865 = vmatprep.mubr.f32.mxu0 0.0
        %3866 = vmatmul.mubr.f32.gmra.mrb[0].mxu0 %v3799
        %v3867 = vpop.f32.mrb[0].mxu0
        %v3868 = vadd.f32 0.0, %v3867
        %v3869 = vpop.f32.mrb[0].mxu0
        %3870 = vdwg.mxu0
        %v3871 = vadd.f32 %v3630, %v3868
        %3872 = vrot.lane.b32.xlu0 %v3156, 104
        %v3873 = vpop.permute.xlu0 %3872
        %3874 = vrot.lane.b32.xlu0 %v3153, 72
        %v3875 = vpop.permute.xlu0 %3874
        %v3876 = vsel %vm711, %v3873, 0
        %v3878 = vsel %vm711, %v3875, 0
        %3880 = vmatprep.subr.mxu0 0.0
        %3881 = vmatpush1.xpose.msra.mxu0 %v3878
        %3882 = vmatprep.subr.mxu0 0.0
        %3883 = vmatpush1.xpose.msra.mxu0 0.0
        %3884 = vmatprep.subr.mxu0 0.0
        %3885 = vmatpush1.xpose.msra.mxu0 0.0
        %3886 = vmatprep.subr.mxu0 0.0
        %3887 = vmatpush1.xpose.msra.mxu0 0.0
        %3888 = vmatprep.subr.mxu0 0.0
        %3889 = vmatpush1.xpose.msra.mxu0 0.0
        %3890 = vmatprep.subr.mxu0 0.0
        %3891 = vmatpush1.xpose.msra.mxu0 0.0
        %3892 = vmatprep.subr.mxu0 0.0
        %3893 = vmatpush1.xpose.msra.mxu0 0.0
        %3894 = vmatprep.subr.mxu0 0.0
        %3895 = vmatpush1.xpose.msra.mxu0 0.0
        %3896 = vmatprep.subr.mxu0 0.0
        %3897 = vmatpush1.xpose.msra.mxu0 0.0
        %3898 = vmatprep.subr.mxu0 0.0
        %3899 = vmatpush1.xpose.msra.mxu0 0.0
        %3900 = vmatprep.subr.mxu0 0.0
        %3901 = vmatpush1.xpose.msra.mxu0 0.0
        %3902 = vmatprep.subr.mxu0 0.0
        %3903 = vmatpush1.xpose.msra.mxu0 0.0
        %3904 = vmatprep.subr.mxu0 0.0
        %3905 = vmatpush1.xpose.msra.mxu0 0.0
        %3906 = vmatprep.subr.mxu0 0.0
        %3907 = vmatpush1.xpose.msra.mxu0 0.0
        %3908 = vmatprep.subr.mxu0 0.0
        %3909 = vmatpush1.xpose.msra.mxu0 0.0
        %3910 = vmatprep.subr.mxu0 0.0
        %3911 = vmatpush1.xpose.msra.mxu0 0.0
        %3912 = vmatprep.subr.mxu0 0.0
        %3913 = vmatpush1.xpose.msra.mxu0 0.0
        %3914 = vmatprep.subr.mxu0 0.0
        %3915 = vmatpush1.xpose.msra.mxu0 0.0
        %3916 = vmatprep.subr.mxu0 0.0
        %3917 = vmatpush1.xpose.msra.mxu0 0.0
        %3918 = vmatprep.subr.mxu0 0.0
        %3919 = vmatpush1.xpose.msra.mxu0 0.0
        %3920 = vmatprep.subr.mxu0 0.0
        %3921 = vmatpush1.xpose.msra.mxu0 0.0
        %3922 = vmatprep.subr.mxu0 0.0
        %3923 = vmatpush1.xpose.msra.mxu0 0.0
        %3924 = vmatprep.subr.mxu0 0.0
        %3925 = vmatpush1.xpose.msra.mxu0 0.0
        %3926 = vmatprep.subr.mxu0 0.0
        %3927 = vmatpush1.xpose.msra.mxu0 0.0
        %3928 = vmatprep.subr.mxu0 0.0
        %3929 = vmatpush1.xpose.msra.mxu0 0.0
        %3930 = vmatprep.subr.mxu0 0.0
        %3931 = vmatpush1.xpose.msra.mxu0 0.0
        %3932 = vmatprep.subr.mxu0 0.0
        %3933 = vmatpush1.xpose.msra.mxu0 0.0
        %3934 = vmatprep.subr.mxu0 0.0
        %3935 = vmatpush1.xpose.msra.mxu0 0.0
        %3936 = vmatprep.subr.mxu0 0.0
        %3937 = vmatpush1.xpose.msra.mxu0 0.0
        %3938 = vmatprep.subr.mxu0 0.0
        %3939 = vmatpush1.xpose.msra.mxu0 0.0
        %3940 = vmatprep.subr.mxu0 0.0
        %3941 = vmatpush1.xpose.msra.mxu0 0.0
        %3942 = vmatprep.subr.mxu0 0.0
        %3943 = vmatpush1.xpose.msra.mxu0 0.0
        %3944 = vmatprep.mubr.f32.mxu0 0.0
        %3945 = vmatmul.mubr.f32.gmra.mrb[0].mxu0 %v3876
        %v3946 = vpop.f32.mrb[0].mxu0
        %v3947 = vadd.f32 0.0, %v3946
        %v3948 = vpop.f32.mrb[0].mxu0
        %3949 = vdwg.mxu0
        %v3950 = vsel %vm711, %v3947, -inf
        %3951 = vmax.xlane.f32.xlu0 %v3950
        %v3952 = vpop.xlane.xlu0 %3951
        %v3953 = vsub.f32 %v3947, %v3952
        %v3954 = vmul.f32 %v3953, 1.442695
        %v3955 = vpow.pop %v3954
        %v3956 = vsel %vm711, %v3955, 0.0
        %3957 = vadd.xlane.f32.xlu0 %v3956
        %v3958 = vpop.xlane.xlu0 %3957
        %v3959 = vrcp.pop %v3958
        %v3960 = vmul.f32 %v3955, %v3959
        %3961 = vrot.lane.b32.xlu0 %v3153, 40
        %v3962 = vpop.permute.xlu0 %3961
        %v3965 = vsel %vm711, %v3960, 0
        %3967 = vmatprep.subr.mxu0 0.0
        %3968 = vmatpush1.msra.mxu0 %v3962
        %3969 = vmatprep.subr.mxu0 0.0
        %3970 = vmatpush1.msra.mxu0 0.0
        %3971 = vmatprep.subr.mxu0 0.0
        %3972 = vmatpush1.msra.mxu0 0.0
        %3973 = vmatprep.subr.mxu0 0.0
        %3974 = vmatpush1.msra.mxu0 0.0
        %3975 = vmatprep.subr.mxu0 0.0
        %3976 = vmatpush1.msra.mxu0 0.0
        %3977 = vmatprep.subr.mxu0 0.0
        %3978 = vmatpush1.msra.mxu0 0.0
        %3979 = vmatprep.subr.mxu0 0.0
        %3980 = vmatpush1.msra.mxu0 0.0
        %3981 = vmatprep.subr.mxu0 0.0
        %3982 = vmatpush1.msra.mxu0 0.0
        %3983 = vmatprep.subr.mxu0 0.0
        %3984 = vmatpush1.msra.mxu0 0.0
        %3985 = vmatprep.subr.mxu0 0.0
        %3986 = vmatpush1.msra.mxu0 0.0
        %3987 = vmatprep.subr.mxu0 0.0
        %3988 = vmatpush1.msra.mxu0 0.0
        %3989 = vmatprep.subr.mxu0 0.0
        %3990 = vmatpush1.msra.mxu0 0.0
        %3991 = vmatprep.subr.mxu0 0.0
        %3992 = vmatpush1.msra.mxu0 0.0
        %3993 = vmatprep.subr.mxu0 0.0
        %3994 = vmatpush1.msra.mxu0 0.0
        %3995 = vmatprep.subr.mxu0 0.0
        %3996 = vmatpush1.msra.mxu0 0.0
        %3997 = vmatprep.subr.mxu0 0.0
        %3998 = vmatpush1.msra.mxu0 0.0
        %3999 = vmatprep.subr.mxu0 0.0
        %4000 = vmatpush1.msra.mxu0 0.0
        %4001 = vmatprep.subr.mxu0 0.0
        %4002 = vmatpush1.msra.mxu0 0.0
        %4003 = vmatprep.subr.mxu0 0.0
        %4004 = vmatpush1.msra.mxu0 0.0
        %4005 = vmatprep.subr.mxu0 0.0
        %4006 = vmatpush1.msra.mxu0 0.0
        %4007 = vmatprep.subr.mxu0 0.0
        %4008 = vmatpush1.msra.mxu0 0.0
        %4009 = vmatprep.subr.mxu0 0.0
        %4010 = vmatpush1.msra.mxu0 0.0
        %4011 = vmatprep.subr.mxu0 0.0
        %4012 = vmatpush1.msra.mxu0 0.0
        %4013 = vmatprep.subr.mxu0 0.0
        %4014 = vmatpush1.msra.mxu0 0.0
        %4015 = vmatprep.subr.mxu0 0.0
        %4016 = vmatpush1.msra.mxu0 0.0
        %4017 = vmatprep.subr.mxu0 0.0
        %4018 = vmatpush1.msra.mxu0 0.0
        %4019 = vmatprep.subr.mxu0 0.0
        %4020 = vmatpush1.msra.mxu0 0.0
        %4021 = vmatprep.subr.mxu0 0.0
        %4022 = vmatpush1.msra.mxu0 0.0
        %4023 = vmatprep.subr.mxu0 0.0
        %4024 = vmatpush1.msra.mxu0 0.0
        %4025 = vmatprep.subr.mxu0 0.0
        %4026 = vmatpush1.msra.mxu0 0.0
        %4027 = vmatprep.subr.mxu0 0.0
        %4028 = vmatpush1.msra.mxu0 0.0
        %4029 = vmatprep.subr.mxu0 0.0
        %4030 = vmatpush1.msra.mxu0 0.0
        %4031 = vmatprep.mubr.f32.mxu0 0.0
        %4032 = vmatmul.mubr.f32.gmra.mrb[0].mxu0 %v3965
        %v4033 = vpop.f32.mrb[0].mxu0
        %v4034 = vadd.f32 0.0, %v4033
        %v4035 = vpop.f32.mrb[0].mxu0
        %4036 = vdwg.mxu0
        %v4038 = vsel %vm711, %v4034, 0
        %4040 = vmatprep.subr.mxu0 0.0
        %4041 = vmatpush1.msra.mxu0 %v3074
        %4042 = vmatprep.subr.mxu0 0.0
        %4043 = vmatpush1.msra.mxu0 0.0
        %4044 = vmatprep.subr.mxu0 0.0
        %4045 = vmatpush1.msra.mxu0 0.0
        %4046 = vmatprep.subr.mxu0 0.0
        %4047 = vmatpush1.msra.mxu0 0.0
        %4048 = vmatprep.subr.mxu0 0.0
        %4049 = vmatpush1.msra.mxu0 0.0
        %4050 = vmatprep.subr.mxu0 0.0
        %4051 = vmatpush1.msra.mxu0 0.0
        %4052 = vmatprep.subr.mxu0 0.0
        %4053 = vmatpush1.msra.mxu0 0.0
        %4054 = vmatprep.subr.mxu0 0.0
        %4055 = vmatpush1.msra.mxu0 0.0
        %4056 = vmatprep.subr.mxu0 0.0
        %4057 = vmatpush1.msra.mxu0 0.0
        %4058 = vmatprep.subr.mxu0 0.0
        %4059 = vmatpush1.msra.mxu0 0.0
        %4060 = vmatprep.subr.mxu0 0.0
        %4061 = vmatpush1.msra.mxu0 0.0
        %4062 = vmatprep.subr.mxu0 0.0
        %4063 = vmatpush1.msra.mxu0 0.0
        %4064 = vmatprep.subr.mxu0 0.0
        %4065 = vmatpush1.msra.mxu0 0.0
        %4066 = vmatprep.subr.mxu0 0.0
        %4067 = vmatpush1.msra.mxu0 0.0
        %4068 = vmatprep.subr.mxu0 0.0
        %4069 = vmatpush1.msra.mxu0 0.0
        %4070 = vmatprep.subr.mxu0 0.0
        %4071 = vmatpush1.msra.mxu0 0.0
        %4072 = vmatprep.subr.mxu0 0.0
        %4073 = vmatpush1.msra.mxu0 0.0
        %4074 = vmatprep.subr.mxu0 0.0
        %4075 = vmatpush1.msra.mxu0 0.0
        %4076 = vmatprep.subr.mxu0 0.0
        %4077 = vmatpush1.msra.mxu0 0.0
        %4078 = vmatprep.subr.mxu0 0.0
        %4079 = vmatpush1.msra.mxu0 0.0
        %4080 = vmatprep.subr.mxu0 0.0
        %4081 = vmatpush1.msra.mxu0 0.0
        %4082 = vmatprep.subr.mxu0 0.0
        %4083 = vmatpush1.msra.mxu0 0.0
        %4084 = vmatprep.subr.mxu0 0.0
        %4085 = vmatpush1.msra.mxu0 0.0
        %4086 = vmatprep.subr.mxu0 0.0
        %4087 = vmatpush1.msra.mxu0 0.0
        %4088 = vmatprep.subr.mxu0 0.0
        %4089 = vmatpush1.msra.mxu0 0.0
        %4090 = vmatprep.subr.mxu0 0.0
        %4091 = vmatpush1.msra.mxu0 0.0
        %4092 = vmatprep.subr.mxu0 0.0
        %4093 = vmatpush1.msra.mxu0 0.0
        %4094 = vmatprep.subr.mxu0 0.0
        %4095 = vmatpush1.msra.mxu0 0.0
        %4096 = vmatprep.subr.mxu0 0.0
        %4097 = vmatpush1.msra.mxu0 0.0
        %4098 = vmatprep.subr.mxu0 0.0
        %4099 = vmatpush1.msra.mxu0 0.0
        %4100 = vmatprep.subr.mxu0 0.0
        %4101 = vmatpush1.msra.mxu0 0.0
        %4102 = vmatprep.subr.mxu0 0.0
        %4103 = vmatpush1.msra.mxu0 0.0
        %4104 = vmatprep.mubr.f32.mxu0 0.0
        %4105 = vmatmul.mubr.f32.gmra.mrb[0].mxu0 %v4038
        %v4106 = vpop.f32.mrb[0].mxu0
        %v4107 = vadd.f32 0.0, %v4106
        %v4108 = vpop.f32.mrb[0].mxu0
        %4109 = vdwg.mxu0
        %v4110 = vadd.f32 %v3871, %v4107
        %v4112 = vlaneseq
        %v4113 = vshrl.u32 %v4112, 7
        %v4114 = vsub.s32 0, %v4113
        %v4115 = vrot.slane %v3076, %v4114
        %v4117 = vadd.f32 %v4110, %v4115
        %v4118 = vadd.f32 %v3058, %v4117
        %v4119 = vsel %vm633, %v4118, 0.0
        %4120 = vadd.xlane.f32.xlu0 %v4119
        %v4121 = vpop.xlane.xlu0 %4120
        %v4122 = vmul.f32 %v4121, %v1674
        %v4123 = vsub.f32 %v4118, %v4122
        %v4124 = vmul.f32 %v4123, %v4123
        %v4125 = vsel %vm633, %v4124, 0.0
        %4126 = vadd.xlane.f32.xlu0 %v4125
        %v4127 = vpop.xlane.xlu0 %4126
        %v4128 = vmul.f32 %v4127, %v1674
        %v4129 = vadd.f32 %v4128, 1e-05
        %v4130 = vrsqrt.pop %v4129
        %v4131 = vmul.f32 %v4123, %v4130
        %v4132 = vlaneseq
        %v4133 = vshrl.u32 %v4132, 7
        %v4134 = vsub.s32 0, %v4133
        %v4135 = vrot.slane %v3060, %v4134
        %v4136 = vmul.f32 %v4131, %v4135
        %v4137 = vlaneseq
        %v4138 = vshrl.u32 %v4137, 7
        %v4139 = vsub.s32 0, %v4138
        %v4140 = vrot.slane %v3062, %v4139
        %v4141 = vadd.f32 %v4136, %v4140
        %s4142 = scalar_lea.vmem %s3, 96
        %v4143 = vld [vmem:[%s4142] sm:$0xff]
        %v4144 = vld [vmem:[%s4142 + $0x8] sm:$0xff]
        %v4145 = vld [vmem:[%s4142 + $0x10] sm:$0xff]
        %v4146 = vld [vmem:[%s4142 + $0x18] sm:$0xff]
        %s4147 = scalar_lea.vmem [#allocation8], 3
        %v4148 = vld [vmem:[%s4147] sm:$0x1]
        %s4149 = scalar_lea.vmem [#allocation10], 96
        %v4150 = vld [vmem:[%s4149] sm:$0xff]
        %v4151 = vld [vmem:[%s4149 + $0x8] sm:$0xff]
        %v4152 = vld [vmem:[%s4149 + $0x10] sm:$0xff]
        %v4153 = vld [vmem:[%s4149 + $0x18] sm:$0xff]
        %s4154 = scalar_lea.vmem %s6, 3
        %v4155 = vld [vmem:[%s4154] sm:$0x1]
        %v4157 = vlaneseq
        %v4158 = vshrl.u32 %v4157, 7
        %v4159 = vsub.s32 0, %v4158
        %v4160 = vrot.slane %v4148, %v4159
        %v4163 = vsel %vm633, %v4141, 0
        %4165 = vmatprep.subr.mxu0 0.0
        %4166 = vmatpush1.msra.mxu0 %v4143
        %4167 = vmatprep.subr.mxu0 0.0
        %4168 = vmatpush1.msra.mxu0 %v4144
        %4169 = vmatprep.subr.mxu0 0.0
        %4170 = vmatpush1.msra.mxu0 %v4145
        %4171 = vmatprep.subr.mxu0 0.0
        %4172 = vmatpush1.msra.mxu0 %v4146
        %4173 = vmatprep.subr.mxu0 0.0
        %4174 = vmatpush1.msra.mxu0 0.0
        %4175 = vmatprep.subr.mxu0 0.0
        %4176 = vmatpush1.msra.mxu0 0.0
        %4177 = vmatprep.subr.mxu0 0.0
        %4178 = vmatpush1.msra.mxu0 0.0
        %4179 = vmatprep.subr.mxu0 0.0
        %4180 = vmatpush1.msra.mxu0 0.0
        %4181 = vmatprep.subr.mxu0 0.0
        %4182 = vmatpush1.msra.mxu0 0.0
        %4183 = vmatprep.subr.mxu0 0.0
        %4184 = vmatpush1.msra.mxu0 0.0
        %4185 = vmatprep.subr.mxu0 0.0
        %4186 = vmatpush1.msra.mxu0 0.0
        %4187 = vmatprep.subr.mxu0 0.0
        %4188 = vmatpush1.msra.mxu0 0.0
        %4189 = vmatprep.subr.mxu0 0.0
        %4190 = vmatpush1.msra.mxu0 0.0
        %4191 = vmatprep.subr.mxu0 0.0
        %4192 = vmatpush1.msra.mxu0 0.0
        %4193 = vmatprep.subr.mxu0 0.0
        %4194 = vmatpush1.msra.mxu0 0.0
        %4195 = vmatprep.subr.mxu0 0.0
        %4196 = vmatpush1.msra.mxu0 0.0
        %4197 = vmatprep.subr.mxu0 0.0
        %4198 = vmatpush1.msra.mxu0 0.0
        %4199 = vmatprep.subr.mxu0 0.0
        %4200 = vmatpush1.msra.mxu0 0.0
        %4201 = vmatprep.subr.mxu0 0.0
        %4202 = vmatpush1.msra.mxu0 0.0
        %4203 = vmatprep.subr.mxu0 0.0
        %4204 = vmatpush1.msra.mxu0 0.0
        %4205 = vmatprep.subr.mxu0 0.0
        %4206 = vmatpush1.msra.mxu0 0.0
        %4207 = vmatprep.subr.mxu0 0.0
        %4208 = vmatpush1.msra.mxu0 0.0
        %4209 = vmatprep.subr.mxu0 0.0
        %4210 = vmatpush1.msra.mxu0 0.0
        %4211 = vmatprep.subr.mxu0 0.0
        %4212 = vmatpush1.msra.mxu0 0.0
        %4213 = vmatprep.subr.mxu0 0.0
        %4214 = vmatpush1.msra.mxu0 0.0
        %4215 = vmatprep.subr.mxu0 0.0
        %4216 = vmatpush1.msra.mxu0 0.0
        %4217 = vmatprep.subr.mxu0 0.0
        %4218 = vmatpush1.msra.mxu0 0.0
        %4219 = vmatprep.subr.mxu0 0.0
        %4220 = vmatpush1.msra.mxu0 0.0
        %4221 = vmatprep.subr.mxu0 0.0
        %4222 = vmatpush1.msra.mxu0 0.0
        %4223 = vmatprep.subr.mxu0 0.0
        %4224 = vmatpush1.msra.mxu0 0.0
        %4225 = vmatprep.subr.mxu0 0.0
        %4226 = vmatpush1.msra.mxu0 0.0
        %4227 = vmatprep.subr.mxu0 0.0
        %4228 = vmatpush1.msra.mxu0 0.0
        %4229 = vmatprep.mubr.f32.mxu0 0.0
        %4230 = vmatmul.mubr.f32.gmra.mrb[0].mxu0 %v4163
        %v4231 = vpop.f32.mrb[0].mxu0
        %v4232 = vadd.f32 %v4160, %v4231
        %v4233 = vpop.f32.mrb[0].mxu0
        %4234 = vdwg.mxu0
        %v4235 = vmul.f32 %v4232, 0.35355338
        %4240 = vrot.lane.b32.xlu0 %v4143, 96
        %v4241 = vpop.permute.xlu0 %4240
        %4242 = vrot.lane.b32.xlu0 %v4144, 96
        %v4243 = vpop.permute.xlu0 %4242
        %4244 = vrot.lane.b32.xlu0 %v4145, 96
        %v4245 = vpop.permute.xlu0 %4244
        %4246 = vrot.lane.b32.xlu0 %v4146, 96
        %v4247 = vpop.permute.xlu0 %4246
        %4252 = vrot.lane.b32.xlu0 %v4160, 96
        %v4253 = vpop.permute.xlu0 %4252
        %4255 = vmatprep.subr.mxu0 0.0
        %4256 = vmatpush1.msra.mxu0 %v4241
        %4257 = vmatprep.subr.mxu0 0.0
        %4258 = vmatpush1.msra.mxu0 %v4243
        %4259 = vmatprep.subr.mxu0 0.0
        %4260 = vmatpush1.msra.mxu0 %v4245
        %4261 = vmatprep.subr.mxu0 0.0
        %4262 = vmatpush1.msra.mxu0 %v4247
        %4263 = vmatprep.subr.mxu0 0.0
        %4264 = vmatpush1.msra.mxu0 0.0
        %4265 = vmatprep.subr.mxu0 0.0
        %4266 = vmatpush1.msra.mxu0 0.0
        %4267 = vmatprep.subr.mxu0 0.0
        %4268 = vmatpush1.msra.mxu0 0.0
        %4269 = vmatprep.subr.mxu0 0.0
        %4270 = vmatpush1.msra.mxu0 0.0
        %4271 = vmatprep.subr.mxu0 0.0
        %4272 = vmatpush1.msra.mxu0 0.0
        %4273 = vmatprep.subr.mxu0 0.0
        %4274 = vmatpush1.msra.mxu0 0.0
        %4275 = vmatprep.subr.mxu0 0.0
        %4276 = vmatpush1.msra.mxu0 0.0
        %4277 = vmatprep.subr.mxu0 0.0
        %4278 = vmatpush1.msra.mxu0 0.0
        %4279 = vmatprep.subr.mxu0 0.0
        %4280 = vmatpush1.msra.mxu0 0.0
        %4281 = vmatprep.subr.mxu0 0.0
        %4282 = vmatpush1.msra.mxu0 0.0
        %4283 = vmatprep.subr.mxu0 0.0
        %4284 = vmatpush1.msra.mxu0 0.0
        %4285 = vmatprep.subr.mxu0 0.0
        %4286 = vmatpush1.msra.mxu0 0.0
        %4287 = vmatprep.subr.mxu0 0.0
        %4288 = vmatpush1.msra.mxu0 0.0
        %4289 = vmatprep.subr.mxu0 0.0
        %4290 = vmatpush1.msra.mxu0 0.0
        %4291 = vmatprep.subr.mxu0 0.0
        %4292 = vmatpush1.msra.mxu0 0.0
        %4293 = vmatprep.subr.mxu0 0.0
        %4294 = vmatpush1.msra.mxu0 0.0
        %4295 = vmatprep.subr.mxu0 0.0
        %4296 = vmatpush1.msra.mxu0 0.0
        %4297 = vmatprep.subr.mxu0 0.0
        %4298 = vmatpush1.msra.mxu0 0.0
        %4299 = vmatprep.subr.mxu0 0.0
        %4300 = vmatpush1.msra.mxu0 0.0
        %4301 = vmatprep.subr.mxu0 0.0
        %4302 = vmatpush1.msra.mxu0 0.0
        %4303 = vmatprep.subr.mxu0 0.0
        %4304 = vmatpush1.msra.mxu0 0.0
        %4305 = vmatprep.subr.mxu0 0.0
        %4306 = vmatpush1.msra.mxu0 0.0
        %4307 = vmatprep.subr.mxu0 0.0
        %4308 = vmatpush1.msra.mxu0 0.0
        %4309 = vmatprep.subr.mxu0 0.0
        %4310 = vmatpush1.msra.mxu0 0.0
        %4311 = vmatprep.subr.mxu0 0.0
        %4312 = vmatpush1.msra.mxu0 0.0
        %4313 = vmatprep.subr.mxu0 0.0
        %4314 = vmatpush1.msra.mxu0 0.0
        %4315 = vmatprep.subr.mxu0 0.0
        %4316 = vmatpush1.msra.mxu0 0.0
        %4317 = vmatprep.subr.mxu0 0.0
        %4318 = vmatpush1.msra.mxu0 0.0
        %4319 = vmatprep.mubr.f32.mxu0 0.0
        %4320 = vmatmul.mubr.f32.gmra.mrb[0].mxu0 %v3084
        %v4321 = vpop.f32.mrb[0].mxu0
        %v4322 = vadd.f32 %v4253, %v4321
        %v4323 = vpop.f32.mrb[0].mxu0
        %4324 = vdwg.mxu0
        %v4326 = vsel %vm711, %v4235, 0
        %v4329 = vsel %vm711, %v4322, 0
        %4331 = vmatprep.subr.mxu0 0.0
        %4332 = vmatpush1.xpose.msra.mxu0 %v4329
        %4333 = vmatprep.subr.mxu0 0.0
        %4334 = vmatpush1.xpose.msra.mxu0 0.0
        %4335 = vmatprep.subr.mxu0 0.0
        %4336 = vmatpush1.xpose.msra.mxu0 0.0
        %4337 = vmatprep.subr.mxu0 0.0
        %4338 = vmatpush1.xpose.msra.mxu0 0.0
        %4339 = vmatprep.subr.mxu0 0.0
        %4340 = vmatpush1.xpose.msra.mxu0 0.0
        %4341 = vmatprep.subr.mxu0 0.0
        %4342 = vmatpush1.xpose.msra.mxu0 0.0
        %4343 = vmatprep.subr.mxu0 0.0
        %4344 = vmatpush1.xpose.msra.mxu0 0.0
        %4345 = vmatprep.subr.mxu0 0.0
        %4346 = vmatpush1.xpose.msra.mxu0 0.0
        %4347 = vmatprep.subr.mxu0 0.0
        %4348 = vmatpush1.xpose.msra.mxu0 0.0
        %4349 = vmatprep.subr.mxu0 0.0
        %4350 = vmatpush1.xpose.msra.mxu0 0.0
        %4351 = vmatprep.subr.mxu0 0.0
        %4352 = vmatpush1.xpose.msra.mxu0 0.0
        %4353 = vmatprep.subr.mxu0 0.0
        %4354 = vmatpush1.xpose.msra.mxu0 0.0
        %4355 = vmatprep.subr.mxu0 0.0
        %4356 = vmatpush1.xpose.msra.mxu0 0.0
        %4357 = vmatprep.subr.mxu0 0.0
        %4358 = vmatpush1.xpose.msra.mxu0 0.0
        %4359 = vmatprep.subr.mxu0 0.0
        %4360 = vmatpush1.xpose.msra.mxu0 0.0
        %4361 = vmatprep.subr.mxu0 0.0
        %4362 = vmatpush1.xpose.msra.mxu0 0.0
        %4363 = vmatprep.subr.mxu0 0.0
        %4364 = vmatpush1.xpose.msra.mxu0 0.0
        %4365 = vmatprep.subr.mxu0 0.0
        %4366 = vmatpush1.xpose.msra.mxu0 0.0
        %4367 = vmatprep.subr.mxu0 0.0
        %4368 = vmatpush1.xpose.msra.mxu0 0.0
        %4369 = vmatprep.subr.mxu0 0.0
        %4370 = vmatpush1.xpose.msra.mxu0 0.0
        %4371 = vmatprep.subr.mxu0 0.0
        %4372 = vmatpush1.xpose.msra.mxu0 0.0
        %4373 = vmatprep.subr.mxu0 0.0
        %4374 = vmatpush1.xpose.msra.mxu0 0.0
        %4375 = vmatprep.subr.mxu0 0.0
        %4376 = vmatpush1.xpose.msra.mxu0 0.0
        %4377 = vmatprep.subr.mxu0 0.0
        %4378 = vmatpush1.xpose.msra.mxu0 0.0
        %4379 = vmatprep.subr.mxu0 0.0
        %4380 = vmatpush1.xpose.msra.mxu0 0.0
        %4381 = vmatprep.subr.mxu0 0.0
        %4382 = vmatpush1.xpose.msra.mxu0 0.0
        %4383 = vmatprep.subr.mxu0 0.0
        %4384 = vmatpush1.xpose.msra.mxu0 0.0
        %4385 = vmatprep.subr.mxu0 0.0
        %4386 = vmatpush1.xpose.msra.mxu0 0.0
        %4387 = vmatprep.subr.mxu0 0.0
        %4388 = vmatpush1.xpose.msra.mxu0 0.0
        %4389 = vmatprep.subr.mxu0 0.0
        %4390 = vmatpush1.xpose.msra.mxu0 0.0
        %4391 = vmatprep.subr.mxu0 0.0
        %4392 = vmatpush1.xpose.msra.mxu0 0.0
        %4393 = vmatprep.subr.mxu0 0.0
        %4394 = vmatpush1.xpose.msra.mxu0 0.0
        %4395 = vmatprep.mubr.f32.mxu0 0.0
        %4396 = vmatmul.mubr.f32.gmra.mrb[0].mxu0 %v4326
        %v4397 = vpop.f32.mrb[0].mxu0
        %v4398 = vadd.f32 0.0, %v4397
        %v4399 = vpop.f32.mrb[0].mxu0
        %4400 = vdwg.mxu0
        %v4401 = vsel %vm711, %v4398, -inf
        %4402 = vmax.xlane.f32.xlu0 %v4401
        %v4403 = vpop.xlane.xlu0 %4402
        %v4404 = vsub.f32 %v4398, %v4403
        %v4405 = vmul.f32 %v4404, 1.442695
        %v4406 = vpow.pop %v4405
        %v4407 = vsel %vm711, %v4406, 0.0
        %4408 = vadd.xlane.f32.xlu0 %v4407
        %v4409 = vpop.xlane.xlu0 %4408
        %v4410 = vrcp.pop %v4409
        %v4411 = vmul.f32 %v4406, %v4410
        %4412 = vrot.lane.b32.xlu0 %v4322, 96
        %v4413 = vpop.permute.xlu0 %4412
        %v4416 = vsel %vm711, %v4411, 0
        %4418 = vmatprep.subr.mxu0 0.0
        %4419 = vmatpush1.msra.mxu0 %v4413
        %4420 = vmatprep.subr.mxu0 0.0
        %4421 = vmatpush1.msra.mxu0 0.0
        %4422 = vmatprep.subr.mxu0 0.0
        %4423 = vmatpush1.msra.mxu0 0.0
        %4424 = vmatprep.subr.mxu0 0.0
        %4425 = vmatpush1.msra.mxu0 0.0
        %4426 = vmatprep.subr.mxu0 0.0
        %4427 = vmatpush1.msra.mxu0 0.0
        %4428 = vmatprep.subr.mxu0 0.0
        %4429 = vmatpush1.msra.mxu0 0.0
        %4430 = vmatprep.subr.mxu0 0.0
        %4431 = vmatpush1.msra.mxu0 0.0
        %4432 = vmatprep.subr.mxu0 0.0
        %4433 = vmatpush1.msra.mxu0 0.0
        %4434 = vmatprep.subr.mxu0 0.0
        %4435 = vmatpush1.msra.mxu0 0.0
        %4436 = vmatprep.subr.mxu0 0.0
        %4437 = vmatpush1.msra.mxu0 0.0
        %4438 = vmatprep.subr.mxu0 0.0
        %4439 = vmatpush1.msra.mxu0 0.0
        %4440 = vmatprep.subr.mxu0 0.0
        %4441 = vmatpush1.msra.mxu0 0.0
        %4442 = vmatprep.subr.mxu0 0.0
        %4443 = vmatpush1.msra.mxu0 0.0
        %4444 = vmatprep.subr.mxu0 0.0
        %4445 = vmatpush1.msra.mxu0 0.0
        %4446 = vmatprep.subr.mxu0 0.0
        %4447 = vmatpush1.msra.mxu0 0.0
        %4448 = vmatprep.subr.mxu0 0.0
        %4449 = vmatpush1.msra.mxu0 0.0
        %4450 = vmatprep.subr.mxu0 0.0
        %4451 = vmatpush1.msra.mxu0 0.0
        %4452 = vmatprep.subr.mxu0 0.0
        %4453 = vmatpush1.msra.mxu0 0.0
        %4454 = vmatprep.subr.mxu0 0.0
        %4455 = vmatpush1.msra.mxu0 0.0
        %4456 = vmatprep.subr.mxu0 0.0
        %4457 = vmatpush1.msra.mxu0 0.0
        %4458 = vmatprep.subr.mxu0 0.0
        %4459 = vmatpush1.msra.mxu0 0.0
        %4460 = vmatprep.subr.mxu0 0.0
        %4461 = vmatpush1.msra.mxu0 0.0
        %4462 = vmatprep.subr.mxu0 0.0
        %4463 = vmatpush1.msra.mxu0 0.0
        %4464 = vmatprep.subr.mxu0 0.0
        %4465 = vmatpush1.msra.mxu0 0.0
        %4466 = vmatprep.subr.mxu0 0.0
        %4467 = vmatpush1.msra.mxu0 0.0
        %4468 = vmatprep.subr.mxu0 0.0
        %4469 = vmatpush1.msra.mxu0 0.0
        %4470 = vmatprep.subr.mxu0 0.0
        %4471 = vmatpush1.msra.mxu0 0.0
        %4472 = vmatprep.subr.mxu0 0.0
        %4473 = vmatpush1.msra.mxu0 0.0
        %4474 = vmatprep.subr.mxu0 0.0
        %4475 = vmatpush1.msra.mxu0 0.0
        %4476 = vmatprep.subr.mxu0 0.0
        %4477 = vmatpush1.msra.mxu0 0.0
        %4478 = vmatprep.subr.mxu0 0.0
        %4479 = vmatpush1.msra.mxu0 0.0
        %4480 = vmatprep.subr.mxu0 0.0
        %4481 = vmatpush1.msra.mxu0 0.0
        %4482 = vmatprep.mubr.f32.mxu0 0.0
        %4483 = vmatmul.mubr.f32.gmra.mrb[0].mxu0 %v4416
        %v4484 = vpop.f32.mrb[0].mxu0
        %v4485 = vadd.f32 0.0, %v4484
        %v4486 = vpop.f32.mrb[0].mxu0
        %4487 = vdwg.mxu0
        %4488 = vrot.lane.b32.xlu0 %v4235, 120
        %v4489 = vpop.permute.xlu0 %4488
        %4490 = vrot.lane.b32.xlu0 %v4322, 120
        %v4491 = vpop.permute.xlu0 %4490
        %v4492 = vsel %vm711, %v4489, 0
        %v4494 = vsel %vm711, %v4491, 0
        %4496 = vmatprep.subr.mxu0 0.0
        %4497 = vmatpush1.xpose.msra.mxu0 %v4494
        %4498 = vmatprep.subr.mxu0 0.0
        %4499 = vmatpush1.xpose.msra.mxu0 0.0
        %4500 = vmatprep.subr.mxu0 0.0
        %4501 = vmatpush1.xpose.msra.mxu0 0.0
        %4502 = vmatprep.subr.mxu0 0.0
        %4503 = vmatpush1.xpose.msra.mxu0 0.0
        %4504 = vmatprep.subr.mxu0 0.0
        %4505 = vmatpush1.xpose.msra.mxu0 0.0
        %4506 = vmatprep.subr.mxu0 0.0
        %4507 = vmatpush1.xpose.msra.mxu0 0.0
        %4508 = vmatprep.subr.mxu0 0.0
        %4509 = vmatpush1.xpose.msra.mxu0 0.0
        %4510 = vmatprep.subr.mxu0 0.0
        %4511 = vmatpush1.xpose.msra.mxu0 0.0
        %4512 = vmatprep.subr.mxu0 0.0
        %4513 = vmatpush1.xpose.msra.mxu0 0.0
        %4514 = vmatprep.subr.mxu0 0.0
        %4515 = vmatpush1.xpose.msra.mxu0 0.0
        %4516 = vmatprep.subr.mxu0 0.0
        %4517 = vmatpush1.xpose.msra.mxu0 0.0
        %4518 = vmatprep.subr.mxu0 0.0
        %4519 = vmatpush1.xpose.msra.mxu0 0.0
        %4520 = vmatprep.subr.mxu0 0.0
        %4521 = vmatpush1.xpose.msra.mxu0 0.0
        %4522 = vmatprep.subr.mxu0 0.0
        %4523 = vmatpush1.xpose.msra.mxu0 0.0
        %4524 = vmatprep.subr.mxu0 0.0
        %4525 = vmatpush1.xpose.msra.mxu0 0.0
        %4526 = vmatprep.subr.mxu0 0.0
        %4527 = vmatpush1.xpose.msra.mxu0 0.0
        %4528 = vmatprep.subr.mxu0 0.0
        %4529 = vmatpush1.xpose.msra.mxu0 0.0
        %4530 = vmatprep.subr.mxu0 0.0
        %4531 = vmatpush1.xpose.msra.mxu0 0.0
        %4532 = vmatprep.subr.mxu0 0.0
        %4533 = vmatpush1.xpose.msra.mxu0 0.0
        %4534 = vmatprep.subr.mxu0 0.0
        %4535 = vmatpush1.xpose.msra.mxu0 0.0
        %4536 = vmatprep.subr.mxu0 0.0
        %4537 = vmatpush1.xpose.msra.mxu0 0.0
        %4538 = vmatprep.subr.mxu0 0.0
        %4539 = vmatpush1.xpose.msra.mxu0 0.0
        %4540 = vmatprep.subr.mxu0 0.0
        %4541 = vmatpush1.xpose.msra.mxu0 0.0
        %4542 = vmatprep.subr.mxu0 0.0
        %4543 = vmatpush1.xpose.msra.mxu0 0.0
        %4544 = vmatprep.subr.mxu0 0.0
        %4545 = vmatpush1.xpose.msra.mxu0 0.0
        %4546 = vmatprep.subr.mxu0 0.0
        %4547 = vmatpush1.xpose.msra.mxu0 0.0
        %4548 = vmatprep.subr.mxu0 0.0
        %4549 = vmatpush1.xpose.msra.mxu0 0.0
        %4550 = vmatprep.subr.mxu0 0.0
        %4551 = vmatpush1.xpose.msra.mxu0 0.0
        %4552 = vmatprep.subr.mxu0 0.0
        %4553 = vmatpush1.xpose.msra.mxu0 0.0
        %4554 = vmatprep.subr.mxu0 0.0
        %4555 = vmatpush1.xpose.msra.mxu0 0.0
        %4556 = vmatprep.subr.mxu0 0.0
        %4557 = vmatpush1.xpose.msra.mxu0 0.0
        %4558 = vmatprep.subr.mxu0 0.0
        %4559 = vmatpush1.xpose.msra.mxu0 0.0
        %4560 = vmatprep.mubr.f32.mxu0 0.0
        %4561 = vmatmul.mubr.f32.gmra.mrb[0].mxu0 %v4492
        %v4562 = vpop.f32.mrb[0].mxu0
        %v4563 = vadd.f32 0.0, %v4562
        %v4564 = vpop.f32.mrb[0].mxu0
        %4565 = vdwg.mxu0
        %v4566 = vsel %vm711, %v4563, -inf
        %4567 = vmax.xlane.f32.xlu0 %v4566
        %v4568 = vpop.xlane.xlu0 %4567
        %v4569 = vsub.f32 %v4563, %v4568
        %v4570 = vmul.f32 %v4569, 1.442695
        %v4571 = vpow.pop %v4570
        %v4572 = vsel %vm711, %v4571, 0.0
        %4573 = vadd.xlane.f32.xlu0 %v4572
        %v4574 = vpop.xlane.xlu0 %4573
        %v4575 = vrcp.pop %v4574
        %v4576 = vmul.f32 %v4571, %v4575
        %4577 = vrot.lane.b32.xlu0 %v4322, 88
        %v4578 = vpop.permute.xlu0 %4577
        %v4581 = vsel %vm711, %v4576, 0
        %4583 = vmatprep.subr.mxu0 0.0
        %4584 = vmatpush1.msra.mxu0 %v4578
        %4585 = vmatprep.subr.mxu0 0.0
        %4586 = vmatpush1.msra.mxu0 0.0
        %4587 = vmatprep.subr.mxu0 0.0
        %4588 = vmatpush1.msra.mxu0 0.0
        %4589 = vmatprep.subr.mxu0 0.0
        %4590 = vmatpush1.msra.mxu0 0.0
        %4591 = vmatprep.subr.mxu0 0.0
        %4592 = vmatpush1.msra.mxu0 0.0
        %4593 = vmatprep.subr.mxu0 0.0
        %4594 = vmatpush1.msra.mxu0 0.0
        %4595 = vmatprep.subr.mxu0 0.0
        %4596 = vmatpush1.msra.mxu0 0.0
        %4597 = vmatprep.subr.mxu0 0.0
        %4598 = vmatpush1.msra.mxu0 0.0
        %4599 = vmatprep.subr.mxu0 0.0
        %4600 = vmatpush1.msra.mxu0 0.0
        %4601 = vmatprep.subr.mxu0 0.0
        %4602 = vmatpush1.msra.mxu0 0.0
        %4603 = vmatprep.subr.mxu0 0.0
        %4604 = vmatpush1.msra.mxu0 0.0
        %4605 = vmatprep.subr.mxu0 0.0
        %4606 = vmatpush1.msra.mxu0 0.0
        %4607 = vmatprep.subr.mxu0 0.0
        %4608 = vmatpush1.msra.mxu0 0.0
        %4609 = vmatprep.subr.mxu0 0.0
        %4610 = vmatpush1.msra.mxu0 0.0
        %4611 = vmatprep.subr.mxu0 0.0
        %4612 = vmatpush1.msra.mxu0 0.0
        %4613 = vmatprep.subr.mxu0 0.0
        %4614 = vmatpush1.msra.mxu0 0.0
        %4615 = vmatprep.subr.mxu0 0.0
        %4616 = vmatpush1.msra.mxu0 0.0
        %4617 = vmatprep.subr.mxu0 0.0
        %4618 = vmatpush1.msra.mxu0 0.0
        %4619 = vmatprep.subr.mxu0 0.0
        %4620 = vmatpush1.msra.mxu0 0.0
        %4621 = vmatprep.subr.mxu0 0.0
        %4622 = vmatpush1.msra.mxu0 0.0
        %4623 = vmatprep.subr.mxu0 0.0
        %4624 = vmatpush1.msra.mxu0 0.0
        %4625 = vmatprep.subr.mxu0 0.0
        %4626 = vmatpush1.msra.mxu0 0.0
        %4627 = vmatprep.subr.mxu0 0.0
        %4628 = vmatpush1.msra.mxu0 0.0
        %4629 = vmatprep.subr.mxu0 0.0
        %4630 = vmatpush1.msra.mxu0 0.0
        %4631 = vmatprep.subr.mxu0 0.0
        %4632 = vmatpush1.msra.mxu0 0.0
        %4633 = vmatprep.subr.mxu0 0.0
        %4634 = vmatpush1.msra.mxu0 0.0
        %4635 = vmatprep.subr.mxu0 0.0
        %4636 = vmatpush1.msra.mxu0 0.0
        %4637 = vmatprep.subr.mxu0 0.0
        %4638 = vmatpush1.msra.mxu0 0.0
        %4639 = vmatprep.subr.mxu0 0.0
        %4640 = vmatpush1.msra.mxu0 0.0
        %4641 = vmatprep.subr.mxu0 0.0
        %4642 = vmatpush1.msra.mxu0 0.0
        %4643 = vmatprep.subr.mxu0 0.0
        %4644 = vmatpush1.msra.mxu0 0.0
        %4645 = vmatprep.subr.mxu0 0.0
        %4646 = vmatpush1.msra.mxu0 0.0
        %4647 = vmatprep.mubr.f32.mxu0 0.0
        %4648 = vmatmul.mubr.f32.gmra.mrb[0].mxu0 %v4581
        %v4649 = vpop.f32.mrb[0].mxu0
        %v4650 = vadd.f32 0.0, %v4649
        %v4651 = vpop.f32.mrb[0].mxu0
        %4652 = vdwg.mxu0
        %v4654 = vsel %vm711, %v4650, 0
        %4656 = vmatprep.subr.mxu0 0.0
        %4657 = vmatpush1.msra.mxu0 %v4151
        %4658 = vmatprep.subr.mxu0 0.0
        %4659 = vmatpush1.msra.mxu0 0.0
        %4660 = vmatprep.subr.mxu0 0.0
        %4661 = vmatpush1.msra.mxu0 0.0
        %4662 = vmatprep.subr.mxu0 0.0
        %4663 = vmatpush1.msra.mxu0 0.0
        %4664 = vmatprep.subr.mxu0 0.0
        %4665 = vmatpush1.msra.mxu0 0.0
        %4666 = vmatprep.subr.mxu0 0.0
        %4667 = vmatpush1.msra.mxu0 0.0
        %4668 = vmatprep.subr.mxu0 0.0
        %4669 = vmatpush1.msra.mxu0 0.0
        %4670 = vmatprep.subr.mxu0 0.0
        %4671 = vmatpush1.msra.mxu0 0.0
        %4672 = vmatprep.subr.mxu0 0.0
        %4673 = vmatpush1.msra.mxu0 0.0
        %4674 = vmatprep.subr.mxu0 0.0
        %4675 = vmatpush1.msra.mxu0 0.0
        %4676 = vmatprep.subr.mxu0 0.0
        %4677 = vmatpush1.msra.mxu0 0.0
        %4678 = vmatprep.subr.mxu0 0.0
        %4679 = vmatpush1.msra.mxu0 0.0
        %4680 = vmatprep.subr.mxu0 0.0
        %4681 = vmatpush1.msra.mxu0 0.0
        %4682 = vmatprep.subr.mxu0 0.0
        %4683 = vmatpush1.msra.mxu0 0.0
        %4684 = vmatprep.subr.mxu0 0.0
        %4685 = vmatpush1.msra.mxu0 0.0
        %4686 = vmatprep.subr.mxu0 0.0
        %4687 = vmatpush1.msra.mxu0 0.0
        %4688 = vmatprep.subr.mxu0 0.0
        %4689 = vmatpush1.msra.mxu0 0.0
        %4690 = vmatprep.subr.mxu0 0.0
        %4691 = vmatpush1.msra.mxu0 0.0
        %4692 = vmatprep.subr.mxu0 0.0
        %4693 = vmatpush1.msra.mxu0 0.0
        %4694 = vmatprep.subr.mxu0 0.0
        %4695 = vmatpush1.msra.mxu0 0.0
        %4696 = vmatprep.subr.mxu0 0.0
        %4697 = vmatpush1.msra.mxu0 0.0
        %4698 = vmatprep.subr.mxu0 0.0
        %4699 = vmatpush1.msra.mxu0 0.0
        %4700 = vmatprep.subr.mxu0 0.0
        %4701 = vmatpush1.msra.mxu0 0.0
        %4702 = vmatprep.subr.mxu0 0.0
        %4703 = vmatpush1.msra.mxu0 0.0
        %4704 = vmatprep.subr.mxu0 0.0
        %4705 = vmatpush1.msra.mxu0 0.0
        %4706 = vmatprep.subr.mxu0 0.0
        %4707 = vmatpush1.msra.mxu0 0.0
        %4708 = vmatprep.subr.mxu0 0.0
        %4709 = vmatpush1.msra.mxu0 0.0
        %4710 = vmatprep.subr.mxu0 0.0
        %4711 = vmatpush1.msra.mxu0 0.0
        %4712 = vmatprep.subr.mxu0 0.0
        %4713 = vmatpush1.msra.mxu0 0.0
        %4714 = vmatprep.subr.mxu0 0.0
        %4715 = vmatpush1.msra.mxu0 0.0
        %4716 = vmatprep.subr.mxu0 0.0
        %4717 = vmatpush1.msra.mxu0 0.0
        %4718 = vmatprep.subr.mxu0 0.0
        %4719 = vmatpush1.msra.mxu0 0.0
        %4720 = vmatprep.mubr.f32.mxu0 0.0
        %4721 = vmatmul.mubr.f32.gmra.mrb[0].mxu0 %v4654
        %v4722 = vpop.f32.mrb[0].mxu0
        %v4723 = vadd.f32 0.0, %v4722
        %v4724 = vpop.f32.mrb[0].mxu0
        %4725 = vdwg.mxu0
        %v4727 = vsel %vm711, %v4485, 0
        %4729 = vmatprep.subr.mxu0 0.0
        %4730 = vmatpush1.msra.mxu0 %v4150
        %4731 = vmatprep.subr.mxu0 0.0
        %4732 = vmatpush1.msra.mxu0 0.0
        %4733 = vmatprep.subr.mxu0 0.0
        %4734 = vmatpush1.msra.mxu0 0.0
        %4735 = vmatprep.subr.mxu0 0.0
        %4736 = vmatpush1.msra.mxu0 0.0
        %4737 = vmatprep.subr.mxu0 0.0
        %4738 = vmatpush1.msra.mxu0 0.0
        %4739 = vmatprep.subr.mxu0 0.0
        %4740 = vmatpush1.msra.mxu0 0.0
        %4741 = vmatprep.subr.mxu0 0.0
        %4742 = vmatpush1.msra.mxu0 0.0
        %4743 = vmatprep.subr.mxu0 0.0
        %4744 = vmatpush1.msra.mxu0 0.0
        %4745 = vmatprep.subr.mxu0 0.0
        %4746 = vmatpush1.msra.mxu0 0.0
        %4747 = vmatprep.subr.mxu0 0.0
        %4748 = vmatpush1.msra.mxu0 0.0
        %4749 = vmatprep.subr.mxu0 0.0
        %4750 = vmatpush1.msra.mxu0 0.0
        %4751 = vmatprep.subr.mxu0 0.0
        %4752 = vmatpush1.msra.mxu0 0.0
        %4753 = vmatprep.subr.mxu0 0.0
        %4754 = vmatpush1.msra.mxu0 0.0
        %4755 = vmatprep.subr.mxu0 0.0
        %4756 = vmatpush1.msra.mxu0 0.0
        %4757 = vmatprep.subr.mxu0 0.0
        %4758 = vmatpush1.msra.mxu0 0.0
        %4759 = vmatprep.subr.mxu0 0.0
        %4760 = vmatpush1.msra.mxu0 0.0
        %4761 = vmatprep.subr.mxu0 0.0
        %4762 = vmatpush1.msra.mxu0 0.0
        %4763 = vmatprep.subr.mxu0 0.0
        %4764 = vmatpush1.msra.mxu0 0.0
        %4765 = vmatprep.subr.mxu0 0.0
        %4766 = vmatpush1.msra.mxu0 0.0
        %4767 = vmatprep.subr.mxu0 0.0
        %4768 = vmatpush1.msra.mxu0 0.0
        %4769 = vmatprep.subr.mxu0 0.0
        %4770 = vmatpush1.msra.mxu0 0.0
        %4771 = vmatprep.subr.mxu0 0.0
        %4772 = vmatpush1.msra.mxu0 0.0
        %4773 = vmatprep.subr.mxu0 0.0
        %4774 = vmatpush1.msra.mxu0 0.0
        %4775 = vmatprep.subr.mxu0 0.0
        %4776 = vmatpush1.msra.mxu0 0.0
        %4777 = vmatprep.subr.mxu0 0.0
        %4778 = vmatpush1.msra.mxu0 0.0
        %4779 = vmatprep.subr.mxu0 0.0
        %4780 = vmatpush1.msra.mxu0 0.0
        %4781 = vmatprep.subr.mxu0 0.0
        %4782 = vmatpush1.msra.mxu0 0.0
        %4783 = vmatprep.subr.mxu0 0.0
        %4784 = vmatpush1.msra.mxu0 0.0
        %4785 = vmatprep.subr.mxu0 0.0
        %4786 = vmatpush1.msra.mxu0 0.0
        %4787 = vmatprep.subr.mxu0 0.0
        %4788 = vmatpush1.msra.mxu0 0.0
        %4789 = vmatprep.subr.mxu0 0.0
        %4790 = vmatpush1.msra.mxu0 0.0
        %4791 = vmatprep.subr.mxu0 0.0
        %4792 = vmatpush1.msra.mxu0 0.0
        %4793 = vmatprep.mubr.f32.mxu0 0.0
        %4794 = vmatmul.mubr.f32.gmra.mrb[0].mxu0 %v4727
        %v4795 = vpop.f32.mrb[0].mxu0
        %v4796 = vadd.f32 %v4723, %v4795
        %v4797 = vpop.f32.mrb[0].mxu0
        %4798 = vdwg.mxu0
        %4799 = vrot.lane.b32.xlu0 %v4235, 112
        %v4800 = vpop.permute.xlu0 %4799
        %4801 = vrot.lane.b32.xlu0 %v4322, 112
        %v4802 = vpop.permute.xlu0 %4801
        %v4803 = vsel %vm711, %v4800, 0
        %v4805 = vsel %vm711, %v4802, 0
        %4807 = vmatprep.subr.mxu0 0.0
        %4808 = vmatpush1.xpose.msra.mxu0 %v4805
        %4809 = vmatprep.subr.mxu0 0.0
        %4810 = vmatpush1.xpose.msra.mxu0 0.0
        %4811 = vmatprep.subr.mxu0 0.0
        %4812 = vmatpush1.xpose.msra.mxu0 0.0
        %4813 = vmatprep.subr.mxu0 0.0
        %4814 = vmatpush1.xpose.msra.mxu0 0.0
        %4815 = vmatprep.subr.mxu0 0.0
        %4816 = vmatpush1.xpose.msra.mxu0 0.0
        %4817 = vmatprep.subr.mxu0 0.0
        %4818 = vmatpush1.xpose.msra.mxu0 0.0
        %4819 = vmatprep.subr.mxu0 0.0
        %4820 = vmatpush1.xpose.msra.mxu0 0.0
        %4821 = vmatprep.subr.mxu0 0.0
        %4822 = vmatpush1.xpose.msra.mxu0 0.0
        %4823 = vmatprep.subr.mxu0 0.0
        %4824 = vmatpush1.xpose.msra.mxu0 0.0
        %4825 = vmatprep.subr.mxu0 0.0
        %4826 = vmatpush1.xpose.msra.mxu0 0.0
        %4827 = vmatprep.subr.mxu0 0.0
        %4828 = vmatpush1.xpose.msra.mxu0 0.0
        %4829 = vmatprep.subr.mxu0 0.0
        %4830 = vmatpush1.xpose.msra.mxu0 0.0
        %4831 = vmatprep.subr.mxu0 0.0
        %4832 = vmatpush1.xpose.msra.mxu0 0.0
        %4833 = vmatprep.subr.mxu0 0.0
        %4834 = vmatpush1.xpose.msra.mxu0 0.0
        %4835 = vmatprep.subr.mxu0 0.0
        %4836 = vmatpush1.xpose.msra.mxu0 0.0
        %4837 = vmatprep.subr.mxu0 0.0
        %4838 = vmatpush1.xpose.msra.mxu0 0.0
        %4839 = vmatprep.subr.mxu0 0.0
        %4840 = vmatpush1.xpose.msra.mxu0 0.0
        %4841 = vmatprep.subr.mxu0 0.0
        %4842 = vmatpush1.xpose.msra.mxu0 0.0
        %4843 = vmatprep.subr.mxu0 0.0
        %4844 = vmatpush1.xpose.msra.mxu0 0.0
        %4845 = vmatprep.subr.mxu0 0.0
        %4846 = vmatpush1.xpose.msra.mxu0 0.0
        %4847 = vmatprep.subr.mxu0 0.0
        %4848 = vmatpush1.xpose.msra.mxu0 0.0
        %4849 = vmatprep.subr.mxu0 0.0
        %4850 = vmatpush1.xpose.msra.mxu0 0.0
        %4851 = vmatprep.subr.mxu0 0.0
        %4852 = vmatpush1.xpose.msra.mxu0 0.0
        %4853 = vmatprep.subr.mxu0 0.0
        %4854 = vmatpush1.xpose.msra.mxu0 0.0
        %4855 = vmatprep.subr.mxu0 0.0
        %4856 = vmatpush1.xpose.msra.mxu0 0.0
        %4857 = vmatprep.subr.mxu0 0.0
        %4858 = vmatpush1.xpose.msra.mxu0 0.0
        %4859 = vmatprep.subr.mxu0 0.0
        %4860 = vmatpush1.xpose.msra.mxu0 0.0
        %4861 = vmatprep.subr.mxu0 0.0
        %4862 = vmatpush1.xpose.msra.mxu0 0.0
        %4863 = vmatprep.subr.mxu0 0.0
        %4864 = vmatpush1.xpose.msra.mxu0 0.0
        %4865 = vmatprep.subr.mxu0 0.0
        %4866 = vmatpush1.xpose.msra.mxu0 0.0
        %4867 = vmatprep.subr.mxu0 0.0
        %4868 = vmatpush1.xpose.msra.mxu0 0.0
        %4869 = vmatprep.subr.mxu0 0.0
        %4870 = vmatpush1.xpose.msra.mxu0 0.0
        %4871 = vmatprep.mubr.f32.mxu0 0.0
        %4872 = vmatmul.mubr.f32.gmra.mrb[0].mxu0 %v4803
        %v4873 = vpop.f32.mrb[0].mxu0
        %v4874 = vadd.f32 0.0, %v4873
        %v4875 = vpop.f32.mrb[0].mxu0
        %4876 = vdwg.mxu0
        %v4877 = vsel %vm711, %v4874, -inf
        %4878 = vmax.xlane.f32.xlu0 %v4877
        %v4879 = vpop.xlane.xlu0 %4878
        %v4880 = vsub.f32 %v4874, %v4879
        %v4881 = vmul.f32 %v4880, 1.442695
        %v4882 = vpow.pop %v4881
        %v4883 = vsel %vm711, %v4882, 0.0
        %4884 = vadd.xlane.f32.xlu0 %v4883
        %v4885 = vpop.xlane.xlu0 %4884
        %v4886 = vrcp.pop %v4885
        %v4887 = vmul.f32 %v4882, %v4886
        %4888 = vrot.lane.b32.xlu0 %v4322, 80
        %v4889 = vpop.permute.xlu0 %4888
        %v4892 = vsel %vm711, %v4887, 0
        %4894 = vmatprep.subr.mxu0 0.0
        %4895 = vmatpush1.msra.mxu0 %v4889
        %4896 = vmatprep.subr.mxu0 0.0
        %4897 = vmatpush1.msra.mxu0 0.0
        %4898 = vmatprep.subr.mxu0 0.0
        %4899 = vmatpush1.msra.mxu0 0.0
        %4900 = vmatprep.subr.mxu0 0.0
        %4901 = vmatpush1.msra.mxu0 0.0
        %4902 = vmatprep.subr.mxu0 0.0
        %4903 = vmatpush1.msra.mxu0 0.0
        %4904 = vmatprep.subr.mxu0 0.0
        %4905 = vmatpush1.msra.mxu0 0.0
        %4906 = vmatprep.subr.mxu0 0.0
        %4907 = vmatpush1.msra.mxu0 0.0
        %4908 = vmatprep.subr.mxu0 0.0
        %4909 = vmatpush1.msra.mxu0 0.0
        %4910 = vmatprep.subr.mxu0 0.0
        %4911 = vmatpush1.msra.mxu0 0.0
        %4912 = vmatprep.subr.mxu0 0.0
        %4913 = vmatpush1.msra.mxu0 0.0
        %4914 = vmatprep.subr.mxu0 0.0
        %4915 = vmatpush1.msra.mxu0 0.0
        %4916 = vmatprep.subr.mxu0 0.0
        %4917 = vmatpush1.msra.mxu0 0.0
        %4918 = vmatprep.subr.mxu0 0.0
        %4919 = vmatpush1.msra.mxu0 0.0
        %4920 = vmatprep.subr.mxu0 0.0
        %4921 = vmatpush1.msra.mxu0 0.0
        %4922 = vmatprep.subr.mxu0 0.0
        %4923 = vmatpush1.msra.mxu0 0.0
        %4924 = vmatprep.subr.mxu0 0.0
        %4925 = vmatpush1.msra.mxu0 0.0
        %4926 = vmatprep.subr.mxu0 0.0
        %4927 = vmatpush1.msra.mxu0 0.0
        %4928 = vmatprep.subr.mxu0 0.0
        %4929 = vmatpush1.msra.mxu0 0.0
        %4930 = vmatprep.subr.mxu0 0.0
        %4931 = vmatpush1.msra.mxu0 0.0
        %4932 = vmatprep.subr.mxu0 0.0
        %4933 = vmatpush1.msra.mxu0 0.0
        %4934 = vmatprep.subr.mxu0 0.0
        %4935 = vmatpush1.msra.mxu0 0.0
        %4936 = vmatprep.subr.mxu0 0.0
        %4937 = vmatpush1.msra.mxu0 0.0
        %4938 = vmatprep.subr.mxu0 0.0
        %4939 = vmatpush1.msra.mxu0 0.0
        %4940 = vmatprep.subr.mxu0 0.0
        %4941 = vmatpush1.msra.mxu0 0.0
        %4942 = vmatprep.subr.mxu0 0.0
        %4943 = vmatpush1.msra.mxu0 0.0
        %4944 = vmatprep.subr.mxu0 0.0
        %4945 = vmatpush1.msra.mxu0 0.0
        %4946 = vmatprep.subr.mxu0 0.0
        %4947 = vmatpush1.msra.mxu0 0.0
        %4948 = vmatprep.subr.mxu0 0.0
        %4949 = vmatpush1.msra.mxu0 0.0
        %4950 = vmatprep.subr.mxu0 0.0
        %4951 = vmatpush1.msra.mxu0 0.0
        %4952 = vmatprep.subr.mxu0 0.0
        %4953 = vmatpush1.msra.mxu0 0.0
        %4954 = vmatprep.subr.mxu0 0.0
        %4955 = vmatpush1.msra.mxu0 0.0
        %4956 = vmatprep.subr.mxu0 0.0
        %4957 = vmatpush1.msra.mxu0 0.0
        %4958 = vmatprep.mubr.f32.mxu0 0.0
        %4959 = vmatmul.mubr.f32.gmra.mrb[0].mxu0 %v4892
        %v4960 = vpop.f32.mrb[0].mxu0
        %v4961 = vadd.f32 0.0, %v4960
        %v4962 = vpop.f32.mrb[0].mxu0
        %4963 = vdwg.mxu0
        %v4965 = vsel %vm711, %v4961, 0
        %4967 = vmatprep.subr.mxu0 0.0
        %4968 = vmatpush1.msra.mxu0 %v4152
        %4969 = vmatprep.subr.mxu0 0.0
        %4970 = vmatpush1.msra.mxu0 0.0
        %4971 = vmatprep.subr.mxu0 0.0
        %4972 = vmatpush1.msra.mxu0 0.0
        %4973 = vmatprep.subr.mxu0 0.0
        %4974 = vmatpush1.msra.mxu0 0.0
        %4975 = vmatprep.subr.mxu0 0.0
        %4976 = vmatpush1.msra.mxu0 0.0
        %4977 = vmatprep.subr.mxu0 0.0
        %4978 = vmatpush1.msra.mxu0 0.0
        %4979 = vmatprep.subr.mxu0 0.0
        %4980 = vmatpush1.msra.mxu0 0.0
        %4981 = vmatprep.subr.mxu0 0.0
        %4982 = vmatpush1.msra.mxu0 0.0
        %4983 = vmatprep.subr.mxu0 0.0
        %4984 = vmatpush1.msra.mxu0 0.0
        %4985 = vmatprep.subr.mxu0 0.0
        %4986 = vmatpush1.msra.mxu0 0.0
        %4987 = vmatprep.subr.mxu0 0.0
        %4988 = vmatpush1.msra.mxu0 0.0
        %4989 = vmatprep.subr.mxu0 0.0
        %4990 = vmatpush1.msra.mxu0 0.0
        %4991 = vmatprep.subr.mxu0 0.0
        %4992 = vmatpush1.msra.mxu0 0.0
        %4993 = vmatprep.subr.mxu0 0.0
        %4994 = vmatpush1.msra.mxu0 0.0
        %4995 = vmatprep.subr.mxu0 0.0
        %4996 = vmatpush1.msra.mxu0 0.0
        %4997 = vmatprep.subr.mxu0 0.0
        %4998 = vmatpush1.msra.mxu0 0.0
        %4999 = vmatprep.subr.mxu0 0.0
        %5000 = vmatpush1.msra.mxu0 0.0
        %5001 = vmatprep.subr.mxu0 0.0
        %5002 = vmatpush1.msra.mxu0 0.0
        %5003 = vmatprep.subr.mxu0 0.0
        %5004 = vmatpush1.msra.mxu0 0.0
        %5005 = vmatprep.subr.mxu0 0.0
        %5006 = vmatpush1.msra.mxu0 0.0
        %5007 = vmatprep.subr.mxu0 0.0
        %5008 = vmatpush1.msra.mxu0 0.0
        %5009 = vmatprep.subr.mxu0 0.0
        %5010 = vmatpush1.msra.mxu0 0.0
        %5011 = vmatprep.subr.mxu0 0.0
        %5012 = vmatpush1.msra.mxu0 0.0
        %5013 = vmatprep.subr.mxu0 0.0
        %5014 = vmatpush1.msra.mxu0 0.0
        %5015 = vmatprep.subr.mxu0 0.0
        %5016 = vmatpush1.msra.mxu0 0.0
        %5017 = vmatprep.subr.mxu0 0.0
        %5018 = vmatpush1.msra.mxu0 0.0
        %5019 = vmatprep.subr.mxu0 0.0
        %5020 = vmatpush1.msra.mxu0 0.0
        %5021 = vmatprep.subr.mxu0 0.0
        %5022 = vmatpush1.msra.mxu0 0.0
        %5023 = vmatprep.subr.mxu0 0.0
        %5024 = vmatpush1.msra.mxu0 0.0
        %5025 = vmatprep.subr.mxu0 0.0
        %5026 = vmatpush1.msra.mxu0 0.0
        %5027 = vmatprep.subr.mxu0 0.0
        %5028 = vmatpush1.msra.mxu0 0.0
        %5029 = vmatprep.subr.mxu0 0.0
        %5030 = vmatpush1.msra.mxu0 0.0
        %5031 = vmatprep.mubr.f32.mxu0 0.0
        %5032 = vmatmul.mubr.f32.gmra.mrb[0].mxu0 %v4965
        %v5033 = vpop.f32.mrb[0].mxu0
        %v5034 = vadd.f32 0.0, %v5033
        %v5035 = vpop.f32.mrb[0].mxu0
        %5036 = vdwg.mxu0
        %v5037 = vadd.f32 %v4796, %v5034
        %5038 = vrot.lane.b32.xlu0 %v4235, 104
        %v5039 = vpop.permute.xlu0 %5038
        %5040 = vrot.lane.b32.xlu0 %v4322, 104
        %v5041 = vpop.permute.xlu0 %5040
        %v5042 = vsel %vm711, %v5039, 0
        %v5044 = vsel %vm711, %v5041, 0
        %5046 = vmatprep.subr.mxu0 0.0
        %5047 = vmatpush1.xpose.msra.mxu0 %v5044
        %5048 = vmatprep.subr.mxu0 0.0
        %5049 = vmatpush1.xpose.msra.mxu0 0.0
        %5050 = vmatprep.subr.mxu0 0.0
        %5051 = vmatpush1.xpose.msra.mxu0 0.0
        %5052 = vmatprep.subr.mxu0 0.0
        %5053 = vmatpush1.xpose.msra.mxu0 0.0
        %5054 = vmatprep.subr.mxu0 0.0
        %5055 = vmatpush1.xpose.msra.mxu0 0.0
        %5056 = vmatprep.subr.mxu0 0.0
        %5057 = vmatpush1.xpose.msra.mxu0 0.0
        %5058 = vmatprep.subr.mxu0 0.0
        %5059 = vmatpush1.xpose.msra.mxu0 0.0
        %5060 = vmatprep.subr.mxu0 0.0
        %5061 = vmatpush1.xpose.msra.mxu0 0.0
        %5062 = vmatprep.subr.mxu0 0.0
        %5063 = vmatpush1.xpose.msra.mxu0 0.0
        %5064 = vmatprep.subr.mxu0 0.0
        %5065 = vmatpush1.xpose.msra.mxu0 0.0
        %5066 = vmatprep.subr.mxu0 0.0
        %5067 = vmatpush1.xpose.msra.mxu0 0.0
        %5068 = vmatprep.subr.mxu0 0.0
        %5069 = vmatpush1.xpose.msra.mxu0 0.0
        %5070 = vmatprep.subr.mxu0 0.0
        %5071 = vmatpush1.xpose.msra.mxu0 0.0
        %5072 = vmatprep.subr.mxu0 0.0
        %5073 = vmatpush1.xpose.msra.mxu0 0.0
        %5074 = vmatprep.subr.mxu0 0.0
        %5075 = vmatpush1.xpose.msra.mxu0 0.0
        %5076 = vmatprep.subr.mxu0 0.0
        %5077 = vmatpush1.xpose.msra.mxu0 0.0
        %5078 = vmatprep.subr.mxu0 0.0
        %5079 = vmatpush1.xpose.msra.mxu0 0.0
        %5080 = vmatprep.subr.mxu0 0.0
        %5081 = vmatpush1.xpose.msra.mxu0 0.0
        %5082 = vmatprep.subr.mxu0 0.0
        %5083 = vmatpush1.xpose.msra.mxu0 0.0
        %5084 = vmatprep.subr.mxu0 0.0
        %5085 = vmatpush1.xpose.msra.mxu0 0.0
        %5086 = vmatprep.subr.mxu0 0.0
        %5087 = vmatpush1.xpose.msra.mxu0 0.0
        %5088 = vmatprep.subr.mxu0 0.0
        %5089 = vmatpush1.xpose.msra.mxu0 0.0
        %5090 = vmatprep.subr.mxu0 0.0
        %5091 = vmatpush1.xpose.msra.mxu0 0.0
        %5092 = vmatprep.subr.mxu0 0.0
        %5093 = vmatpush1.xpose.msra.mxu0 0.0
        %5094 = vmatprep.subr.mxu0 0.0
        %5095 = vmatpush1.xpose.msra.mxu0 0.0
        %5096 = vmatprep.subr.mxu0 0.0
        %5097 = vmatpush1.xpose.msra.mxu0 0.0
        %5098 = vmatprep.subr.mxu0 0.0
        %5099 = vmatpush1.xpose.msra.mxu0 0.0
        %5100 = vmatprep.subr.mxu0 0.0
        %5101 = vmatpush1.xpose.msra.mxu0 0.0
        %5102 = vmatprep.subr.mxu0 0.0
        %5103 = vmatpush1.xpose.msra.mxu0 0.0
        %5104 = vmatprep.subr.mxu0 0.0
        %5105 = vmatpush1.xpose.msra.mxu0 0.0
        %5106 = vmatprep.subr.mxu0 0.0
        %5107 = vmatpush1.xpose.msra.mxu0 0.0
        %5108 = vmatprep.subr.mxu0 0.0
        %5109 = vmatpush1.xpose.msra.mxu0 0.0
        %5110 = vmatprep.mubr.f32.mxu0 0.0
        %5111 = vmatmul.mubr.f32.gmra.mrb[0].mxu0 %v5042
        %v5112 = vpop.f32.mrb[0].mxu0
        %v5113 = vadd.f32 0.0, %v5112
        %v5114 = vpop.f32.mrb[0].mxu0
        %5115 = vdwg.mxu0
        %v5116 = vsel %vm711, %v5113, -inf
        %5117 = vmax.xlane.f32.xlu0 %v5116
        %v5118 = vpop.xlane.xlu0 %5117
        %v5119 = vsub.f32 %v5113, %v5118
        %v5120 = vmul.f32 %v5119, 1.442695
        %v5121 = vpow.pop %v5120
        %v5122 = vsel %vm711, %v5121, 0.0
        %5123 = vadd.xlane.f32.xlu0 %v5122
        %v5124 = vpop.xlane.xlu0 %5123
        %v5125 = vrcp.pop %v5124
        %v5126 = vmul.f32 %v5121, %v5125
        %5127 = vrot.lane.b32.xlu0 %v4322, 72
        %v5128 = vpop.permute.xlu0 %5127
        %v5131 = vsel %vm711, %v5126, 0
        %5133 = vmatprep.subr.mxu0 0.0
        %5134 = vmatpush1.msra.mxu0 %v5128
        %5135 = vmatprep.subr.mxu0 0.0
        %5136 = vmatpush1.msra.mxu0 0.0
        %5137 = vmatprep.subr.mxu0 0.0
        %5138 = vmatpush1.msra.mxu0 0.0
        %5139 = vmatprep.subr.mxu0 0.0
        %5140 = vmatpush1.msra.mxu0 0.0
        %5141 = vmatprep.subr.mxu0 0.0
        %5142 = vmatpush1.msra.mxu0 0.0
        %5143 = vmatprep.subr.mxu0 0.0
        %5144 = vmatpush1.msra.mxu0 0.0
        %5145 = vmatprep.subr.mxu0 0.0
        %5146 = vmatpush1.msra.mxu0 0.0
        %5147 = vmatprep.subr.mxu0 0.0
        %5148 = vmatpush1.msra.mxu0 0.0
        %5149 = vmatprep.subr.mxu0 0.0
        %5150 = vmatpush1.msra.mxu0 0.0
        %5151 = vmatprep.subr.mxu0 0.0
        %5152 = vmatpush1.msra.mxu0 0.0
        %5153 = vmatprep.subr.mxu0 0.0
        %5154 = vmatpush1.msra.mxu0 0.0
        %5155 = vmatprep.subr.mxu0 0.0
        %5156 = vmatpush1.msra.mxu0 0.0
        %5157 = vmatprep.subr.mxu0 0.0
        %5158 = vmatpush1.msra.mxu0 0.0
        %5159 = vmatprep.subr.mxu0 0.0
        %5160 = vmatpush1.msra.mxu0 0.0
        %5161 = vmatprep.subr.mxu0 0.0
        %5162 = vmatpush1.msra.mxu0 0.0
        %5163 = vmatprep.subr.mxu0 0.0
        %5164 = vmatpush1.msra.mxu0 0.0
        %5165 = vmatprep.subr.mxu0 0.0
        %5166 = vmatpush1.msra.mxu0 0.0
        %5167 = vmatprep.subr.mxu0 0.0
        %5168 = vmatpush1.msra.mxu0 0.0
        %5169 = vmatprep.subr.mxu0 0.0
        %5170 = vmatpush1.msra.mxu0 0.0
        %5171 = vmatprep.subr.mxu0 0.0
        %5172 = vmatpush1.msra.mxu0 0.0
        %5173 = vmatprep.subr.mxu0 0.0
        %5174 = vmatpush1.msra.mxu0 0.0
        %5175 = vmatprep.subr.mxu0 0.0
        %5176 = vmatpush1.msra.mxu0 0.0
        %5177 = vmatprep.subr.mxu0 0.0
        %5178 = vmatpush1.msra.mxu0 0.0
        %5179 = vmatprep.subr.mxu0 0.0
        %5180 = vmatpush1.msra.mxu0 0.0
        %5181 = vmatprep.subr.mxu0 0.0
        %5182 = vmatpush1.msra.mxu0 0.0
        %5183 = vmatprep.subr.mxu0 0.0
        %5184 = vmatpush1.msra.mxu0 0.0
        %5185 = vmatprep.subr.mxu0 0.0
        %5186 = vmatpush1.msra.mxu0 0.0
        %5187 = vmatprep.subr.mxu0 0.0
        %5188 = vmatpush1.msra.mxu0 0.0
        %5189 = vmatprep.subr.mxu0 0.0
        %5190 = vmatpush1.msra.mxu0 0.0
        %5191 = vmatprep.subr.mxu0 0.0
        %5192 = vmatpush1.msra.mxu0 0.0
        %5193 = vmatprep.subr.mxu0 0.0
        %5194 = vmatpush1.msra.mxu0 0.0
        %5195 = vmatprep.subr.mxu0 0.0
        %5196 = vmatpush1.msra.mxu0 0.0
        %5197 = vmatprep.mubr.f32.mxu0 0.0
        %5198 = vmatmul.mubr.f32.gmra.mrb[0].mxu0 %v5131
        %v5199 = vpop.f32.mrb[0].mxu0
        %v5200 = vadd.f32 0.0, %v5199
        %v5201 = vpop.f32.mrb[0].mxu0
        %5202 = vdwg.mxu0
        %v5204 = vsel %vm711, %v5200, 0
        %5206 = vmatprep.subr.mxu0 0.0
        %5207 = vmatpush1.msra.mxu0 %v4153
        %5208 = vmatprep.subr.mxu0 0.0
        %5209 = vmatpush1.msra.mxu0 0.0
        %5210 = vmatprep.subr.mxu0 0.0
        %5211 = vmatpush1.msra.mxu0 0.0
        %5212 = vmatprep.subr.mxu0 0.0
        %5213 = vmatpush1.msra.mxu0 0.0
        %5214 = vmatprep.subr.mxu0 0.0
        %5215 = vmatpush1.msra.mxu0 0.0
        %5216 = vmatprep.subr.mxu0 0.0
        %5217 = vmatpush1.msra.mxu0 0.0
        %5218 = vmatprep.subr.mxu0 0.0
        %5219 = vmatpush1.msra.mxu0 0.0
        %5220 = vmatprep.subr.mxu0 0.0
        %5221 = vmatpush1.msra.mxu0 0.0
        %5222 = vmatprep.subr.mxu0 0.0
        %5223 = vmatpush1.msra.mxu0 0.0
        %5224 = vmatprep.subr.mxu0 0.0
        %5225 = vmatpush1.msra.mxu0 0.0
        %5226 = vmatprep.subr.mxu0 0.0
        %5227 = vmatpush1.msra.mxu0 0.0
        %5228 = vmatprep.subr.mxu0 0.0
        %5229 = vmatpush1.msra.mxu0 0.0
        %5230 = vmatprep.subr.mxu0 0.0
        %5231 = vmatpush1.msra.mxu0 0.0
        %5232 = vmatprep.subr.mxu0 0.0
        %5233 = vmatpush1.msra.mxu0 0.0
        %5234 = vmatprep.subr.mxu0 0.0
        %5235 = vmatpush1.msra.mxu0 0.0
        %5236 = vmatprep.subr.mxu0 0.0
        %5237 = vmatpush1.msra.mxu0 0.0
        %5238 = vmatprep.subr.mxu0 0.0
        %5239 = vmatpush1.msra.mxu0 0.0
        %5240 = vmatprep.subr.mxu0 0.0
        %5241 = vmatpush1.msra.mxu0 0.0
        %5242 = vmatprep.subr.mxu0 0.0
        %5243 = vmatpush1.msra.mxu0 0.0
        %5244 = vmatprep.subr.mxu0 0.0
        %5245 = vmatpush1.msra.mxu0 0.0
        %5246 = vmatprep.subr.mxu0 0.0
        %5247 = vmatpush1.msra.mxu0 0.0
        %5248 = vmatprep.subr.mxu0 0.0
        %5249 = vmatpush1.msra.mxu0 0.0
        %5250 = vmatprep.subr.mxu0 0.0
        %5251 = vmatpush1.msra.mxu0 0.0
        %5252 = vmatprep.subr.mxu0 0.0
        %5253 = vmatpush1.msra.mxu0 0.0
        %5254 = vmatprep.subr.mxu0 0.0
        %5255 = vmatpush1.msra.mxu0 0.0
        %5256 = vmatprep.subr.mxu0 0.0
        %5257 = vmatpush1.msra.mxu0 0.0
        %5258 = vmatprep.subr.mxu0 0.0
        %5259 = vmatpush1.msra.mxu0 0.0
        %5260 = vmatprep.subr.mxu0 0.0
        %5261 = vmatpush1.msra.mxu0 0.0
        %5262 = vmatprep.subr.mxu0 0.0
        %5263 = vmatpush1.msra.mxu0 0.0
        %5264 = vmatprep.subr.mxu0 0.0
        %5265 = vmatpush1.msra.mxu0 0.0
        %5266 = vmatprep.subr.mxu0 0.0
        %5267 = vmatpush1.msra.mxu0 0.0
        %5268 = vmatprep.subr.mxu0 0.0
        %5269 = vmatpush1.msra.mxu0 0.0
        %5270 = vmatprep.mubr.f32.mxu0 0.0
        %5271 = vmatmul.mubr.f32.gmra.mrb[0].mxu0 %v5204
        %v5272 = vpop.f32.mrb[0].mxu0
        %v5273 = vadd.f32 0.0, %v5272
        %v5274 = vpop.f32.mrb[0].mxu0
        %5275 = vdwg.mxu0
        %v5276 = vadd.f32 %v5037, %v5273
        %v5278 = vlaneseq
        %v5279 = vshrl.u32 %v5278, 7
        %v5280 = vsub.s32 0, %v5279
        %v5281 = vrot.slane %v4155, %v5280
        %v5283 = vadd.f32 %v5276, %v5281
        %v5284 = vadd.f32 %v4141, %v5283
        %v5285 = vsel %vm633, %v5284, 0.0
        %5286 = vadd.xlane.f32.xlu0 %v5285
        %v5287 = vpop.xlane.xlu0 %5286
        %v5288 = vmul.f32 %v5287, %v1674
        %v5289 = vsub.f32 %v5284, %v5288
        %v5290 = vmul.f32 %v5289, %v5289
        %v5291 = vsel %vm633, %v5290, 0.0
        %5292 = vadd.xlane.f32.xlu0 %v5291
        %v5293 = vpop.xlane.xlu0 %5292
        %v5294 = vmul.f32 %v5293, %v1674
        %v5295 = vadd.f32 %v5294, 1e-05
        %v5296 = vrsqrt.pop %v5295
        %v5297 = vmul.f32 %v5289, %v5296
        %v5298 = vlaneseq
        %v5299 = vshrl.u32 %v5298, 7
        %v5300 = vsub.s32 1, %v5299
        %v5301 = vrot.slane %v3060, %v5300
        %v5302 = vmul.f32 %v5297, %v5301
        %v5303 = vlaneseq
        %v5304 = vshrl.u32 %v5303, 7
        %v5305 = vsub.s32 1, %v5304
        %v5306 = vrot.slane %v3062, %v5305
        %v5307 = vadd.f32 %v5302, %v5306
        %s5308 = scalar_lea.vmem %s7, 32
        %v5309 = vld [vmem:[%s5308] sm:$0xff]
        %v5310 = vld [vmem:[%s5308 + $0x8] sm:$0xff]
        %v5311 = vld [vmem:[%s5308 + $0x10] sm:$0xff]
        %v5312 = vld [vmem:[%s5308 + $0x18] sm:$0xff]
        %s5313 = scalar_lea.vmem %s8, 1
        %v5314 = vld [vmem:[%s5313] sm:$0x1]
        %v5316 = vlaneseq
        %v5317 = vshrl.u32 %v5316, 7
        %v5318 = vsub.s32 0, %v5317
        %v5319 = vrot.slane %v5314, %v5318
        %v5322 = vsel %vm633, %v5307, 0
        %5324 = vmatprep.subr.mxu0 0.0
        %5325 = vmatpush1.msra.mxu0 %v5309
        %5326 = vmatprep.subr.mxu0 0.0
        %5327 = vmatpush1.msra.mxu0 %v5310
        %5328 = vmatprep.subr.mxu0 0.0
        %5329 = vmatpush1.msra.mxu0 %v5311
        %5330 = vmatprep.subr.mxu0 0.0
        %5331 = vmatpush1.msra.mxu0 %v5312
        %5332 = vmatprep.subr.mxu0 0.0
        %5333 = vmatpush1.msra.mxu0 0.0
        %5334 = vmatprep.subr.mxu0 0.0
        %5335 = vmatpush1.msra.mxu0 0.0
        %5336 = vmatprep.subr.mxu0 0.0
        %5337 = vmatpush1.msra.mxu0 0.0
        %5338 = vmatprep.subr.mxu0 0.0
        %5339 = vmatpush1.msra.mxu0 0.0
        %5340 = vmatprep.subr.mxu0 0.0
        %5341 = vmatpush1.msra.mxu0 0.0
        %5342 = vmatprep.subr.mxu0 0.0
        %5343 = vmatpush1.msra.mxu0 0.0
        %5344 = vmatprep.subr.mxu0 0.0
        %5345 = vmatpush1.msra.mxu0 0.0
        %5346 = vmatprep.subr.mxu0 0.0
        %5347 = vmatpush1.msra.mxu0 0.0
        %5348 = vmatprep.subr.mxu0 0.0
        %5349 = vmatpush1.msra.mxu0 0.0
        %5350 = vmatprep.subr.mxu0 0.0
        %5351 = vmatpush1.msra.mxu0 0.0
        %5352 = vmatprep.subr.mxu0 0.0
        %5353 = vmatpush1.msra.mxu0 0.0
        %5354 = vmatprep.subr.mxu0 0.0
        %5355 = vmatpush1.msra.mxu0 0.0
        %5356 = vmatprep.subr.mxu0 0.0
        %5357 = vmatpush1.msra.mxu0 0.0
        %5358 = vmatprep.subr.mxu0 0.0
        %5359 = vmatpush1.msra.mxu0 0.0
        %5360 = vmatprep.subr.mxu0 0.0
        %5361 = vmatpush1.msra.mxu0 0.0
        %5362 = vmatprep.subr.mxu0 0.0
        %5363 = vmatpush1.msra.mxu0 0.0
        %5364 = vmatprep.subr.mxu0 0.0
        %5365 = vmatpush1.msra.mxu0 0.0
        %5366 = vmatprep.subr.mxu0 0.0
        %5367 = vmatpush1.msra.mxu0 0.0
        %5368 = vmatprep.subr.mxu0 0.0
        %5369 = vmatpush1.msra.mxu0 0.0
        %5370 = vmatprep.subr.mxu0 0.0
        %5371 = vmatpush1.msra.mxu0 0.0
        %5372 = vmatprep.subr.mxu0 0.0
        %5373 = vmatpush1.msra.mxu0 0.0
        %5374 = vmatprep.subr.mxu0 0.0
        %5375 = vmatpush1.msra.mxu0 0.0
        %5376 = vmatprep.subr.mxu0 0.0
        %5377 = vmatpush1.msra.mxu0 0.0
        %5378 = vmatprep.subr.mxu0 0.0
        %5379 = vmatpush1.msra.mxu0 0.0
        %5380 = vmatprep.subr.mxu0 0.0
        %5381 = vmatpush1.msra.mxu0 0.0
        %5382 = vmatprep.subr.mxu0 0.0
        %5383 = vmatpush1.msra.mxu0 0.0
        %5384 = vmatprep.subr.mxu0 0.0
        %5385 = vmatpush1.msra.mxu0 0.0
        %5386 = vmatprep.subr.mxu0 0.0
        %5387 = vmatpush1.msra.mxu0 0.0
        %5388 = vmatprep.mubr.f32.mxu0 0.0
        %5389 = vmatmul.mubr.f32.gmra.mrb[0].mxu0 %v5322
        %v5390 = vpop.f32.mrb[0].mxu0
        %v5391 = vadd.f32 %v5319, %v5390
        %v5392 = vpop.f32.mrb[0].mxu0
        %5393 = vdwg.mxu0
        %v5394 = vmax.f32 %v5391, 0.0
        %s5395 = scalar_lea.vmem %s9, 64
        %v5396 = vld [vmem:[%s5395] sm:$0xff]
        %v5397 = vld [vmem:[%s5395 + $0x8] sm:$0xff]
        %v5398 = vld [vmem:[%s5395 + $0x10] sm:$0xff]
        %v5399 = vld [vmem:[%s5395 + $0x18] sm:$0xff]
        %v5400 = vld [vmem:[%s5395 + $0x20] sm:$0xff]
        %v5401 = vld [vmem:[%s5395 + $0x28] sm:$0xff]
        %v5402 = vld [vmem:[%s5395 + $0x30] sm:$0xff]
        %v5403 = vld [vmem:[%s5395 + $0x38] sm:$0xff]
        %s5404 = scalar_lea.vmem %s10, 1
        %v5405 = vld [vmem:[%s5404] sm:$0x1]
        %v5407 = vlaneseq
        %v5408 = vshrl.u32 %v5407, 7
        %v5409 = vsub.s32 0, %v5408
        %v5410 = vrot.slane %v5405, %v5409
        %v5413 = vsel %vm2961, %v5394, 0
        %5415 = vmatprep.subr.mxu0 0.0
        %5416 = vmatpush1.msra.mxu0 %v5396
        %5417 = vmatprep.subr.mxu0 0.0
        %5418 = vmatpush1.msra.mxu0 %v5397
        %5419 = vmatprep.subr.mxu0 0.0
        %5420 = vmatpush1.msra.mxu0 %v5398
        %5421 = vmatprep.subr.mxu0 0.0
        %5422 = vmatpush1.msra.mxu0 %v5399
        %5423 = vmatprep.subr.mxu0 0.0
        %5424 = vmatpush1.msra.mxu0 %v5400
        %5425 = vmatprep.subr.mxu0 0.0
        %5426 = vmatpush1.msra.mxu0 %v5401
        %5427 = vmatprep.subr.mxu0 0.0
        %5428 = vmatpush1.msra.mxu0 %v5402
        %5429 = vmatprep.subr.mxu0 0.0
        %5430 = vmatpush1.msra.mxu0 %v5403
        %5431 = vmatprep.subr.mxu0 0.0
        %5432 = vmatpush1.msra.mxu0 0.0
        %5433 = vmatprep.subr.mxu0 0.0
        %5434 = vmatpush1.msra.mxu0 0.0
        %5435 = vmatprep.subr.mxu0 0.0
        %5436 = vmatpush1.msra.mxu0 0.0
        %5437 = vmatprep.subr.mxu0 0.0
        %5438 = vmatpush1.msra.mxu0 0.0
        %5439 = vmatprep.subr.mxu0 0.0
        %5440 = vmatpush1.msra.mxu0 0.0
        %5441 = vmatprep.subr.mxu0 0.0
        %5442 = vmatpush1.msra.mxu0 0.0
        %5443 = vmatprep.subr.mxu0 0.0
        %5444 = vmatpush1.msra.mxu0 0.0
        %5445 = vmatprep.subr.mxu0 0.0
        %5446 = vmatpush1.msra.mxu0 0.0
        %5447 = vmatprep.subr.mxu0 0.0
        %5448 = vmatpush1.msra.mxu0 0.0
        %5449 = vmatprep.subr.mxu0 0.0
        %5450 = vmatpush1.msra.mxu0 0.0
        %5451 = vmatprep.subr.mxu0 0.0
        %5452 = vmatpush1.msra.mxu0 0.0
        %5453 = vmatprep.subr.mxu0 0.0
        %5454 = vmatpush1.msra.mxu0 0.0
        %5455 = vmatprep.subr.mxu0 0.0
        %5456 = vmatpush1.msra.mxu0 0.0
        %5457 = vmatprep.subr.mxu0 0.0
        %5458 = vmatpush1.msra.mxu0 0.0
        %5459 = vmatprep.subr.mxu0 0.0
        %5460 = vmatpush1.msra.mxu0 0.0
        %5461 = vmatprep.subr.mxu0 0.0
        %5462 = vmatpush1.msra.mxu0 0.0
        %5463 = vmatprep.subr.mxu0 0.0
        %5464 = vmatpush1.msra.mxu0 0.0
        %5465 = vmatprep.subr.mxu0 0.0
        %5466 = vmatpush1.msra.mxu0 0.0
        %5467 = vmatprep.subr.mxu0 0.0
        %5468 = vmatpush1.msra.mxu0 0.0
        %5469 = vmatprep.subr.mxu0 0.0
        %5470 = vmatpush1.msra.mxu0 0.0
        %5471 = vmatprep.subr.mxu0 0.0
        %5472 = vmatpush1.msra.mxu0 0.0
        %5473 = vmatprep.subr.mxu0 0.0
        %5474 = vmatpush1.msra.mxu0 0.0
        %5475 = vmatprep.subr.mxu0 0.0
        %5476 = vmatpush1.msra.mxu0 0.0
        %5477 = vmatprep.subr.mxu0 0.0
        %5478 = vmatpush1.msra.mxu0 0.0
        %5479 = vmatprep.mubr.f32.mxu0 0.0
        %5480 = vmatmul.mubr.f32.gmra.mrb[0].mxu0 %v5413
        %v5481 = vpop.f32.mrb[0].mxu0
        %v5482 = vadd.f32 %v5410, %v5481
        %v5483 = vpop.f32.mrb[0].mxu0
        %5484 = vdwg.mxu0
        %v5485 = vadd.f32 %v5307, %v5482
        %v5486 = vsel %vm633, %v5485, 0.0
        %5487 = vadd.xlane.f32.xlu0 %v5486
        %v5488 = vpop.xlane.xlu0 %5487
        %v5489 = vmul.f32 %v5488, %v1674
        %v5490 = vsub.f32 %v5485, %v5489
        %v5491 = vmul.f32 %v5490, %v5490
        %v5492 = vsel %vm633, %v5491, 0.0
        %5493 = vadd.xlane.f32.xlu0 %v5492
        %v5494 = vpop.xlane.xlu0 %5493
        %v5495 = vmul.f32 %v5494, %v1674
        %v5496 = vadd.f32 %v5495, 1e-05
        %v5497 = vrsqrt.pop %v5496
        %v5498 = vmul.f32 %v5490, %v5497
        %v5499 = vlaneseq
        %v5500 = vshrl.u32 %v5499, 7
        %v5501 = vsub.s32 2, %v5500
        %v5502 = vrot.slane %v3060, %v5501
        %v5503 = vmul.f32 %v5498, %v5502
        %v5504 = vlaneseq
        %v5505 = vshrl.u32 %v5504, 7
        %v5506 = vsub.s32 2, %v5505
        %v5507 = vrot.slane %v3062, %v5506
        %v5508 = vadd.f32 %v5503, %v5507
        %v5509 = vld [vmem:[%s13] sm:$0xff]
        %v5510 = vld [vmem:[%s13 + $0x8] sm:$0xff]
        %v5511 = vld [vmem:[%s13 + $0x10] sm:$0xff]
        %v5512 = vld [vmem:[%s13 + $0x18] sm:$0xff]
        %v5513 = vld [vmem:[%s14] sm:$0x1]
        %v5515 = vlaneseq
        %v5516 = vshrl.u32 %v5515, 7
        %v5517 = vsub.s32 0, %v5516
        %v5518 = vrot.slane %v5513, %v5517
        %v5521 = vsel %vm633, %v5508, 0
        %5523 = vmatprep.subr.mxu0 0.0
        %5524 = vmatpush1.msra.mxu0 %v5509
        %5525 = vmatprep.subr.mxu0 0.0
        %5526 = vmatpush1.msra.mxu0 %v5510
        %5527 = vmatprep.subr.mxu0 0.0
        %5528 = vmatpush1.msra.mxu0 %v5511
        %5529 = vmatprep.subr.mxu0 0.0
        %5530 = vmatpush1.msra.mxu0 %v5512
        %5531 = vmatprep.subr.mxu0 0.0
        %5532 = vmatpush1.msra.mxu0 0.0
        %5533 = vmatprep.subr.mxu0 0.0
        %5534 = vmatpush1.msra.mxu0 0.0
        %5535 = vmatprep.subr.mxu0 0.0
        %5536 = vmatpush1.msra.mxu0 0.0
        %5537 = vmatprep.subr.mxu0 0.0
        %5538 = vmatpush1.msra.mxu0 0.0
        %5539 = vmatprep.subr.mxu0 0.0
        %5540 = vmatpush1.msra.mxu0 0.0
        %5541 = vmatprep.subr.mxu0 0.0
        %5542 = vmatpush1.msra.mxu0 0.0
        %5543 = vmatprep.subr.mxu0 0.0
        %5544 = vmatpush1.msra.mxu0 0.0
        %5545 = vmatprep.subr.mxu0 0.0
        %5546 = vmatpush1.msra.mxu0 0.0
        %5547 = vmatprep.subr.mxu0 0.0
        %5548 = vmatpush1.msra.mxu0 0.0
        %5549 = vmatprep.subr.mxu0 0.0
        %5550 = vmatpush1.msra.mxu0 0.0
        %5551 = vmatprep.subr.mxu0 0.0
        %5552 = vmatpush1.msra.mxu0 0.0
        %5553 = vmatprep.subr.mxu0 0.0
        %5554 = vmatpush1.msra.mxu0 0.0
        %5555 = vmatprep.subr.mxu0 0.0
        %5556 = vmatpush1.msra.mxu0 0.0
        %5557 = vmatprep.subr.mxu0 0.0
        %5558 = vmatpush1.msra.mxu0 0.0
        %5559 = vmatprep.subr.mxu0 0.0
        %5560 = vmatpush1.msra.mxu0 0.0
        %5561 = vmatprep.subr.mxu0 0.0
        %5562 = vmatpush1.msra.mxu0 0.0
        %5563 = vmatprep.subr.mxu0 0.0
        %5564 = vmatpush1.msra.mxu0 0.0
        %5565 = vmatprep.subr.mxu0 0.0
        %5566 = vmatpush1.msra.mxu0 0.0
        %5567 = vmatprep.subr.mxu0 0.0
        %5568 = vmatpush1.msra.mxu0 0.0
        %5569 = vmatprep.subr.mxu0 0.0
        %5570 = vmatpush1.msra.mxu0 0.0
        %5571 = vmatprep.subr.mxu0 0.0
        %5572 = vmatpush1.msra.mxu0 0.0
        %5573 = vmatprep.subr.mxu0 0.0
        %5574 = vmatpush1.msra.mxu0 0.0
        %5575 = vmatprep.subr.mxu0 0.0
        %5576 = vmatpush1.msra.mxu0 0.0
        %5577 = vmatprep.subr.mxu0 0.0
        %5578 = vmatpush1.msra.mxu0 0.0
        %5579 = vmatprep.subr.mxu0 0.0
        %5580 = vmatpush1.msra.mxu0 0.0
        %5581 = vmatprep.subr.mxu0 0.0
        %5582 = vmatpush1.msra.mxu0 0.0
        %5583 = vmatprep.subr.mxu0 0.0
        %5584 = vmatpush1.msra.mxu0 0.0
        %5585 = vmatprep.subr.mxu0 0.0
        %5586 = vmatpush1.msra.mxu0 0.0
        %5587 = vmatprep.mubr.f32.mxu0 0.0
        %5588 = vmatmul.mubr.f32.gmra.mrb[0].mxu0 %v5521
        %v5589 = vpop.f32.mrb[0].mxu0
        %v5590 = vadd.f32 %v5518, %v5589
        %v5591 = vpop.f32.mrb[0].mxu0
        %5592 = vdwg.mxu0
        %v5593 = vsel %vm2961, %v5590, -inf
        %5594 = vmax.xlane.f32.xlu0 %v5593
        %v5595 = vpop.xlane.xlu0 %5594
        %v5596 = vsub.f32 %v5590, %v5595
        %v5597 = vmul.f32 %v5596, 1.442695
        %v5598 = vpow.pop %v5597
        %v5599 = vsel %vm2961, %v5598, 0.0
        %5600 = vadd.xlane.f32.xlu0 %v5599
        %v5601 = vpop.xlane.xlu0 %5600
        %v5602 = vrcp.pop %v5601
        %v5603 = vmul.f32 %v5598, %v5602
        %5604 = vst.msk [vmem:[%s609] sm:$0xff] %vm2961, %v5603
        %s5605 = sand.u32 %s374, 1
        %s5606 = scalar_lea.sflag [#allocation4], %s5605
        %s5607 = sand.u32 %s374, 1
        %s5608 = smul.addr %s5607, 8
        %s5609 = scalar_lea.vmem [#allocation11], %s5608
        // Predicated region
        $region101: #{tpu_custom_call.1} parent=79 // pred_check
          %p5610 = pneg %p384
        $region102: #{tpu_custom_call.1} parent=79 // pred_check_branch
          %5612 = sbr.rel (%p5610) target = $region104
        $region103: #{tpu_custom_call.1} parent=79 // pred_region
          %s5614 = ssub.s32 128, 128
          %5615 = vsyncadd %s5606, %s5614
          %s5616 = smul.addr %s36, 128
          %s5617 = scalar_lea.hbm %s15, %s5616
          %s5619 = sshll.u32 %s5609, 4
          %s5620 = int_to_ptr.vmem [resolvable:$true] %s5619
          %5622 = dma.vmem_to_hbm [thread:$0]  %s5620, 128, %s5617, %s5606
        $region104: #{tpu_custom_call.1} parent=79 // pred_fallthru
          _
      $region80: #{tpu_custom_call.1} parent=5 // pred_fallthru
        _
      %p5623 = scmp.le.s32.totalorder 2, %s31
      // Predicated region
      $region105: #{tpu_custom_call.1} parent=5 // pred_check
        %p5624 = pneg %p5623
      $region106: #{tpu_custom_call.1} parent=5 // pred_check_branch
        %5626 = sbr.rel (%p5624) target = $region108
      $region107: #{tpu_custom_call.1} parent=5 // pred_region
        %s5627 = ssub.s32 %s31, 2
        // Predicated region
        $region109: #{tpu_custom_call.1} parent=107 // pred_check
          %p5628 = pneg %p390
        $region110: #{tpu_custom_call.1} parent=107 // pred_check_branch
          %5630 = sbr.rel (%p5628) target = $region112
        $region111: #{tpu_custom_call.1} parent=107 // pred_region
          %s5631 = sand.u32 %s375, 1
          %s5632 = scalar_lea.sflag [#allocation4], %s5631
          %s5633 = sand.u32 %s375, 1
          %s5634 = smul.addr %s5633, 8
          %s5635 = scalar_lea.vmem [#allocation11], %s5634
          %5636 = dma.done %s5632, 128
        $region112: #{tpu_custom_call.1} parent=107 // pred_fallthru
          _
      $region108: #{tpu_custom_call.1} parent=5 // pred_fallthru
        _
    $region6: #{tpu_custom_call.1} parent=1 // loop_footer
      %s35 = sadd.s32 1, %s31
    $region7: #{tpu_custom_call.1} parent=1 // loop_footer_branch
      %30 = sbr.rel target = $region3
    $region8: #{tpu_custom_call.1} parent=1 // loop_exit
      _
    %5637 = vsyncpa [#allocation3], 1
    %s5638 = scalar_lea.sflag [#allocation3], 1
    %5639 = vsyncpa %s5638, 1
    %5640 = vsyncpa [#allocation6], 1
    %s5641 = scalar_lea.sflag [#allocation6], 1
    %5642 = vsyncpa %s5641, 1
    %5643 = vsyncpa [#allocation9], 1
    %5644 = vsyncpa [#allocation4], 1
    %s5645 = scalar_lea.sflag [#allocation4], 1
    %5646 = vsyncpa %s5645, 1

</llo_original>
